<compile_context>
chip_gen: v5e
topology: v5e:2x2
jax: 0.10.0
libtpu: 0.0.40
codegen_flags: <defaults>
</compile_context>

<pallas_src>
import jax
import jax.numpy as jnp
from jax.experimental import pallas as pl
from jax.experimental.pallas import tpu as pltpu


# ----------------------------- hardware-aware constants -----------------------------

def _device_kind():
    try:
        return jax.devices()[0].device_kind.lower()
    except Exception:
        return ""


_KIND = _device_kind()
_IS_V7 = "v7" in _KIND
# bf16 EUP exists on v6e/v7x only (v5e has no bf16 transcendentals)
_USE_BF16_EXP = ("v6" in _KIND) or _IS_V7
# 64 MiB physical VMEM on v7x -> keep headroom; 128 MiB on v5e/v6e
_VMEM_LIMIT = (48 if _IS_V7 else 96 if ("v5" in _KIND or "v6" in _KIND) else 48) * 1024 * 1024
_TM_PREF = 256 if _IS_V7 else 512


# ----------------------------- small helpers -----------------------------

def _round_up(v, m):
    return ((v + m - 1) // m) * m


def _tile(dim, pref, align):
    """Largest multiple of `align` that divides `dim` and is <= pref (else full dim)."""
    if dim <= pref or dim % align:
        return dim
    t = (pref // align) * align
    while t >= align:
        if dim % t == 0:
            return t
        t -= align
    return dim


def _erf(x):
    # Abramowitz & Stegun 7.1.26 (|err| <= 1.5e-7) -- effectively exact in f32,
    # built only from ops guaranteed to lower in Mosaic (abs/exp/mul/where).
    a1, a2, a3, a4, a5 = (0.254829592, -0.284496736, 1.421413741,
                          -1.453152027, 1.061405429)
    ax = jnp.abs(x)
    t = 1.0 / (1.0 + 0.3275911 * ax)
    poly = ((((a5 * t + a4) * t + a3) * t + a2) * t + a1) * t
    y = 1.0 - poly * jnp.exp(-ax * ax)
    return jnp.where(x >= 0, y, -y)


def _gelu_exact(x):
    # erf-based GELU: matches timm / torch.nn.GELU() (not the tanh approximation)
    return 0.5 * x * (1.0 + _erf(x * 0.7071067811865476))


def _layernorm(x, g, b, eps):
    mu = jnp.mean(x, axis=-1, keepdims=True)
    var = jnp.mean(jnp.square(x - mu), axis=-1, keepdims=True)
    return (x - mu) * jax.lax.rsqrt(var + eps) * g + b


# ----------------------------- tiled fused linear -----------------------------

def _make_single_k_kernel(*, has_ln, ln_eps, act, has_ls, has_res):
    """One MXU pass per (i, j) tile -- no accumulator scratch needed."""
    def kernel(*refs):
        it = iter(refs)
        x_ref, w_ref, b_ref = next(it), next(it), next(it)
        g_ref = next(it) if has_ln else None
        gb_ref = next(it) if has_ln else None
        ls_ref = next(it) if has_ls else None
        r_ref = next(it) if has_res else None
        o_ref = next(it)
        xln_ref = next(it) if has_ln else None

        if has_ln:
            # LN'd + bf16-cast row tile is computed once per row tile (j == 0)
            # and reused for every N tile (j axis is "arbitrary" => sequential).
            @pl.when(pl.program_id(1) == 0)
            def _ln():
                xv = x_ref[...].astype(jnp.float32)
                xln_ref[...] = _layernorm(xv, g_ref[...], gb_ref[...],
                                          ln_eps).astype(jnp.bfloat16)
            xb = xln_ref[...]
        else:
            xb = x_ref[...]
            if xb.dtype != jnp.bfloat16:
                xb = xb.astype(jnp.bfloat16)

        y = jnp.dot(xb, w_ref[...], preferred_element_type=jnp.float32)
        y = y + b_ref[...].astype(jnp.float32)
        if act == 'gelu':
            y = _gelu_exact(y)
        if has_ls:
            y = y * ls_ref[...].astype(jnp.float32)
        if has_res:
            y = y + r_ref[...].astype(jnp.float32)
        o_ref[...] = y.astype(o_ref.dtype)
    return kernel


def _make_multi_k_kernel(*, act, has_ls, has_res):
    """K-tiled matmul with f32 VMEM accumulator and pl.when init/finalize."""
    def kernel(*refs):
        it = iter(refs)
        x_ref, w_ref, b_ref = next(it), next(it), next(it)
        ls_ref = next(it) if has_ls else None
        r_ref = next(it) if has_res else None
        o_ref = next(it)
        acc_ref = next(it)

        @pl.when(pl.program_id(2) == 0)
        def _init():
            acc_ref[...] = jnp.zeros_like(acc_ref)

        xb = x_ref[...]
        if xb.dtype != jnp.bfloat16:
            xb = xb.astype(jnp.bfloat16)
        acc_ref[...] += jnp.dot(xb, w_ref[...], preferred_element_type=jnp.float32)

        @pl.when(pl.program_id(2) == pl.num_programs(2) - 1)
        def _finalize():
            y = acc_ref[...] + b_ref[...].astype(jnp.float32)
            if act == 'gelu':
                y = _gelu_exact(y)
            if has_ls:
                y = y * ls_ref[...].astype(jnp.float32)
            if has_res:
                y = y + r_ref[...].astype(jnp.float32)
            o_ref[...] = y.astype(o_ref.dtype)
    return kernel


def pallas_linear(x, w, b, *, ln=None, ln_eps=1e-6, act=None, ls=None,
                  residual=None, out_dtype=jnp.float32,
                  tm_pref=None, tn_pref=512, tk_pref=512):
    """y = [residual +] [ls *] act(LN(x) @ w + b) as one tiled Pallas matmul.

    `w` is bf16; the matmul runs on the MXU with f32 accumulation.  Rows are
    zero-padded to a tile multiple (never degenerates to a full-M block) and
    sliced back afterwards.  With an LN prologue the K axis is not tiled (LN
    needs the full feature row) and the LN result is cached across N tiles.
    """
    if tm_pref is None:
        tm_pref = _TM_PREF
    M, K = x.shape
    N = w.shape[1]
    has_ln = ln is not None
    has_ls = ls is not None
    has_res = residual is not None

    tm = min(tm_pref, _round_up(M, 8))
    Mp = _round_up(M, tm)
    if Mp != M:                       # zero-pad rows -> tiling/pipelining at any M
        x = jnp.pad(x, ((0, Mp - M), (0, 0)))
        if has_res:
            residual = jnp.pad(residual, ((0, Mp - M), (0, 0)))
    tn = _tile(N, tn_pref, 128)
    tk = K if has_ln else _tile(K, tk_pref, 128)
    gm, gn, gk = Mp // tm, N // tn, K // tk

    bytes_acc = (x.dtype.itemsize * Mp * K + w.dtype.itemsize * K * N + 4 * N
                 + jnp.dtype(out_dtype).itemsize * Mp * N)
    if has_res:
        bytes_acc += residual.dtype.itemsize * Mp * N
    if has_ls:
        bytes_acc += 4 * N
    if has_ln:
        bytes_acc += 8 * K
    cost = pl.CostEstimate(flops=int(2 * Mp * N * K),
                           transcendentals=int(Mp * N if act == 'gelu' else 0),
                           bytes_accessed=int(bytes_acc))

    if gk == 1:
        in_specs = [pl.BlockSpec((tm, K), lambda i, j: (i, 0)),
                    pl.BlockSpec((K, tn), lambda i, j: (0, j)),
                    pl.BlockSpec((1, tn), lambda i, j: (0, j))]
        args = [x, w, b.reshape(1, N)]
        if has_ln:
            g, gb = ln
            in_specs += [pl.BlockSpec((1, K), lambda i, j: (0, 0)),
                         pl.BlockSpec((1, K), lambda i, j: (0, 0))]
            args += [g.reshape(1, K), gb.reshape(1, K)]
        if has_ls:
            in_specs.append(pl.BlockSpec((1, tn), lambda i, j: (0, j)))
            args.append(ls.reshape(1, N))
        if has_res:
            in_specs.append(pl.BlockSpec((tm, tn), lambda i, j: (i, j)))
            args.append(residual)
        kernel = _make_single_k_kernel(has_ln=has_ln, ln_eps=ln_eps, act=act,
                                       has_ls=has_ls, has_res=has_res)
        out = pl.pallas_call(
            kernel,
            out_shape=jax.ShapeDtypeStruct((Mp, N), out_dtype),
            grid=(gm, gn),
            in_specs=in_specs,
            out_specs=pl.BlockSpec((tm, tn), lambda i, j: (i, j)),
            scratch_shapes=[pltpu.VMEM((tm, K), jnp.bfloat16)] if has_ln else [],
            compiler_params=pltpu.CompilerParams(
                dimension_semantics=(("parallel", "arbitrary") if has_ln
                                     else ("parallel", "parallel")),
                vmem_limit_bytes=_VMEM_LIMIT),
            cost_estimate=cost,
        )(*args)
    else:
        in_specs = [pl.BlockSpec((tm, tk), lambda i, j, k: (i, k)),
                    pl.BlockSpec((tk, tn), lambda i, j, k: (k, j)),
                    pl.BlockSpec((1, tn), lambda i, j, k: (0, j))]
        args = [x, w, b.reshape(1, N)]
        if has_ls:
            in_specs.append(pl.BlockSpec((1, tn), lambda i, j, k: (0, j)))
            args.append(ls.reshape(1, N))
        if has_res:
            in_specs.append(pl.BlockSpec((tm, tn), lambda i, j, k: (i, j)))
            args.append(residual)
        kernel = _make_multi_k_kernel(act=act, has_ls=has_ls, has_res=has_res)
        out = pl.pallas_call(
            kernel,
            out_shape=jax.ShapeDtypeStruct((Mp, N), out_dtype),
            grid=(gm, gn, gk),
            in_specs=in_specs,
            out_specs=pl.BlockSpec((tm, tn), lambda i, j, k: (i, j)),
            scratch_shapes=[pltpu.VMEM((tm, tn), jnp.float32)],
            compiler_params=pltpu.CompilerParams(
                dimension_semantics=("parallel", "parallel", "arbitrary"),
                vmem_limit_bytes=_VMEM_LIMIT),
            cost_estimate=cost,
        )(*args)
    return out[:M] if Mp != M else out


# ----------------------------- fused attention core -----------------------------

def _make_attn_core_kernel(group_heads, dh, use_bf16_exp):
    gd = group_heads * dh
    scale = 1.0 / float(dh) ** 0.5

    def kernel(qkv_ref, o_ref):
        blk = qkv_ref[0]                                      # [T, 3*gd] bf16
        outs = []
        for h in range(group_heads):
            # 1/sqrt(dh) folded into q (T*dh mults, not T*T)
            q = (blk[:, h * dh:(h + 1) * dh].astype(jnp.float32) * scale
                 ).astype(jnp.bfloat16)
            k = blk[:, gd + h * dh: gd + (h + 1) * dh]
            v = blk[:, 2 * gd + h * dh: 2 * gd + (h + 1) * dh]
            # q @ k^T via dot_general contracting on head_dim (no XLU transpose)
            s = jax.lax.dot_general(q, k, (((1,), (1,)), ((), ())),
                                    preferred_element_type=jnp.float32)
            z = s - jnp.max(s, axis=-1, keepdims=True)
            if use_bf16_exp:                                  # bf16 EUP (v6e/v7x only)
                z = z.astype(jnp.bfloat16)
            p = jnp.exp(z)
            denom = jnp.sum(p.astype(jnp.float32), axis=-1, keepdims=True)
            o = jnp.dot(p.astype(jnp.bfloat16), v,
                        preferred_element_type=jnp.float32)
            # normalize the [T, dh] output, not the [T, T] score matrix
            outs.append(o * pl.reciprocal(denom, approx=True))
        out = outs[0] if group_heads == 1 else jnp.concatenate(outs, axis=-1)
        o_ref[0] = out.astype(o_ref.dtype)
    return kernel


def attention_core(qkv, heads, *, use_bf16_exp, out_dtype=jnp.bfloat16):
    """Softmax attention core over pre-computed qkv.

    qkv is [B, T, 3*D] in the grouped (head-pair, q|k|v, head-in-pair, dh)
    column layout; grid = (batch, head-pair) so the output block is 128-lane
    dense and the second TensorCore stays busy even when B == 1.
    """
    B, T, threeD = qkv.shape
    D = threeD // 3
    dh = D // heads
    gh = 2 if heads % 2 == 0 else heads       # pair heads (all real configs are even)
    G = heads // gh
    gd = gh * dh
    return pl.pallas_call(
        _make_attn_core_kernel(gh, dh, use_bf16_exp),
        out_shape=jax.ShapeDtypeStruct((B, T, D), out_dtype),
        grid=(B, G),
        in_specs=[pl.BlockSpec((1, T, 3 * gd), lambda bidx, g: (bidx, 0, g))],
        out_specs=pl.BlockSpec((1, T, gd), lambda bidx, g: (bidx, 0, g)),
        compiler_params=pltpu.CompilerParams(
            dimension_semantics=("parallel", "parallel"),
            vmem_limit_bytes=_VMEM_LIMIT),
    )(qkv)


# ----------------------------- standalone layernorm (final norm only) ---------

def _make_layernorm_kernel(eps):
    def kernel(x_ref, g_ref, b_ref, o_ref):
        o_ref[...] = _layernorm(x_ref[...].astype(jnp.float32),
                                g_ref[...], b_ref[...], eps).astype(o_ref.dtype)
    return kernel


def pallas_layernorm(x, g, b, eps):
    M, D = x.shape
    return pl.pallas_call(
        _make_layernorm_kernel(eps),
        out_shape=jax.ShapeDtypeStruct((M, D), jnp.float32),
        grid=(1,),
        in_specs=[pl.BlockSpec((M, D), lambda i: (0, 0)),
                  pl.BlockSpec((1, D), lambda i: (0, 0)),
                  pl.BlockSpec((1, D), lambda i: (0, 0))],
        out_specs=pl.BlockSpec((M, D), lambda i: (0, 0)),
        compiler_params=pltpu.CompilerParams(vmem_limit_bytes=_VMEM_LIMIT),
    )(x, g.reshape(1, D), b.reshape(1, D))


# ----------------------------- transformer block -----------------------------

def transformer_block(x, p, heads, eps, use_bf16_exp):
    # x: [B, T, D] bf16 residual stream
    B, T, D = x.shape
    x2 = x.reshape(B * T, D)
    # (1) LN1 + QKV projection (weights stream from HBM; grouped column layout)
    qkv = pallas_linear(x2, p['qkv_w'], p['qkv_b'],
                        ln=(p['ln1_g'], p['ln1_b']), ln_eps=eps,
                        out_dtype=jnp.bfloat16)
    # (2) fused attention core (scores / softmax / PV), grid = (B, head-pairs)
    attn = attention_core(qkv.reshape(B, T, 3 * D), heads,
                          use_bf16_exp=use_bf16_exp)
    # (3) output projection + LayerScale + residual
    x2 = pallas_linear(attn.reshape(B * T, D), p['proj_w'], p['proj_b'],
                       ls=p['ls1'], residual=x2, out_dtype=jnp.bfloat16)
    # (4) LN2 + fc1 + exact GELU
    h = pallas_linear(x2, p['fc1_w'], p['fc1_b'],
                      ln=(p['ln2_g'], p['ln2_b']), ln_eps=eps,
                      act='gelu', out_dtype=jnp.bfloat16)
    # (5) fc2 (K-accumulated) + LayerScale + residual
    x2 = pallas_linear(h, p['fc2_w'], p['fc2_b'], ls=p['ls2'], residual=x2,
                       out_dtype=jnp.bfloat16)
    return x2.reshape(B, T, D)


# ----------------------------- config & params -----------------------------

class Config:
    # downscaled stand-in shapes (real model in comments)
    tiles = 4            # number of tile images per slide (variable)
    img_size = 32        # real: 224
    in_chans = 3
    patch_size = 16
    tile_dim = 256       # real: 1536
    tile_depth = 2       # real: 40
    tile_heads = 4       # real: 24  (head_dim 64, same as real model)
    tile_mlp_ratio = 5.33334
    tile_ls_init = 1e-5
    slide_dim = 128      # real: 768
    slide_depth = 2      # real: 12
    slide_heads = 2      # real: 12  (head_dim 64)
    slide_mlp_ratio = 4.0


def _regroup_qkv_cols(a, heads, group_heads):
    """Permute qkv output columns from (q|k|v, head, dh) to
    (head-group, q|k|v, head-in-group, dh) so each head-pair is one contiguous,
    128-lane-aligned column block for the attention core.
    With a real checkpoint the same permutation is applied at load time."""
    d3 = a.shape[-1]
    d = d3 // 3
    dh = d // heads
    groups = heads // group_heads
    lead = a.shape[:-1]
    a = a.reshape(lead + (3, groups, group_heads, dh))
    a = jnp.swapaxes(a, -4, -3)
    return a.reshape(lead + (d3,))


def _init_block(key, dim, heads, mlp_hidden, layerscale_init):
    ks = jax.random.split(key, 4)
    std = 0.02
    f32, bf16 = jnp.float32, jnp.bfloat16
    gh = 2 if heads % 2 == 0 else heads
    qkv_w = std * jax.random.normal(ks[0], (dim, 3 * dim), f32)
    qkv_b = jnp.zeros((3 * dim,), f32)
    qkv_w = _regroup_qkv_cols(qkv_w, heads, gh)
    qkv_b = _regroup_qkv_cols(qkv_b, heads, gh)
    return {
        'ln1_g': jnp.ones((dim,), f32),
        'ln1_b': jnp.zeros((dim,), f32),
        'qkv_w': qkv_w.astype(bf16),
        'qkv_b': qkv_b,
        'proj_w': (std * jax.random.normal(ks[1], (dim, dim), f32)).astype(bf16),
        'proj_b': jnp.zeros((dim,), f32),
        'ls1': layerscale_init * jnp.ones((dim,), f32),
        'ln2_g': jnp.ones((dim,), f32),
        'ln2_b': jnp.zeros((dim,), f32),
        'fc1_w': (std * jax.random.normal(ks[2], (dim, mlp_hidden), f32)).astype(bf16),
        'fc1_b': jnp.zeros((mlp_hidden,), f32),
        'fc2_w': (std * jax.random.normal(ks[3], (mlp_hidden, dim), f32)).astype(bf16),
        'fc2_b': jnp.zeros((dim,), f32),
        'ls2': layerscale_init * jnp.ones((dim,), f32),
    }


def init_params(key, cfg):
    nP = (cfg.img_size // cfg.patch_size) ** 2
    # MLP hidden padded to a multiple of 128 for lane-dense stores; padding a
    # real checkpoint with zero fc1 columns/bias is exact (gelu(0) == 0).
    tile_mlp = _round_up(int(cfg.tile_dim * cfg.tile_mlp_ratio), 128)
    slide_mlp = _round_up(int(cfg.slide_dim * cfg.slide_mlp_ratio), 128)
    keys = jax.random.split(key, 5 + cfg.tile_depth + cfg.slide_depth)
    std = 0.02
    f32, bf16 = jnp.float32, jnp.bfloat16
    return {
        'patch_w': (std * jax.random.normal(
            keys[0], (cfg.in_chans * cfg.patch_size ** 2, cfg.tile_dim), f32)).astype(bf16),
        'patch_b': jnp.zeros((cfg.tile_dim,), f32),
        'cls_tok': std * jax.random.normal(keys[1], (1, cfg.tile_dim), f32),
        'pos_emb': std * jax.random.normal(keys[2], (nP + 1, cfg.tile_dim), f32),
        'tile_norm_g': jnp.ones((cfg.tile_dim,), f32),
        'tile_norm_b': jnp.zeros((cfg.tile_dim,), f32),
        'slide_in_w': (std * jax.random.normal(
            keys[3], (cfg.tile_dim, cfg.slide_dim), f32)).astype(bf16),
        'slide_in_b': jnp.zeros((cfg.slide_dim,), f32),
        'slide_cls': std * jax.random.normal(keys[4], (1, cfg.slide_dim), f32),
        'slide_norm_g': jnp.ones((cfg.slide_dim,), f32),
        'slide_norm_b': jnp.zeros((cfg.slide_dim,), f32),
        'tile_blocks': [_init_block(keys[5 + i], cfg.tile_dim, cfg.tile_heads,
                                    tile_mlp, cfg.tile_ls_init)
                        for i in range(cfg.tile_depth)],
        'slide_blocks': [_init_block(keys[5 + cfg.tile_depth + i], cfg.slide_dim,
                                     cfg.slide_heads, slide_mlp, 1.0)
                         for i in range(cfg.slide_depth)],
    }


# ----------------------------- forward pass -----------------------------

def im2col(x, p):
    # NCHW -> [T, num_patches, C*p*p]  (matches Conv2d(kernel=p, stride=p) unfold order)
    T, C, H, W = x.shape
    hp, wp = H // p, W // p
    x = x.reshape(T, C, hp, p, wp, p).transpose(0, 2, 4, 1, 3, 5)
    return x.reshape(T, hp * wp, C * p * p)


def sincos_coord_embed(coords, dim):
    # gigapath-style 2-D sin/cos positional embedding from (x, y) tile coords
    quarter = dim // 4
    omega = 1.0 / (10000.0 ** (jnp.arange(quarter, dtype=jnp.float32) / quarter))
    parts = []
    for axis in range(2):
        ang = coords[:, axis:axis + 1] * omega[None, :]
        parts.append(jnp.sin(ang))
        parts.append(jnp.cos(ang))
    return jnp.concatenate(parts, axis=-1)


def gigapath_slide_forward(params, cfg, x, coords):
    n_tiles = x.shape[0]
    nP = (cfg.img_size // cfg.patch_size) ** 2
    D = cfg.tile_dim

    # ---- tile encoder (timm vit_giant-style ViT, CLS-pooled, num_classes=0) ----
    patches = im2col(x, cfg.patch_size).astype(jnp.bfloat16)             # [T, nP, C*p*p]
    z = pallas_linear(patches.reshape(n_tiles * nP, -1),
                      params['patch_w'], params['patch_b'])              # patch embed (f32)
    z = z.reshape(n_tiles, nP, D)
    cls = jnp.broadcast_to(params['cls_tok'][None], (n_tiles, 1, D))
    h = jnp.concatenate([cls, z], axis=1) + params['pos_emb'][None]      # [T, nP+1, D]
    h = h.astype(jnp.bfloat16)                                           # bf16 residual stream
    for blk in params['tile_blocks']:
        h = transformer_block(h, blk, cfg.tile_heads, eps=1e-6,          # timm ViT eps
                              use_bf16_exp=_USE_BF16_EXP)
    cls_embed = h[:, 0]                                                  # [T, D]
    # final tile LN fused as the prologue of the slide input projection
    s = pallas_linear(cls_embed, params['slide_in_w'], params['slide_in_b'],
                      ln=(params['tile_norm_g'], params['tile_norm_b']), ln_eps=1e-6)

    # ---- slide encoder (gigapath_slide_enc12l768d, simplified) ----
    # TODO(synk): real slide model uses LongNet dilated/segmented attention;
    #             dense attention over all tiles is used here instead.
    s = s + sincos_coord_embed(coords.astype(jnp.float32), cfg.slide_dim)
    s = jnp.concatenate([params['slide_cls'], s], axis=0)[None]          # [1, T+1, Ds]
    s = s.astype(jnp.bfloat16)
    for blk in params['slide_blocks']:
        # TODO(synk): confirm LongNet LayerNorm eps; torch nn.LayerNorm default (1e-5) used.
        s = transformer_block(s, blk, cfg.slide_heads, eps=1e-5,
                              use_bf16_exp=_USE_BF16_EXP)
    s = pallas_layernorm(s[0], params['slide_norm_g'], params['slide_norm_b'], eps=1e-5)
    # reference returns output[0][0, 1:]  -> drop the slide CLS token
    return s[1:]


if __name__ == "__main__":
    cfg = Config()
    key = jax.random.PRNGKey(0)
    kp, kx, kc = jax.random.split(key, 3)
    params = init_params(kp, cfg)
    x = jax.random.normal(kx, (cfg.tiles, cfg.in_chans, cfg.img_size, cfg.img_size),
                          jnp.float32)
    coords = jax.random.uniform(kc, (cfg.tiles, 2), jnp.float32, 0.0, 100.0)

    fwd = jax.jit(lambda p, xx, cc: gigapath_slide_forward(p, cfg, xx, cc))
    out = jax.block_until_ready(fwd(params, x, coords))
    assert out.shape == (cfg.tiles, cfg.slide_dim), out.shape
    assert bool(jnp.all(jnp.isfinite(out)))
    print("KERNEL_OK")
</pallas_src>

<mosaic_0001>
module attributes {stable_mosaic.version = 11 : i64} {
  func.func @kernel(%arg0: i32, %arg1: i32, %arg2: i32, %arg3: memref<16x384xbf16, #tpu.memory_space<vmem>>, %arg4: memref<384x256xbf16, #tpu.memory_space<vmem>>, %arg5: memref<1x256xf32, #tpu.memory_space<vmem>>, %arg6: memref<16x256xf32, #tpu.memory_space<vmem>>, %arg7: memref<16x256xf32, #tpu.memory_space<vmem>>) attributes {dimension_semantics = [#tpu.dimension_semantics<parallel>, #tpu.dimension_semantics<parallel>, #tpu.dimension_semantics<arbitrary>], iteration_bounds = array<i64: 1, 1, 2>, scalar_prefetch = 0 : i64, scratch_operands = 1 : i64, tpu.core_type = #tpu.core_type<tc>, window_params = [{transform_indices = @transform_0, window_bounds = array<i64: 16, 384>}, {transform_indices = @transform_1, window_bounds = array<i64: 384, 256>}, {transform_indices = @transform_2, window_bounds = array<i64: 1, 256>}, {transform_indices = @transform_3, window_bounds = array<i64: 16, 256>}]} {
    %c0_i32 = arith.constant 0 : i32
    %0 = arith.cmpi eq, %arg2, %c0_i32 : i32
    %1 = arith.extui %0 : i1 to i32
    %c0_i32_0 = arith.constant 0 : i32
    %2 = arith.cmpi ne, %1, %c0_i32_0 : i32
    scf.if %2 {
      %cst_9 = arith.constant 0.000000e+00 : f32
      %12 = vector.broadcast %cst_9 : f32 to vector<16x256xf32>
      %c0_10 = arith.constant 0 : index
      %c0_11 = arith.constant 0 : index
      %13 = vector.load %arg7[%c0_10, %c0_11] : memref<16x256xf32, #tpu.memory_space<vmem>>, vector<16x256xf32>
      tpu.vector_store %arg7[%c0_10, %c0_11], %12 {strides = array<i32>} : memref<16x256xf32, #tpu.memory_space<vmem>>, vector<16x256xf32>,
    } else {
    }
    %c0 = arith.constant 0 : index
    %c0_1 = arith.constant 0 : index
    %3 = vector.load %arg3[%c0, %c0_1] : memref<16x384xbf16, #tpu.memory_space<vmem>>, vector<16x384xbf16>
    %c0_2 = arith.constant 0 : index
    %c0_3 = arith.constant 0 : index
    %4 = vector.load %arg7[%c0_2, %c0_3] : memref<16x256xf32, #tpu.memory_space<vmem>>, vector<16x256xf32>
    %c0_4 = arith.constant 0 : index
    %c0_5 = arith.constant 0 : index
    %5 = vector.load %arg4[%c0_4, %c0_5] : memref<384x256xbf16, #tpu.memory_space<vmem>>, vector<384x256xbf16>
    %cst = arith.constant dense<0.000000e+00> : vector<16x256xf32>
    %6 = tpu.matmul %3, %5, %cst {dimension_numbers = #tpu.dot_dimension_numbers<[1], [0], [0], [1], [0, 0, 1, 1], [], []>} : vector<16x384xbf16>, vector<384x256xbf16>, vector<16x256xf32> -> vector<16x256xf32>
    %7 = arith.addf %4, %6 : vector<16x256xf32>
    %c0_6 = arith.constant 0 : index
    %c0_7 = arith.constant 0 : index
    %8 = vector.load %arg7[%c0_6, %c0_7] : memref<16x256xf32, #tpu.memory_space<vmem>>, vector<16x256xf32>
    tpu.vector_store %arg7[%c0_6, %c0_7], %7 {strides = array<i32>} : memref<16x256xf32, #tpu.memory_space<vmem>>, vector<16x256xf32>,
    %c1_i32 = arith.constant 1 : i32
    %9 = arith.cmpi eq, %arg2, %c1_i32 : i32
    %10 = arith.extui %9 : i1 to i32
    %c0_i32_8 = arith.constant 0 : i32
    %11 = arith.cmpi ne, %10, %c0_i32_8 : i32
    scf.if %11 {
      %c0_9 = arith.constant 0 : index
      %c0_10 = arith.constant 0 : index
      %12 = vector.load %arg7[%c0_9, %c0_10] : memref<16x256xf32, #tpu.memory_space<vmem>>, vector<16x256xf32>
      %c0_11 = arith.constant 0 : index
      %c0_12 = arith.constant 0 : index
      %13 = vector.load %arg5[%c0_11, %c0_12] : memref<1x256xf32, #tpu.memory_space<vmem>>, vector<1x256xf32>
      %14 = vector.broadcast %13 : vector<1x256xf32> to vector<16x256xf32>
      %15 = arith.addf %12, %14 : vector<16x256xf32>
      %c0_13 = arith.constant 0 : index
      %c0_14 = arith.constant 0 : index
      %16 = vector.load %arg6[%c0_13, %c0_14] : memref<16x256xf32, #tpu.memory_space<vmem>>, vector<16x256xf32>
      tpu.vector_store %arg6[%c0_13, %c0_14], %15 {strides = array<i32>} : memref<16x256xf32, #tpu.memory_space<vmem>>, vector<16x256xf32>,
    } else {
    }
    return
  }
  func.func @transform_0(%arg0: i32, %arg1: i32, %arg2: i32) -> (i32, i32) {
    %c0_i32 = arith.constant 0 : i32
    return %arg0, %arg2 : i32, i32
  }
  func.func @transform_1(%arg0: i32, %arg1: i32, %arg2: i32) -> (i32, i32) {
    %c0_i32 = arith.constant 0 : i32
    return %arg2, %arg1 : i32, i32
  }
  func.func @transform_2(%arg0: i32, %arg1: i32, %arg2: i32) -> (i32, i32) {
    %c0_i32 = arith.constant 0 : i32
    %c0_i32_0 = arith.constant 0 : i32
    return %c0_i32, %arg1 : i32, i32
  }
  func.func @transform_3(%arg0: i32, %arg1: i32, %arg2: i32) -> (i32, i32) {
    %c0_i32 = arith.constant 0 : i32
    return %arg0, %arg1 : i32, i32
  }
}

module attributes {stable_mosaic.version = 11 : i64} {
  func.func @kernel(%arg0: i32, %arg1: i32, %arg2: memref<24x256xbf16, #tpu.memory_space<vmem>>, %arg3: memref<256x384xbf16, #tpu.memory_space<vmem>>, %arg4: memref<1x384xf32, #tpu.memory_space<vmem>>, %arg5: memref<1x256xf32, #tpu.memory_space<vmem>>, %arg6: memref<1x256xf32, #tpu.memory_space<vmem>>, %arg7: memref<24x384xbf16, #tpu.memory_space<vmem>>, %arg8: memref<24x256xbf16, #tpu.memory_space<vmem>>) attributes {dimension_semantics = [#tpu.dimension_semantics<parallel>, #tpu.dimension_semantics<arbitrary>], iteration_bounds = array<i64: 1, 2>, scalar_prefetch = 0 : i64, scratch_operands = 1 : i64, tpu.core_type = #tpu.core_type<tc>, window_params = [{transform_indices = @transform_0, window_bounds = array<i64: 24, 256>}, {transform_indices = @transform_1, window_bounds = array<i64: 256, 384>}, {transform_indices = @transform_2, window_bounds = array<i64: 1, 384>}, {pipeline_mode = #tpu.pipeline_mode<synchronous>, transform_indices = @transform_3, window_bounds = array<i64: 1, 256>}, {pipeline_mode = #tpu.pipeline_mode<synchronous>, transform_indices = @transform_4, window_bounds = array<i64: 1, 256>}, {transform_indices = @transform_5, window_bounds = array<i64: 24, 384>}]} {
    %c0_i32 = arith.constant 0 : i32
    %0 = arith.cmpi eq, %arg1, %c0_i32 : i32
    %1 = arith.extui %0 : i1 to i32
    %c0_i32_0 = arith.constant 0 : i32
    %2 = arith.cmpi ne, %1, %c0_i32_0 : i32
    scf.if %2 {
      %c0_8 = arith.constant 0 : index
      %c0_9 = arith.constant 0 : index
      %11 = vector.load %arg2[%c0_8, %c0_9] : memref<24x256xbf16, #tpu.memory_space<vmem>>, vector<24x256xbf16>
      %12 = arith.extf %11 : vector<24x256xbf16> to vector<24x256xf32>
      %c0_10 = arith.constant 0 : index
      %c0_11 = arith.constant 0 : index
      %13 = vector.load %arg5[%c0_10, %c0_11] : memref<1x256xf32, #tpu.memory_space<vmem>>, vector<1x256xf32>
      %c0_12 = arith.constant 0 : index
      %c0_13 = arith.constant 0 : index
      %14 = vector.load %arg6[%c0_12, %c0_13] : memref<1x256xf32, #tpu.memory_space<vmem>>, vector<1x256xf32>
      %cst_14 = arith.constant dense<0.000000e+00> : vector<24xf32>
      %15 = vector.multi_reduction <add>, %12, %cst_14 [1] : vector<24x256xf32> to vector<24xf32>
      %16 = vector.shape_cast %15 : vector<24xf32> to vector<24x1xf32>
      %cst_15 = arith.constant 2.560000e+02 : f32
      %17 = vector.broadcast %cst_15 : f32 to vector<24x1xf32>
      %18 = arith.divf %16, %17 : vector<24x1xf32>
      %19 = vector.broadcast %18 : vector<24x1xf32> to vector<24x256xf32>
      %20 = arith.subf %12, %19 : vector<24x256xf32>
      %21 = arith.mulf %20, %20 : vector<24x256xf32>
      %cst_16 = arith.constant dense<0.000000e+00> : vector<24xf32>
      %22 = vector.multi_reduction <add>, %21, %cst_16 [1] : vector<24x256xf32> to vector<24xf32>
      %23 = vector.shape_cast %22 : vector<24xf32> to vector<24x1xf32>
      %cst_17 = arith.constant 2.560000e+02 : f32
      %24 = vector.broadcast %cst_17 : f32 to vector<24x1xf32>
      %25 = arith.divf %23, %24 : vector<24x1xf32>
      %26 = vector.broadcast %18 : vector<24x1xf32> to vector<24x256xf32>
      %27 = arith.subf %12, %26 : vector<24x256xf32>
      %cst_18 = arith.constant 9.99999997E-7 : f32
      %28 = vector.broadcast %cst_18 : f32 to vector<24x1xf32>
      %29 = arith.addf %25, %28 : vector<24x1xf32>
      %30 = math.rsqrt %29 : vector<24x1xf32>
      %31 = vector.broadcast %30 : vector<24x1xf32> to vector<24x256xf32>
      %32 = arith.mulf %27, %31 : vector<24x256xf32>
      %33 = vector.broadcast %13 : vector<1x256xf32> to vector<24x256xf32>
      %34 = arith.mulf %32, %33 : vector<24x256xf32>
      %35 = vector.broadcast %14 : vector<1x256xf32> to vector<24x256xf32>
      %36 = arith.addf %34, %35 : vector<24x256xf32>
      %37 = arith.truncf %36 : vector<24x256xf32> to vector<24x256xbf16>
      %c0_19 = arith.constant 0 : index
      %c0_20 = arith.constant 0 : index
      %38 = vector.load %arg8[%c0_19, %c0_20] : memref<24x256xbf16, #tpu.memory_space<vmem>>, vector<24x256xbf16>
      tpu.vector_store %arg8[%c0_19, %c0_20], %37 {strides = array<i32>} : memref<24x256xbf16, #tpu.memory_space<vmem>>, vector<24x256xbf16>,
    } else {
    }
    %c0 = arith.constant 0 : index
    %c0_1 = arith.constant 0 : index
    %3 = vector.load %arg8[%c0, %c0_1] : memref<24x256xbf16, #tpu.memory_space<vmem>>, vector<24x256xbf16>
    %c0_2 = arith.constant 0 : index
    %c0_3 = arith.constant 0 : index
    %4 = vector.load %arg3[%c0_2, %c0_3] : memref<256x384xbf16, #tpu.memory_space<vmem>>, vector<256x384xbf16>
    %cst = arith.constant dense<0.000000e+00> : vector<24x384xf32>
    %5 = tpu.matmul %3, %4, %cst {dimension_numbers = #tpu.dot_dimension_numbers<[1], [0], [0], [1], [0, 0, 1, 1], [], []>} : vector<24x256xbf16>, vector<256x384xbf16>, vector<24x384xf32> -> vector<24x384xf32>
    %c0_4 = arith.constant 0 : index
    %c0_5 = arith.constant 0 : index
    %6 = vector.load %arg4[%c0_4, %c0_5] : memref<1x384xf32, #tpu.memory_space<vmem>>, vector<1x384xf32>
    %7 = vector.broadcast %6 : vector<1x384xf32> to vector<24x384xf32>
    %8 = arith.addf %5, %7 : vector<24x384xf32>
    %9 = arith.truncf %8 : vector<24x384xf32> to vector<24x384xbf16>
    %c0_6 = arith.constant 0 : index
    %c0_7 = arith.constant 0 : index
    %10 = vector.load %arg7[%c0_6, %c0_7] : memref<24x384xbf16, #tpu.memory_space<vmem>>, vector<24x384xbf16>
    tpu.vector_store %arg7[%c0_6, %c0_7], %9 {strides = array<i32>} : memref<24x384xbf16, #tpu.memory_space<vmem>>, vector<24x384xbf16>,
    return
  }
  func.func @transform_0(%arg0: i32, %arg1: i32) -> (i32, i32) {
    %c0_i32 = arith.constant 0 : i32
    %c0_i32_0 = arith.constant 0 : i32
    return %arg0, %c0_i32 : i32, i32
  }
  func.func @transform_1(%arg0: i32, %arg1: i32) -> (i32, i32) {
    %c0_i32 = arith.constant 0 : i32
    %c0_i32_0 = arith.constant 0 : i32
    return %c0_i32, %arg1 : i32, i32
  }
  func.func @transform_2(%arg0: i32, %arg1: i32) -> (i32, i32) {
    %c0_i32 = arith.constant 0 : i32
    %c0_i32_0 = arith.constant 0 : i32
    return %c0_i32, %arg1 : i32, i32
  }
  func.func @transform_3(%arg0: i32, %arg1: i32) -> (i32, i32) {
    %c0_i32 = arith.constant 0 : i32
    %c0_i32_0 = arith.constant 0 : i32
    %c0_i32_1 = arith.constant 0 : i32
    return %c0_i32, %c0_i32_0 : i32, i32
  }
  func.func @transform_4(%arg0: i32, %arg1: i32) -> (i32, i32) {
    %c0_i32 = arith.constant 0 : i32
    %c0_i32_0 = arith.constant 0 : i32
    %c0_i32_1 = arith.constant 0 : i32
    return %c0_i32, %c0_i32_0 : i32, i32
  }
  func.func @transform_5(%arg0: i32, %arg1: i32) -> (i32, i32) {
    %c0_i32 = arith.constant 0 : i32
    return %arg0, %arg1 : i32, i32
  }
}

module attributes {stable_mosaic.version = 11 : i64} {
  func.func @kernel(%arg0: i32, %arg1: i32, %arg2: memref<1x5x384xbf16, #tpu.memory_space<vmem>>, %arg3: memref<1x5x128xbf16, #tpu.memory_space<vmem>>) attributes {dimension_semantics = [#tpu.dimension_semantics<parallel>, #tpu.dimension_semantics<parallel>], iteration_bounds = array<i64: 4, 2>, scalar_prefetch = 0 : i64, scratch_operands = 0 : i64, tpu.core_type = #tpu.core_type<tc>, window_params = [{transform_indices = @transform_0, window_bounds = array<i64: 1, 5, 384>}, {transform_indices = @transform_1, window_bounds = array<i64: 1, 5, 128>}]} {
    %c0 = arith.constant 0 : index
    %c0_0 = arith.constant 0 : index
    %c0_1 = arith.constant 0 : index
    %0 = vector.load %arg2[%c0, %c0_0, %c0_1] : memref<1x5x384xbf16, #tpu.memory_space<vmem>>, vector<1x5x384xbf16>
    %1 = vector.shape_cast %0 : vector<1x5x384xbf16> to vector<5x384xbf16>
    %2 = vector.extract_strided_slice %1 {offsets = [0, 0], sizes = [5, 64], strides = [1, 1]} : vector<5x384xbf16> to vector<5x64xbf16>
    %3 = arith.extf %2 : vector<5x64xbf16> to vector<5x64xf32>
    %cst = arith.constant 1.250000e-01 : f32
    %4 = vector.broadcast %cst : f32 to vector<5x64xf32>
    %5 = arith.mulf %3, %4 : vector<5x64xf32>
    %6 = arith.truncf %5 : vector<5x64xf32> to vector<5x64xbf16>
    %7 = vector.extract_strided_slice %1 {offsets = [0, 128], sizes = [5, 64], strides = [1, 1]} : vector<5x384xbf16> to vector<5x64xbf16>
    %8 = vector.extract_strided_slice %1 {offsets = [0, 256], sizes = [5, 64], strides = [1, 1]} : vector<5x384xbf16> to vector<5x64xbf16>
    %cst_2 = arith.constant dense<0.000000e+00> : vector<5x5xf32>
    %9 = tpu.matmul %6, %7, %cst_2 {dimension_numbers = #tpu.dot_dimension_numbers<[1], [1], [0], [0], [0, 0, 1, 0], [], []>} : vector<5x64xbf16>, vector<5x64xbf16>, vector<5x5xf32> -> vector<5x5xf32>
    %cst_3 = arith.constant dense<0xFF800000> : vector<5xf32>
    %10 = vector.multi_reduction <maximumf>, %9, %cst_3 [1] : vector<5x5xf32> to vector<5xf32>
    %11 = vector.shape_cast %10 : vector<5xf32> to vector<5x1xf32>
    %12 = vector.broadcast %11 : vector<5x1xf32> to vector<5x5xf32>
    %13 = arith.subf %9, %12 : vector<5x5xf32>
    %14 = math.exp %13 : vector<5x5xf32>
    %cst_4 = arith.constant dense<0.000000e+00> : vector<5xf32>
    %15 = vector.multi_reduction <add>, %14, %cst_4 [1] : vector<5x5xf32> to vector<5xf32>
    %16 = vector.shape_cast %15 : vector<5xf32> to vector<5x1xf32>
    %17 = arith.truncf %14 : vector<5x5xf32> to vector<5x5xbf16>
    %cst_5 = arith.constant dense<0.000000e+00> : vector<5x64xf32>
    %18 = tpu.matmul %17, %8, %cst_5 {dimension_numbers = #tpu.dot_dimension_numbers<[1], [0], [0], [1], [0, 0, 1, 1], [], []>} : vector<5x5xbf16>, vector<5x64xbf16>, vector<5x64xf32> -> vector<5x64xf32>
    %19 = tpu.reciprocal %16 {approx = true} : vector<5x1xf32> -> vector<5x1xf32>
    %20 = vector.broadcast %19 : vector<5x1xf32> to vector<5x64xf32>
    %21 = arith.mulf %18, %20 : vector<5x64xf32>
    %22 = vector.extract_strided_slice %1 {offsets = [0, 64], sizes = [5, 64], strides = [1, 1]} : vector<5x384xbf16> to vector<5x64xbf16>
    %23 = arith.extf %22 : vector<5x64xbf16> to vector<5x64xf32>
    %cst_6 = arith.constant 1.250000e-01 : f32
    %24 = vector.broadcast %cst_6 : f32 to vector<5x64xf32>
    %25 = arith.mulf %23, %24 : vector<5x64xf32>
    %26 = arith.truncf %25 : vector<5x64xf32> to vector<5x64xbf16>
    %27 = vector.extract_strided_slice %1 {offsets = [0, 192], sizes = [5, 64], strides = [1, 1]} : vector<5x384xbf16> to vector<5x64xbf16>
    %28 = vector.extract_strided_slice %1 {offsets = [0, 320], sizes = [5, 64], strides = [1, 1]} : vector<5x384xbf16> to vector<5x64xbf16>
    %cst_7 = arith.constant dense<0.000000e+00> : vector<5x5xf32>
    %29 = tpu.matmul %26, %27, %cst_7 {dimension_numbers = #tpu.dot_dimension_numbers<[1], [1], [0], [0], [0, 0, 1, 0], [], []>} : vector<5x64xbf16>, vector<5x64xbf16>, vector<5x5xf32> -> vector<5x5xf32>
    %cst_8 = arith.constant dense<0xFF800000> : vector<5xf32>
    %30 = vector.multi_reduction <maximumf>, %29, %cst_8 [1] : vector<5x5xf32> to vector<5xf32>
    %31 = vector.shape_cast %30 : vector<5xf32> to vector<5x1xf32>
    %32 = vector.broadcast %31 : vector<5x1xf32> to vector<5x5xf32>
    %33 = arith.subf %29, %32 : vector<5x5xf32>
    %34 = math.exp %33 : vector<5x5xf32>
    %cst_9 = arith.constant dense<0.000000e+00> : vector<5xf32>
    %35 = vector.multi_reduction <add>, %34, %cst_9 [1] : vector<5x5xf32> to vector<5xf32>
    %36 = vector.shape_cast %35 : vector<5xf32> to vector<5x1xf32>
    %37 = arith.truncf %34 : vector<5x5xf32> to vector<5x5xbf16>
    %cst_10 = arith.constant dense<0.000000e+00> : vector<5x64xf32>
    %38 = tpu.matmul %37, %28, %cst_10 {dimension_numbers = #tpu.dot_dimension_numbers<[1], [0], [0], [1], [0, 0, 1, 1], [], []>} : vector<5x5xbf16>, vector<5x64xbf16>, vector<5x64xf32> -> vector<5x64xf32>
    %39 = tpu.reciprocal %36 {approx = true} : vector<5x1xf32> -> vector<5x1xf32>
    %40 = vector.broadcast %39 : vector<5x1xf32> to vector<5x64xf32>
    %41 = arith.mulf %38, %40 : vector<5x64xf32>
    %42 = tpu.concatenate %21, %41 in 1 : vector<5x64xf32>, vector<5x64xf32> -> vector<5x128xf32>
    %43 = arith.truncf %42 : vector<5x128xf32> to vector<5x128xbf16>
    %c0_11 = arith.constant 0 : index
    %c0_12 = arith.constant 0 : index
    %c0_13 = arith.constant 0 : index
    %44 = vector.load %arg3[%c0_11, %c0_12, %c0_13] : memref<1x5x128xbf16, #tpu.memory_space<vmem>>, vector<1x5x128xbf16>
    %45 = vector.shape_cast %44 : vector<1x5x128xbf16> to vector<5x128xbf16>
    %46 = vector.shape_cast %43 : vector<5x128xbf16> to vector<1x5x128xbf16>
    tpu.vector_store %arg3[%c0_11, %c0_12, %c0_13], %46 {strides = array<i32>} : memref<1x5x128xbf16, #tpu.memory_space<vmem>>, vector<1x5x128xbf16>,
    return
  }
  func.func @transform_0(%arg0: i32, %arg1: i32) -> (i32, i32, i32) {
    %c0_i32 = arith.constant 0 : i32
    %c0_i32_0 = arith.constant 0 : i32
    return %arg0, %c0_i32, %arg1 : i32, i32, i32
  }
  func.func @transform_1(%arg0: i32, %arg1: i32) -> (i32, i32, i32) {
    %c0_i32 = arith.constant 0 : i32
    %c0_i32_0 = arith.constant 0 : i32
    return %arg0, %c0_i32, %arg1 : i32, i32, i32
  }
}

module attributes {stable_mosaic.version = 11 : i64} {
  func.func @kernel(%arg0: i32, %arg1: i32, %arg2: memref<24x256xbf16, #tpu.memory_space<vmem>>, %arg3: memref<256x256xbf16, #tpu.memory_space<vmem>>, %arg4: memref<1x256xf32, #tpu.memory_space<vmem>>, %arg5: memref<1x256xf32, #tpu.memory_space<vmem>>, %arg6: memref<24x256xbf16, #tpu.memory_space<vmem>>, %arg7: memref<24x256xbf16, #tpu.memory_space<vmem>>) attributes {dimension_semantics = [#tpu.dimension_semantics<parallel>, #tpu.dimension_semantics<parallel>], iteration_bounds = array<i64: 1, 1>, scalar_prefetch = 0 : i64, scratch_operands = 0 : i64, tpu.core_type = #tpu.core_type<tc>, window_params = [{transform_indices = @transform_0, window_bounds = array<i64: 24, 256>}, {transform_indices = @transform_1, window_bounds = array<i64: 256, 256>}, {transform_indices = @transform_2, window_bounds = array<i64: 1, 256>}, {transform_indices = @transform_3, window_bounds = array<i64: 1, 256>}, {transform_indices = @transform_4, window_bounds = array<i64: 24, 256>}, {transform_indices = @transform_5, window_bounds = array<i64: 24, 256>}]} {
    %c0 = arith.constant 0 : index
    %c0_0 = arith.constant 0 : index
    %0 = vector.load %arg2[%c0, %c0_0] : memref<24x256xbf16, #tpu.memory_space<vmem>>, vector<24x256xbf16>
    %c0_1 = arith.constant 0 : index
    %c0_2 = arith.constant 0 : index
    %1 = vector.load %arg3[%c0_1, %c0_2] : memref<256x256xbf16, #tpu.memory_space<vmem>>, vector<256x256xbf16>
    %cst = arith.constant dense<0.000000e+00> : vector<24x256xf32>
    %2 = tpu.matmul %0, %1, %cst {dimension_numbers = #tpu.dot_dimension_numbers<[1], [0], [0], [1], [0, 0, 1, 1], [], []>} : vector<24x256xbf16>, vector<256x256xbf16>, vector<24x256xf32> -> vector<24x256xf32>
    %c0_3 = arith.constant 0 : index
    %c0_4 = arith.constant 0 : index
    %3 = vector.load %arg4[%c0_3, %c0_4] : memref<1x256xf32, #tpu.memory_space<vmem>>, vector<1x256xf32>
    %4 = vector.broadcast %3 : vector<1x256xf32> to vector<24x256xf32>
    %5 = arith.addf %2, %4 : vector<24x256xf32>
    %c0_5 = arith.constant 0 : index
    %c0_6 = arith.constant 0 : index
    %6 = vector.load %arg5[%c0_5, %c0_6] : memref<1x256xf32, #tpu.memory_space<vmem>>, vector<1x256xf32>
    %7 = vector.broadcast %6 : vector<1x256xf32> to vector<24x256xf32>
    %8 = arith.mulf %5, %7 : vector<24x256xf32>
    %c0_7 = arith.constant 0 : index
    %c0_8 = arith.constant 0 : index
    %9 = vector.load %arg6[%c0_7, %c0_8] : memref<24x256xbf16, #tpu.memory_space<vmem>>, vector<24x256xbf16>
    %10 = arith.extf %9 : vector<24x256xbf16> to vector<24x256xf32>
    %11 = arith.addf %8, %10 : vector<24x256xf32>
    %12 = arith.truncf %11 : vector<24x256xf32> to vector<24x256xbf16>
    %c0_9 = arith.constant 0 : index
    %c0_10 = arith.constant 0 : index
    %13 = vector.load %arg7[%c0_9, %c0_10] : memref<24x256xbf16, #tpu.memory_space<vmem>>, vector<24x256xbf16>
    tpu.vector_store %arg7[%c0_9, %c0_10], %12 {strides = array<i32>} : memref<24x256xbf16, #tpu.memory_space<vmem>>, vector<24x256xbf16>,
    return
  }
  func.func @transform_0(%arg0: i32, %arg1: i32) -> (i32, i32) {
    %c0_i32 = arith.constant 0 : i32
    %c0_i32_0 = arith.constant 0 : i32
    return %arg0, %c0_i32 : i32, i32
  }
  func.func @transform_1(%arg0: i32, %arg1: i32) -> (i32, i32) {
    %c0_i32 = arith.constant 0 : i32
    %c0_i32_0 = arith.constant 0 : i32
    return %c0_i32, %arg1 : i32, i32
  }
  func.func @transform_2(%arg0: i32, %arg1: i32) -> (i32, i32) {
    %c0_i32 = arith.constant 0 : i32
    %c0_i32_0 = arith.constant 0 : i32
    return %c0_i32, %arg1 : i32, i32
  }
  func.func @transform_3(%arg0: i32, %arg1: i32) -> (i32, i32) {
    %c0_i32 = arith.constant 0 : i32
    %c0_i32_0 = arith.constant 0 : i32
    return %c0_i32, %arg1 : i32, i32
  }
  func.func @transform_4(%arg0: i32, %arg1: i32) -> (i32, i32) {
    %c0_i32 = arith.constant 0 : i32
    return %arg0, %arg1 : i32, i32
  }
  func.func @transform_5(%arg0: i32, %arg1: i32) -> (i32, i32) {
    %c0_i32 = arith.constant 0 : i32
    return %arg0, %arg1 : i32, i32
  }
}

module attributes {stable_mosaic.version = 11 : i64} {
  func.func @kernel(%arg0: i32, %arg1: i32, %arg2: memref<24x256xbf16, #tpu.memory_space<vmem>>, %arg3: memref<256x128xbf16, #tpu.memory_space<vmem>>, %arg4: memref<1x128xf32, #tpu.memory_space<vmem>>, %arg5: memref<1x256xf32, #tpu.memory_space<vmem>>, %arg6: memref<1x256xf32, #tpu.memory_space<vmem>>, %arg7: memref<24x128xbf16, #tpu.memory_space<vmem>>, %arg8: memref<24x256xbf16, #tpu.memory_space<vmem>>) attributes {dimension_semantics = [#tpu.dimension_semantics<parallel>, #tpu.dimension_semantics<arbitrary>], iteration_bounds = array<i64: 1, 11>, scalar_prefetch = 0 : i64, scratch_operands = 1 : i64, tpu.core_type = #tpu.core_type<tc>, window_params = [{transform_indices = @transform_0, window_bounds = array<i64: 24, 256>}, {transform_indices = @transform_1, window_bounds = array<i64: 256, 128>}, {transform_indices = @transform_2, window_bounds = array<i64: 1, 128>}, {pipeline_mode = #tpu.pipeline_mode<synchronous>, transform_indices = @transform_3, window_bounds = array<i64: 1, 256>}, {pipeline_mode = #tpu.pipeline_mode<synchronous>, transform_indices = @transform_4, window_bounds = array<i64: 1, 256>}, {transform_indices = @transform_5, window_bounds = array<i64: 24, 128>}]} {
    %c0_i32 = arith.constant 0 : i32
    %0 = arith.cmpi eq, %arg1, %c0_i32 : i32
    %1 = arith.extui %0 : i1 to i32
    %c0_i32_0 = arith.constant 0 : i32
    %2 = arith.cmpi ne, %1, %c0_i32_0 : i32
    scf.if %2 {
      %c0_23 = arith.constant 0 : index
      %c0_24 = arith.constant 0 : index
      %51 = vector.load %arg2[%c0_23, %c0_24] : memref<24x256xbf16, #tpu.memory_space<vmem>>, vector<24x256xbf16>
      %52 = arith.extf %51 : vector<24x256xbf16> to vector<24x256xf32>
      %c0_25 = arith.constant 0 : index
      %c0_26 = arith.constant 0 : index
      %53 = vector.load %arg5[%c0_25, %c0_26] : memref<1x256xf32, #tpu.memory_space<vmem>>, vector<1x256xf32>
      %c0_27 = arith.constant 0 : index
      %c0_28 = arith.constant 0 : index
      %54 = vector.load %arg6[%c0_27, %c0_28] : memref<1x256xf32, #tpu.memory_space<vmem>>, vector<1x256xf32>
      %cst_29 = arith.constant dense<0.000000e+00> : vector<24xf32>
      %55 = vector.multi_reduction <add>, %52, %cst_29 [1] : vector<24x256xf32> to vector<24xf32>
      %56 = vector.shape_cast %55 : vector<24xf32> to vector<24x1xf32>
      %cst_30 = arith.constant 2.560000e+02 : f32
      %57 = vector.broadcast %cst_30 : f32 to vector<24x1xf32>
      %58 = arith.divf %56, %57 : vector<24x1xf32>
      %59 = vector.broadcast %58 : vector<24x1xf32> to vector<24x256xf32>
      %60 = arith.subf %52, %59 : vector<24x256xf32>
      %61 = arith.mulf %60, %60 : vector<24x256xf32>
      %cst_31 = arith.constant dense<0.000000e+00> : vector<24xf32>
      %62 = vector.multi_reduction <add>, %61, %cst_31 [1] : vector<24x256xf32> to vector<24xf32>
      %63 = vector.shape_cast %62 : vector<24xf32> to vector<24x1xf32>
      %cst_32 = arith.constant 2.560000e+02 : f32
      %64 = vector.broadcast %cst_32 : f32 to vector<24x1xf32>
      %65 = arith.divf %63, %64 : vector<24x1xf32>
      %66 = vector.broadcast %58 : vector<24x1xf32> to vector<24x256xf32>
      %67 = arith.subf %52, %66 : vector<24x256xf32>
      %cst_33 = arith.constant 9.99999997E-7 : f32
      %68 = vector.broadcast %cst_33 : f32 to vector<24x1xf32>
      %69 = arith.addf %65, %68 : vector<24x1xf32>
      %70 = math.rsqrt %69 : vector<24x1xf32>
      %71 = vector.broadcast %70 : vector<24x1xf32> to vector<24x256xf32>
      %72 = arith.mulf %67, %71 : vector<24x256xf32>
      %73 = vector.broadcast %53 : vector<1x256xf32> to vector<24x256xf32>
      %74 = arith.mulf %72, %73 : vector<24x256xf32>
      %75 = vector.broadcast %54 : vector<1x256xf32> to vector<24x256xf32>
      %76 = arith.addf %74, %75 : vector<24x256xf32>
      %77 = arith.truncf %76 : vector<24x256xf32> to vector<24x256xbf16>
      %c0_34 = arith.constant 0 : index
      %c0_35 = arith.constant 0 : index
      %78 = vector.load %arg8[%c0_34, %c0_35] : memref<24x256xbf16, #tpu.memory_space<vmem>>, vector<24x256xbf16>
      tpu.vector_store %arg8[%c0_34, %c0_35], %77 {strides = array<i32>} : memref<24x256xbf16, #tpu.memory_space<vmem>>, vector<24x256xbf16>,
    } else {
    }
    %c0 = arith.constant 0 : index
    %c0_1 = arith.constant 0 : index
    %3 = vector.load %arg8[%c0, %c0_1] : memref<24x256xbf16, #tpu.memory_space<vmem>>, vector<24x256xbf16>
    %c0_2 = arith.constant 0 : index
    %c0_3 = arith.constant 0 : index
    %4 = vector.load %arg3[%c0_2, %c0_3] : memref<256x128xbf16, #tpu.memory_space<vmem>>, vector<256x128xbf16>
    %cst = arith.constant dense<0.000000e+00> : vector<24x128xf32>
    %5 = tpu.matmul %3, %4, %cst {dimension_numbers = #tpu.dot_dimension_numbers<[1], [0], [0], [1], [0, 0, 1, 1], [], []>} : vector<24x256xbf16>, vector<256x128xbf16>, vector<24x128xf32> -> vector<24x128xf32>
    %c0_4 = arith.constant 0 : index
    %c0_5 = arith.constant 0 : index
    %6 = vector.load %arg4[%c0_4, %c0_5] : memref<1x128xf32, #tpu.memory_space<vmem>>, vector<1x128xf32>
    %7 = vector.broadcast %6 : vector<1x128xf32> to vector<24x128xf32>
    %8 = arith.addf %5, %7 : vector<24x128xf32>
    %cst_6 = arith.constant 5.000000e-01 : f32
    %9 = vector.broadcast %cst_6 : f32 to vector<24x128xf32>
    %10 = arith.mulf %9, %8 : vector<24x128xf32>
    %cst_7 = arith.constant 0.707106769 : f32
    %11 = vector.broadcast %cst_7 : f32 to vector<24x128xf32>
    %12 = arith.mulf %8, %11 : vector<24x128xf32>
    %13 = math.absf %12 : vector<24x128xf32>
    %cst_8 = arith.constant 0.327591091 : f32
    %14 = vector.broadcast %cst_8 : f32 to vector<24x128xf32>
    %15 = arith.mulf %14, %13 : vector<24x128xf32>
    %cst_9 = arith.constant 1.000000e+00 : f32
    %16 = vector.broadcast %cst_9 : f32 to vector<24x128xf32>
    %17 = arith.addf %16, %15 : vector<24x128xf32>
    %cst_10 = arith.constant 1.000000e+00 : f32
    %18 = vector.broadcast %cst_10 : f32 to vector<24x128xf32>
    %19 = arith.divf %18, %17 : vector<24x128xf32>
    %cst_11 = arith.constant 1.06140542 : f32
    %20 = vector.broadcast %cst_11 : f32 to vector<24x128xf32>
    %21 = arith.mulf %20, %19 : vector<24x128xf32>
    %cst_12 = arith.constant -1.45315206 : f32
    %22 = vector.broadcast %cst_12 : f32 to vector<24x128xf32>
    %23 = arith.addf %21, %22 : vector<24x128xf32>
    %24 = arith.mulf %23, %19 : vector<24x128xf32>
    %cst_13 = arith.constant 1.42141378 : f32
    %25 = vector.broadcast %cst_13 : f32 to vector<24x128xf32>
    %26 = arith.addf %24, %25 : vector<24x128xf32>
    %27 = arith.mulf %26, %19 : vector<24x128xf32>
    %cst_14 = arith.constant -0.284496725 : f32
    %28 = vector.broadcast %cst_14 : f32 to vector<24x128xf32>
    %29 = arith.addf %27, %28 : vector<24x128xf32>
    %30 = arith.mulf %29, %19 : vector<24x128xf32>
    %cst_15 = arith.constant 0.254829586 : f32
    %31 = vector.broadcast %cst_15 : f32 to vector<24x128xf32>
    %32 = arith.addf %30, %31 : vector<24x128xf32>
    %33 = arith.mulf %32, %19 : vector<24x128xf32>
    %cst_16 = arith.constant 0.000000e+00 : f32
    %34 = vector.broadcast %cst_16 : f32 to vector<24x128xf32>
    %35 = arith.subf %34, %13 : vector<24x128xf32>
    %36 = arith.mulf %35, %13 : vector<24x128xf32>
    %37 = math.exp %36 : vector<24x128xf32>
    %38 = arith.mulf %33, %37 : vector<24x128xf32>
    %cst_17 = arith.constant 1.000000e+00 : f32
    %39 = vector.broadcast %cst_17 : f32 to vector<24x128xf32>
    %40 = arith.subf %39, %38 : vector<24x128xf32>
    %cst_18 = arith.constant 0.000000e+00 : f32
    %41 = vector.broadcast %cst_18 : f32 to vector<24x128xf32>
    %42 = arith.cmpf oge, %12, %41 : vector<24x128xf32>
    %cst_19 = arith.constant 0.000000e+00 : f32
    %43 = vector.broadcast %cst_19 : f32 to vector<24x128xf32>
    %44 = arith.subf %43, %40 : vector<24x128xf32>
    %45 = arith.select %42, %40, %44 : vector<24x128xi1>, vector<24x128xf32>
    %cst_20 = arith.constant 1.000000e+00 : f32
    %46 = vector.broadcast %cst_20 : f32 to vector<24x128xf32>
    %47 = arith.addf %46, %45 : vector<24x128xf32>
    %48 = arith.mulf %10, %47 : vector<24x128xf32>
    %49 = arith.truncf %48 : vector<24x128xf32> to vector<24x128xbf16>
    %c0_21 = arith.constant 0 : index
    %c0_22 = arith.constant 0 : index
    %50 = vector.load %arg7[%c0_21, %c0_22] : memref<24x128xbf16, #tpu.memory_space<vmem>>, vector<24x128xbf16>
    tpu.vector_store %arg7[%c0_21, %c0_22], %49 {strides = array<i32>} : memref<24x128xbf16, #tpu.memory_space<vmem>>, vector<24x128xbf16>,
    return
  }
  func.func @transform_0(%arg0: i32, %arg1: i32) -> (i32, i32) {
    %c0_i32 = arith.constant 0 : i32
    %c0_i32_0 = arith.constant 0 : i32
    return %arg0, %c0_i32 : i32, i32
  }
  func.func @transform_1(%arg0: i32, %arg1: i32) -> (i32, i32) {
    %c0_i32 = arith.constant 0 : i32
    %c0_i32_0 = arith.constant 0 : i32
    return %c0_i32, %arg1 : i32, i32
  }
  func.func @transform_2(%arg0: i32, %arg1: i32) -> (i32, i32) {
    %c0_i32 = arith.constant 0 : i32
    %c0_i32_0 = arith.constant 0 : i32
    return %c0_i32, %arg1 : i32, i32
  }
  func.func @transform_3(%arg0: i32, %arg1: i32) -> (i32, i32) {
    %c0_i32 = arith.constant 0 : i32
    %c0_i32_0 = arith.constant 0 : i32
    %c0_i32_1 = arith.constant 0 : i32
    return %c0_i32, %c0_i32_0 : i32, i32
  }
  func.func @transform_4(%arg0: i32, %arg1: i32) -> (i32, i32) {
    %c0_i32 = arith.constant 0 : i32
    %c0_i32_0 = arith.constant 0 : i32
    %c0_i32_1 = arith.constant 0 : i32
    return %c0_i32, %c0_i32_0 : i32, i32
  }
  func.func @transform_5(%arg0: i32, %arg1: i32) -> (i32, i32) {
    %c0_i32 = arith.constant 0 : i32
    return %arg0, %arg1 : i32, i32
  }
}

module attributes {stable_mosaic.version = 11 : i64} {
  func.func @kernel(%arg0: i32, %arg1: i32, %arg2: i32, %arg3: memref<24x128xbf16, #tpu.memory_space<vmem>>, %arg4: memref<128x256xbf16, #tpu.memory_space<vmem>>, %arg5: memref<1x256xf32, #tpu.memory_space<vmem>>, %arg6: memref<1x256xf32, #tpu.memory_space<vmem>>, %arg7: memref<24x256xbf16, #tpu.memory_space<vmem>>, %arg8: memref<24x256xbf16, #tpu.memory_space<vmem>>, %arg9: memref<24x256xf32, #tpu.memory_space<vmem>>) attributes {dimension_semantics = [#tpu.dimension_semantics<parallel>, #tpu.dimension_semantics<parallel>, #tpu.dimension_semantics<arbitrary>], iteration_bounds = array<i64: 1, 1, 11>, scalar_prefetch = 0 : i64, scratch_operands = 1 : i64, tpu.core_type = #tpu.core_type<tc>, window_params = [{transform_indices = @transform_0, window_bounds = array<i64: 24, 128>}, {transform_indices = @transform_1, window_bounds = array<i64: 128, 256>}, {transform_indices = @transform_2, window_bounds = array<i64: 1, 256>}, {transform_indices = @transform_3, window_bounds = array<i64: 1, 256>}, {transform_indices = @transform_4, window_bounds = array<i64: 24, 256>}, {transform_indices = @transform_5, window_bounds = array<i64: 24, 256>}]} {
    %c0_i32 = arith.constant 0 : i32
    %0 = arith.cmpi eq, %arg2, %c0_i32 : i32
    %1 = arith.extui %0 : i1 to i32
    %c0_i32_0 = arith.constant 0 : i32
    %2 = arith.cmpi ne, %1, %c0_i32_0 : i32
    scf.if %2 {
      %cst_9 = arith.constant 0.000000e+00 : f32
      %12 = vector.broadcast %cst_9 : f32 to vector<24x256xf32>
      %c0_10 = arith.constant 0 : index
      %c0_11 = arith.constant 0 : index
      %13 = vector.load %arg9[%c0_10, %c0_11] : memref<24x256xf32, #tpu.memory_space<vmem>>, vector<24x256xf32>
      tpu.vector_store %arg9[%c0_10, %c0_11], %12 {strides = array<i32>} : memref<24x256xf32, #tpu.memory_space<vmem>>, vector<24x256xf32>,
    } else {
    }
    %c0 = arith.constant 0 : index
    %c0_1 = arith.constant 0 : index
    %3 = vector.load %arg3[%c0, %c0_1] : memref<24x128xbf16, #tpu.memory_space<vmem>>, vector<24x128xbf16>
    %c0_2 = arith.constant 0 : index
    %c0_3 = arith.constant 0 : index
    %4 = vector.load %arg9[%c0_2, %c0_3] : memref<24x256xf32, #tpu.memory_space<vmem>>, vector<24x256xf32>
    %c0_4 = arith.constant 0 : index
    %c0_5 = arith.constant 0 : index
    %5 = vector.load %arg4[%c0_4, %c0_5] : memref<128x256xbf16, #tpu.memory_space<vmem>>, vector<128x256xbf16>
    %cst = arith.constant dense<0.000000e+00> : vector<24x256xf32>
    %6 = tpu.matmul %3, %5, %cst {dimension_numbers = #tpu.dot_dimension_numbers<[1], [0], [0], [1], [0, 0, 1, 1], [], []>} : vector<24x128xbf16>, vector<128x256xbf16>, vector<24x256xf32> -> vector<24x256xf32>
    %7 = arith.addf %4, %6 : vector<24x256xf32>
    %c0_6 = arith.constant 0 : index
    %c0_7 = arith.constant 0 : index
    %8 = vector.load %arg9[%c0_6, %c0_7] : memref<24x256xf32, #tpu.memory_space<vmem>>, vector<24x256xf32>
    tpu.vector_store %arg9[%c0_6, %c0_7], %7 {strides = array<i32>} : memref<24x256xf32, #tpu.memory_space<vmem>>, vector<24x256xf32>,
    %c10_i32 = arith.constant 10 : i32
    %9 = arith.cmpi eq, %arg2, %c10_i32 : i32
    %10 = arith.extui %9 : i1 to i32
    %c0_i32_8 = arith.constant 0 : i32
    %11 = arith.cmpi ne, %10, %c0_i32_8 : i32
    scf.if %11 {
      %c0_9 = arith.constant 0 : index
      %c0_10 = arith.constant 0 : index
      %12 = vector.load %arg9[%c0_9, %c0_10] : memref<24x256xf32, #tpu.memory_space<vmem>>, vector<24x256xf32>
      %c0_11 = arith.constant 0 : index
      %c0_12 = arith.constant 0 : index
      %13 = vector.load %arg5[%c0_11, %c0_12] : memref<1x256xf32, #tpu.memory_space<vmem>>, vector<1x256xf32>
      %14 = vector.broadcast %13 : vector<1x256xf32> to vector<24x256xf32>
      %15 = arith.addf %12, %14 : vector<24x256xf32>
      %c0_13 = arith.constant 0 : index
      %c0_14 = arith.constant 0 : index
      %16 = vector.load %arg6[%c0_13, %c0_14] : memref<1x256xf32, #tpu.memory_space<vmem>>, vector<1x256xf32>
      %17 = vector.broadcast %16 : vector<1x256xf32> to vector<24x256xf32>
      %18 = arith.mulf %15, %17 : vector<24x256xf32>
      %c0_15 = arith.constant 0 : index
      %c0_16 = arith.constant 0 : index
      %19 = vector.load %arg7[%c0_15, %c0_16] : memref<24x256xbf16, #tpu.memory_space<vmem>>, vector<24x256xbf16>
      %20 = arith.extf %19 : vector<24x256xbf16> to vector<24x256xf32>
      %21 = arith.addf %18, %20 : vector<24x256xf32>
      %22 = arith.truncf %21 : vector<24x256xf32> to vector<24x256xbf16>
      %c0_17 = arith.constant 0 : index
      %c0_18 = arith.constant 0 : index
      %23 = vector.load %arg8[%c0_17, %c0_18] : memref<24x256xbf16, #tpu.memory_space<vmem>>, vector<24x256xbf16>
      tpu.vector_store %arg8[%c0_17, %c0_18], %22 {strides = array<i32>} : memref<24x256xbf16, #tpu.memory_space<vmem>>, vector<24x256xbf16>,
    } else {
    }
    return
  }
  func.func @transform_0(%arg0: i32, %arg1: i32, %arg2: i32) -> (i32, i32) {
    %c0_i32 = arith.constant 0 : i32
    return %arg0, %arg2 : i32, i32
  }
  func.func @transform_1(%arg0: i32, %arg1: i32, %arg2: i32) -> (i32, i32) {
    %c0_i32 = arith.constant 0 : i32
    return %arg2, %arg1 : i32, i32
  }
  func.func @transform_2(%arg0: i32, %arg1: i32, %arg2: i32) -> (i32, i32) {
    %c0_i32 = arith.constant 0 : i32
    %c0_i32_0 = arith.constant 0 : i32
    return %c0_i32, %arg1 : i32, i32
  }
  func.func @transform_3(%arg0: i32, %arg1: i32, %arg2: i32) -> (i32, i32) {
    %c0_i32 = arith.constant 0 : i32
    %c0_i32_0 = arith.constant 0 : i32
    return %c0_i32, %arg1 : i32, i32
  }
  func.func @transform_4(%arg0: i32, %arg1: i32, %arg2: i32) -> (i32, i32) {
    %c0_i32 = arith.constant 0 : i32
    return %arg0, %arg1 : i32, i32
  }
  func.func @transform_5(%arg0: i32, %arg1: i32, %arg2: i32) -> (i32, i32) {
    %c0_i32 = arith.constant 0 : i32
    return %arg0, %arg1 : i32, i32
  }
}

module attributes {stable_mosaic.version = 11 : i64} {
  func.func @kernel(%arg0: i32, %arg1: i32, %arg2: memref<8x256xbf16, #tpu.memory_space<vmem>>, %arg3: memref<256x128xbf16, #tpu.memory_space<vmem>>, %arg4: memref<1x128xf32, #tpu.memory_space<vmem>>, %arg5: memref<1x256xf32, #tpu.memory_space<vmem>>, %arg6: memref<1x256xf32, #tpu.memory_space<vmem>>, %arg7: memref<8x128xf32, #tpu.memory_space<vmem>>, %arg8: memref<8x256xbf16, #tpu.memory_space<vmem>>) attributes {dimension_semantics = [#tpu.dimension_semantics<parallel>, #tpu.dimension_semantics<arbitrary>], iteration_bounds = array<i64: 1, 1>, scalar_prefetch = 0 : i64, scratch_operands = 1 : i64, tpu.core_type = #tpu.core_type<tc>, window_params = [{transform_indices = @transform_0, window_bounds = array<i64: 8, 256>}, {transform_indices = @transform_1, window_bounds = array<i64: 256, 128>}, {transform_indices = @transform_2, window_bounds = array<i64: 1, 128>}, {pipeline_mode = #tpu.pipeline_mode<synchronous>, transform_indices = @transform_3, window_bounds = array<i64: 1, 256>}, {pipeline_mode = #tpu.pipeline_mode<synchronous>, transform_indices = @transform_4, window_bounds = array<i64: 1, 256>}, {transform_indices = @transform_5, window_bounds = array<i64: 8, 128>}]} {
    %c0_i32 = arith.constant 0 : i32
    %0 = arith.cmpi eq, %arg1, %c0_i32 : i32
    %1 = arith.extui %0 : i1 to i32
    %c0_i32_0 = arith.constant 0 : i32
    %2 = arith.cmpi ne, %1, %c0_i32_0 : i32
    scf.if %2 {
      %c0_8 = arith.constant 0 : index
      %c0_9 = arith.constant 0 : index
      %10 = vector.load %arg2[%c0_8, %c0_9] : memref<8x256xbf16, #tpu.memory_space<vmem>>, vector<8x256xbf16>
      %11 = arith.extf %10 : vector<8x256xbf16> to vector<8x256xf32>
      %c0_10 = arith.constant 0 : index
      %c0_11 = arith.constant 0 : index
      %12 = vector.load %arg5[%c0_10, %c0_11] : memref<1x256xf32, #tpu.memory_space<vmem>>, vector<1x256xf32>
      %c0_12 = arith.constant 0 : index
      %c0_13 = arith.constant 0 : index
      %13 = vector.load %arg6[%c0_12, %c0_13] : memref<1x256xf32, #tpu.memory_space<vmem>>, vector<1x256xf32>
      %cst_14 = arith.constant dense<0.000000e+00> : vector<8xf32>
      %14 = vector.multi_reduction <add>, %11, %cst_14 [1] : vector<8x256xf32> to vector<8xf32>
      %15 = vector.shape_cast %14 : vector<8xf32> to vector<8x1xf32>
      %cst_15 = arith.constant 2.560000e+02 : f32
      %16 = vector.broadcast %cst_15 : f32 to vector<8x1xf32>
      %17 = arith.divf %15, %16 : vector<8x1xf32>
      %18 = vector.broadcast %17 : vector<8x1xf32> to vector<8x256xf32>
      %19 = arith.subf %11, %18 : vector<8x256xf32>
      %20 = arith.mulf %19, %19 : vector<8x256xf32>
      %cst_16 = arith.constant dense<0.000000e+00> : vector<8xf32>
      %21 = vector.multi_reduction <add>, %20, %cst_16 [1] : vector<8x256xf32> to vector<8xf32>
      %22 = vector.shape_cast %21 : vector<8xf32> to vector<8x1xf32>
      %cst_17 = arith.constant 2.560000e+02 : f32
      %23 = vector.broadcast %cst_17 : f32 to vector<8x1xf32>
      %24 = arith.divf %22, %23 : vector<8x1xf32>
      %25 = vector.broadcast %17 : vector<8x1xf32> to vector<8x256xf32>
      %26 = arith.subf %11, %25 : vector<8x256xf32>
      %cst_18 = arith.constant 9.99999997E-7 : f32
      %27 = vector.broadcast %cst_18 : f32 to vector<8x1xf32>
      %28 = arith.addf %24, %27 : vector<8x1xf32>
      %29 = math.rsqrt %28 : vector<8x1xf32>
      %30 = vector.broadcast %29 : vector<8x1xf32> to vector<8x256xf32>
      %31 = arith.mulf %26, %30 : vector<8x256xf32>
      %32 = vector.broadcast %12 : vector<1x256xf32> to vector<8x256xf32>
      %33 = arith.mulf %31, %32 : vector<8x256xf32>
      %34 = vector.broadcast %13 : vector<1x256xf32> to vector<8x256xf32>
      %35 = arith.addf %33, %34 : vector<8x256xf32>
      %36 = arith.truncf %35 : vector<8x256xf32> to vector<8x256xbf16>
      %c0_19 = arith.constant 0 : index
      %c0_20 = arith.constant 0 : index
      %37 = vector.load %arg8[%c0_19, %c0_20] : memref<8x256xbf16, #tpu.memory_space<vmem>>, vector<8x256xbf16>
      tpu.vector_store %arg8[%c0_19, %c0_20], %36 {strides = array<i32>} : memref<8x256xbf16, #tpu.memory_space<vmem>>, vector<8x256xbf16>,
    } else {
    }
    %c0 = arith.constant 0 : index
    %c0_1 = arith.constant 0 : index
    %3 = vector.load %arg8[%c0, %c0_1] : memref<8x256xbf16, #tpu.memory_space<vmem>>, vector<8x256xbf16>
    %c0_2 = arith.constant 0 : index
    %c0_3 = arith.constant 0 : index
    %4 = vector.load %arg3[%c0_2, %c0_3] : memref<256x128xbf16, #tpu.memory_space<vmem>>, vector<256x128xbf16>
    %cst = arith.constant dense<0.000000e+00> : vector<8x128xf32>
    %5 = tpu.matmul %3, %4, %cst {dimension_numbers = #tpu.dot_dimension_numbers<[1], [0], [0], [1], [0, 0, 1, 1], [], []>} : vector<8x256xbf16>, vector<256x128xbf16>, vector<8x128xf32> -> vector<8x128xf32>
    %c0_4 = arith.constant 0 : index
    %c0_5 = arith.constant 0 : index
    %6 = vector.load %arg4[%c0_4, %c0_5] : memref<1x128xf32, #tpu.memory_space<vmem>>, vector<1x128xf32>
    %7 = vector.broadcast %6 : vector<1x128xf32> to vector<8x128xf32>
    %8 = arith.addf %5, %7 : vector<8x128xf32>
    %c0_6 = arith.constant 0 : index
    %c0_7 = arith.constant 0 : index
    %9 = vector.load %arg7[%c0_6, %c0_7] : memref<8x128xf32, #tpu.memory_space<vmem>>, vector<8x128xf32>
    tpu.vector_store %arg7[%c0_6, %c0_7], %8 {strides = array<i32>} : memref<8x128xf32, #tpu.memory_space<vmem>>, vector<8x128xf32>,
    return
  }
  func.func @transform_0(%arg0: i32, %arg1: i32) -> (i32, i32) {
    %c0_i32 = arith.constant 0 : i32
    %c0_i32_0 = arith.constant 0 : i32
    return %arg0, %c0_i32 : i32, i32
  }
  func.func @transform_1(%arg0: i32, %arg1: i32) -> (i32, i32) {
    %c0_i32 = arith.constant 0 : i32
    %c0_i32_0 = arith.constant 0 : i32
    return %c0_i32, %arg1 : i32, i32
  }
  func.func @transform_2(%arg0: i32, %arg1: i32) -> (i32, i32) {
    %c0_i32 = arith.constant 0 : i32
    %c0_i32_0 = arith.constant 0 : i32
    return %c0_i32, %arg1 : i32, i32
  }
  func.func @transform_3(%arg0: i32, %arg1: i32) -> (i32, i32) {
    %c0_i32 = arith.constant 0 : i32
    %c0_i32_0 = arith.constant 0 : i32
    %c0_i32_1 = arith.constant 0 : i32
    return %c0_i32, %c0_i32_0 : i32, i32
  }
  func.func @transform_4(%arg0: i32, %arg1: i32) -> (i32, i32) {
    %c0_i32 = arith.constant 0 : i32
    %c0_i32_0 = arith.constant 0 : i32
    %c0_i32_1 = arith.constant 0 : i32
    return %c0_i32, %c0_i32_0 : i32, i32
  }
  func.func @transform_5(%arg0: i32, %arg1: i32) -> (i32, i32) {
    %c0_i32 = arith.constant 0 : i32
    return %arg0, %arg1 : i32, i32
  }
}

module attributes {stable_mosaic.version = 11 : i64} {
  func.func @kernel(%arg0: i32, %arg1: i32, %arg2: memref<1x5x384xbf16, #tpu.memory_space<vmem>>, %arg3: memref<1x5x128xbf16, #tpu.memory_space<vmem>>) attributes {dimension_semantics = [#tpu.dimension_semantics<parallel>, #tpu.dimension_semantics<parallel>], iteration_bounds = array<i64: 1, 1>, scalar_prefetch = 0 : i64, scratch_operands = 0 : i64, tpu.core_type = #tpu.core_type<tc>, window_params = [{transform_indices = @transform_0, window_bounds = array<i64: 1, 5, 384>}, {transform_indices = @transform_1, window_bounds = array<i64: 1, 5, 128>}]} {
    %c0 = arith.constant 0 : index
    %c0_0 = arith.constant 0 : index
    %c0_1 = arith.constant 0 : index
    %0 = vector.load %arg2[%c0, %c0_0, %c0_1] : memref<1x5x384xbf16, #tpu.memory_space<vmem>>, vector<1x5x384xbf16>
    %1 = vector.shape_cast %0 : vector<1x5x384xbf16> to vector<5x384xbf16>
    %2 = vector.extract_strided_slice %1 {offsets = [0, 0], sizes = [5, 64], strides = [1, 1]} : vector<5x384xbf16> to vector<5x64xbf16>
    %3 = arith.extf %2 : vector<5x64xbf16> to vector<5x64xf32>
    %cst = arith.constant 1.250000e-01 : f32
    %4 = vector.broadcast %cst : f32 to vector<5x64xf32>
    %5 = arith.mulf %3, %4 : vector<5x64xf32>
    %6 = arith.truncf %5 : vector<5x64xf32> to vector<5x64xbf16>
    %7 = vector.extract_strided_slice %1 {offsets = [0, 128], sizes = [5, 64], strides = [1, 1]} : vector<5x384xbf16> to vector<5x64xbf16>
    %8 = vector.extract_strided_slice %1 {offsets = [0, 256], sizes = [5, 64], strides = [1, 1]} : vector<5x384xbf16> to vector<5x64xbf16>
    %cst_2 = arith.constant dense<0.000000e+00> : vector<5x5xf32>
    %9 = tpu.matmul %6, %7, %cst_2 {dimension_numbers = #tpu.dot_dimension_numbers<[1], [1], [0], [0], [0, 0, 1, 0], [], []>} : vector<5x64xbf16>, vector<5x64xbf16>, vector<5x5xf32> -> vector<5x5xf32>
    %cst_3 = arith.constant dense<0xFF800000> : vector<5xf32>
    %10 = vector.multi_reduction <maximumf>, %9, %cst_3 [1] : vector<5x5xf32> to vector<5xf32>
    %11 = vector.shape_cast %10 : vector<5xf32> to vector<5x1xf32>
    %12 = vector.broadcast %11 : vector<5x1xf32> to vector<5x5xf32>
    %13 = arith.subf %9, %12 : vector<5x5xf32>
    %14 = math.exp %13 : vector<5x5xf32>
    %cst_4 = arith.constant dense<0.000000e+00> : vector<5xf32>
    %15 = vector.multi_reduction <add>, %14, %cst_4 [1] : vector<5x5xf32> to vector<5xf32>
    %16 = vector.shape_cast %15 : vector<5xf32> to vector<5x1xf32>
    %17 = arith.truncf %14 : vector<5x5xf32> to vector<5x5xbf16>
    %cst_5 = arith.constant dense<0.000000e+00> : vector<5x64xf32>
    %18 = tpu.matmul %17, %8, %cst_5 {dimension_numbers = #tpu.dot_dimension_numbers<[1], [0], [0], [1], [0, 0, 1, 1], [], []>} : vector<5x5xbf16>, vector<5x64xbf16>, vector<5x64xf32> -> vector<5x64xf32>
    %19 = tpu.reciprocal %16 {approx = true} : vector<5x1xf32> -> vector<5x1xf32>
    %20 = vector.broadcast %19 : vector<5x1xf32> to vector<5x64xf32>
    %21 = arith.mulf %18, %20 : vector<5x64xf32>
    %22 = vector.extract_strided_slice %1 {offsets = [0, 64], sizes = [5, 64], strides = [1, 1]} : vector<5x384xbf16> to vector<5x64xbf16>
    %23 = arith.extf %22 : vector<5x64xbf16> to vector<5x64xf32>
    %cst_6 = arith.constant 1.250000e-01 : f32
    %24 = vector.broadcast %cst_6 : f32 to vector<5x64xf32>
    %25 = arith.mulf %23, %24 : vector<5x64xf32>
    %26 = arith.truncf %25 : vector<5x64xf32> to vector<5x64xbf16>
    %27 = vector.extract_strided_slice %1 {offsets = [0, 192], sizes = [5, 64], strides = [1, 1]} : vector<5x384xbf16> to vector<5x64xbf16>
    %28 = vector.extract_strided_slice %1 {offsets = [0, 320], sizes = [5, 64], strides = [1, 1]} : vector<5x384xbf16> to vector<5x64xbf16>
    %cst_7 = arith.constant dense<0.000000e+00> : vector<5x5xf32>
    %29 = tpu.matmul %26, %27, %cst_7 {dimension_numbers = #tpu.dot_dimension_numbers<[1], [1], [0], [0], [0, 0, 1, 0], [], []>} : vector<5x64xbf16>, vector<5x64xbf16>, vector<5x5xf32> -> vector<5x5xf32>
    %cst_8 = arith.constant dense<0xFF800000> : vector<5xf32>
    %30 = vector.multi_reduction <maximumf>, %29, %cst_8 [1] : vector<5x5xf32> to vector<5xf32>
    %31 = vector.shape_cast %30 : vector<5xf32> to vector<5x1xf32>
    %32 = vector.broadcast %31 : vector<5x1xf32> to vector<5x5xf32>
    %33 = arith.subf %29, %32 : vector<5x5xf32>
    %34 = math.exp %33 : vector<5x5xf32>
    %cst_9 = arith.constant dense<0.000000e+00> : vector<5xf32>
    %35 = vector.multi_reduction <add>, %34, %cst_9 [1] : vector<5x5xf32> to vector<5xf32>
    %36 = vector.shape_cast %35 : vector<5xf32> to vector<5x1xf32>
    %37 = arith.truncf %34 : vector<5x5xf32> to vector<5x5xbf16>
    %cst_10 = arith.constant dense<0.000000e+00> : vector<5x64xf32>
    %38 = tpu.matmul %37, %28, %cst_10 {dimension_numbers = #tpu.dot_dimension_numbers<[1], [0], [0], [1], [0, 0, 1, 1], [], []>} : vector<5x5xbf16>, vector<5x64xbf16>, vector<5x64xf32> -> vector<5x64xf32>
    %39 = tpu.reciprocal %36 {approx = true} : vector<5x1xf32> -> vector<5x1xf32>
    %40 = vector.broadcast %39 : vector<5x1xf32> to vector<5x64xf32>
    %41 = arith.mulf %38, %40 : vector<5x64xf32>
    %42 = tpu.concatenate %21, %41 in 1 : vector<5x64xf32>, vector<5x64xf32> -> vector<5x128xf32>
    %43 = arith.truncf %42 : vector<5x128xf32> to vector<5x128xbf16>
    %c0_11 = arith.constant 0 : index
    %c0_12 = arith.constant 0 : index
    %c0_13 = arith.constant 0 : index
    %44 = vector.load %arg3[%c0_11, %c0_12, %c0_13] : memref<1x5x128xbf16, #tpu.memory_space<vmem>>, vector<1x5x128xbf16>
    %45 = vector.shape_cast %44 : vector<1x5x128xbf16> to vector<5x128xbf16>
    %46 = vector.shape_cast %43 : vector<5x128xbf16> to vector<1x5x128xbf16>
    tpu.vector_store %arg3[%c0_11, %c0_12, %c0_13], %46 {strides = array<i32>} : memref<1x5x128xbf16, #tpu.memory_space<vmem>>, vector<1x5x128xbf16>,
    return
  }
  func.func @transform_0(%arg0: i32, %arg1: i32) -> (i32, i32, i32) {
    %c0_i32 = arith.constant 0 : i32
    %c0_i32_0 = arith.constant 0 : i32
    return %arg0, %c0_i32, %arg1 : i32, i32, i32
  }
  func.func @transform_1(%arg0: i32, %arg1: i32) -> (i32, i32, i32) {
    %c0_i32 = arith.constant 0 : i32
    %c0_i32_0 = arith.constant 0 : i32
    return %arg0, %c0_i32, %arg1 : i32, i32, i32
  }
}

module attributes {stable_mosaic.version = 11 : i64} {
  func.func @kernel(%arg0: i32, %arg1: i32, %arg2: memref<8x128xbf16, #tpu.memory_space<vmem>>, %arg3: memref<128x384xbf16, #tpu.memory_space<vmem>>, %arg4: memref<1x384xf32, #tpu.memory_space<vmem>>, %arg5: memref<1x128xf32, #tpu.memory_space<vmem>>, %arg6: memref<1x128xf32, #tpu.memory_space<vmem>>, %arg7: memref<8x384xbf16, #tpu.memory_space<vmem>>, %arg8: memref<8x128xbf16, #tpu.memory_space<vmem>>) attributes {dimension_semantics = [#tpu.dimension_semantics<parallel>, #tpu.dimension_semantics<arbitrary>], iteration_bounds = array<i64: 1, 1>, scalar_prefetch = 0 : i64, scratch_operands = 1 : i64, tpu.core_type = #tpu.core_type<tc>, window_params = [{transform_indices = @transform_0, window_bounds = array<i64: 8, 128>}, {transform_indices = @transform_1, window_bounds = array<i64: 128, 384>}, {transform_indices = @transform_2, window_bounds = array<i64: 1, 384>}, {pipeline_mode = #tpu.pipeline_mode<synchronous>, transform_indices = @transform_3, window_bounds = array<i64: 1, 128>}, {pipeline_mode = #tpu.pipeline_mode<synchronous>, transform_indices = @transform_4, window_bounds = array<i64: 1, 128>}, {transform_indices = @transform_5, window_bounds = array<i64: 8, 384>}]} {
    %c0_i32 = arith.constant 0 : i32
    %0 = arith.cmpi eq, %arg1, %c0_i32 : i32
    %1 = arith.extui %0 : i1 to i32
    %c0_i32_0 = arith.constant 0 : i32
    %2 = arith.cmpi ne, %1, %c0_i32_0 : i32
    scf.if %2 {
      %c0_8 = arith.constant 0 : index
      %c0_9 = arith.constant 0 : index
      %11 = vector.load %arg2[%c0_8, %c0_9] : memref<8x128xbf16, #tpu.memory_space<vmem>>, vector<8x128xbf16>
      %12 = arith.extf %11 : vector<8x128xbf16> to vector<8x128xf32>
      %c0_10 = arith.constant 0 : index
      %c0_11 = arith.constant 0 : index
      %13 = vector.load %arg5[%c0_10, %c0_11] : memref<1x128xf32, #tpu.memory_space<vmem>>, vector<1x128xf32>
      %c0_12 = arith.constant 0 : index
      %c0_13 = arith.constant 0 : index
      %14 = vector.load %arg6[%c0_12, %c0_13] : memref<1x128xf32, #tpu.memory_space<vmem>>, vector<1x128xf32>
      %cst_14 = arith.constant dense<0.000000e+00> : vector<8xf32>
      %15 = vector.multi_reduction <add>, %12, %cst_14 [1] : vector<8x128xf32> to vector<8xf32>
      %16 = vector.shape_cast %15 : vector<8xf32> to vector<8x1xf32>
      %cst_15 = arith.constant 1.280000e+02 : f32
      %17 = vector.broadcast %cst_15 : f32 to vector<8x1xf32>
      %18 = arith.divf %16, %17 : vector<8x1xf32>
      %19 = vector.broadcast %18 : vector<8x1xf32> to vector<8x128xf32>
      %20 = arith.subf %12, %19 : vector<8x128xf32>
      %21 = arith.mulf %20, %20 : vector<8x128xf32>
      %cst_16 = arith.constant dense<0.000000e+00> : vector<8xf32>
      %22 = vector.multi_reduction <add>, %21, %cst_16 [1] : vector<8x128xf32> to vector<8xf32>
      %23 = vector.shape_cast %22 : vector<8xf32> to vector<8x1xf32>
      %cst_17 = arith.constant 1.280000e+02 : f32
      %24 = vector.broadcast %cst_17 : f32 to vector<8x1xf32>
      %25 = arith.divf %23, %24 : vector<8x1xf32>
      %26 = vector.broadcast %18 : vector<8x1xf32> to vector<8x128xf32>
      %27 = arith.subf %12, %26 : vector<8x128xf32>
      %cst_18 = arith.constant 9.99999974E-6 : f32
      %28 = vector.broadcast %cst_18 : f32 to vector<8x1xf32>
      %29 = arith.addf %25, %28 : vector<8x1xf32>
      %30 = math.rsqrt %29 : vector<8x1xf32>
      %31 = vector.broadcast %30 : vector<8x1xf32> to vector<8x128xf32>
      %32 = arith.mulf %27, %31 : vector<8x128xf32>
      %33 = vector.broadcast %13 : vector<1x128xf32> to vector<8x128xf32>
      %34 = arith.mulf %32, %33 : vector<8x128xf32>
      %35 = vector.broadcast %14 : vector<1x128xf32> to vector<8x128xf32>
      %36 = arith.addf %34, %35 : vector<8x128xf32>
      %37 = arith.truncf %36 : vector<8x128xf32> to vector<8x128xbf16>
      %c0_19 = arith.constant 0 : index
      %c0_20 = arith.constant 0 : index
      %38 = vector.load %arg8[%c0_19, %c0_20] : memref<8x128xbf16, #tpu.memory_space<vmem>>, vector<8x128xbf16>
      tpu.vector_store %arg8[%c0_19, %c0_20], %37 {strides = array<i32>} : memref<8x128xbf16, #tpu.memory_space<vmem>>, vector<8x128xbf16>,
    } else {
    }
    %c0 = arith.constant 0 : index
    %c0_1 = arith.constant 0 : index
    %3 = vector.load %arg8[%c0, %c0_1] : memref<8x128xbf16, #tpu.memory_space<vmem>>, vector<8x128xbf16>
    %c0_2 = arith.constant 0 : index
    %c0_3 = arith.constant 0 : index
    %4 = vector.load %arg3[%c0_2, %c0_3] : memref<128x384xbf16, #tpu.memory_space<vmem>>, vector<128x384xbf16>
    %cst = arith.constant dense<0.000000e+00> : vector<8x384xf32>
    %5 = tpu.matmul %3, %4, %cst {dimension_numbers = #tpu.dot_dimension_numbers<[1], [0], [0], [1], [0, 0, 1, 1], [], []>} : vector<8x128xbf16>, vector<128x384xbf16>, vector<8x384xf32> -> vector<8x384xf32>
    %c0_4 = arith.constant 0 : index
    %c0_5 = arith.constant 0 : index
    %6 = vector.load %arg4[%c0_4, %c0_5] : memref<1x384xf32, #tpu.memory_space<vmem>>, vector<1x384xf32>
    %7 = vector.broadcast %6 : vector<1x384xf32> to vector<8x384xf32>
    %8 = arith.addf %5, %7 : vector<8x384xf32>
    %9 = arith.truncf %8 : vector<8x384xf32> to vector<8x384xbf16>
    %c0_6 = arith.constant 0 : index
    %c0_7 = arith.constant 0 : index
    %10 = vector.load %arg7[%c0_6, %c0_7] : memref<8x384xbf16, #tpu.memory_space<vmem>>, vector<8x384xbf16>
    tpu.vector_store %arg7[%c0_6, %c0_7], %9 {strides = array<i32>} : memref<8x384xbf16, #tpu.memory_space<vmem>>, vector<8x384xbf16>,
    return
  }
  func.func @transform_0(%arg0: i32, %arg1: i32) -> (i32, i32) {
    %c0_i32 = arith.constant 0 : i32
    %c0_i32_0 = arith.constant 0 : i32
    return %arg0, %c0_i32 : i32, i32
  }
  func.func @transform_1(%arg0: i32, %arg1: i32) -> (i32, i32) {
    %c0_i32 = arith.constant 0 : i32
    %c0_i32_0 = arith.constant 0 : i32
    return %c0_i32, %arg1 : i32, i32
  }
  func.func @transform_2(%arg0: i32, %arg1: i32) -> (i32, i32) {
    %c0_i32 = arith.constant 0 : i32
    %c0_i32_0 = arith.constant 0 : i32
    return %c0_i32, %arg1 : i32, i32
  }
  func.func @transform_3(%arg0: i32, %arg1: i32) -> (i32, i32) {
    %c0_i32 = arith.constant 0 : i32
    %c0_i32_0 = arith.constant 0 : i32
    %c0_i32_1 = arith.constant 0 : i32
    return %c0_i32, %c0_i32_0 : i32, i32
  }
  func.func @transform_4(%arg0: i32, %arg1: i32) -> (i32, i32) {
    %c0_i32 = arith.constant 0 : i32
    %c0_i32_0 = arith.constant 0 : i32
    %c0_i32_1 = arith.constant 0 : i32
    return %c0_i32, %c0_i32_0 : i32, i32
  }
  func.func @transform_5(%arg0: i32, %arg1: i32) -> (i32, i32) {
    %c0_i32 = arith.constant 0 : i32
    return %arg0, %arg1 : i32, i32
  }
}

module attributes {stable_mosaic.version = 11 : i64} {
  func.func @kernel(%arg0: i32, %arg1: i32, %arg2: memref<8x128xbf16, #tpu.memory_space<vmem>>, %arg3: memref<128x128xbf16, #tpu.memory_space<vmem>>, %arg4: memref<1x128xf32, #tpu.memory_space<vmem>>, %arg5: memref<1x128xf32, #tpu.memory_space<vmem>>, %arg6: memref<8x128xbf16, #tpu.memory_space<vmem>>, %arg7: memref<8x128xbf16, #tpu.memory_space<vmem>>) attributes {dimension_semantics = [#tpu.dimension_semantics<parallel>, #tpu.dimension_semantics<parallel>], iteration_bounds = array<i64: 1, 1>, scalar_prefetch = 0 : i64, scratch_operands = 0 : i64, tpu.core_type = #tpu.core_type<tc>, window_params = [{transform_indices = @transform_0, window_bounds = array<i64: 8, 128>}, {transform_indices = @transform_1, window_bounds = array<i64: 128, 128>}, {transform_indices = @transform_2, window_bounds = array<i64: 1, 128>}, {transform_indices = @transform_3, window_bounds = array<i64: 1, 128>}, {transform_indices = @transform_4, window_bounds = array<i64: 8, 128>}, {transform_indices = @transform_5, window_bounds = array<i64: 8, 128>}]} {
    %c0 = arith.constant 0 : index
    %c0_0 = arith.constant 0 : index
    %0 = vector.load %arg2[%c0, %c0_0] : memref<8x128xbf16, #tpu.memory_space<vmem>>, vector<8x128xbf16>
    %c0_1 = arith.constant 0 : index
    %c0_2 = arith.constant 0 : index
    %1 = vector.load %arg3[%c0_1, %c0_2] : memref<128x128xbf16, #tpu.memory_space<vmem>>, vector<128x128xbf16>
    %cst = arith.constant dense<0.000000e+00> : vector<8x128xf32>
    %2 = tpu.matmul %0, %1, %cst {dimension_numbers = #tpu.dot_dimension_numbers<[1], [0], [0], [1], [0, 0, 1, 1], [], []>} : vector<8x128xbf16>, vector<128x128xbf16>, vector<8x128xf32> -> vector<8x128xf32>
    %c0_3 = arith.constant 0 : index
    %c0_4 = arith.constant 0 : index
    %3 = vector.load %arg4[%c0_3, %c0_4] : memref<1x128xf32, #tpu.memory_space<vmem>>, vector<1x128xf32>
    %4 = vector.broadcast %3 : vector<1x128xf32> to vector<8x128xf32>
    %5 = arith.addf %2, %4 : vector<8x128xf32>
    %c0_5 = arith.constant 0 : index
    %c0_6 = arith.constant 0 : index
    %6 = vector.load %arg5[%c0_5, %c0_6] : memref<1x128xf32, #tpu.memory_space<vmem>>, vector<1x128xf32>
    %7 = vector.broadcast %6 : vector<1x128xf32> to vector<8x128xf32>
    %8 = arith.mulf %5, %7 : vector<8x128xf32>
    %c0_7 = arith.constant 0 : index
    %c0_8 = arith.constant 0 : index
    %9 = vector.load %arg6[%c0_7, %c0_8] : memref<8x128xbf16, #tpu.memory_space<vmem>>, vector<8x128xbf16>
    %10 = arith.extf %9 : vector<8x128xbf16> to vector<8x128xf32>
    %11 = arith.addf %8, %10 : vector<8x128xf32>
    %12 = arith.truncf %11 : vector<8x128xf32> to vector<8x128xbf16>
    %c0_9 = arith.constant 0 : index
    %c0_10 = arith.constant 0 : index
    %13 = vector.load %arg7[%c0_9, %c0_10] : memref<8x128xbf16, #tpu.memory_space<vmem>>, vector<8x128xbf16>
    tpu.vector_store %arg7[%c0_9, %c0_10], %12 {strides = array<i32>} : memref<8x128xbf16, #tpu.memory_space<vmem>>, vector<8x128xbf16>,
    return
  }
  func.func @transform_0(%arg0: i32, %arg1: i32) -> (i32, i32) {
    %c0_i32 = arith.constant 0 : i32
    %c0_i32_0 = arith.constant 0 : i32
    return %arg0, %c0_i32 : i32, i32
  }
  func.func @transform_1(%arg0: i32, %arg1: i32) -> (i32, i32) {
    %c0_i32 = arith.constant 0 : i32
    %c0_i32_0 = arith.constant 0 : i32
    return %c0_i32, %arg1 : i32, i32
  }
  func.func @transform_2(%arg0: i32, %arg1: i32) -> (i32, i32) {
    %c0_i32 = arith.constant 0 : i32
    %c0_i32_0 = arith.constant 0 : i32
    return %c0_i32, %arg1 : i32, i32
  }
  func.func @transform_3(%arg0: i32, %arg1: i32) -> (i32, i32) {
    %c0_i32 = arith.constant 0 : i32
    %c0_i32_0 = arith.constant 0 : i32
    return %c0_i32, %arg1 : i32, i32
  }
  func.func @transform_4(%arg0: i32, %arg1: i32) -> (i32, i32) {
    %c0_i32 = arith.constant 0 : i32
    return %arg0, %arg1 : i32, i32
  }
  func.func @transform_5(%arg0: i32, %arg1: i32) -> (i32, i32) {
    %c0_i32 = arith.constant 0 : i32
    return %arg0, %arg1 : i32, i32
  }
}

module attributes {stable_mosaic.version = 11 : i64} {
  func.func @kernel(%arg0: i32, %arg1: i32, %arg2: memref<8x128xbf16, #tpu.memory_space<vmem>>, %arg3: memref<128x512xbf16, #tpu.memory_space<vmem>>, %arg4: memref<1x512xf32, #tpu.memory_space<vmem>>, %arg5: memref<1x128xf32, #tpu.memory_space<vmem>>, %arg6: memref<1x128xf32, #tpu.memory_space<vmem>>, %arg7: memref<8x512xbf16, #tpu.memory_space<vmem>>, %arg8: memref<8x128xbf16, #tpu.memory_space<vmem>>) attributes {dimension_semantics = [#tpu.dimension_semantics<parallel>, #tpu.dimension_semantics<arbitrary>], iteration_bounds = array<i64: 1, 1>, scalar_prefetch = 0 : i64, scratch_operands = 1 : i64, tpu.core_type = #tpu.core_type<tc>, window_params = [{transform_indices = @transform_0, window_bounds = array<i64: 8, 128>}, {transform_indices = @transform_1, window_bounds = array<i64: 128, 512>}, {transform_indices = @transform_2, window_bounds = array<i64: 1, 512>}, {pipeline_mode = #tpu.pipeline_mode<synchronous>, transform_indices = @transform_3, window_bounds = array<i64: 1, 128>}, {pipeline_mode = #tpu.pipeline_mode<synchronous>, transform_indices = @transform_4, window_bounds = array<i64: 1, 128>}, {transform_indices = @transform_5, window_bounds = array<i64: 8, 512>}]} {
    %c0_i32 = arith.constant 0 : i32
    %0 = arith.cmpi eq, %arg1, %c0_i32 : i32
    %1 = arith.extui %0 : i1 to i32
    %c0_i32_0 = arith.constant 0 : i32
    %2 = arith.cmpi ne, %1, %c0_i32_0 : i32
    scf.if %2 {
      %c0_23 = arith.constant 0 : index
      %c0_24 = arith.constant 0 : index
      %51 = vector.load %arg2[%c0_23, %c0_24] : memref<8x128xbf16, #tpu.memory_space<vmem>>, vector<8x128xbf16>
      %52 = arith.extf %51 : vector<8x128xbf16> to vector<8x128xf32>
      %c0_25 = arith.constant 0 : index
      %c0_26 = arith.constant 0 : index
      %53 = vector.load %arg5[%c0_25, %c0_26] : memref<1x128xf32, #tpu.memory_space<vmem>>, vector<1x128xf32>
      %c0_27 = arith.constant 0 : index
      %c0_28 = arith.constant 0 : index
      %54 = vector.load %arg6[%c0_27, %c0_28] : memref<1x128xf32, #tpu.memory_space<vmem>>, vector<1x128xf32>
      %cst_29 = arith.constant dense<0.000000e+00> : vector<8xf32>
      %55 = vector.multi_reduction <add>, %52, %cst_29 [1] : vector<8x128xf32> to vector<8xf32>
      %56 = vector.shape_cast %55 : vector<8xf32> to vector<8x1xf32>
      %cst_30 = arith.constant 1.280000e+02 : f32
      %57 = vector.broadcast %cst_30 : f32 to vector<8x1xf32>
      %58 = arith.divf %56, %57 : vector<8x1xf32>
      %59 = vector.broadcast %58 : vector<8x1xf32> to vector<8x128xf32>
      %60 = arith.subf %52, %59 : vector<8x128xf32>
      %61 = arith.mulf %60, %60 : vector<8x128xf32>
      %cst_31 = arith.constant dense<0.000000e+00> : vector<8xf32>
      %62 = vector.multi_reduction <add>, %61, %cst_31 [1] : vector<8x128xf32> to vector<8xf32>
      %63 = vector.shape_cast %62 : vector<8xf32> to vector<8x1xf32>
      %cst_32 = arith.constant 1.280000e+02 : f32
      %64 = vector.broadcast %cst_32 : f32 to vector<8x1xf32>
      %65 = arith.divf %63, %64 : vector<8x1xf32>
      %66 = vector.broadcast %58 : vector<8x1xf32> to vector<8x128xf32>
      %67 = arith.subf %52, %66 : vector<8x128xf32>
      %cst_33 = arith.constant 9.99999974E-6 : f32
      %68 = vector.broadcast %cst_33 : f32 to vector<8x1xf32>
      %69 = arith.addf %65, %68 : vector<8x1xf32>
      %70 = math.rsqrt %69 : vector<8x1xf32>
      %71 = vector.broadcast %70 : vector<8x1xf32> to vector<8x128xf32>
      %72 = arith.mulf %67, %71 : vector<8x128xf32>
      %73 = vector.broadcast %53 : vector<1x128xf32> to vector<8x128xf32>
      %74 = arith.mulf %72, %73 : vector<8x128xf32>
      %75 = vector.broadcast %54 : vector<1x128xf32> to vector<8x128xf32>
      %76 = arith.addf %74, %75 : vector<8x128xf32>
      %77 = arith.truncf %76 : vector<8x128xf32> to vector<8x128xbf16>
      %c0_34 = arith.constant 0 : index
      %c0_35 = arith.constant 0 : index
      %78 = vector.load %arg8[%c0_34, %c0_35] : memref<8x128xbf16, #tpu.memory_space<vmem>>, vector<8x128xbf16>
      tpu.vector_store %arg8[%c0_34, %c0_35], %77 {strides = array<i32>} : memref<8x128xbf16, #tpu.memory_space<vmem>>, vector<8x128xbf16>,
    } else {
    }
    %c0 = arith.constant 0 : index
    %c0_1 = arith.constant 0 : index
    %3 = vector.load %arg8[%c0, %c0_1] : memref<8x128xbf16, #tpu.memory_space<vmem>>, vector<8x128xbf16>
    %c0_2 = arith.constant 0 : index
    %c0_3 = arith.constant 0 : index
    %4 = vector.load %arg3[%c0_2, %c0_3] : memref<128x512xbf16, #tpu.memory_space<vmem>>, vector<128x512xbf16>
    %cst = arith.constant dense<0.000000e+00> : vector<8x512xf32>
    %5 = tpu.matmul %3, %4, %cst {dimension_numbers = #tpu.dot_dimension_numbers<[1], [0], [0], [1], [0, 0, 1, 1], [], []>} : vector<8x128xbf16>, vector<128x512xbf16>, vector<8x512xf32> -> vector<8x512xf32>
    %c0_4 = arith.constant 0 : index
    %c0_5 = arith.constant 0 : index
    %6 = vector.load %arg4[%c0_4, %c0_5] : memref<1x512xf32, #tpu.memory_space<vmem>>, vector<1x512xf32>
    %7 = vector.broadcast %6 : vector<1x512xf32> to vector<8x512xf32>
    %8 = arith.addf %5, %7 : vector<8x512xf32>
    %cst_6 = arith.constant 5.000000e-01 : f32
    %9 = vector.broadcast %cst_6 : f32 to vector<8x512xf32>
    %10 = arith.mulf %9, %8 : vector<8x512xf32>
    %cst_7 = arith.constant 0.707106769 : f32
    %11 = vector.broadcast %cst_7 : f32 to vector<8x512xf32>
    %12 = arith.mulf %8, %11 : vector<8x512xf32>
    %13 = math.absf %12 : vector<8x512xf32>
    %cst_8 = arith.constant 0.327591091 : f32
    %14 = vector.broadcast %cst_8 : f32 to vector<8x512xf32>
    %15 = arith.mulf %14, %13 : vector<8x512xf32>
    %cst_9 = arith.constant 1.000000e+00 : f32
    %16 = vector.broadcast %cst_9 : f32 to vector<8x512xf32>
    %17 = arith.addf %16, %15 : vector<8x512xf32>
    %cst_10 = arith.constant 1.000000e+00 : f32
    %18 = vector.broadcast %cst_10 : f32 to vector<8x512xf32>
    %19 = arith.divf %18, %17 : vector<8x512xf32>
    %cst_11 = arith.constant 1.06140542 : f32
    %20 = vector.broadcast %cst_11 : f32 to vector<8x512xf32>
    %21 = arith.mulf %20, %19 : vector<8x512xf32>
    %cst_12 = arith.constant -1.45315206 : f32
    %22 = vector.broadcast %cst_12 : f32 to vector<8x512xf32>
    %23 = arith.addf %21, %22 : vector<8x512xf32>
    %24 = arith.mulf %23, %19 : vector<8x512xf32>
    %cst_13 = arith.constant 1.42141378 : f32
    %25 = vector.broadcast %cst_13 : f32 to vector<8x512xf32>
    %26 = arith.addf %24, %25 : vector<8x512xf32>
    %27 = arith.mulf %26, %19 : vector<8x512xf32>
    %cst_14 = arith.constant -0.284496725 : f32
    %28 = vector.broadcast %cst_14 : f32 to vector<8x512xf32>
    %29 = arith.addf %27, %28 : vector<8x512xf32>
    %30 = arith.mulf %29, %19 : vector<8x512xf32>
    %cst_15 = arith.constant 0.254829586 : f32
    %31 = vector.broadcast %cst_15 : f32 to vector<8x512xf32>
    %32 = arith.addf %30, %31 : vector<8x512xf32>
    %33 = arith.mulf %32, %19 : vector<8x512xf32>
    %cst_16 = arith.constant 0.000000e+00 : f32
    %34 = vector.broadcast %cst_16 : f32 to vector<8x512xf32>
    %35 = arith.subf %34, %13 : vector<8x512xf32>
    %36 = arith.mulf %35, %13 : vector<8x512xf32>
    %37 = math.exp %36 : vector<8x512xf32>
    %38 = arith.mulf %33, %37 : vector<8x512xf32>
    %cst_17 = arith.constant 1.000000e+00 : f32
    %39 = vector.broadcast %cst_17 : f32 to vector<8x512xf32>
    %40 = arith.subf %39, %38 : vector<8x512xf32>
    %cst_18 = arith.constant 0.000000e+00 : f32
    %41 = vector.broadcast %cst_18 : f32 to vector<8x512xf32>
    %42 = arith.cmpf oge, %12, %41 : vector<8x512xf32>
    %cst_19 = arith.constant 0.000000e+00 : f32
    %43 = vector.broadcast %cst_19 : f32 to vector<8x512xf32>
    %44 = arith.subf %43, %40 : vector<8x512xf32>
    %45 = arith.select %42, %40, %44 : vector<8x512xi1>, vector<8x512xf32>
    %cst_20 = arith.constant 1.000000e+00 : f32
    %46 = vector.broadcast %cst_20 : f32 to vector<8x512xf32>
    %47 = arith.addf %46, %45 : vector<8x512xf32>
    %48 = arith.mulf %10, %47 : vector<8x512xf32>
    %49 = arith.truncf %48 : vector<8x512xf32> to vector<8x512xbf16>
    %c0_21 = arith.constant 0 : index
    %c0_22 = arith.constant 0 : index
    %50 = vector.load %arg7[%c0_21, %c0_22] : memref<8x512xbf16, #tpu.memory_space<vmem>>, vector<8x512xbf16>
    tpu.vector_store %arg7[%c0_21, %c0_22], %49 {strides = array<i32>} : memref<8x512xbf16, #tpu.memory_space<vmem>>, vector<8x512xbf16>,
    return
  }
  func.func @transform_0(%arg0: i32, %arg1: i32) -> (i32, i32) {
    %c0_i32 = arith.constant 0 : i32
    %c0_i32_0 = arith.constant 0 : i32
    return %arg0, %c0_i32 : i32, i32
  }
  func.func @transform_1(%arg0: i32, %arg1: i32) -> (i32, i32) {
    %c0_i32 = arith.constant 0 : i32
    %c0_i32_0 = arith.constant 0 : i32
    return %c0_i32, %arg1 : i32, i32
  }
  func.func @transform_2(%arg0: i32, %arg1: i32) -> (i32, i32) {
    %c0_i32 = arith.constant 0 : i32
    %c0_i32_0 = arith.constant 0 : i32
    return %c0_i32, %arg1 : i32, i32
  }
  func.func @transform_3(%arg0: i32, %arg1: i32) -> (i32, i32) {
    %c0_i32 = arith.constant 0 : i32
    %c0_i32_0 = arith.constant 0 : i32
    %c0_i32_1 = arith.constant 0 : i32
    return %c0_i32, %c0_i32_0 : i32, i32
  }
  func.func @transform_4(%arg0: i32, %arg1: i32) -> (i32, i32) {
    %c0_i32 = arith.constant 0 : i32
    %c0_i32_0 = arith.constant 0 : i32
    %c0_i32_1 = arith.constant 0 : i32
    return %c0_i32, %c0_i32_0 : i32, i32
  }
  func.func @transform_5(%arg0: i32, %arg1: i32) -> (i32, i32) {
    %c0_i32 = arith.constant 0 : i32
    return %arg0, %arg1 : i32, i32
  }
}

module attributes {stable_mosaic.version = 11 : i64} {
  func.func @kernel(%arg0: i32, %arg1: i32, %arg2: memref<8x512xbf16, #tpu.memory_space<vmem>>, %arg3: memref<512x128xbf16, #tpu.memory_space<vmem>>, %arg4: memref<1x128xf32, #tpu.memory_space<vmem>>, %arg5: memref<1x128xf32, #tpu.memory_space<vmem>>, %arg6: memref<8x128xbf16, #tpu.memory_space<vmem>>, %arg7: memref<8x128xbf16, #tpu.memory_space<vmem>>) attributes {dimension_semantics = [#tpu.dimension_semantics<parallel>, #tpu.dimension_semantics<parallel>], iteration_bounds = array<i64: 1, 1>, scalar_prefetch = 0 : i64, scratch_operands = 0 : i64, tpu.core_type = #tpu.core_type<tc>, window_params = [{transform_indices = @transform_0, window_bounds = array<i64: 8, 512>}, {transform_indices = @transform_1, window_bounds = array<i64: 512, 128>}, {transform_indices = @transform_2, window_bounds = array<i64: 1, 128>}, {transform_indices = @transform_3, window_bounds = array<i64: 1, 128>}, {transform_indices = @transform_4, window_bounds = array<i64: 8, 128>}, {transform_indices = @transform_5, window_bounds = array<i64: 8, 128>}]} {
    %c0 = arith.constant 0 : index
    %c0_0 = arith.constant 0 : index
    %0 = vector.load %arg2[%c0, %c0_0] : memref<8x512xbf16, #tpu.memory_space<vmem>>, vector<8x512xbf16>
    %c0_1 = arith.constant 0 : index
    %c0_2 = arith.constant 0 : index
    %1 = vector.load %arg3[%c0_1, %c0_2] : memref<512x128xbf16, #tpu.memory_space<vmem>>, vector<512x128xbf16>
    %cst = arith.constant dense<0.000000e+00> : vector<8x128xf32>
    %2 = tpu.matmul %0, %1, %cst {dimension_numbers = #tpu.dot_dimension_numbers<[1], [0], [0], [1], [0, 0, 1, 1], [], []>} : vector<8x512xbf16>, vector<512x128xbf16>, vector<8x128xf32> -> vector<8x128xf32>
    %c0_3 = arith.constant 0 : index
    %c0_4 = arith.constant 0 : index
    %3 = vector.load %arg4[%c0_3, %c0_4] : memref<1x128xf32, #tpu.memory_space<vmem>>, vector<1x128xf32>
    %4 = vector.broadcast %3 : vector<1x128xf32> to vector<8x128xf32>
    %5 = arith.addf %2, %4 : vector<8x128xf32>
    %c0_5 = arith.constant 0 : index
    %c0_6 = arith.constant 0 : index
    %6 = vector.load %arg5[%c0_5, %c0_6] : memref<1x128xf32, #tpu.memory_space<vmem>>, vector<1x128xf32>
    %7 = vector.broadcast %6 : vector<1x128xf32> to vector<8x128xf32>
    %8 = arith.mulf %5, %7 : vector<8x128xf32>
    %c0_7 = arith.constant 0 : index
    %c0_8 = arith.constant 0 : index
    %9 = vector.load %arg6[%c0_7, %c0_8] : memref<8x128xbf16, #tpu.memory_space<vmem>>, vector<8x128xbf16>
    %10 = arith.extf %9 : vector<8x128xbf16> to vector<8x128xf32>
    %11 = arith.addf %8, %10 : vector<8x128xf32>
    %12 = arith.truncf %11 : vector<8x128xf32> to vector<8x128xbf16>
    %c0_9 = arith.constant 0 : index
    %c0_10 = arith.constant 0 : index
    %13 = vector.load %arg7[%c0_9, %c0_10] : memref<8x128xbf16, #tpu.memory_space<vmem>>, vector<8x128xbf16>
    tpu.vector_store %arg7[%c0_9, %c0_10], %12 {strides = array<i32>} : memref<8x128xbf16, #tpu.memory_space<vmem>>, vector<8x128xbf16>,
    return
  }
  func.func @transform_0(%arg0: i32, %arg1: i32) -> (i32, i32) {
    %c0_i32 = arith.constant 0 : i32
    %c0_i32_0 = arith.constant 0 : i32
    return %arg0, %c0_i32 : i32, i32
  }
  func.func @transform_1(%arg0: i32, %arg1: i32) -> (i32, i32) {
    %c0_i32 = arith.constant 0 : i32
    %c0_i32_0 = arith.constant 0 : i32
    return %c0_i32, %arg1 : i32, i32
  }
  func.func @transform_2(%arg0: i32, %arg1: i32) -> (i32, i32) {
    %c0_i32 = arith.constant 0 : i32
    %c0_i32_0 = arith.constant 0 : i32
    return %c0_i32, %arg1 : i32, i32
  }
  func.func @transform_3(%arg0: i32, %arg1: i32) -> (i32, i32) {
    %c0_i32 = arith.constant 0 : i32
    %c0_i32_0 = arith.constant 0 : i32
    return %c0_i32, %arg1 : i32, i32
  }
  func.func @transform_4(%arg0: i32, %arg1: i32) -> (i32, i32) {
    %c0_i32 = arith.constant 0 : i32
    return %arg0, %arg1 : i32, i32
  }
  func.func @transform_5(%arg0: i32, %arg1: i32) -> (i32, i32) {
    %c0_i32 = arith.constant 0 : i32
    return %arg0, %arg1 : i32, i32
  }
}

module attributes {stable_mosaic.version = 11 : i64} {
  func.func @kernel(%arg0: i32, %arg1: memref<5x128xbf16, #tpu.memory_space<vmem>>, %arg2: memref<1x128xf32, #tpu.memory_space<vmem>>, %arg3: memref<1x128xf32, #tpu.memory_space<vmem>>, %arg4: memref<5x128xf32, #tpu.memory_space<vmem>>) attributes {dimension_semantics = [#tpu.dimension_semantics<arbitrary>], iteration_bounds = array<i64: 1>, scalar_prefetch = 0 : i64, scratch_operands = 0 : i64, tpu.core_type = #tpu.core_type<tc>, window_params = [{pipeline_mode = #tpu.pipeline_mode<synchronous>, transform_indices = @transform_0, window_bounds = array<i64: 5, 128>}, {pipeline_mode = #tpu.pipeline_mode<synchronous>, transform_indices = @transform_1, window_bounds = array<i64: 1, 128>}, {pipeline_mode = #tpu.pipeline_mode<synchronous>, transform_indices = @transform_2, window_bounds = array<i64: 1, 128>}, {pipeline_mode = #tpu.pipeline_mode<synchronous>, transform_indices = @transform_3, window_bounds = array<i64: 5, 128>}]} {
    %c0 = arith.constant 0 : index
    %c0_0 = arith.constant 0 : index
    %0 = vector.load %arg1[%c0, %c0_0] : memref<5x128xbf16, #tpu.memory_space<vmem>>, vector<5x128xbf16>
    %1 = arith.extf %0 : vector<5x128xbf16> to vector<5x128xf32>
    %c0_1 = arith.constant 0 : index
    %c0_2 = arith.constant 0 : index
    %2 = vector.load %arg2[%c0_1, %c0_2] : memref<1x128xf32, #tpu.memory_space<vmem>>, vector<1x128xf32>
    %c0_3 = arith.constant 0 : index
    %c0_4 = arith.constant 0 : index
    %3 = vector.load %arg3[%c0_3, %c0_4] : memref<1x128xf32, #tpu.memory_space<vmem>>, vector<1x128xf32>
    %cst = arith.constant dense<0.000000e+00> : vector<5xf32>
    %4 = vector.multi_reduction <add>, %1, %cst [1] : vector<5x128xf32> to vector<5xf32>
    %5 = vector.shape_cast %4 : vector<5xf32> to vector<5x1xf32>
    %cst_5 = arith.constant 1.280000e+02 : f32
    %6 = vector.broadcast %cst_5 : f32 to vector<5x1xf32>
    %7 = arith.divf %5, %6 : vector<5x1xf32>
    %8 = vector.broadcast %7 : vector<5x1xf32> to vector<5x128xf32>
    %9 = arith.subf %1, %8 : vector<5x128xf32>
    %10 = arith.mulf %9, %9 : vector<5x128xf32>
    %cst_6 = arith.constant dense<0.000000e+00> : vector<5xf32>
    %11 = vector.multi_reduction <add>, %10, %cst_6 [1] : vector<5x128xf32> to vector<5xf32>
    %12 = vector.shape_cast %11 : vector<5xf32> to vector<5x1xf32>
    %cst_7 = arith.constant 1.280000e+02 : f32
    %13 = vector.broadcast %cst_7 : f32 to vector<5x1xf32>
    %14 = arith.divf %12, %13 : vector<5x1xf32>
    %15 = vector.broadcast %7 : vector<5x1xf32> to vector<5x128xf32>
    %16 = arith.subf %1, %15 : vector<5x128xf32>
    %cst_8 = arith.constant 9.99999974E-6 : f32
    %17 = vector.broadcast %cst_8 : f32 to vector<5x1xf32>
    %18 = arith.addf %14, %17 : vector<5x1xf32>
    %19 = math.rsqrt %18 : vector<5x1xf32>
    %20 = vector.broadcast %19 : vector<5x1xf32> to vector<5x128xf32>
    %21 = arith.mulf %16, %20 : vector<5x128xf32>
    %22 = vector.broadcast %2 : vector<1x128xf32> to vector<5x128xf32>
    %23 = arith.mulf %21, %22 : vector<5x128xf32>
    %24 = vector.broadcast %3 : vector<1x128xf32> to vector<5x128xf32>
    %25 = arith.addf %23, %24 : vector<5x128xf32>
    %c0_9 = arith.constant 0 : index
    %c0_10 = arith.constant 0 : index
    %26 = vector.load %arg4[%c0_9, %c0_10] : memref<5x128xf32, #tpu.memory_space<vmem>>, vector<5x128xf32>
    tpu.vector_store %arg4[%c0_9, %c0_10], %25 {strides = array<i32>} : memref<5x128xf32, #tpu.memory_space<vmem>>, vector<5x128xf32>,
    return
  }
  func.func @transform_0(%arg0: i32) -> (i32, i32) {
    %c0_i32 = arith.constant 0 : i32
    %c0_i32_0 = arith.constant 0 : i32
    %c0_i32_1 = arith.constant 0 : i32
    return %c0_i32, %c0_i32_0 : i32, i32
  }
  func.func @transform_1(%arg0: i32) -> (i32, i32) {
    %c0_i32 = arith.constant 0 : i32
    %c0_i32_0 = arith.constant 0 : i32
    %c0_i32_1 = arith.constant 0 : i32
    return %c0_i32, %c0_i32_0 : i32, i32
  }
  func.func @transform_2(%arg0: i32) -> (i32, i32) {
    %c0_i32 = arith.constant 0 : i32
    %c0_i32_0 = arith.constant 0 : i32
    %c0_i32_1 = arith.constant 0 : i32
    return %c0_i32, %c0_i32_0 : i32, i32
  }
  func.func @transform_3(%arg0: i32) -> (i32, i32) {
    %c0_i32 = arith.constant 0 : i32
    %c0_i32_0 = arith.constant 0 : i32
    %c0_i32_1 = arith.constant 0 : i32
    return %c0_i32, %c0_i32_0 : i32, i32
  }
}

</mosaic_0001>

<llo_original>
// kernel: _lambda_.25
$region0: #{_lambda_.25}
  #allocation0 [shape = 'u32[]', space=smem, size = 0x4, offset = 0x4, fixed_abs, tag = 'smem constant byte address 0x4 - core index']
  #allocation1 [shape = 'u32[72,128]{1,0:T(1,128)}', space=vmem, size = 0x9000, scoped, tag = 'internal scratch']
  %s0 = inlined_call_operand.vmem [shape: bf16[4,5,768], index: 0, kind: input, shape index: {}]
  %s1 = inlined_call_operand.vmem [shape: bf16[4,5,256], index: 1, kind: output, shape index: {}]
  %s2 = sld [smem:[#allocation0]]
  $region37: #{_lambda_.25} parent=0
    _
  %s4 = ssub.s32 1, %s2
  %s5 = scalar_select 0, %s4, %s2
  loop: start=0, step=1, limit=10
  $region2: #{_lambda_.25} parent=0 // loop_pre_header
    _
  $region3: #{_lambda_.25} parent=0 // loop_header
    %s7 = sphi 0, %s11
    %p8 = scmp.ge.s32.totalorder %s7, 10
    %s14 = sphi 0, %s26
    %s15 = sphi 0, %s22
    %s16 = sphi 0, %s14
    %s17 = sphi 0, %s15
    %s18 = sphi 0, %s16
    %s19 = sphi 0, %s17
    %s31 = sphi 0, %s33
    %s34 = sphi 0, %s31
    %s35 = sphi 0, %s34
    %s51 = sphi 0, %s35
    %s59 = sphi 0, %s61
    %s62 = sphi 0, %s59
    %s63 = sphi 0, %s62
    %s79 = sphi 0, %s63
  $region4: #{_lambda_.25} parent=0 // loop_header_branch
    %10 = sbr.rel (%p8) target = $region8
  $region5: #{_lambda_.25} parent=0 // loop_body
    %s12 = ssub.s32 %s7, 1
    %s13 = ssub.s32 %s7, 2
    %s20 = sadd.s32 1, %s15
    %p21 = scmp.ge.s32.totalorder %s20, 2
    %s22 = scalar_select %p21, 0, %s20
    %s23 = sadd.s32 1, %s14
    %s24 = scalar_select %p21, %s23, %s14
    %p25 = scmp.ge.s32.totalorder %s24, 4
    %s26 = scalar_select %p25, 0, %s24
    %s27 = ssub.s32 %s14, %s26
    %s28 = ssub.s32 %s15, %s22
    %s29 = sor.u32 %s27, %s28
    %p30 = scmp.eq.s32.totalorder %s29, 0
    %s32 = sadd.s32 %s31, 1
    %s33 = scalar_select %p30, %s31, %s32
    %p36 = pneg %p30
    %p37 = scmp.eq.s32.totalorder %s7, 7
    %p38 = por %p36, %p37
    %p39 = scmp.ne.s32.totalorder %s31, %s34
    %p40 = scmp.eq.s32.totalorder %s7, 0
    %p41 = por %p39, %p40
    %p42 = scmp.ne.s32.totalorder %s31, %s34
    %p43 = scmp.eq.s32.totalorder %s12, 7
    %p44 = por %p42, %p43
    %p45 = scmp.ne.s32.totalorder %s34, %s35
    %p46 = scmp.eq.s32.totalorder %s12, 0
    %p47 = por %p45, %p46
    %p48 = scmp.ne.s32.totalorder %s34, %s35
    %p49 = scmp.eq.s32.totalorder %s13, 7
    %p50 = por %p48, %p49
    %p52 = scmp.ne.s32.totalorder %s35, %s51
    %p53 = scmp.eq.s32.totalorder %s13, 0
    %p54 = por %p52, %p53
    %s55 = ssub.s32 %s14, %s26
    %s56 = ssub.s32 %s15, %s22
    %s57 = sor.u32 %s55, %s56
    %p58 = scmp.eq.s32.totalorder %s57, 0
    %s60 = sadd.s32 %s59, 1
    %s61 = scalar_select %p58, %s59, %s60
    %p64 = pneg %p58
    %p65 = scmp.eq.s32.totalorder %s7, 7
    %p66 = por %p64, %p65
    %p67 = scmp.ne.s32.totalorder %s59, %s62
    %p68 = scmp.eq.s32.totalorder %s7, 0
    %p69 = por %p67, %p68
    %p70 = scmp.ne.s32.totalorder %s59, %s62
    %p71 = scmp.eq.s32.totalorder %s12, 7
    %p72 = por %p70, %p71
    %p73 = scmp.ne.s32.totalorder %s62, %s63
    %p74 = scmp.eq.s32.totalorder %s12, 0
    %p75 = por %p73, %p74
    %p76 = scmp.ne.s32.totalorder %s62, %s63
    %p77 = scmp.eq.s32.totalorder %s13, 7
    %p78 = por %p76, %p77
    %p80 = scmp.ne.s32.totalorder %s63, %s79
    %p81 = scmp.eq.s32.totalorder %s13, 0
    %p82 = por %p80, %p81
    %p83 = scmp.le.s32.totalorder 1, %s7
    %p84 = scmp.lt.s32.totalorder %s7, 9
    %p85 = pnand %p83, %p84
    %p86 = pneg %p85
    // Predicated region
    $region9: #{_lambda_.25} parent=5 // pred_check
      _
    $region10: #{_lambda_.25} parent=5 // pred_check_branch
      %88 = sbr.rel (%p85) target = $region12
    $region11: #{_lambda_.25} parent=5 // pred_region
      %s89 = ssub.s32 %s7, 1
    $region12: #{_lambda_.25} parent=5 // pred_fallthru
      _
    %p90 = scmp.lt.s32.totalorder %s7, 8
    // Predicated region
    $region13: #{_lambda_.25} parent=5 // pred_check
      %p91 = pneg %p90
    $region14: #{_lambda_.25} parent=5 // pred_check_branch
      %93 = sbr.rel (%p91) target = $region16
    $region15: #{_lambda_.25} parent=5 // pred_region
      // Predicated region
      $region17: #{_lambda_.25} parent=15 // pred_check
        %p94 = pneg %p41
      $region18: #{_lambda_.25} parent=15 // pred_check_branch
        %96 = sbr.rel (%p94) target = $region20
      $region19: #{_lambda_.25} parent=15 // pred_region
        %s97 = smul.u32 3, %s15
        %p98 = scmp.lt.s32.totalorder %s14, 3
        %s99 = scalar_select %p98, %s14, 3
        %p100 = scmp.lt.s32.totalorder %s97, 5
        %s101 = scalar_select %p100, %s97, 5
        %s102 = smul.addr %s99, 6
        %s103 = sadd.s32 %s101, %s102
        %s104 = smul.addr %s103, 4
        %s105 = scalar_lea.vmem %s0, %s104
        %s106 = smul.u32 3, %s15
      $region20: #{_lambda_.25} parent=15 // pred_fallthru
        _
    $region16: #{_lambda_.25} parent=5 // pred_fallthru
      _
    %p107 = scmp.le.s32.totalorder 1, %s7
    %p108 = scmp.lt.s32.totalorder %s7, 9
    %p109 = pnand %p107, %p108
    %p110 = pneg %p109
    // Predicated region
    $region21: #{_lambda_.25} parent=5 // pred_check
      _
    $region22: #{_lambda_.25} parent=5 // pred_check_branch
      %112 = sbr.rel (%p109) target = $region24
    $region23: #{_lambda_.25} parent=5 // pred_region
      %s113 = ssub.s32 %s7, 1
      %s114 = smul.u32 3, %s17
      %p115 = scmp.lt.s32.totalorder %s16, 3
      %s116 = scalar_select %p115, %s16, 3
      %p117 = scmp.lt.s32.totalorder %s114, 5
      %s118 = scalar_select %p117, %s114, 5
      %s119 = smul.addr %s116, 6
      %s120 = sadd.s32 %s118, %s119
      %s121 = smul.addr %s120, 4
      %s122 = scalar_lea.vmem %s0, %s121
      %p123 = pneg %p47
      %p124 = pneg %p44
      %p125 = pneg %p75
      %p126 = pneg %p72
      %p127 = scmp.lt.s32.totalorder %s16, 3
      %s128 = scalar_select %p127, %s16, 3
      %p129 = scmp.lt.s32.totalorder %s17, 1
      %s130 = scalar_select %p129, %s17, 1
      %s131 = smul.addr %s128, 2
      %s132 = sadd.s32 %s130, %s131
      %s133 = smul.addr %s132, 4
      %s134 = scalar_lea.vmem %s1, %s133
      %s135 = smul.u32 3, %s17
      %p136 = scmp.lt.s32.totalorder %s16, 3
      %s137 = scalar_select %p136, %s16, 3
      %p138 = scmp.lt.s32.totalorder %s135, 5
      %s139 = scalar_select %p138, %s135, 5
      %s140 = smul.addr %s137, 6
      %s141 = sadd.s32 %s139, %s140
      %s142 = smul.addr %s141, 4
      %s143 = scalar_lea.vmem %s0, %s142
      %s144 = smul.u32 3, %s17
      %p145 = scmp.lt.s32.totalorder %s16, 3
      %s146 = scalar_select %p145, %s16, 3
      %p147 = scmp.lt.s32.totalorder %s17, 1
      %s148 = scalar_select %p147, %s17, 1
      %s149 = smul.addr %s146, 2
      %s150 = sadd.s32 %s148, %s149
      %s151 = smul.addr %s150, 4
      %s152 = scalar_lea.vmem %s1, %s151
      %v154 = vld [vmem:[%s143] sm:$0x77]
      %v155 = vld [vmem:[%s143 + $0x8] sm:$0x7]
      %v156 = vunpack.c.l.bf16 %v154
      %v157 = vmul.f32 %v156, 0.125
      %v158 = vpack.c.bf16 %v157, %v157
      %v160 = vunpack.c.h.b16 %v154
      %v161 = vpack.c.b16 %v160, %v160
      %vm162 = vcmask 523264
      %v164 = vsel %vm162, %v158, 0
      %v167 = vsel %vm162, %v161, 0
      %169 = vmatpush.bf16.xpose.msra.mxu0 0
      %170 = vmatpush.bf16.xpose.msra.mxu0 0
      %171 = vmatpush.bf16.xpose.msra.mxu0 0
      %172 = vmatpush.bf16.xpose.msra.mxu0 0
      %173 = vmatpush.bf16.xpose.msra.mxu0 0
      %174 = vmatpush.bf16.xpose.msra.mxu0 0
      %175 = vmatpush.bf16.xpose.msra.mxu0 0
      %176 = vmatpush.bf16.xpose.msra.mxu0 %v167
      %177 = vmatmul.bf16.gmra.mxu0 %v164
      %v178 = vpop.f32.mrf.mxu0
      %v179 = vadd.f32 0.0, %v178
      %v180 = vpop.f32.mrf.mxu0
      %181 = vdwg.mxu0
      %vm182 = vcmask 36864
      %v183 = vsel %vm182, %v179, -inf
      %184 = vmax.xlane.f32.xlu0 %v183
      %v185 = vpop.xlane.xlu0 %184
      %v186 = vsub.f32 %v179, %v185
      %v187 = vmul.f32 %v186, 1.442695
      %v188 = vpow.pop %v187
      %v189 = vsel %vm182, %v188, 0.0
      %190 = vadd.xlane.f32.xlu0 %v189
      %v191 = vpop.xlane.xlu0 %190
      %v192 = vpack.c.bf16 %v188, %v188
      %vm193 = vcmask 39936
      %v195 = vsel %vm193, %v192, 0
      %vm197 = vcmask 1041408
      %vm198 = vcmask 1042432
      %v199 = vsel %vm197, 4294967295, 65535
      %v200 = vsel %vm198, %v199, 0
      %v202 = vand.u32 %v155, %v200
      %204 = vmatpush.bf16.msra.mxu0 0
      %205 = vmatpush.bf16.msra.mxu0 0
      %206 = vmatpush.bf16.msra.mxu0 0
      %207 = vmatpush.bf16.msra.mxu0 0
      %208 = vmatpush.bf16.msra.mxu0 0
      %209 = vmatpush.bf16.msra.mxu0 0
      %210 = vmatpush.bf16.msra.mxu0 0
      %211 = vmatpush.bf16.msra.mxu0 %v202
      %212 = vmatmul.bf16.gmra.mxu0 %v195
      %v213 = vpop.f32.mrf.mxu0
      %v214 = vadd.f32 0.0, %v213
      %v215 = vpop.f32.mrf.mxu0
      %216 = vdwg.mxu0
      %v217 = vrcp.pop %v191
      %v218 = vmul.f32 %v214, %v217
      %220 = vrot.lane.b32.xlu0 %v158, 64
      %v221 = vpop.permute.xlu0 %220
      %222 = vrot.lane.b32.xlu0 %v161, 64
      %v223 = vpop.permute.xlu0 %222
      %v225 = vsel %vm162, %v221, 0
      %v228 = vsel %vm162, %v223, 0
      %230 = vmatpush.bf16.xpose.msra.mxu0 0
      %231 = vmatpush.bf16.xpose.msra.mxu0 0
      %232 = vmatpush.bf16.xpose.msra.mxu0 0
      %233 = vmatpush.bf16.xpose.msra.mxu0 0
      %234 = vmatpush.bf16.xpose.msra.mxu0 0
      %235 = vmatpush.bf16.xpose.msra.mxu0 0
      %236 = vmatpush.bf16.xpose.msra.mxu0 0
      %237 = vmatpush.bf16.xpose.msra.mxu0 %v228
      %238 = vmatmul.bf16.gmra.mxu0 %v225
      %v239 = vpop.f32.mrf.mxu0
      %v240 = vadd.f32 0.0, %v239
      %v241 = vpop.f32.mrf.mxu0
      %242 = vdwg.mxu0
      %v243 = vsel %vm182, %v240, -inf
      %244 = vmax.xlane.f32.xlu0 %v243
      %v245 = vpop.xlane.xlu0 %244
      %v246 = vsub.f32 %v240, %v245
      %v247 = vmul.f32 %v246, 1.442695
      %v248 = vpow.pop %v247
      %v249 = vsel %vm182, %v248, 0.0
      %250 = vadd.xlane.f32.xlu0 %v249
      %v251 = vpop.xlane.xlu0 %250
      %v252 = vpack.c.bf16 %v248, %v248
      %v254 = vunpack.c.l.b16 %v155
      %v255 = vpack.c.b16 %v254, %v254
      %256 = vrot.lane.b32.xlu0 %v255, 64
      %v257 = vpop.permute.xlu0 %256
      %v259 = vsel %vm193, %v252, 0
      %v262 = vand.u32 %v257, %v200
      %264 = vmatpush.bf16.msra.mxu0 0
      %265 = vmatpush.bf16.msra.mxu0 0
      %266 = vmatpush.bf16.msra.mxu0 0
      %267 = vmatpush.bf16.msra.mxu0 0
      %268 = vmatpush.bf16.msra.mxu0 0
      %269 = vmatpush.bf16.msra.mxu0 0
      %270 = vmatpush.bf16.msra.mxu0 0
      %271 = vmatpush.bf16.msra.mxu0 %v262
      %272 = vmatmul.bf16.gmra.mxu0 %v259
      %v273 = vpop.f32.mrf.mxu0
      %v274 = vadd.f32 0.0, %v273
      %v275 = vpop.f32.mrf.mxu0
      %276 = vdwg.mxu0
      %v277 = vrcp.pop %v251
      %v278 = vmul.f32 %v274, %v277
      %280 = vrot.lane.b32.xlu0 %v278, 64
      %v281 = vpop.permute.xlu0 %280
      %v283 = vsel %vm162, %v218, %v281
      %v284 = vpack.c.bf16 %v283, %v283
      %vm285 = vcmask 1042432
      %vm286 = vsmask.f32 2304
      %vm287 = vmand %vm285, %vm286
      %v288 = vld [vmem:[%s152] sm:$0x7]
      %v289 = vsel %vm287, %v284, %v288
      %290 = vst [vmem:[%s152] sm:$0x7] %v289
      %p291 = scmp.lt.s32.totalorder %s16, 3
      %s292 = scalar_select %p291, %s16, 3
      %p293 = scmp.lt.s32.totalorder %s17, 1
      %s294 = scalar_select %p293, %s17, 1
      %s295 = smul.addr %s292, 2
      %s296 = sadd.s32 %s294, %s295
      %s297 = smul.addr %s296, 4
      %s298 = scalar_lea.vmem %s1, %s297
      // Predicated region
      $region25: #{_lambda_.25} parent=23 // pred_check
        %p299 = pneg %p72
      $region26: #{_lambda_.25} parent=23 // pred_check_branch
        %301 = sbr.rel (%p299) target = $region28
      $region27: #{_lambda_.25} parent=23 // pred_region
        _
      $region28: #{_lambda_.25} parent=23 // pred_fallthru
        _
    $region24: #{_lambda_.25} parent=5 // pred_fallthru
      _
    %p302 = scmp.le.s32.totalorder 2, %s7
    // Predicated region
    $region29: #{_lambda_.25} parent=5 // pred_check
      %p303 = pneg %p302
    $region30: #{_lambda_.25} parent=5 // pred_check_branch
      %305 = sbr.rel (%p303) target = $region32
    $region31: #{_lambda_.25} parent=5 // pred_region
      %s306 = ssub.s32 %s7, 2
      // Predicated region
      $region33: #{_lambda_.25} parent=31 // pred_check
        %p307 = pneg %p78
      $region34: #{_lambda_.25} parent=31 // pred_check_branch
        %309 = sbr.rel (%p307) target = $region36
      $region35: #{_lambda_.25} parent=31 // pred_region
        %p310 = scmp.lt.s32.totalorder %s18, 3
        %s311 = scalar_select %p310, %s18, 3
        %p312 = scmp.lt.s32.totalorder %s19, 1
        %s313 = scalar_select %p312, %s19, 1
        %s314 = smul.addr %s311, 2
        %s315 = sadd.s32 %s313, %s314
        %s316 = smul.addr %s315, 4
        %s317 = scalar_lea.vmem %s1, %s316
      $region36: #{_lambda_.25} parent=31 // pred_fallthru
        _
    $region32: #{_lambda_.25} parent=5 // pred_fallthru
      _
  $region6: #{_lambda_.25} parent=0 // loop_footer
    %s11 = sadd.s32 1, %s7
  $region7: #{_lambda_.25} parent=0 // loop_footer_branch
    %6 = sbr.rel target = $region3
  $region8: #{_lambda_.25} parent=0 // loop_exit
    _

// kernel: _lambda_.23
$region0: #{_lambda_.23}
  #allocation0 [shape = 'u32[]', space=smem, size = 0x4, offset = 0x4, fixed_abs, tag = 'smem constant byte address 0x4 - core index']
  #allocation1 [shape = 'u32[72,128]{1,0:T(1,128)}', space=vmem, size = 0x9000, scoped, tag = 'internal scratch']
  #allocation2 [shape = 'f32[16,256]{1,0:T(8,128)}', space=vmem, size = 0x4000, scoped, tag = 'scratch operand']
  %s0 = inlined_call_operand.vmem [shape: bf16[16,768], index: 0, kind: input, shape index: {}]
  %s1 = inlined_call_operand.vmem [shape: bf16[768,256], index: 1, kind: input, shape index: {}]
  %s2 = inlined_call_operand.vmem [shape: f32[1,256], index: 2, kind: input, shape index: {}]
  %s3 = inlined_call_operand.vmem [shape: f32[16,256], index: 3, kind: output, shape index: {}]
  %s4 = sld [smem:[#allocation0]]
  $region79: #{_lambda_.23} parent=0
    _
  %s6 = ssub.s32 1, %s4
  %s7 = scalar_select 0, %s6, %s4
  $region1: #{_lambda_.23} parent=0
    #allocation3 [shape = 'u8[24576]{0}', space=vmem, size = 0x6000, scoped, tag = 'input window, operand 0']
    loop: start=0, step=1, limit=4
    $region2: #{_lambda_.23} parent=1 // loop_pre_header
      _
    $region3: #{_lambda_.23} parent=1 // loop_header
      %s9 = sphi 0, %s13
      %p10 = scmp.ge.s32.totalorder %s9, 4
      %s16 = sphi 0, %s35
      %s17 = sphi 0, %s31
      %s18 = sphi 0, %s27
      %s19 = sphi 0, %s16
      %s20 = sphi 0, %s17
      %s21 = sphi 0, %s18
      %s22 = sphi 0, %s19
      %s23 = sphi 0, %s20
      %s24 = sphi 0, %s21
      %s40 = sphi 0, %s42
      %s43 = sphi 0, %s40
      %s44 = sphi 0, %s43
      %s60 = sphi 0, %s44
      %s68 = sphi 0, %s70
      %s71 = sphi 0, %s68
      %s72 = sphi 0, %s71
      %s88 = sphi 0, %s72
      %s94 = sphi 0, %s96
      %s97 = sphi 0, %s94
      %s98 = sphi 0, %s97
      %s114 = sphi 0, %s98
      %s122 = sphi 0, %s124
      %s125 = sphi 0, %s122
      %s126 = sphi 0, %s125
      %s142 = sphi 0, %s126
    $region4: #{_lambda_.23} parent=1 // loop_header_branch
      %12 = sbr.rel (%p10) target = $region8
    $region5: #{_lambda_.23} parent=1 // loop_body
      %s14 = ssub.s32 %s9, 1
      %s15 = ssub.s32 %s9, 2
      %s25 = sadd.s32 1, %s18
      %p26 = scmp.ge.s32.totalorder %s25, 2
      %s27 = scalar_select %p26, 0, %s25
      %s28 = sadd.s32 1, %s17
      %s29 = scalar_select %p26, %s28, %s17
      %p30 = scmp.ge.s32.totalorder %s29, 1
      %s31 = scalar_select %p30, 0, %s29
      %s32 = sadd.s32 1, %s16
      %s33 = scalar_select %p30, %s32, %s16
      %p34 = scmp.ge.s32.totalorder %s33, 1
      %s35 = scalar_select %p34, 0, %s33
      %s36 = ssub.s32 %s16, %s35
      %s37 = ssub.s32 %s18, %s27
      %s38 = sor.u32 %s36, %s37
      %p39 = scmp.eq.s32.totalorder %s38, 0
      %s41 = sadd.s32 %s40, 1
      %s42 = scalar_select %p39, %s40, %s41
      %p45 = pneg %p39
      %p46 = scmp.eq.s32.totalorder %s9, 1
      %p47 = por %p45, %p46
      %p48 = scmp.ne.s32.totalorder %s40, %s43
      %p49 = scmp.eq.s32.totalorder %s9, 0
      %p50 = por %p48, %p49
      %p51 = scmp.ne.s32.totalorder %s40, %s43
      %p52 = scmp.eq.s32.totalorder %s14, 1
      %p53 = por %p51, %p52
      %p54 = scmp.ne.s32.totalorder %s43, %s44
      %p55 = scmp.eq.s32.totalorder %s14, 0
      %p56 = por %p54, %p55
      %p57 = scmp.ne.s32.totalorder %s43, %s44
      %p58 = scmp.eq.s32.totalorder %s15, 1
      %p59 = por %p57, %p58
      %p61 = scmp.ne.s32.totalorder %s44, %s60
      %p62 = scmp.eq.s32.totalorder %s15, 0
      %p63 = por %p61, %p62
      %s64 = ssub.s32 %s18, %s27
      %s65 = ssub.s32 %s17, %s31
      %s66 = sor.u32 %s64, %s65
      %p67 = scmp.eq.s32.totalorder %s66, 0
      %s69 = sadd.s32 %s68, 1
      %s70 = scalar_select %p67, %s68, %s69
      %p73 = pneg %p67
      %p74 = scmp.eq.s32.totalorder %s9, 1
      %p75 = por %p73, %p74
      %p76 = scmp.ne.s32.totalorder %s68, %s71
      %p77 = scmp.eq.s32.totalorder %s9, 0
      %p78 = por %p76, %p77
      %p79 = scmp.ne.s32.totalorder %s68, %s71
      %p80 = scmp.eq.s32.totalorder %s14, 1
      %p81 = por %p79, %p80
      %p82 = scmp.ne.s32.totalorder %s71, %s72
      %p83 = scmp.eq.s32.totalorder %s14, 0
      %p84 = por %p82, %p83
      %p85 = scmp.ne.s32.totalorder %s71, %s72
      %p86 = scmp.eq.s32.totalorder %s15, 1
      %p87 = por %p85, %p86
      %p89 = scmp.ne.s32.totalorder %s72, %s88
      %p90 = scmp.eq.s32.totalorder %s15, 0
      %p91 = por %p89, %p90
      %s92 = ssub.s32 %s17, %s31
      %p93 = scmp.eq.s32.totalorder %s92, 0
      %s95 = sadd.s32 %s94, 1
      %s96 = scalar_select %p93, %s94, %s95
      %p99 = pneg %p93
      %p100 = scmp.eq.s32.totalorder %s9, 1
      %p101 = por %p99, %p100
      %p102 = scmp.ne.s32.totalorder %s94, %s97
      %p103 = scmp.eq.s32.totalorder %s9, 0
      %p104 = por %p102, %p103
      %p105 = scmp.ne.s32.totalorder %s94, %s97
      %p106 = scmp.eq.s32.totalorder %s14, 1
      %p107 = por %p105, %p106
      %p108 = scmp.ne.s32.totalorder %s97, %s98
      %p109 = scmp.eq.s32.totalorder %s14, 0
      %p110 = por %p108, %p109
      %p111 = scmp.ne.s32.totalorder %s97, %s98
      %p112 = scmp.eq.s32.totalorder %s15, 1
      %p113 = por %p111, %p112
      %p115 = scmp.ne.s32.totalorder %s98, %s114
      %p116 = scmp.eq.s32.totalorder %s15, 0
      %p117 = por %p115, %p116
      %s118 = ssub.s32 %s16, %s35
      %s119 = ssub.s32 %s17, %s31
      %s120 = sor.u32 %s118, %s119
      %p121 = scmp.eq.s32.totalorder %s120, 0
      %s123 = sadd.s32 %s122, 1
      %s124 = scalar_select %p121, %s122, %s123
      %p127 = pneg %p121
      %p128 = scmp.eq.s32.totalorder %s9, 1
      %p129 = por %p127, %p128
      %p130 = scmp.ne.s32.totalorder %s122, %s125
      %p131 = scmp.eq.s32.totalorder %s9, 0
      %p132 = por %p130, %p131
      %p133 = scmp.ne.s32.totalorder %s122, %s125
      %p134 = scmp.eq.s32.totalorder %s14, 1
      %p135 = por %p133, %p134
      %p136 = scmp.ne.s32.totalorder %s125, %s126
      %p137 = scmp.eq.s32.totalorder %s14, 0
      %p138 = por %p136, %p137
      %p139 = scmp.ne.s32.totalorder %s125, %s126
      %p140 = scmp.eq.s32.totalorder %s15, 1
      %p141 = por %p139, %p140
      %p143 = scmp.ne.s32.totalorder %s126, %s142
      %p144 = scmp.eq.s32.totalorder %s15, 0
      %p145 = por %p143, %p144
      %p146 = scmp.le.s32.totalorder 1, %s9
      %p147 = scmp.lt.s32.totalorder %s9, 3
      %p148 = pnand %p146, %p147
      %p149 = pneg %p148
      // Predicated region
      $region9: #{_lambda_.23} parent=5 // pred_check
        _
      $region10: #{_lambda_.23} parent=5 // pred_check_branch
        %151 = sbr.rel (%p148) target = $region12
      $region11: #{_lambda_.23} parent=5 // pred_region
        %s152 = ssub.s32 %s9, 1
        // Predicated region
        $region13: #{_lambda_.23} parent=11 // pred_check
          %p153 = pneg %p110
        $region14: #{_lambda_.23} parent=11 // pred_check_branch
          %155 = sbr.rel (%p153) target = $region16
        $region15: #{_lambda_.23} parent=11 // pred_region
          %s156 = smul.u32 2, %s20
          %p157 = scmp.lt.s32.totalorder %s156, 1
          %s158 = scalar_select %p157, %s156, 1
          %s159 = scalar_lea.vmem %s2, %s158
          %s160 = smul.u32 2, %s20
        $region16: #{_lambda_.23} parent=11 // pred_fallthru
          _
      $region12: #{_lambda_.23} parent=5 // pred_fallthru
        _
      %p161 = scmp.lt.s32.totalorder %s9, 2
      // Predicated region
      $region17: #{_lambda_.23} parent=5 // pred_check
        %p162 = pneg %p161
      $region18: #{_lambda_.23} parent=5 // pred_check_branch
        %164 = sbr.rel (%p162) target = $region20
      $region19: #{_lambda_.23} parent=5 // pred_region
        // Predicated region
        $region21: #{_lambda_.23} parent=19 // pred_check
          %p165 = pneg %p50
        $region22: #{_lambda_.23} parent=19 // pred_check_branch
          %167 = sbr.rel (%p165) target = $region24
        $region23: #{_lambda_.23} parent=19 // pred_region
          %s168 = sand.u32 %s40, 1
          %s169 = sand.u32 %s40, 1
          %s170 = smul.addr %s169, 24
          %s171 = scalar_lea.vmem [#allocation3], %s170
          %s172 = smul.u32 2, %s16
          %s173 = smul.u32 3, %s18
          %s174 = smul.addr %s172, 6
          %s175 = sadd.s32 %s173, %s174
          %s176 = smul.addr %s175, 4
          %s177 = scalar_lea.vmem %s0, %s176
          // Predicated region
          $region25: #{_lambda_.23} parent=23 // pred_check
            _
          $region26: #{_lambda_.23} parent=23 // pred_check_branch
            %179 = sbr.rel (0) target = $region28
          $region27: #{_lambda_.23} parent=23 // pred_region
            // Predicated region
            $region29: #{_lambda_.23} parent=27 // pred_check
              _
            $region30: #{_lambda_.23} parent=27 // pred_check_branch
              %181 = sbr.rel (0) target = $region32
            $region31: #{_lambda_.23} parent=27 // pred_region
              %s182 = scalar_lea.vmem %s177, 8
              %s183 = scalar_lea.vmem %s171, 8 [#allocation3]
              loop: start=0, step=1, limit=1
              $region33: #{_lambda_.23} parent=31 // loop_pre_header
                _
              $region34: #{_lambda_.23} parent=31 // loop_header
                %s185 = sphi 0, %s189
                %p186 = scmp.ge.s32.totalorder %s185, 1
                %s190 = sphi %s177, %s177
                %s191 = sphi %s171, %s171
              $region35: #{_lambda_.23} parent=31 // loop_header_branch
                %188 = sbr.rel (%p186) target = $region39
              $region36: #{_lambda_.23} parent=31 // loop_body
                %v192 = vld [vmem:[%s190] sm:$0xff]
                %193 = vst [vmem:[%s191] sm:$0xff] %v192
                %v194 = vld [vmem:[%s190 + $0x18] sm:$0xff]
                %195 = vst [vmem:[%s191 + $0xc] sm:$0xff] %v194
              $region37: #{_lambda_.23} parent=31 // loop_footer
                %s189 = sadd.s32 1, %s185
              $region38: #{_lambda_.23} parent=31 // loop_footer_branch
                %184 = sbr.rel target = $region34
              $region39: #{_lambda_.23} parent=31 // loop_exit
                _
              %s197 = ssub.s32 16, 1
              loop: start=0, step=1, limit=1
              $region40: #{_lambda_.23} parent=31 // loop_pre_header
                _
              $region41: #{_lambda_.23} parent=31 // loop_header
                %s199 = sphi 0, %s203
                %p200 = scmp.ge.s32.totalorder %s199, 1
                %s204 = sphi %s182, %s182
                %s205 = sphi %s183, %s183
              $region42: #{_lambda_.23} parent=31 // loop_header_branch
                %202 = sbr.rel (%p200) target = $region46
              $region43: #{_lambda_.23} parent=31 // loop_body
                %v206 = vld [vmem:[%s204] sm:%s197]
                %207 = vst [vmem:[%s205] sm:%s197] %v206
                %v208 = vld [vmem:[%s204 + $0x18] sm:%s197]
                %209 = vst [vmem:[%s205 + $0xc] sm:%s197] %v208
              $region44: #{_lambda_.23} parent=31 // loop_footer
                %s203 = sadd.s32 1, %s199
              $region45: #{_lambda_.23} parent=31 // loop_footer_branch
                %198 = sbr.rel target = $region41
              $region46: #{_lambda_.23} parent=31 // loop_exit
                _
            $region32: #{_lambda_.23} parent=27 // pred_fallthru
              _
          $region28: #{_lambda_.23} parent=23 // pred_fallthru
            _
          %210 = vnop
        $region24: #{_lambda_.23} parent=19 // pred_fallthru
          _
        // Predicated region
        $region47: #{_lambda_.23} parent=19 // pred_check
          %p211 = pneg %p78
        $region48: #{_lambda_.23} parent=19 // pred_check_branch
          %213 = sbr.rel (%p211) target = $region50
        $region49: #{_lambda_.23} parent=19 // pred_region
          %s214 = smul.u32 48, %s18
          %s215 = smul.u32 2, %s17
          %p216 = scmp.lt.s32.totalorder %s214, 95
          %s217 = scalar_select %p216, %s214, 95
          %p218 = scmp.lt.s32.totalorder %s215, 1
          %s219 = scalar_select %p218, %s215, 1
          %s220 = smul.addr %s217, 2
          %s221 = sadd.s32 %s219, %s220
          %s222 = smul.addr %s221, 4
          %s223 = scalar_lea.vmem %s1, %s222
          %s224 = smul.u32 48, %s18
          %s225 = smul.u32 2, %s17
        $region50: #{_lambda_.23} parent=19 // pred_fallthru
          _
      $region20: #{_lambda_.23} parent=5 // pred_fallthru
        _
      %p226 = scmp.le.s32.totalorder 1, %s9
      %p227 = scmp.lt.s32.totalorder %s9, 3
      %p228 = pnand %p226, %p227
      %p229 = pneg %p228
      // Predicated region
      $region51: #{_lambda_.23} parent=5 // pred_check
        _
      $region52: #{_lambda_.23} parent=5 // pred_check_branch
        %231 = sbr.rel (%p228) target = $region54
      $region53: #{_lambda_.23} parent=5 // pred_region
        %s232 = ssub.s32 %s9, 1
        %s233 = sand.u32 %s43, 1
        %s234 = sand.u32 %s43, 1
        %s235 = smul.addr %s234, 24
        %s236 = scalar_lea.vmem [#allocation3], %s235
        // Predicated region
        $region55: #{_lambda_.23} parent=53 // pred_check
          %p237 = pneg %p56
        $region56: #{_lambda_.23} parent=53 // pred_check_branch
          %239 = sbr.rel (%p237) target = $region58
        $region57: #{_lambda_.23} parent=53 // pred_region
          _
        $region58: #{_lambda_.23} parent=53 // pred_fallthru
          _
        %s240 = sand.u32 %s43, 1
        %s241 = sand.u32 %s43, 1
        %s242 = smul.addr %s241, 24
        %s243 = scalar_lea.vmem [#allocation3], %s242
        %p244 = pneg %p56
        %p245 = pneg %p53
        %s246 = smul.u32 48, %s21
        %s247 = smul.u32 2, %s20
        %p248 = scmp.lt.s32.totalorder %s246, 95
        %s249 = scalar_select %p248, %s246, 95
        %p250 = scmp.lt.s32.totalorder %s247, 1
        %s251 = scalar_select %p250, %s247, 1
        %s252 = smul.addr %s249, 2
        %s253 = sadd.s32 %s251, %s252
        %s254 = smul.addr %s253, 4
        %s255 = scalar_lea.vmem %s1, %s254
        %p256 = pneg %p84
        %p257 = pneg %p81
        %s258 = smul.u32 2, %s20
        %p259 = scmp.lt.s32.totalorder %s258, 1
        %s260 = scalar_select %p259, %s258, 1
        %s261 = scalar_lea.vmem %s2, %s260
        %p262 = pneg %p110
        %p263 = pneg %p107
        %p264 = pneg %p138
        %p265 = pneg %p135
        %s266 = smul.u32 2, %s19
        %s267 = smul.u32 2, %s20
        %p268 = scmp.lt.s32.totalorder %s266, 1
        %s269 = scalar_select %p268, %s266, 1
        %p270 = scmp.lt.s32.totalorder %s267, 1
        %s271 = scalar_select %p270, %s267, 1
        %s272 = smul.addr %s269, 2
        %s273 = sadd.s32 %s271, %s272
        %s274 = smul.addr %s273, 8
        %s275 = scalar_lea.vmem %s3, %s274
        %s276 = smul.u32 2, %s19
        %s277 = smul.u32 3, %s21
        %s278 = smul.u32 48, %s21
        %s279 = smul.u32 2, %s20
        %p280 = scmp.lt.s32.totalorder %s278, 95
        %s281 = scalar_select %p280, %s278, 95
        %p282 = scmp.lt.s32.totalorder %s279, 1
        %s283 = scalar_select %p282, %s279, 1
        %s284 = smul.addr %s281, 2
        %s285 = sadd.s32 %s283, %s284
        %s286 = smul.addr %s285, 4
        %s287 = scalar_lea.vmem %s1, %s286
        %s288 = smul.u32 48, %s21
        %s289 = smul.u32 2, %s20
        %s290 = smul.u32 2, %s20
        %p291 = scmp.lt.s32.totalorder %s290, 1
        %s292 = scalar_select %p291, %s290, 1
        %s293 = scalar_lea.vmem %s2, %s292
        %s294 = smul.u32 2, %s20
        %s295 = smul.u32 2, %s19
        %s296 = smul.u32 2, %s20
        %p297 = scmp.lt.s32.totalorder %s295, 1
        %s298 = scalar_select %p297, %s295, 1
        %p299 = scmp.lt.s32.totalorder %s296, 1
        %s300 = scalar_select %p299, %s296, 1
        %s301 = smul.addr %s298, 2
        %s302 = sadd.s32 %s300, %s301
        %s303 = smul.addr %s302, 8
        %s304 = scalar_lea.vmem %s3, %s303
        %s305 = smul.u32 2, %s19
        %s306 = smul.u32 2, %s20
        %p307 = scmp.eq.s32.totalorder %s21, 0
        // Predicated region
        $region59: #{_lambda_.23} parent=53 // pred_check
          %p308 = pneg %p307
        $region60: #{_lambda_.23} parent=53 // pred_check_branch
          %310 = sbr.rel (%p308) target = $region62
        $region61: #{_lambda_.23} parent=53 // pred_region
          %311 = vst [vmem:[#allocation2] sm:$0xff] 0.0
          %312 = vst [vmem:[#allocation2 + $0x8] sm:$0xff] 0.0
          %313 = vst [vmem:[#allocation2 + $0x10] sm:$0xff] 0.0
          %314 = vst [vmem:[#allocation2 + $0x18] sm:$0xff] 0.0
        $region62: #{_lambda_.23} parent=53 // pred_fallthru
          _
        %v315 = vld [vmem:[%s236] sm:$0xff]
        %v316 = vld [vmem:[%s236 + $0x8] sm:$0xf]
        %v317 = vld [vmem:[%s236 + $0xc] sm:$0xff]
        %v318 = vld [vmem:[%s236 + $0x14] sm:$0xf]
        %v319 = vld [vmem:[#allocation2] sm:$0xff]
        %v320 = vld [vmem:[#allocation2 + $0x8] sm:$0xff]
        %v321 = vld [vmem:[#allocation2 + $0x10] sm:$0xff]
        %v322 = vld [vmem:[#allocation2 + $0x18] sm:$0xff]
        %v323 = vld [vmem:[%s287] sm:$0xff]
        %v324 = vld [vmem:[%s287 + $0x8] sm:$0xff]
        %v325 = vld [vmem:[%s287 + $0x10] sm:$0xff]
        %v326 = vld [vmem:[%s287 + $0x18] sm:$0xff]
        %v327 = vld [vmem:[%s287 + $0x20] sm:$0xff]
        %v328 = vld [vmem:[%s287 + $0x28] sm:$0xff]
        %v329 = vld [vmem:[%s287 + $0x30] sm:$0xff]
        %v330 = vld [vmem:[%s287 + $0x38] sm:$0xff]
        %v331 = vld [vmem:[%s287 + $0x40] sm:$0xff]
        %v332 = vld [vmem:[%s287 + $0x48] sm:$0xff]
        %v333 = vld [vmem:[%s287 + $0x50] sm:$0xff]
        %v334 = vld [vmem:[%s287 + $0x58] sm:$0xff]
        %v335 = vld [vmem:[%s287 + $0x60] sm:$0xff]
        %v336 = vld [vmem:[%s287 + $0x68] sm:$0xff]
        %v337 = vld [vmem:[%s287 + $0x70] sm:$0xff]
        %v338 = vld [vmem:[%s287 + $0x78] sm:$0xff]
        %v339 = vld [vmem:[%s287 + $0x80] sm:$0xff]
        %v340 = vld [vmem:[%s287 + $0x88] sm:$0xff]
        %v341 = vld [vmem:[%s287 + $0x90] sm:$0xff]
        %v342 = vld [vmem:[%s287 + $0x98] sm:$0xff]
        %v343 = vld [vmem:[%s287 + $0xa0] sm:$0xff]
        %v344 = vld [vmem:[%s287 + $0xa8] sm:$0xff]
        %v345 = vld [vmem:[%s287 + $0xb0] sm:$0xff]
        %v346 = vld [vmem:[%s287 + $0xb8] sm:$0xff]
        %v347 = vld [vmem:[%s287 + $0xc0] sm:$0xff]
        %v348 = vld [vmem:[%s287 + $0xc8] sm:$0xff]
        %v349 = vld [vmem:[%s287 + $0xd0] sm:$0xff]
        %v350 = vld [vmem:[%s287 + $0xd8] sm:$0xff]
        %v351 = vld [vmem:[%s287 + $0xe0] sm:$0xff]
        %v352 = vld [vmem:[%s287 + $0xe8] sm:$0xff]
        %v353 = vld [vmem:[%s287 + $0xf0] sm:$0xff]
        %v354 = vld [vmem:[%s287 + $0xf8] sm:$0xff]
        %v355 = vld [vmem:[%s287 + $0x100] sm:$0xff]
        %v356 = vld [vmem:[%s287 + $0x108] sm:$0xff]
        %v357 = vld [vmem:[%s287 + $0x110] sm:$0xff]
        %v358 = vld [vmem:[%s287 + $0x118] sm:$0xff]
        %v359 = vld [vmem:[%s287 + $0x120] sm:$0xff]
        %v360 = vld [vmem:[%s287 + $0x128] sm:$0xff]
        %v361 = vld [vmem:[%s287 + $0x130] sm:$0xff]
        %v362 = vld [vmem:[%s287 + $0x138] sm:$0xff]
        %v363 = vld [vmem:[%s287 + $0x140] sm:$0xff]
        %v364 = vld [vmem:[%s287 + $0x148] sm:$0xff]
        %v365 = vld [vmem:[%s287 + $0x150] sm:$0xff]
        %v366 = vld [vmem:[%s287 + $0x158] sm:$0xff]
        %v367 = vld [vmem:[%s287 + $0x160] sm:$0xff]
        %v368 = vld [vmem:[%s287 + $0x168] sm:$0xff]
        %v369 = vld [vmem:[%s287 + $0x170] sm:$0xff]
        %v370 = vld [vmem:[%s287 + $0x178] sm:$0xff]
        %v375 = vunpack.c.l.b16 %v315
        %v376 = vunpack.c.h.b16 %v315
        %v377 = vunpack.c.l.b16 %v316
        %v378 = vunpack.c.l.b16 %v317
        %v379 = vunpack.c.h.b16 %v317
        %v380 = vunpack.c.l.b16 %v318
        %v381 = vpack.c.b16 %v378, %v375
        %v382 = vpack.c.b16 %v379, %v376
        %v383 = vpack.c.b16 %v380, %v377
        %v435 = vunpack.c.l.b16 %v323
        %v436 = vunpack.c.h.b16 %v323
        %v437 = vunpack.c.l.b16 %v324
        %v438 = vunpack.c.h.b16 %v324
        %v439 = vunpack.c.l.b16 %v325
        %v440 = vunpack.c.h.b16 %v325
        %v441 = vunpack.c.l.b16 %v326
        %v442 = vunpack.c.h.b16 %v326
        %v443 = vunpack.c.l.b16 %v327
        %v444 = vunpack.c.h.b16 %v327
        %v445 = vunpack.c.l.b16 %v328
        %v446 = vunpack.c.h.b16 %v328
        %v447 = vunpack.c.l.b16 %v329
        %v448 = vunpack.c.h.b16 %v329
        %v449 = vunpack.c.l.b16 %v330
        %v450 = vunpack.c.h.b16 %v330
        %v451 = vunpack.c.l.b16 %v331
        %v452 = vunpack.c.h.b16 %v331
        %v453 = vunpack.c.l.b16 %v332
        %v454 = vunpack.c.h.b16 %v332
        %v455 = vunpack.c.l.b16 %v333
        %v456 = vunpack.c.h.b16 %v333
        %v457 = vunpack.c.l.b16 %v334
        %v458 = vunpack.c.h.b16 %v334
        %v459 = vunpack.c.l.b16 %v335
        %v460 = vunpack.c.h.b16 %v335
        %v461 = vunpack.c.l.b16 %v336
        %v462 = vunpack.c.h.b16 %v336
        %v463 = vunpack.c.l.b16 %v337
        %v464 = vunpack.c.h.b16 %v337
        %v465 = vunpack.c.l.b16 %v338
        %v466 = vunpack.c.h.b16 %v338
        %v467 = vunpack.c.l.b16 %v339
        %v468 = vunpack.c.h.b16 %v339
        %v469 = vunpack.c.l.b16 %v340
        %v470 = vunpack.c.h.b16 %v340
        %v471 = vunpack.c.l.b16 %v341
        %v472 = vunpack.c.h.b16 %v341
        %v473 = vunpack.c.l.b16 %v342
        %v474 = vunpack.c.h.b16 %v342
        %v475 = vunpack.c.l.b16 %v343
        %v476 = vunpack.c.h.b16 %v343
        %v477 = vunpack.c.l.b16 %v344
        %v478 = vunpack.c.h.b16 %v344
        %v479 = vunpack.c.l.b16 %v345
        %v480 = vunpack.c.h.b16 %v345
        %v481 = vunpack.c.l.b16 %v346
        %v482 = vunpack.c.h.b16 %v346
        %v483 = vunpack.c.l.b16 %v347
        %v484 = vunpack.c.h.b16 %v347
        %v485 = vunpack.c.l.b16 %v348
        %v486 = vunpack.c.h.b16 %v348
        %v487 = vunpack.c.l.b16 %v349
        %v488 = vunpack.c.h.b16 %v349
        %v489 = vunpack.c.l.b16 %v350
        %v490 = vunpack.c.h.b16 %v350
        %v491 = vunpack.c.l.b16 %v351
        %v492 = vunpack.c.h.b16 %v351
        %v493 = vunpack.c.l.b16 %v352
        %v494 = vunpack.c.h.b16 %v352
        %v495 = vunpack.c.l.b16 %v353
        %v496 = vunpack.c.h.b16 %v353
        %v497 = vunpack.c.l.b16 %v354
        %v498 = vunpack.c.h.b16 %v354
        %v499 = vunpack.c.l.b16 %v355
        %v500 = vunpack.c.h.b16 %v355
        %v501 = vunpack.c.l.b16 %v356
        %v502 = vunpack.c.h.b16 %v356
        %v503 = vunpack.c.l.b16 %v357
        %v504 = vunpack.c.h.b16 %v357
        %v505 = vunpack.c.l.b16 %v358
        %v506 = vunpack.c.h.b16 %v358
        %v507 = vunpack.c.l.b16 %v359
        %v508 = vunpack.c.h.b16 %v359
        %v509 = vunpack.c.l.b16 %v360
        %v510 = vunpack.c.h.b16 %v360
        %v511 = vunpack.c.l.b16 %v361
        %v512 = vunpack.c.h.b16 %v361
        %v513 = vunpack.c.l.b16 %v362
        %v514 = vunpack.c.h.b16 %v362
        %v515 = vunpack.c.l.b16 %v363
        %v516 = vunpack.c.h.b16 %v363
        %v517 = vunpack.c.l.b16 %v364
        %v518 = vunpack.c.h.b16 %v364
        %v519 = vunpack.c.l.b16 %v365
        %v520 = vunpack.c.h.b16 %v365
        %v521 = vunpack.c.l.b16 %v366
        %v522 = vunpack.c.h.b16 %v366
        %v523 = vunpack.c.l.b16 %v367
        %v524 = vunpack.c.h.b16 %v367
        %v525 = vunpack.c.l.b16 %v368
        %v526 = vunpack.c.h.b16 %v368
        %v527 = vunpack.c.l.b16 %v369
        %v528 = vunpack.c.h.b16 %v369
        %v529 = vunpack.c.l.b16 %v370
        %v530 = vunpack.c.h.b16 %v370
        %v531 = vpack.c.b16 %v437, %v435
        %v532 = vpack.c.b16 %v438, %v436
        %v533 = vpack.c.b16 %v441, %v439
        %v534 = vpack.c.b16 %v442, %v440
        %v535 = vpack.c.b16 %v445, %v443
        %v536 = vpack.c.b16 %v446, %v444
        %v537 = vpack.c.b16 %v449, %v447
        %v538 = vpack.c.b16 %v450, %v448
        %v539 = vpack.c.b16 %v453, %v451
        %v540 = vpack.c.b16 %v454, %v452
        %v541 = vpack.c.b16 %v457, %v455
        %v542 = vpack.c.b16 %v458, %v456
        %v543 = vpack.c.b16 %v461, %v459
        %v544 = vpack.c.b16 %v462, %v460
        %v545 = vpack.c.b16 %v465, %v463
        %v546 = vpack.c.b16 %v466, %v464
        %v547 = vpack.c.b16 %v469, %v467
        %v548 = vpack.c.b16 %v470, %v468
        %v549 = vpack.c.b16 %v473, %v471
        %v550 = vpack.c.b16 %v474, %v472
        %v551 = vpack.c.b16 %v477, %v475
        %v552 = vpack.c.b16 %v478, %v476
        %v553 = vpack.c.b16 %v481, %v479
        %v554 = vpack.c.b16 %v482, %v480
        %v555 = vpack.c.b16 %v485, %v483
        %v556 = vpack.c.b16 %v486, %v484
        %v557 = vpack.c.b16 %v489, %v487
        %v558 = vpack.c.b16 %v490, %v488
        %v559 = vpack.c.b16 %v493, %v491
        %v560 = vpack.c.b16 %v494, %v492
        %v561 = vpack.c.b16 %v497, %v495
        %v562 = vpack.c.b16 %v498, %v496
        %v563 = vpack.c.b16 %v501, %v499
        %v564 = vpack.c.b16 %v502, %v500
        %v565 = vpack.c.b16 %v505, %v503
        %v566 = vpack.c.b16 %v506, %v504
        %v567 = vpack.c.b16 %v509, %v507
        %v568 = vpack.c.b16 %v510, %v508
        %v569 = vpack.c.b16 %v513, %v511
        %v570 = vpack.c.b16 %v514, %v512
        %v571 = vpack.c.b16 %v517, %v515
        %v572 = vpack.c.b16 %v518, %v516
        %v573 = vpack.c.b16 %v521, %v519
        %v574 = vpack.c.b16 %v522, %v520
        %v575 = vpack.c.b16 %v525, %v523
        %v576 = vpack.c.b16 %v526, %v524
        %v577 = vpack.c.b16 %v529, %v527
        %v578 = vpack.c.b16 %v530, %v528
        %627 = vmatpush.bf16.msra.mxu0 %v545
        %628 = vmatpush.bf16.msra.mxu0 %v543
        %629 = vmatpush.bf16.msra.mxu0 %v541
        %630 = vmatpush.bf16.msra.mxu0 %v539
        %631 = vmatpush.bf16.msra.mxu0 %v537
        %632 = vmatpush.bf16.msra.mxu0 %v535
        %633 = vmatpush.bf16.msra.mxu0 %v533
        %634 = vmatpush.bf16.msra.mxu0 %v531
        %635 = vmatmul.bf16.gmra.mxu0 %v381
        %v636 = vpop.f32.mrf.mxu0
        %v637 = vadd.f32 0.0, %v636
        %v638 = vpop.f32.mrf.mxu0
        %v639 = vadd.f32 0.0, %v638
        %640 = vdwg.mxu0
        %641 = vmatpush.bf16.msra.mxu0 %v561
        %642 = vmatpush.bf16.msra.mxu0 %v559
        %643 = vmatpush.bf16.msra.mxu0 %v557
        %644 = vmatpush.bf16.msra.mxu0 %v555
        %645 = vmatpush.bf16.msra.mxu0 %v553
        %646 = vmatpush.bf16.msra.mxu0 %v551
        %647 = vmatpush.bf16.msra.mxu0 %v549
        %648 = vmatpush.bf16.msra.mxu0 %v547
        %649 = vmatmul.bf16.gmra.mxu0 %v382
        %v650 = vpop.f32.mrf.mxu0
        %v651 = vadd.f32 %v637, %v650
        %v652 = vpop.f32.mrf.mxu0
        %v653 = vadd.f32 %v639, %v652
        %654 = vdwg.mxu0
        %655 = vmatpush.bf16.msra.mxu0 %v577
        %656 = vmatpush.bf16.msra.mxu0 %v575
        %657 = vmatpush.bf16.msra.mxu0 %v573
        %658 = vmatpush.bf16.msra.mxu0 %v571
        %659 = vmatpush.bf16.msra.mxu0 %v569
        %660 = vmatpush.bf16.msra.mxu0 %v567
        %661 = vmatpush.bf16.msra.mxu0 %v565
        %662 = vmatpush.bf16.msra.mxu0 %v563
        %663 = vmatmul.bf16.gmra.mxu0 %v383
        %v664 = vpop.f32.mrf.mxu0
        %v665 = vadd.f32 %v651, %v664
        %v666 = vpop.f32.mrf.mxu0
        %v667 = vadd.f32 %v653, %v666
        %668 = vdwg.mxu0
        %669 = vmatpush.bf16.msra.mxu0 %v546
        %670 = vmatpush.bf16.msra.mxu0 %v544
        %671 = vmatpush.bf16.msra.mxu0 %v542
        %672 = vmatpush.bf16.msra.mxu0 %v540
        %673 = vmatpush.bf16.msra.mxu0 %v538
        %674 = vmatpush.bf16.msra.mxu0 %v536
        %675 = vmatpush.bf16.msra.mxu0 %v534
        %676 = vmatpush.bf16.msra.mxu0 %v532
        %677 = vmatmul.bf16.gmra.mxu0 %v381
        %v678 = vpop.f32.mrf.mxu0
        %v679 = vadd.f32 0.0, %v678
        %v680 = vpop.f32.mrf.mxu0
        %v681 = vadd.f32 0.0, %v680
        %682 = vdwg.mxu0
        %683 = vmatpush.bf16.msra.mxu0 %v562
        %684 = vmatpush.bf16.msra.mxu0 %v560
        %685 = vmatpush.bf16.msra.mxu0 %v558
        %686 = vmatpush.bf16.msra.mxu0 %v556
        %687 = vmatpush.bf16.msra.mxu0 %v554
        %688 = vmatpush.bf16.msra.mxu0 %v552
        %689 = vmatpush.bf16.msra.mxu0 %v550
        %690 = vmatpush.bf16.msra.mxu0 %v548
        %691 = vmatmul.bf16.gmra.mxu0 %v382
        %v692 = vpop.f32.mrf.mxu0
        %v693 = vadd.f32 %v679, %v692
        %v694 = vpop.f32.mrf.mxu0
        %v695 = vadd.f32 %v681, %v694
        %696 = vdwg.mxu0
        %697 = vmatpush.bf16.msra.mxu0 %v578
        %698 = vmatpush.bf16.msra.mxu0 %v576
        %699 = vmatpush.bf16.msra.mxu0 %v574
        %700 = vmatpush.bf16.msra.mxu0 %v572
        %701 = vmatpush.bf16.msra.mxu0 %v570
        %702 = vmatpush.bf16.msra.mxu0 %v568
        %703 = vmatpush.bf16.msra.mxu0 %v566
        %704 = vmatpush.bf16.msra.mxu0 %v564
        %705 = vmatmul.bf16.gmra.mxu0 %v383
        %v706 = vpop.f32.mrf.mxu0
        %v707 = vadd.f32 %v693, %v706
        %v708 = vpop.f32.mrf.mxu0
        %v709 = vadd.f32 %v695, %v708
        %710 = vdwg.mxu0
        %v711 = vadd.f32 %v319, %v665
        %v712 = vadd.f32 %v320, %v707
        %v713 = vadd.f32 %v321, %v667
        %v714 = vadd.f32 %v322, %v709
        %715 = vst [vmem:[#allocation2] sm:$0xff] %v711
        %716 = vst [vmem:[#allocation2 + $0x8] sm:$0xff] %v712
        %717 = vst [vmem:[#allocation2 + $0x10] sm:$0xff] %v713
        %718 = vst [vmem:[#allocation2 + $0x18] sm:$0xff] %v714
        %p719 = scmp.eq.s32.totalorder %s21, 1
        // Predicated region
        $region63: #{_lambda_.23} parent=53 // pred_check
          %p720 = pneg %p719
        $region64: #{_lambda_.23} parent=53 // pred_check_branch
          %722 = sbr.rel (%p720) target = $region66
        $region65: #{_lambda_.23} parent=53 // pred_region
          %v723 = vld [vmem:[#allocation2] sm:$0xff]
          %v724 = vld [vmem:[#allocation2 + $0x8] sm:$0xff]
          %v725 = vld [vmem:[#allocation2 + $0x10] sm:$0xff]
          %v726 = vld [vmem:[#allocation2 + $0x18] sm:$0xff]
          %v727 = vld [vmem:[%s293] sm:$0x3]
          %v729 = vperm.slane %v727, 0
          %v730 = vperm.slane %v727, 1
          %v733 = vadd.f32 %v723, %v729
          %v734 = vadd.f32 %v724, %v730
          %v735 = vadd.f32 %v725, %v729
          %v736 = vadd.f32 %v726, %v730
          %737 = vst [vmem:[%s304] sm:$0xff] %v733
          %738 = vst [vmem:[%s304 + $0x8] sm:$0xff] %v734
          %739 = vst [vmem:[%s304 + $0x10] sm:$0xff] %v735
          %740 = vst [vmem:[%s304 + $0x18] sm:$0xff] %v736
        $region66: #{_lambda_.23} parent=53 // pred_fallthru
          _
        %s741 = smul.u32 2, %s19
        %s742 = smul.u32 2, %s20
        %p743 = scmp.lt.s32.totalorder %s741, 1
        %s744 = scalar_select %p743, %s741, 1
        %p745 = scmp.lt.s32.totalorder %s742, 1
        %s746 = scalar_select %p745, %s742, 1
        %s747 = smul.addr %s744, 2
        %s748 = sadd.s32 %s746, %s747
        %s749 = smul.addr %s748, 8
        %s750 = scalar_lea.vmem %s3, %s749
        // Predicated region
        $region67: #{_lambda_.23} parent=53 // pred_check
          %p751 = pneg %p135
        $region68: #{_lambda_.23} parent=53 // pred_check_branch
          %753 = sbr.rel (%p751) target = $region70
        $region69: #{_lambda_.23} parent=53 // pred_region
          %s754 = smul.u32 2, %s19
          %s755 = smul.u32 2, %s20
        $region70: #{_lambda_.23} parent=53 // pred_fallthru
          _
        // Predicated region
        $region71: #{_lambda_.23} parent=53 // pred_check
          %p756 = pneg %p135
        $region72: #{_lambda_.23} parent=53 // pred_check_branch
          %758 = sbr.rel (%p756) target = $region74
        $region73: #{_lambda_.23} parent=53 // pred_region
          %s759 = smul.u32 2, %s19
          %s760 = smul.u32 2, %s20
          %p761 = scmp.lt.s32.totalorder %s759, 1
          %s762 = scalar_select %p761, %s759, 1
          %p763 = scmp.lt.s32.totalorder %s760, 1
          %s764 = scalar_select %p763, %s760, 1
          %s765 = smul.addr %s762, 2
          %s766 = sadd.s32 %s764, %s765
          %s767 = smul.addr %s766, 8
          %s768 = scalar_lea.vmem %s3, %s767
        $region74: #{_lambda_.23} parent=53 // pred_fallthru
          _
      $region54: #{_lambda_.23} parent=5 // pred_fallthru
        _
      %p769 = scmp.le.s32.totalorder 2, %s9
      // Predicated region
      $region75: #{_lambda_.23} parent=5 // pred_check
        %p770 = pneg %p769
      $region76: #{_lambda_.23} parent=5 // pred_check_branch
        %772 = sbr.rel (%p770) target = $region78
      $region77: #{_lambda_.23} parent=5 // pred_region
        %s773 = ssub.s32 %s9, 2
      $region78: #{_lambda_.23} parent=5 // pred_fallthru
        _
    $region6: #{_lambda_.23} parent=1 // loop_footer
      %s13 = sadd.s32 1, %s9
    $region7: #{_lambda_.23} parent=1 // loop_footer_branch
      %8 = sbr.rel target = $region3
    $region8: #{_lambda_.23} parent=1 // loop_exit
      _

// kernel: _lambda_.26
$region0: #{_lambda_.26}
  #allocation0 [shape = 'u32[]', space=smem, size = 0x4, offset = 0x4, fixed_abs, tag = 'smem constant byte address 0x4 - core index']
  #allocation1 [shape = 'u32[72,128]{1,0:T(1,128)}', space=vmem, size = 0x9000, scoped, tag = 'internal scratch']
  %s0 = inlined_call_operand.vmem [shape: bf16[24,256], index: 0, kind: input, shape index: {}]
  %s1 = inlined_call_operand.vmem [shape: bf16[256,256], index: 1, kind: input, shape index: {}]
  %s2 = inlined_call_operand.vmem [shape: f32[1,256], index: 2, kind: input, shape index: {}]
  %s3 = inlined_call_operand.vmem [shape: f32[1,256], index: 3, kind: input, shape index: {}]
  %s4 = inlined_call_operand.vmem [shape: bf16[24,256], index: 4, kind: input, shape index: {}]
  %s5 = inlined_call_operand.vmem [shape: bf16[24,256], index: 5, kind: output, shape index: {}]
  %s6 = sld [smem:[#allocation0]]
  $region30: #{_lambda_.26} parent=0
    _
  %s8 = ssub.s32 1, %s6
  %s9 = scalar_select 0, %s8, %s6
  // Predicated region
  $region2: #{_lambda_.26} parent=0 // pred_check
    _
  $region3: #{_lambda_.26} parent=0 // pred_check_branch
    %11 = sbr.rel (0) target = $region5
  $region4: #{_lambda_.26} parent=0 // pred_region
    _
  $region5: #{_lambda_.26} parent=0 // pred_fallthru
    _
  // Predicated region
  $region6: #{_lambda_.26} parent=0 // pred_check
    _
  $region7: #{_lambda_.26} parent=0 // pred_check_branch
    %13 = sbr.rel (0) target = $region9
  $region8: #{_lambda_.26} parent=0 // pred_region
    _
  $region9: #{_lambda_.26} parent=0 // pred_fallthru
    _
  // Predicated region
  $region10: #{_lambda_.26} parent=0 // pred_check
    _
  $region11: #{_lambda_.26} parent=0 // pred_check_branch
    %15 = sbr.rel (0) target = $region13
  $region12: #{_lambda_.26} parent=0 // pred_region
    _
  $region13: #{_lambda_.26} parent=0 // pred_fallthru
    _
  // Predicated region
  $region14: #{_lambda_.26} parent=0 // pred_check
    _
  $region15: #{_lambda_.26} parent=0 // pred_check_branch
    %17 = sbr.rel (0) target = $region17
  $region16: #{_lambda_.26} parent=0 // pred_region
    _
  $region17: #{_lambda_.26} parent=0 // pred_fallthru
    _
  // Predicated region
  $region18: #{_lambda_.26} parent=0 // pred_check
    _
  $region19: #{_lambda_.26} parent=0 // pred_check_branch
    %19 = sbr.rel (0) target = $region21
  $region20: #{_lambda_.26} parent=0 // pred_region
    _
  $region21: #{_lambda_.26} parent=0 // pred_fallthru
    _
  %v20 = vld [vmem:[%s0] sm:$0xff]
  %v21 = vld [vmem:[%s0 + $0x8] sm:$0xff]
  %v22 = vld [vmem:[%s0 + $0x10] sm:$0xff]
  %v23 = vld [vmem:[%s1] sm:$0xff]
  %v24 = vld [vmem:[%s1 + $0x8] sm:$0xff]
  %v25 = vld [vmem:[%s1 + $0x10] sm:$0xff]
  %v26 = vld [vmem:[%s1 + $0x18] sm:$0xff]
  %v27 = vld [vmem:[%s1 + $0x20] sm:$0xff]
  %v28 = vld [vmem:[%s1 + $0x28] sm:$0xff]
  %v29 = vld [vmem:[%s1 + $0x30] sm:$0xff]
  %v30 = vld [vmem:[%s1 + $0x38] sm:$0xff]
  %v31 = vld [vmem:[%s1 + $0x40] sm:$0xff]
  %v32 = vld [vmem:[%s1 + $0x48] sm:$0xff]
  %v33 = vld [vmem:[%s1 + $0x50] sm:$0xff]
  %v34 = vld [vmem:[%s1 + $0x58] sm:$0xff]
  %v35 = vld [vmem:[%s1 + $0x60] sm:$0xff]
  %v36 = vld [vmem:[%s1 + $0x68] sm:$0xff]
  %v37 = vld [vmem:[%s1 + $0x70] sm:$0xff]
  %v38 = vld [vmem:[%s1 + $0x78] sm:$0xff]
  %v39 = vld [vmem:[%s1 + $0x80] sm:$0xff]
  %v40 = vld [vmem:[%s1 + $0x88] sm:$0xff]
  %v41 = vld [vmem:[%s1 + $0x90] sm:$0xff]
  %v42 = vld [vmem:[%s1 + $0x98] sm:$0xff]
  %v43 = vld [vmem:[%s1 + $0xa0] sm:$0xff]
  %v44 = vld [vmem:[%s1 + $0xa8] sm:$0xff]
  %v45 = vld [vmem:[%s1 + $0xb0] sm:$0xff]
  %v46 = vld [vmem:[%s1 + $0xb8] sm:$0xff]
  %v47 = vld [vmem:[%s1 + $0xc0] sm:$0xff]
  %v48 = vld [vmem:[%s1 + $0xc8] sm:$0xff]
  %v49 = vld [vmem:[%s1 + $0xd0] sm:$0xff]
  %v50 = vld [vmem:[%s1 + $0xd8] sm:$0xff]
  %v51 = vld [vmem:[%s1 + $0xe0] sm:$0xff]
  %v52 = vld [vmem:[%s1 + $0xe8] sm:$0xff]
  %v53 = vld [vmem:[%s1 + $0xf0] sm:$0xff]
  %v54 = vld [vmem:[%s1 + $0xf8] sm:$0xff]
  %v55 = vld [vmem:[%s2] sm:$0x3]
  %v57 = vperm.slane %v55, 0
  %v58 = vperm.slane %v55, 1
  %v64 = vunpack.c.l.b16 %v20
  %v65 = vunpack.c.h.b16 %v20
  %v66 = vunpack.c.l.b16 %v21
  %v67 = vunpack.c.h.b16 %v21
  %v68 = vunpack.c.l.b16 %v22
  %v69 = vunpack.c.h.b16 %v22
  %v70 = vpack.c.b16 %v66, %v64
  %v71 = vpack.c.b16 %v67, %v65
  %v72 = vpack.c.b16 %v68, %v68
  %v73 = vpack.c.b16 %v69, %v69
  %v110 = vunpack.c.l.b16 %v23
  %v111 = vunpack.c.h.b16 %v23
  %v112 = vunpack.c.l.b16 %v24
  %v113 = vunpack.c.h.b16 %v24
  %v114 = vunpack.c.l.b16 %v25
  %v115 = vunpack.c.h.b16 %v25
  %v116 = vunpack.c.l.b16 %v26
  %v117 = vunpack.c.h.b16 %v26
  %v118 = vunpack.c.l.b16 %v27
  %v119 = vunpack.c.h.b16 %v27
  %v120 = vunpack.c.l.b16 %v28
  %v121 = vunpack.c.h.b16 %v28
  %v122 = vunpack.c.l.b16 %v29
  %v123 = vunpack.c.h.b16 %v29
  %v124 = vunpack.c.l.b16 %v30
  %v125 = vunpack.c.h.b16 %v30
  %v126 = vunpack.c.l.b16 %v31
  %v127 = vunpack.c.h.b16 %v31
  %v128 = vunpack.c.l.b16 %v32
  %v129 = vunpack.c.h.b16 %v32
  %v130 = vunpack.c.l.b16 %v33
  %v131 = vunpack.c.h.b16 %v33
  %v132 = vunpack.c.l.b16 %v34
  %v133 = vunpack.c.h.b16 %v34
  %v134 = vunpack.c.l.b16 %v35
  %v135 = vunpack.c.h.b16 %v35
  %v136 = vunpack.c.l.b16 %v36
  %v137 = vunpack.c.h.b16 %v36
  %v138 = vunpack.c.l.b16 %v37
  %v139 = vunpack.c.h.b16 %v37
  %v140 = vunpack.c.l.b16 %v38
  %v141 = vunpack.c.h.b16 %v38
  %v142 = vunpack.c.l.b16 %v39
  %v143 = vunpack.c.h.b16 %v39
  %v144 = vunpack.c.l.b16 %v40
  %v145 = vunpack.c.h.b16 %v40
  %v146 = vunpack.c.l.b16 %v41
  %v147 = vunpack.c.h.b16 %v41
  %v148 = vunpack.c.l.b16 %v42
  %v149 = vunpack.c.h.b16 %v42
  %v150 = vunpack.c.l.b16 %v43
  %v151 = vunpack.c.h.b16 %v43
  %v152 = vunpack.c.l.b16 %v44
  %v153 = vunpack.c.h.b16 %v44
  %v154 = vunpack.c.l.b16 %v45
  %v155 = vunpack.c.h.b16 %v45
  %v156 = vunpack.c.l.b16 %v46
  %v157 = vunpack.c.h.b16 %v46
  %v158 = vunpack.c.l.b16 %v47
  %v159 = vunpack.c.h.b16 %v47
  %v160 = vunpack.c.l.b16 %v48
  %v161 = vunpack.c.h.b16 %v48
  %v162 = vunpack.c.l.b16 %v49
  %v163 = vunpack.c.h.b16 %v49
  %v164 = vunpack.c.l.b16 %v50
  %v165 = vunpack.c.h.b16 %v50
  %v166 = vunpack.c.l.b16 %v51
  %v167 = vunpack.c.h.b16 %v51
  %v168 = vunpack.c.l.b16 %v52
  %v169 = vunpack.c.h.b16 %v52
  %v170 = vunpack.c.l.b16 %v53
  %v171 = vunpack.c.h.b16 %v53
  %v172 = vunpack.c.l.b16 %v54
  %v173 = vunpack.c.h.b16 %v54
  %v174 = vpack.c.b16 %v112, %v110
  %v175 = vpack.c.b16 %v113, %v111
  %v176 = vpack.c.b16 %v116, %v114
  %v177 = vpack.c.b16 %v117, %v115
  %v178 = vpack.c.b16 %v120, %v118
  %v179 = vpack.c.b16 %v121, %v119
  %v180 = vpack.c.b16 %v124, %v122
  %v181 = vpack.c.b16 %v125, %v123
  %v182 = vpack.c.b16 %v128, %v126
  %v183 = vpack.c.b16 %v129, %v127
  %v184 = vpack.c.b16 %v132, %v130
  %v185 = vpack.c.b16 %v133, %v131
  %v186 = vpack.c.b16 %v136, %v134
  %v187 = vpack.c.b16 %v137, %v135
  %v188 = vpack.c.b16 %v140, %v138
  %v189 = vpack.c.b16 %v141, %v139
  %v190 = vpack.c.b16 %v144, %v142
  %v191 = vpack.c.b16 %v145, %v143
  %v192 = vpack.c.b16 %v148, %v146
  %v193 = vpack.c.b16 %v149, %v147
  %v194 = vpack.c.b16 %v152, %v150
  %v195 = vpack.c.b16 %v153, %v151
  %v196 = vpack.c.b16 %v156, %v154
  %v197 = vpack.c.b16 %v157, %v155
  %v198 = vpack.c.b16 %v160, %v158
  %v199 = vpack.c.b16 %v161, %v159
  %v200 = vpack.c.b16 %v164, %v162
  %v201 = vpack.c.b16 %v165, %v163
  %v202 = vpack.c.b16 %v168, %v166
  %v203 = vpack.c.b16 %v169, %v167
  %v204 = vpack.c.b16 %v172, %v170
  %v205 = vpack.c.b16 %v173, %v171
  %238 = vmatpush.bf16.msra.mxu0 %v188
  %239 = vmatpush.bf16.msra.mxu0 %v186
  %240 = vmatpush.bf16.msra.mxu0 %v184
  %241 = vmatpush.bf16.msra.mxu0 %v182
  %242 = vmatpush.bf16.msra.mxu0 %v180
  %243 = vmatpush.bf16.msra.mxu0 %v178
  %244 = vmatpush.bf16.msra.mxu0 %v176
  %245 = vmatpush.bf16.msra.mxu0 %v174
  %246 = vmatmul.bf16.gmra.mxu0 %v70
  %v247 = vpop.f32.mrf.mxu0
  %v248 = vadd.f32 %v57, %v247
  %v249 = vpop.f32.mrf.mxu0
  %v250 = vadd.f32 %v57, %v249
  %251 = vmatmul.bf16.gmra.mxu0 %v72
  %v252 = vpop.f32.mrf.mxu0
  %v253 = vadd.f32 %v57, %v252
  %v254 = vpop.f32.mrf.mxu0
  %255 = vdwg.mxu0
  %256 = vmatpush.bf16.msra.mxu0 %v204
  %257 = vmatpush.bf16.msra.mxu0 %v202
  %258 = vmatpush.bf16.msra.mxu0 %v200
  %259 = vmatpush.bf16.msra.mxu0 %v198
  %260 = vmatpush.bf16.msra.mxu0 %v196
  %261 = vmatpush.bf16.msra.mxu0 %v194
  %262 = vmatpush.bf16.msra.mxu0 %v192
  %263 = vmatpush.bf16.msra.mxu0 %v190
  %264 = vmatmul.bf16.gmra.mxu0 %v71
  %v265 = vpop.f32.mrf.mxu0
  %v266 = vadd.f32 %v248, %v265
  %v267 = vpop.f32.mrf.mxu0
  %v268 = vadd.f32 %v250, %v267
  %269 = vmatmul.bf16.gmra.mxu0 %v73
  %v270 = vpop.f32.mrf.mxu0
  %v271 = vadd.f32 %v253, %v270
  %v272 = vpop.f32.mrf.mxu0
  %273 = vdwg.mxu0
  %274 = vmatpush.bf16.msra.mxu0 %v189
  %275 = vmatpush.bf16.msra.mxu0 %v187
  %276 = vmatpush.bf16.msra.mxu0 %v185
  %277 = vmatpush.bf16.msra.mxu0 %v183
  %278 = vmatpush.bf16.msra.mxu0 %v181
  %279 = vmatpush.bf16.msra.mxu0 %v179
  %280 = vmatpush.bf16.msra.mxu0 %v177
  %281 = vmatpush.bf16.msra.mxu0 %v175
  %282 = vmatmul.bf16.gmra.mxu0 %v70
  %v283 = vpop.f32.mrf.mxu0
  %v284 = vadd.f32 %v58, %v283
  %v285 = vpop.f32.mrf.mxu0
  %v286 = vadd.f32 %v58, %v285
  %287 = vmatmul.bf16.gmra.mxu0 %v72
  %v288 = vpop.f32.mrf.mxu0
  %v289 = vadd.f32 %v58, %v288
  %v290 = vpop.f32.mrf.mxu0
  %291 = vdwg.mxu0
  %292 = vmatpush.bf16.msra.mxu0 %v205
  %293 = vmatpush.bf16.msra.mxu0 %v203
  %294 = vmatpush.bf16.msra.mxu0 %v201
  %295 = vmatpush.bf16.msra.mxu0 %v199
  %296 = vmatpush.bf16.msra.mxu0 %v197
  %297 = vmatpush.bf16.msra.mxu0 %v195
  %298 = vmatpush.bf16.msra.mxu0 %v193
  %299 = vmatpush.bf16.msra.mxu0 %v191
  %300 = vmatmul.bf16.gmra.mxu0 %v71
  %v301 = vpop.f32.mrf.mxu0
  %v302 = vadd.f32 %v284, %v301
  %v303 = vpop.f32.mrf.mxu0
  %v304 = vadd.f32 %v286, %v303
  %305 = vmatmul.bf16.gmra.mxu0 %v73
  %v306 = vpop.f32.mrf.mxu0
  %v307 = vadd.f32 %v289, %v306
  %v308 = vpop.f32.mrf.mxu0
  %309 = vdwg.mxu0
  %v310 = vld [vmem:[%s3] sm:$0x3]
  %v312 = vperm.slane %v310, 0
  %v313 = vperm.slane %v310, 1
  %v316 = vmul.f32 %v266, %v312
  %v317 = vmul.f32 %v302, %v313
  %v318 = vmul.f32 %v268, %v312
  %v319 = vmul.f32 %v304, %v313
  %v320 = vmul.f32 %v271, %v312
  %v321 = vmul.f32 %v307, %v313
  %v322 = vld [vmem:[%s4] sm:$0xff]
  %v323 = vld [vmem:[%s4 + $0x8] sm:$0xff]
  %v324 = vld [vmem:[%s4 + $0x10] sm:$0xff]
  %v325 = vunpack.c.l.bf16 %v322
  %v326 = vunpack.c.h.bf16 %v322
  %v327 = vunpack.c.l.bf16 %v323
  %v328 = vunpack.c.h.bf16 %v323
  %v329 = vunpack.c.l.bf16 %v324
  %v330 = vunpack.c.h.bf16 %v324
  %v331 = vadd.f32 %v316, %v325
  %v332 = vadd.f32 %v317, %v326
  %v333 = vadd.f32 %v318, %v327
  %v334 = vadd.f32 %v319, %v328
  %v335 = vadd.f32 %v320, %v329
  %v336 = vadd.f32 %v321, %v330
  %v337 = vpack.c.bf16 %v332, %v331
  %v338 = vpack.c.bf16 %v334, %v333
  %v339 = vpack.c.bf16 %v336, %v335
  %340 = vst [vmem:[%s5] sm:$0xff] %v337
  %341 = vst [vmem:[%s5 + $0x8] sm:$0xff] %v338
  %342 = vst [vmem:[%s5 + $0x10] sm:$0xff] %v339
  // Predicated region
  $region22: #{_lambda_.26} parent=0 // pred_check
    _
  $region23: #{_lambda_.26} parent=0 // pred_check_branch
    %344 = sbr.rel (0) target = $region25
  $region24: #{_lambda_.26} parent=0 // pred_region
    _
  $region25: #{_lambda_.26} parent=0 // pred_fallthru
    _
  // Predicated region
  $region26: #{_lambda_.26} parent=0 // pred_check
    _
  $region27: #{_lambda_.26} parent=0 // pred_check_branch
    %346 = sbr.rel (0) target = $region29
  $region28: #{_lambda_.26} parent=0 // pred_region
    _
  $region29: #{_lambda_.26} parent=0 // pred_fallthru
    _

// kernel: _lambda_.24
$region0: #{_lambda_.24}
  #allocation0 [shape = 'u32[]', space=smem, size = 0x4, offset = 0x4, fixed_abs, tag = 'smem constant byte address 0x4 - core index']
  #allocation1 [shape = 'u32[72,128]{1,0:T(1,128)}', space=vmem, size = 0x9000, scoped, tag = 'internal scratch']
  #allocation2 [shape = 'bf16[24,256]{1,0:T(8,128)(2,1)}', space=vmem, size = 0x3000, scoped, tag = 'scratch operand']
  %s0 = inlined_call_operand.vmem [shape: bf16[24,256], index: 0, kind: input, shape index: {}]
  %s1 = inlined_call_operand.vmem [shape: bf16[256,768], index: 1, kind: input, shape index: {}]
  %s2 = inlined_call_operand.vmem [shape: f32[1,768], index: 2, kind: input, shape index: {}]
  %s3 = inlined_call_operand.vmem [shape: f32[1,256], index: 3, kind: input, shape index: {}]
  %s4 = inlined_call_operand.vmem [shape: f32[1,256], index: 4, kind: input, shape index: {}]
  %s5 = inlined_call_operand.vmem [shape: bf16[24,768], index: 5, kind: output, shape index: {}]
  %s6 = sld [smem:[#allocation0]]
  $region105: #{_lambda_.24} parent=0
    _
  %s8 = ssub.s32 1, %s6
  %s9 = scalar_select 0, %s8, %s6
  $region1: #{_lambda_.24} parent=0
    #allocation3 [shape = 'u8[393216]{0}', space=vmem, size = 0x60000, scoped, tag = 'input window, operand 1']
    #allocation4 [shape = 'u8[36864]{0}', space=vmem, size = 0x9000, scoped, tag = 'output window, operand 0']
    loop: start=0, step=1, limit=4
    $region2: #{_lambda_.24} parent=1 // loop_pre_header
      _
    $region3: #{_lambda_.24} parent=1 // loop_header
      %s11 = sphi 0, %s15
      %p12 = scmp.ge.s32.totalorder %s11, 4
      %s18 = sphi 0, %s30
      %s19 = sphi 0, %s26
      %s20 = sphi 0, %s18
      %s21 = sphi 0, %s19
      %s22 = sphi 0, %s20
      %s23 = sphi 0, %s21
      %s33 = sphi 0, %s35
      %s36 = sphi 0, %s33
      %s37 = sphi 0, %s36
      %s53 = sphi 0, %s37
      %s59 = sphi 0, %s61
      %s62 = sphi 0, %s59
      %s63 = sphi 0, %s62
      %s79 = sphi 0, %s63
      %s85 = sphi 0, %s87
      %s88 = sphi 0, %s85
      %s89 = sphi 0, %s88
      %s105 = sphi 0, %s89
      %s109 = sphi 0, %s109
      %s111 = sphi 0, %s109
      %s112 = sphi 0, %s111
      %s126 = sphi 0, %s112
      %s130 = sphi 0, %s130
      %s132 = sphi 0, %s130
      %s133 = sphi 0, %s132
      %s147 = sphi 0, %s133
      %s155 = sphi 0, %s157
      %s158 = sphi 0, %s155
      %s159 = sphi 0, %s158
      %s175 = sphi 0, %s159
    $region4: #{_lambda_.24} parent=1 // loop_header_branch
      %14 = sbr.rel (%p12) target = $region8
    $region5: #{_lambda_.24} parent=1 // loop_body
      %s16 = ssub.s32 %s11, 1
      %s17 = ssub.s32 %s11, 2
      %s24 = sadd.s32 1, %s19
      %p25 = scmp.ge.s32.totalorder %s24, 2
      %s26 = scalar_select %p25, 0, %s24
      %s27 = sadd.s32 1, %s18
      %s28 = scalar_select %p25, %s27, %s18
      %p29 = scmp.ge.s32.totalorder %s28, 1
      %s30 = scalar_select %p29, 0, %s28
      %s31 = ssub.s32 %s18, %s30
      %p32 = scmp.eq.s32.totalorder %s31, 0
      %s34 = sadd.s32 %s33, 1
      %s35 = scalar_select %p32, %s33, %s34
      %p38 = pneg %p32
      %p39 = scmp.eq.s32.totalorder %s11, 1
      %p40 = por %p38, %p39
      %p41 = scmp.ne.s32.totalorder %s33, %s36
      %p42 = scmp.eq.s32.totalorder %s11, 0
      %p43 = por %p41, %p42
      %p44 = scmp.ne.s32.totalorder %s33, %s36
      %p45 = scmp.eq.s32.totalorder %s16, 1
      %p46 = por %p44, %p45
      %p47 = scmp.ne.s32.totalorder %s36, %s37
      %p48 = scmp.eq.s32.totalorder %s16, 0
      %p49 = por %p47, %p48
      %p50 = scmp.ne.s32.totalorder %s36, %s37
      %p51 = scmp.eq.s32.totalorder %s17, 1
      %p52 = por %p50, %p51
      %p54 = scmp.ne.s32.totalorder %s37, %s53
      %p55 = scmp.eq.s32.totalorder %s17, 0
      %p56 = por %p54, %p55
      %s57 = ssub.s32 %s19, %s26
      %p58 = scmp.eq.s32.totalorder %s57, 0
      %s60 = sadd.s32 %s59, 1
      %s61 = scalar_select %p58, %s59, %s60
      %p64 = pneg %p58
      %p65 = scmp.eq.s32.totalorder %s11, 1
      %p66 = por %p64, %p65
      %p67 = scmp.ne.s32.totalorder %s59, %s62
      %p68 = scmp.eq.s32.totalorder %s11, 0
      %p69 = por %p67, %p68
      %p70 = scmp.ne.s32.totalorder %s59, %s62
      %p71 = scmp.eq.s32.totalorder %s16, 1
      %p72 = por %p70, %p71
      %p73 = scmp.ne.s32.totalorder %s62, %s63
      %p74 = scmp.eq.s32.totalorder %s16, 0
      %p75 = por %p73, %p74
      %p76 = scmp.ne.s32.totalorder %s62, %s63
      %p77 = scmp.eq.s32.totalorder %s17, 1
      %p78 = por %p76, %p77
      %p80 = scmp.ne.s32.totalorder %s63, %s79
      %p81 = scmp.eq.s32.totalorder %s17, 0
      %p82 = por %p80, %p81
      %s83 = ssub.s32 %s19, %s26
      %p84 = scmp.eq.s32.totalorder %s83, 0
      %s86 = sadd.s32 %s85, 1
      %s87 = scalar_select %p84, %s85, %s86
      %p90 = pneg %p84
      %p91 = scmp.eq.s32.totalorder %s11, 1
      %p92 = por %p90, %p91
      %p93 = scmp.ne.s32.totalorder %s85, %s88
      %p94 = scmp.eq.s32.totalorder %s11, 0
      %p95 = por %p93, %p94
      %p96 = scmp.ne.s32.totalorder %s85, %s88
      %p97 = scmp.eq.s32.totalorder %s16, 1
      %p98 = por %p96, %p97
      %p99 = scmp.ne.s32.totalorder %s88, %s89
      %p100 = scmp.eq.s32.totalorder %s16, 0
      %p101 = por %p99, %p100
      %p102 = scmp.ne.s32.totalorder %s88, %s89
      %p103 = scmp.eq.s32.totalorder %s17, 1
      %p104 = por %p102, %p103
      %p106 = scmp.ne.s32.totalorder %s89, %s105
      %p107 = scmp.eq.s32.totalorder %s17, 0
      %p108 = por %p106, %p107
      %s110 = sadd.s32 %s109, 1
      %p113 = scmp.eq.s32.totalorder %s11, 1
      %p114 = scmp.ne.s32.totalorder %s109, %s111
      %p115 = scmp.eq.s32.totalorder %s11, 0
      %p116 = por %p114, %p115
      %p117 = scmp.ne.s32.totalorder %s109, %s111
      %p118 = scmp.eq.s32.totalorder %s16, 1
      %p119 = por %p117, %p118
      %p120 = scmp.ne.s32.totalorder %s111, %s112
      %p121 = scmp.eq.s32.totalorder %s16, 0
      %p122 = por %p120, %p121
      %p123 = scmp.ne.s32.totalorder %s111, %s112
      %p124 = scmp.eq.s32.totalorder %s17, 1
      %p125 = por %p123, %p124
      %p127 = scmp.ne.s32.totalorder %s112, %s126
      %p128 = scmp.eq.s32.totalorder %s17, 0
      %p129 = por %p127, %p128
      %s131 = sadd.s32 %s130, 1
      %p134 = scmp.eq.s32.totalorder %s11, 1
      %p135 = scmp.ne.s32.totalorder %s130, %s132
      %p136 = scmp.eq.s32.totalorder %s11, 0
      %p137 = por %p135, %p136
      %p138 = scmp.ne.s32.totalorder %s130, %s132
      %p139 = scmp.eq.s32.totalorder %s16, 1
      %p140 = por %p138, %p139
      %p141 = scmp.ne.s32.totalorder %s132, %s133
      %p142 = scmp.eq.s32.totalorder %s16, 0
      %p143 = por %p141, %p142
      %p144 = scmp.ne.s32.totalorder %s132, %s133
      %p145 = scmp.eq.s32.totalorder %s17, 1
      %p146 = por %p144, %p145
      %p148 = scmp.ne.s32.totalorder %s133, %s147
      %p149 = scmp.eq.s32.totalorder %s17, 0
      %p150 = por %p148, %p149
      %s151 = ssub.s32 %s18, %s30
      %s152 = ssub.s32 %s19, %s26
      %s153 = sor.u32 %s151, %s152
      %p154 = scmp.eq.s32.totalorder %s153, 0
      %s156 = sadd.s32 %s155, 1
      %s157 = scalar_select %p154, %s155, %s156
      %p160 = pneg %p154
      %p161 = scmp.eq.s32.totalorder %s11, 1
      %p162 = por %p160, %p161
      %p163 = scmp.ne.s32.totalorder %s155, %s158
      %p164 = scmp.eq.s32.totalorder %s11, 0
      %p165 = por %p163, %p164
      %p166 = scmp.ne.s32.totalorder %s155, %s158
      %p167 = scmp.eq.s32.totalorder %s16, 1
      %p168 = por %p166, %p167
      %p169 = scmp.ne.s32.totalorder %s158, %s159
      %p170 = scmp.eq.s32.totalorder %s16, 0
      %p171 = por %p169, %p170
      %p172 = scmp.ne.s32.totalorder %s158, %s159
      %p173 = scmp.eq.s32.totalorder %s17, 1
      %p174 = por %p172, %p173
      %p176 = scmp.ne.s32.totalorder %s159, %s175
      %p177 = scmp.eq.s32.totalorder %s17, 0
      %p178 = por %p176, %p177
      %p179 = scmp.le.s32.totalorder 1, %s11
      %p180 = scmp.lt.s32.totalorder %s11, 3
      %p181 = pnand %p179, %p180
      %p182 = pneg %p181
      // Predicated region
      $region9: #{_lambda_.24} parent=5 // pred_check
        _
      $region10: #{_lambda_.24} parent=5 // pred_check_branch
        %184 = sbr.rel (%p181) target = $region12
      $region11: #{_lambda_.24} parent=5 // pred_region
        %s185 = ssub.s32 %s11, 1
        // Predicated region
        $region13: #{_lambda_.24} parent=11 // pred_check
          %p186 = pneg %p49
        $region14: #{_lambda_.24} parent=11 // pred_check_branch
          %188 = sbr.rel (%p186) target = $region16
        $region15: #{_lambda_.24} parent=11 // pred_region
          %s189 = smul.u32 3, %s20
          %p190 = scmp.lt.s32.totalorder %s189, 2
          %s191 = scalar_select %p190, %s189, 2
          %s192 = smul.addr %s191, 2
          %s193 = smul.addr %s192, 4
          %s194 = scalar_lea.vmem %s0, %s193
          %s195 = smul.u32 3, %s20
        $region16: #{_lambda_.24} parent=11 // pred_fallthru
          _
        // Predicated region
        $region17: #{_lambda_.24} parent=11 // pred_check
          %p196 = pneg %p122
        $region18: #{_lambda_.24} parent=11 // pred_check_branch
          %198 = sbr.rel (%p196) target = $region20
        $region19: #{_lambda_.24} parent=11 // pred_region
          _
        $region20: #{_lambda_.24} parent=11 // pred_fallthru
          _
        // Predicated region
        $region21: #{_lambda_.24} parent=11 // pred_check
          %p199 = pneg %p143
        $region22: #{_lambda_.24} parent=11 // pred_check_branch
          %201 = sbr.rel (%p199) target = $region24
        $region23: #{_lambda_.24} parent=11 // pred_region
          _
        $region24: #{_lambda_.24} parent=11 // pred_fallthru
          _
      $region12: #{_lambda_.24} parent=5 // pred_fallthru
        _
      %p202 = scmp.lt.s32.totalorder %s11, 2
      // Predicated region
      $region25: #{_lambda_.24} parent=5 // pred_check
        %p203 = pneg %p202
      $region26: #{_lambda_.24} parent=5 // pred_check_branch
        %205 = sbr.rel (%p203) target = $region28
      $region27: #{_lambda_.24} parent=5 // pred_region
        // Predicated region
        $region29: #{_lambda_.24} parent=27 // pred_check
          %p206 = pneg %p69
        $region30: #{_lambda_.24} parent=27 // pred_check_branch
          %208 = sbr.rel (%p206) target = $region32
        $region31: #{_lambda_.24} parent=27 // pred_region
          %s209 = sand.u32 %s59, 1
          %s210 = sand.u32 %s59, 1
          %s211 = smul.addr %s210, 384
          %s212 = scalar_lea.vmem [#allocation3], %s211
          %s213 = smul.u32 3, %s19
          %s214 = smul.addr %s213, 4
          %s215 = scalar_lea.vmem %s1, %s214
          // Predicated region
          $region33: #{_lambda_.24} parent=31 // pred_check
            _
          $region34: #{_lambda_.24} parent=31 // pred_check_branch
            %217 = sbr.rel (0) target = $region36
          $region35: #{_lambda_.24} parent=31 // pred_region
            // Predicated region
            $region37: #{_lambda_.24} parent=35 // pred_check
              _
            $region38: #{_lambda_.24} parent=35 // pred_check_branch
              %219 = sbr.rel (0) target = $region40
            $region39: #{_lambda_.24} parent=35 // pred_region
              %s220 = scalar_lea.vmem %s215, 8
              %s221 = scalar_lea.vmem %s212, 8 [#allocation3]
              loop: start=0, step=1, limit=1
              $region41: #{_lambda_.24} parent=39 // loop_pre_header
                _
              $region42: #{_lambda_.24} parent=39 // loop_header
                %s223 = sphi 0, %s227
                %p224 = scmp.ge.s32.totalorder %s223, 1
                %s228 = sphi %s215, %s215
                %s229 = sphi %s212, %s212
              $region43: #{_lambda_.24} parent=39 // loop_header_branch
                %226 = sbr.rel (%p224) target = $region47
              $region44: #{_lambda_.24} parent=39 // loop_body
                %v230 = vld [vmem:[%s228] sm:$0xff]
                %231 = vst [vmem:[%s229] sm:$0xff] %v230
                %v232 = vld [vmem:[%s228 + $0x18] sm:$0xff]
                %233 = vst [vmem:[%s229 + $0xc] sm:$0xff] %v232
                %v234 = vld [vmem:[%s228 + $0x30] sm:$0xff]
                %235 = vst [vmem:[%s229 + $0x18] sm:$0xff] %v234
                %v236 = vld [vmem:[%s228 + $0x48] sm:$0xff]
                %237 = vst [vmem:[%s229 + $0x24] sm:$0xff] %v236
                %v238 = vld [vmem:[%s228 + $0x60] sm:$0xff]
                %239 = vst [vmem:[%s229 + $0x30] sm:$0xff] %v238
                %v240 = vld [vmem:[%s228 + $0x78] sm:$0xff]
                %241 = vst [vmem:[%s229 + $0x3c] sm:$0xff] %v240
                %v242 = vld [vmem:[%s228 + $0x90] sm:$0xff]
                %243 = vst [vmem:[%s229 + $0x48] sm:$0xff] %v242
                %v244 = vld [vmem:[%s228 + $0xa8] sm:$0xff]
                %245 = vst [vmem:[%s229 + $0x54] sm:$0xff] %v244
                %v246 = vld [vmem:[%s228 + $0xc0] sm:$0xff]
                %247 = vst [vmem:[%s229 + $0x60] sm:$0xff] %v246
                %v248 = vld [vmem:[%s228 + $0xd8] sm:$0xff]
                %249 = vst [vmem:[%s229 + $0x6c] sm:$0xff] %v248
                %v250 = vld [vmem:[%s228 + $0xf0] sm:$0xff]
                %251 = vst [vmem:[%s229 + $0x78] sm:$0xff] %v250
                %v252 = vld [vmem:[%s228 + $0x108] sm:$0xff]
                %253 = vst [vmem:[%s229 + $0x84] sm:$0xff] %v252
                %v254 = vld [vmem:[%s228 + $0x120] sm:$0xff]
                %255 = vst [vmem:[%s229 + $0x90] sm:$0xff] %v254
                %v256 = vld [vmem:[%s228 + $0x138] sm:$0xff]
                %257 = vst [vmem:[%s229 + $0x9c] sm:$0xff] %v256
                %v258 = vld [vmem:[%s228 + $0x150] sm:$0xff]
                %259 = vst [vmem:[%s229 + $0xa8] sm:$0xff] %v258
                %v260 = vld [vmem:[%s228 + $0x168] sm:$0xff]
                %261 = vst [vmem:[%s229 + $0xb4] sm:$0xff] %v260
                %v262 = vld [vmem:[%s228 + $0x180] sm:$0xff]
                %263 = vst [vmem:[%s229 + $0xc0] sm:$0xff] %v262
                %v264 = vld [vmem:[%s228 + $0x198] sm:$0xff]
                %265 = vst [vmem:[%s229 + $0xcc] sm:$0xff] %v264
                %v266 = vld [vmem:[%s228 + $0x1b0] sm:$0xff]
                %267 = vst [vmem:[%s229 + $0xd8] sm:$0xff] %v266
                %v268 = vld [vmem:[%s228 + $0x1c8] sm:$0xff]
                %269 = vst [vmem:[%s229 + $0xe4] sm:$0xff] %v268
                %v270 = vld [vmem:[%s228 + $0x1e0] sm:$0xff]
                %271 = vst [vmem:[%s229 + $0xf0] sm:$0xff] %v270
                %v272 = vld [vmem:[%s228 + $0x1f8] sm:$0xff]
                %273 = vst [vmem:[%s229 + $0xfc] sm:$0xff] %v272
                %v274 = vld [vmem:[%s228 + $0x210] sm:$0xff]
                %275 = vst [vmem:[%s229 + $0x108] sm:$0xff] %v274
                %v276 = vld [vmem:[%s228 + $0x228] sm:$0xff]
                %277 = vst [vmem:[%s229 + $0x114] sm:$0xff] %v276
                %v278 = vld [vmem:[%s228 + $0x240] sm:$0xff]
                %279 = vst [vmem:[%s229 + $0x120] sm:$0xff] %v278
                %v280 = vld [vmem:[%s228 + $0x258] sm:$0xff]
                %281 = vst [vmem:[%s229 + $0x12c] sm:$0xff] %v280
                %v282 = vld [vmem:[%s228 + $0x270] sm:$0xff]
                %283 = vst [vmem:[%s229 + $0x138] sm:$0xff] %v282
                %v284 = vld [vmem:[%s228 + $0x288] sm:$0xff]
                %285 = vst [vmem:[%s229 + $0x144] sm:$0xff] %v284
                %v286 = vld [vmem:[%s228 + $0x2a0] sm:$0xff]
                %287 = vst [vmem:[%s229 + $0x150] sm:$0xff] %v286
                %v288 = vld [vmem:[%s228 + $0x2b8] sm:$0xff]
                %289 = vst [vmem:[%s229 + $0x15c] sm:$0xff] %v288
                %v290 = vld [vmem:[%s228 + $0x2d0] sm:$0xff]
                %291 = vst [vmem:[%s229 + $0x168] sm:$0xff] %v290
                %v292 = vld [vmem:[%s228 + $0x2e8] sm:$0xff]
                %293 = vst [vmem:[%s229 + $0x174] sm:$0xff] %v292
              $region45: #{_lambda_.24} parent=39 // loop_footer
                %s227 = sadd.s32 1, %s223
              $region46: #{_lambda_.24} parent=39 // loop_footer_branch
                %222 = sbr.rel target = $region42
              $region47: #{_lambda_.24} parent=39 // loop_exit
                _
              %s295 = ssub.s32 16, 1
              loop: start=0, step=1, limit=1
              $region48: #{_lambda_.24} parent=39 // loop_pre_header
                _
              $region49: #{_lambda_.24} parent=39 // loop_header
                %s297 = sphi 0, %s301
                %p298 = scmp.ge.s32.totalorder %s297, 1
                %s302 = sphi %s220, %s220
                %s303 = sphi %s221, %s221
              $region50: #{_lambda_.24} parent=39 // loop_header_branch
                %300 = sbr.rel (%p298) target = $region54
              $region51: #{_lambda_.24} parent=39 // loop_body
                %v304 = vld [vmem:[%s302] sm:%s295]
                %305 = vst [vmem:[%s303] sm:%s295] %v304
                %v306 = vld [vmem:[%s302 + $0x18] sm:%s295]
                %307 = vst [vmem:[%s303 + $0xc] sm:%s295] %v306
                %v308 = vld [vmem:[%s302 + $0x30] sm:%s295]
                %309 = vst [vmem:[%s303 + $0x18] sm:%s295] %v308
                %v310 = vld [vmem:[%s302 + $0x48] sm:%s295]
                %311 = vst [vmem:[%s303 + $0x24] sm:%s295] %v310
                %v312 = vld [vmem:[%s302 + $0x60] sm:%s295]
                %313 = vst [vmem:[%s303 + $0x30] sm:%s295] %v312
                %v314 = vld [vmem:[%s302 + $0x78] sm:%s295]
                %315 = vst [vmem:[%s303 + $0x3c] sm:%s295] %v314
                %v316 = vld [vmem:[%s302 + $0x90] sm:%s295]
                %317 = vst [vmem:[%s303 + $0x48] sm:%s295] %v316
                %v318 = vld [vmem:[%s302 + $0xa8] sm:%s295]
                %319 = vst [vmem:[%s303 + $0x54] sm:%s295] %v318
                %v320 = vld [vmem:[%s302 + $0xc0] sm:%s295]
                %321 = vst [vmem:[%s303 + $0x60] sm:%s295] %v320
                %v322 = vld [vmem:[%s302 + $0xd8] sm:%s295]
                %323 = vst [vmem:[%s303 + $0x6c] sm:%s295] %v322
                %v324 = vld [vmem:[%s302 + $0xf0] sm:%s295]
                %325 = vst [vmem:[%s303 + $0x78] sm:%s295] %v324
                %v326 = vld [vmem:[%s302 + $0x108] sm:%s295]
                %327 = vst [vmem:[%s303 + $0x84] sm:%s295] %v326
                %v328 = vld [vmem:[%s302 + $0x120] sm:%s295]
                %329 = vst [vmem:[%s303 + $0x90] sm:%s295] %v328
                %v330 = vld [vmem:[%s302 + $0x138] sm:%s295]
                %331 = vst [vmem:[%s303 + $0x9c] sm:%s295] %v330
                %v332 = vld [vmem:[%s302 + $0x150] sm:%s295]
                %333 = vst [vmem:[%s303 + $0xa8] sm:%s295] %v332
                %v334 = vld [vmem:[%s302 + $0x168] sm:%s295]
                %335 = vst [vmem:[%s303 + $0xb4] sm:%s295] %v334
                %v336 = vld [vmem:[%s302 + $0x180] sm:%s295]
                %337 = vst [vmem:[%s303 + $0xc0] sm:%s295] %v336
                %v338 = vld [vmem:[%s302 + $0x198] sm:%s295]
                %339 = vst [vmem:[%s303 + $0xcc] sm:%s295] %v338
                %v340 = vld [vmem:[%s302 + $0x1b0] sm:%s295]
                %341 = vst [vmem:[%s303 + $0xd8] sm:%s295] %v340
                %v342 = vld [vmem:[%s302 + $0x1c8] sm:%s295]
                %343 = vst [vmem:[%s303 + $0xe4] sm:%s295] %v342
                %v344 = vld [vmem:[%s302 + $0x1e0] sm:%s295]
                %345 = vst [vmem:[%s303 + $0xf0] sm:%s295] %v344
                %v346 = vld [vmem:[%s302 + $0x1f8] sm:%s295]
                %347 = vst [vmem:[%s303 + $0xfc] sm:%s295] %v346
                %v348 = vld [vmem:[%s302 + $0x210] sm:%s295]
                %349 = vst [vmem:[%s303 + $0x108] sm:%s295] %v348
                %v350 = vld [vmem:[%s302 + $0x228] sm:%s295]
                %351 = vst [vmem:[%s303 + $0x114] sm:%s295] %v350
                %v352 = vld [vmem:[%s302 + $0x240] sm:%s295]
                %353 = vst [vmem:[%s303 + $0x120] sm:%s295] %v352
                %v354 = vld [vmem:[%s302 + $0x258] sm:%s295]
                %355 = vst [vmem:[%s303 + $0x12c] sm:%s295] %v354
                %v356 = vld [vmem:[%s302 + $0x270] sm:%s295]
                %357 = vst [vmem:[%s303 + $0x138] sm:%s295] %v356
                %v358 = vld [vmem:[%s302 + $0x288] sm:%s295]
                %359 = vst [vmem:[%s303 + $0x144] sm:%s295] %v358
                %v360 = vld [vmem:[%s302 + $0x2a0] sm:%s295]
                %361 = vst [vmem:[%s303 + $0x150] sm:%s295] %v360
                %v362 = vld [vmem:[%s302 + $0x2b8] sm:%s295]
                %363 = vst [vmem:[%s303 + $0x15c] sm:%s295] %v362
                %v364 = vld [vmem:[%s302 + $0x2d0] sm:%s295]
                %365 = vst [vmem:[%s303 + $0x168] sm:%s295] %v364
                %v366 = vld [vmem:[%s302 + $0x2e8] sm:%s295]
                %367 = vst [vmem:[%s303 + $0x174] sm:%s295] %v366
              $region52: #{_lambda_.24} parent=39 // loop_footer
                %s301 = sadd.s32 1, %s297
              $region53: #{_lambda_.24} parent=39 // loop_footer_branch
                %296 = sbr.rel target = $region49
              $region54: #{_lambda_.24} parent=39 // loop_exit
                _
            $region40: #{_lambda_.24} parent=35 // pred_fallthru
              _
          $region36: #{_lambda_.24} parent=31 // pred_fallthru
            _
          %368 = vnop
        $region32: #{_lambda_.24} parent=27 // pred_fallthru
          _
        // Predicated region
        $region55: #{_lambda_.24} parent=27 // pred_check
          %p369 = pneg %p95
        $region56: #{_lambda_.24} parent=27 // pred_check_branch
          %371 = sbr.rel (%p369) target = $region58
        $region57: #{_lambda_.24} parent=27 // pred_region
          %s372 = smul.u32 3, %s19
          %p373 = scmp.lt.s32.totalorder %s372, 5
          %s374 = scalar_select %p373, %s372, 5
          %s375 = scalar_lea.vmem %s2, %s374
          %s376 = smul.u32 3, %s19
        $region58: #{_lambda_.24} parent=27 // pred_fallthru
          _
      $region28: #{_lambda_.24} parent=5 // pred_fallthru
        _
      %p377 = scmp.le.s32.totalorder 1, %s11
      %p378 = scmp.lt.s32.totalorder %s11, 3
      %p379 = pnand %p377, %p378
      %p380 = pneg %p379
      // Predicated region
      $region59: #{_lambda_.24} parent=5 // pred_check
        _
      $region60: #{_lambda_.24} parent=5 // pred_check_branch
        %382 = sbr.rel (%p379) target = $region62
      $region61: #{_lambda_.24} parent=5 // pred_region
        %s383 = ssub.s32 %s11, 1
        %s384 = sand.u32 %s62, 1
        %s385 = sand.u32 %s62, 1
        %s386 = smul.addr %s385, 384
        %s387 = scalar_lea.vmem [#allocation3], %s386
        // Predicated region
        $region63: #{_lambda_.24} parent=61 // pred_check
          %p388 = pneg %p75
        $region64: #{_lambda_.24} parent=61 // pred_check_branch
          %390 = sbr.rel (%p388) target = $region66
        $region65: #{_lambda_.24} parent=61 // pred_region
          _
        $region66: #{_lambda_.24} parent=61 // pred_fallthru
          _
        %s391 = smul.u32 3, %s20
        %p392 = scmp.lt.s32.totalorder %s391, 2
        %s393 = scalar_select %p392, %s391, 2
        %s394 = smul.addr %s393, 2
        %s395 = smul.addr %s394, 4
        %s396 = scalar_lea.vmem %s0, %s395
        %p397 = pneg %p49
        %p398 = pneg %p46
        %s399 = sand.u32 %s62, 1
        %s400 = sand.u32 %s62, 1
        %s401 = smul.addr %s400, 384
        %s402 = scalar_lea.vmem [#allocation3], %s401
        %p403 = pneg %p75
        %p404 = pneg %p72
        %s405 = smul.u32 3, %s21
        %p406 = scmp.lt.s32.totalorder %s405, 5
        %s407 = scalar_select %p406, %s405, 5
        %s408 = scalar_lea.vmem %s2, %s407
        %p409 = pneg %p101
        %p410 = pneg %p98
        %p411 = pneg %p122
        %p412 = pneg %p119
        %p413 = pneg %p143
        %p414 = pneg %p140
        %p415 = pneg %p171
        %p416 = pneg %p168
        %s417 = sand.u32 %s158, 1
        %s418 = sand.u32 %s158, 1
        %s419 = smul.addr %s418, 36
        %s420 = scalar_lea.vmem [#allocation4], %s419
        %s421 = smul.u32 3, %s20
        %p422 = scmp.lt.s32.totalorder %s421, 2
        %s423 = scalar_select %p422, %s421, 2
        %s424 = smul.addr %s423, 2
        %s425 = smul.addr %s424, 4
        %s426 = scalar_lea.vmem %s0, %s425
        %s427 = smul.u32 3, %s20
        %s428 = smul.u32 3, %s21
        %s429 = smul.u32 3, %s21
        %p430 = scmp.lt.s32.totalorder %s429, 5
        %s431 = scalar_select %p430, %s429, 5
        %s432 = scalar_lea.vmem %s2, %s431
        %s433 = smul.u32 3, %s21
        %s434 = smul.u32 3, %s20
        %s435 = smul.u32 3, %s21
        %p436 = scmp.eq.s32.totalorder %s21, 0
        // Predicated region
        $region67: #{_lambda_.24} parent=61 // pred_check
          %p437 = pneg %p436
        $region68: #{_lambda_.24} parent=61 // pred_check_branch
          %439 = sbr.rel (%p437) target = $region70
        $region69: #{_lambda_.24} parent=61 // pred_region
          %v440 = vld [vmem:[%s426] sm:$0xff]
          %v441 = vld [vmem:[%s426 + $0x8] sm:$0xff]
          %v442 = vld [vmem:[%s426 + $0x10] sm:$0xff]
          %v443 = vunpack.c.l.bf16 %v440
          %v444 = vunpack.c.h.bf16 %v440
          %v445 = vunpack.c.l.bf16 %v441
          %v446 = vunpack.c.h.bf16 %v441
          %v447 = vunpack.c.l.bf16 %v442
          %v448 = vunpack.c.h.bf16 %v442
          %v449 = vld [vmem:[%s3] sm:$0x3]
          %v450 = vld [vmem:[%s4] sm:$0x3]
          %v451 = vadd.f32 %v443, %v444
          %452 = vadd.xlane.f32.xlu0 %v451
          %v453 = vpop.xlane.xlu0 %452
          %v454 = vadd.f32 %v445, %v446
          %455 = vadd.xlane.f32.xlu0 %v454
          %v456 = vpop.xlane.xlu0 %455
          %v457 = vadd.f32 %v447, %v448
          %458 = vadd.xlane.f32.xlu0 %v457
          %v459 = vpop.xlane.xlu0 %458
          %v460 = vrcp.pop 256.0
          %v461 = vmul.f32 256.0, %v460
          %v462 = vsub.f32 1.0, %v461
          %v463 = vmul.f32 %v460, %v462
          %v464 = vadd.f32 %v460, %v463
          %vm465 = vweird.f32 %v460
          %v466 = vsel %vm465, %v460, %v464
          %v467 = vmul.f32 %v453, %v466
          %v468 = vmul.f32 %v456, %v466
          %v469 = vmul.f32 %v459, %v466
          %v470 = vsub.f32 %v443, %v467
          %v471 = vsub.f32 %v444, %v467
          %v472 = vsub.f32 %v445, %v468
          %v473 = vsub.f32 %v446, %v468
          %v474 = vsub.f32 %v447, %v469
          %v475 = vsub.f32 %v448, %v469
          %v476 = vmul.f32 %v470, %v470
          %v477 = vmul.f32 %v471, %v471
          %v478 = vmul.f32 %v472, %v472
          %v479 = vmul.f32 %v473, %v473
          %v480 = vmul.f32 %v474, %v474
          %v481 = vmul.f32 %v475, %v475
          %v482 = vadd.f32 %v476, %v477
          %483 = vadd.xlane.f32.xlu0 %v482
          %v484 = vpop.xlane.xlu0 %483
          %v485 = vadd.f32 %v478, %v479
          %486 = vadd.xlane.f32.xlu0 %v485
          %v487 = vpop.xlane.xlu0 %486
          %v488 = vadd.f32 %v480, %v481
          %489 = vadd.xlane.f32.xlu0 %v488
          %v490 = vpop.xlane.xlu0 %489
          %v491 = vmul.f32 %v484, %v466
          %v492 = vmul.f32 %v487, %v466
          %v493 = vmul.f32 %v490, %v466
          %v494 = vadd.f32 %v491, 1e-06
          %v495 = vadd.f32 %v492, 1e-06
          %v496 = vadd.f32 %v493, 1e-06
          %v497 = vrsqrt.pop %v494
          %v498 = vmul.f32 %v497, %v494
          %v499 = vmul.f32 %v498, %v497
          %v500 = vmul.f32 0.5, %v499
          %v501 = vsub.f32 1.5, %v500
          %v502 = vmul.f32 %v497, %v501
          %vm503 = vweird.f32 %v494
          %vm504 = vweird.f32 %v497
          %vm505 = vmor %vm503, %vm504
          %v506 = vsel %vm505, %v497, %v502
          %v507 = vrsqrt.pop %v495
          %v508 = vmul.f32 %v507, %v495
          %v509 = vmul.f32 %v508, %v507
          %v510 = vmul.f32 0.5, %v509
          %v511 = vsub.f32 1.5, %v510
          %v512 = vmul.f32 %v507, %v511
          %vm513 = vweird.f32 %v495
          %vm514 = vweird.f32 %v507
          %vm515 = vmor %vm513, %vm514
          %v516 = vsel %vm515, %v507, %v512
          %v517 = vrsqrt.pop %v496
          %v518 = vmul.f32 %v517, %v496
          %v519 = vmul.f32 %v518, %v517
          %v520 = vmul.f32 0.5, %v519
          %v521 = vsub.f32 1.5, %v520
          %v522 = vmul.f32 %v517, %v521
          %vm523 = vweird.f32 %v496
          %vm524 = vweird.f32 %v517
          %vm525 = vmor %vm523, %vm524
          %v526 = vsel %vm525, %v517, %v522
          %v527 = vmul.f32 %v470, %v506
          %v528 = vmul.f32 %v471, %v506
          %v529 = vmul.f32 %v472, %v516
          %v530 = vmul.f32 %v473, %v516
          %v531 = vmul.f32 %v474, %v526
          %v532 = vmul.f32 %v475, %v526
          %v534 = vperm.slane %v449, 0
          %v535 = vperm.slane %v449, 1
          %v538 = vmul.f32 %v527, %v534
          %v539 = vmul.f32 %v528, %v535
          %v540 = vmul.f32 %v529, %v534
          %v541 = vmul.f32 %v530, %v535
          %v542 = vmul.f32 %v531, %v534
          %v543 = vmul.f32 %v532, %v535
          %v545 = vperm.slane %v450, 0
          %v546 = vperm.slane %v450, 1
          %v549 = vadd.f32 %v538, %v545
          %v550 = vadd.f32 %v539, %v546
          %v551 = vadd.f32 %v540, %v545
          %v552 = vadd.f32 %v541, %v546
          %v553 = vadd.f32 %v542, %v545
          %v554 = vadd.f32 %v543, %v546
          %v555 = vpack.c.bf16 %v550, %v549
          %v556 = vpack.c.bf16 %v552, %v551
          %v557 = vpack.c.bf16 %v554, %v553
          %558 = vst [vmem:[#allocation2] sm:$0xff] %v555
          %559 = vst [vmem:[#allocation2 + $0x8] sm:$0xff] %v556
          %560 = vst [vmem:[#allocation2 + $0x10] sm:$0xff] %v557
        $region70: #{_lambda_.24} parent=61 // pred_fallthru
          _
        %v561 = vld [vmem:[#allocation2] sm:$0xff]
        %v562 = vld [vmem:[#allocation2 + $0x8] sm:$0xff]
        %v563 = vld [vmem:[#allocation2 + $0x10] sm:$0xff]
        %v564 = vld [vmem:[%s387] sm:$0xff]
        %v565 = vld [vmem:[%s387 + $0x8] sm:$0xf]
        %v566 = vld [vmem:[%s387 + $0xc] sm:$0xff]
        %v567 = vld [vmem:[%s387 + $0x14] sm:$0xf]
        %v568 = vld [vmem:[%s387 + $0x18] sm:$0xff]
        %v569 = vld [vmem:[%s387 + $0x20] sm:$0xf]
        %v570 = vld [vmem:[%s387 + $0x24] sm:$0xff]
        %v571 = vld [vmem:[%s387 + $0x2c] sm:$0xf]
        %v572 = vld [vmem:[%s387 + $0x30] sm:$0xff]
        %v573 = vld [vmem:[%s387 + $0x38] sm:$0xf]
        %v574 = vld [vmem:[%s387 + $0x3c] sm:$0xff]
        %v575 = vld [vmem:[%s387 + $0x44] sm:$0xf]
        %v576 = vld [vmem:[%s387 + $0x48] sm:$0xff]
        %v577 = vld [vmem:[%s387 + $0x50] sm:$0xf]
        %v578 = vld [vmem:[%s387 + $0x54] sm:$0xff]
        %v579 = vld [vmem:[%s387 + $0x5c] sm:$0xf]
        %v580 = vld [vmem:[%s387 + $0x60] sm:$0xff]
        %v581 = vld [vmem:[%s387 + $0x68] sm:$0xf]
        %v582 = vld [vmem:[%s387 + $0x6c] sm:$0xff]
        %v583 = vld [vmem:[%s387 + $0x74] sm:$0xf]
        %v584 = vld [vmem:[%s387 + $0x78] sm:$0xff]
        %v585 = vld [vmem:[%s387 + $0x80] sm:$0xf]
        %v586 = vld [vmem:[%s387 + $0x84] sm:$0xff]
        %v587 = vld [vmem:[%s387 + $0x8c] sm:$0xf]
        %v588 = vld [vmem:[%s387 + $0x90] sm:$0xff]
        %v589 = vld [vmem:[%s387 + $0x98] sm:$0xf]
        %v590 = vld [vmem:[%s387 + $0x9c] sm:$0xff]
        %v591 = vld [vmem:[%s387 + $0xa4] sm:$0xf]
        %v592 = vld [vmem:[%s387 + $0xa8] sm:$0xff]
        %v593 = vld [vmem:[%s387 + $0xb0] sm:$0xf]
        %v594 = vld [vmem:[%s387 + $0xb4] sm:$0xff]
        %v595 = vld [vmem:[%s387 + $0xbc] sm:$0xf]
        %v596 = vld [vmem:[%s387 + $0xc0] sm:$0xff]
        %v597 = vld [vmem:[%s387 + $0xc8] sm:$0xf]
        %v598 = vld [vmem:[%s387 + $0xcc] sm:$0xff]
        %v599 = vld [vmem:[%s387 + $0xd4] sm:$0xf]
        %v600 = vld [vmem:[%s387 + $0xd8] sm:$0xff]
        %v601 = vld [vmem:[%s387 + $0xe0] sm:$0xf]
        %v602 = vld [vmem:[%s387 + $0xe4] sm:$0xff]
        %v603 = vld [vmem:[%s387 + $0xec] sm:$0xf]
        %v604 = vld [vmem:[%s387 + $0xf0] sm:$0xff]
        %v605 = vld [vmem:[%s387 + $0xf8] sm:$0xf]
        %v606 = vld [vmem:[%s387 + $0xfc] sm:$0xff]
        %v607 = vld [vmem:[%s387 + $0x104] sm:$0xf]
        %v608 = vld [vmem:[%s387 + $0x108] sm:$0xff]
        %v609 = vld [vmem:[%s387 + $0x110] sm:$0xf]
        %v610 = vld [vmem:[%s387 + $0x114] sm:$0xff]
        %v611 = vld [vmem:[%s387 + $0x11c] sm:$0xf]
        %v612 = vld [vmem:[%s387 + $0x120] sm:$0xff]
        %v613 = vld [vmem:[%s387 + $0x128] sm:$0xf]
        %v614 = vld [vmem:[%s387 + $0x12c] sm:$0xff]
        %v615 = vld [vmem:[%s387 + $0x134] sm:$0xf]
        %v616 = vld [vmem:[%s387 + $0x138] sm:$0xff]
        %v617 = vld [vmem:[%s387 + $0x140] sm:$0xf]
        %v618 = vld [vmem:[%s387 + $0x144] sm:$0xff]
        %v619 = vld [vmem:[%s387 + $0x14c] sm:$0xf]
        %v620 = vld [vmem:[%s387 + $0x150] sm:$0xff]
        %v621 = vld [vmem:[%s387 + $0x158] sm:$0xf]
        %v622 = vld [vmem:[%s387 + $0x15c] sm:$0xff]
        %v623 = vld [vmem:[%s387 + $0x164] sm:$0xf]
        %v624 = vld [vmem:[%s387 + $0x168] sm:$0xff]
        %v625 = vld [vmem:[%s387 + $0x170] sm:$0xf]
        %v626 = vld [vmem:[%s387 + $0x174] sm:$0xff]
        %v627 = vld [vmem:[%s387 + $0x17c] sm:$0xf]
        %v628 = vld [vmem:[%s432] sm:$0x7]
        %v630 = vperm.slane %v628, 0
        %v631 = vperm.slane %v628, 1
        %v632 = vperm.slane %v628, 2
        %v639 = vunpack.c.l.b16 %v561
        %v640 = vunpack.c.h.b16 %v561
        %v641 = vunpack.c.l.b16 %v562
        %v642 = vunpack.c.h.b16 %v562
        %v643 = vunpack.c.l.b16 %v563
        %v644 = vunpack.c.h.b16 %v563
        %v645 = vpack.c.b16 %v641, %v639
        %v646 = vpack.c.b16 %v642, %v640
        %v647 = vpack.c.b16 %v643, %v643
        %v648 = vpack.c.b16 %v644, %v644
        %v717 = vunpack.c.l.b16 %v564
        %v718 = vunpack.c.h.b16 %v564
        %v719 = vunpack.c.l.b16 %v565
        %v720 = vunpack.c.l.b16 %v566
        %v721 = vunpack.c.h.b16 %v566
        %v722 = vunpack.c.l.b16 %v567
        %v723 = vunpack.c.l.b16 %v568
        %v724 = vunpack.c.h.b16 %v568
        %v725 = vunpack.c.l.b16 %v569
        %v726 = vunpack.c.l.b16 %v570
        %v727 = vunpack.c.h.b16 %v570
        %v728 = vunpack.c.l.b16 %v571
        %v729 = vunpack.c.l.b16 %v572
        %v730 = vunpack.c.h.b16 %v572
        %v731 = vunpack.c.l.b16 %v573
        %v732 = vunpack.c.l.b16 %v574
        %v733 = vunpack.c.h.b16 %v574
        %v734 = vunpack.c.l.b16 %v575
        %v735 = vunpack.c.l.b16 %v576
        %v736 = vunpack.c.h.b16 %v576
        %v737 = vunpack.c.l.b16 %v577
        %v738 = vunpack.c.l.b16 %v578
        %v739 = vunpack.c.h.b16 %v578
        %v740 = vunpack.c.l.b16 %v579
        %v741 = vunpack.c.l.b16 %v580
        %v742 = vunpack.c.h.b16 %v580
        %v743 = vunpack.c.l.b16 %v581
        %v744 = vunpack.c.l.b16 %v582
        %v745 = vunpack.c.h.b16 %v582
        %v746 = vunpack.c.l.b16 %v583
        %v747 = vunpack.c.l.b16 %v584
        %v748 = vunpack.c.h.b16 %v584
        %v749 = vunpack.c.l.b16 %v585
        %v750 = vunpack.c.l.b16 %v586
        %v751 = vunpack.c.h.b16 %v586
        %v752 = vunpack.c.l.b16 %v587
        %v753 = vunpack.c.l.b16 %v588
        %v754 = vunpack.c.h.b16 %v588
        %v755 = vunpack.c.l.b16 %v589
        %v756 = vunpack.c.l.b16 %v590
        %v757 = vunpack.c.h.b16 %v590
        %v758 = vunpack.c.l.b16 %v591
        %v759 = vunpack.c.l.b16 %v592
        %v760 = vunpack.c.h.b16 %v592
        %v761 = vunpack.c.l.b16 %v593
        %v762 = vunpack.c.l.b16 %v594
        %v763 = vunpack.c.h.b16 %v594
        %v764 = vunpack.c.l.b16 %v595
        %v765 = vunpack.c.l.b16 %v596
        %v766 = vunpack.c.h.b16 %v596
        %v767 = vunpack.c.l.b16 %v597
        %v768 = vunpack.c.l.b16 %v598
        %v769 = vunpack.c.h.b16 %v598
        %v770 = vunpack.c.l.b16 %v599
        %v771 = vunpack.c.l.b16 %v600
        %v772 = vunpack.c.h.b16 %v600
        %v773 = vunpack.c.l.b16 %v601
        %v774 = vunpack.c.l.b16 %v602
        %v775 = vunpack.c.h.b16 %v602
        %v776 = vunpack.c.l.b16 %v603
        %v777 = vunpack.c.l.b16 %v604
        %v778 = vunpack.c.h.b16 %v604
        %v779 = vunpack.c.l.b16 %v605
        %v780 = vunpack.c.l.b16 %v606
        %v781 = vunpack.c.h.b16 %v606
        %v782 = vunpack.c.l.b16 %v607
        %v783 = vunpack.c.l.b16 %v608
        %v784 = vunpack.c.h.b16 %v608
        %v785 = vunpack.c.l.b16 %v609
        %v786 = vunpack.c.l.b16 %v610
        %v787 = vunpack.c.h.b16 %v610
        %v788 = vunpack.c.l.b16 %v611
        %v789 = vunpack.c.l.b16 %v612
        %v790 = vunpack.c.h.b16 %v612
        %v791 = vunpack.c.l.b16 %v613
        %v792 = vunpack.c.l.b16 %v614
        %v793 = vunpack.c.h.b16 %v614
        %v794 = vunpack.c.l.b16 %v615
        %v795 = vunpack.c.l.b16 %v616
        %v796 = vunpack.c.h.b16 %v616
        %v797 = vunpack.c.l.b16 %v617
        %v798 = vunpack.c.l.b16 %v618
        %v799 = vunpack.c.h.b16 %v618
        %v800 = vunpack.c.l.b16 %v619
        %v801 = vunpack.c.l.b16 %v620
        %v802 = vunpack.c.h.b16 %v620
        %v803 = vunpack.c.l.b16 %v621
        %v804 = vunpack.c.l.b16 %v622
        %v805 = vunpack.c.h.b16 %v622
        %v806 = vunpack.c.l.b16 %v623
        %v807 = vunpack.c.l.b16 %v624
        %v808 = vunpack.c.h.b16 %v624
        %v809 = vunpack.c.l.b16 %v625
        %v810 = vunpack.c.l.b16 %v626
        %v811 = vunpack.c.h.b16 %v626
        %v812 = vunpack.c.l.b16 %v627
        %v813 = vpack.c.b16 %v720, %v717
        %v814 = vpack.c.b16 %v721, %v718
        %v815 = vpack.c.b16 %v722, %v719
        %v816 = vpack.c.b16 %v726, %v723
        %v817 = vpack.c.b16 %v727, %v724
        %v818 = vpack.c.b16 %v728, %v725
        %v819 = vpack.c.b16 %v732, %v729
        %v820 = vpack.c.b16 %v733, %v730
        %v821 = vpack.c.b16 %v734, %v731
        %v822 = vpack.c.b16 %v738, %v735
        %v823 = vpack.c.b16 %v739, %v736
        %v824 = vpack.c.b16 %v740, %v737
        %v825 = vpack.c.b16 %v744, %v741
        %v826 = vpack.c.b16 %v745, %v742
        %v827 = vpack.c.b16 %v746, %v743
        %v828 = vpack.c.b16 %v750, %v747
        %v829 = vpack.c.b16 %v751, %v748
        %v830 = vpack.c.b16 %v752, %v749
        %v831 = vpack.c.b16 %v756, %v753
        %v832 = vpack.c.b16 %v757, %v754
        %v833 = vpack.c.b16 %v758, %v755
        %v834 = vpack.c.b16 %v762, %v759
        %v835 = vpack.c.b16 %v763, %v760
        %v836 = vpack.c.b16 %v764, %v761
        %v837 = vpack.c.b16 %v768, %v765
        %v838 = vpack.c.b16 %v769, %v766
        %v839 = vpack.c.b16 %v770, %v767
        %v840 = vpack.c.b16 %v774, %v771
        %v841 = vpack.c.b16 %v775, %v772
        %v842 = vpack.c.b16 %v776, %v773
        %v843 = vpack.c.b16 %v780, %v777
        %v844 = vpack.c.b16 %v781, %v778
        %v845 = vpack.c.b16 %v782, %v779
        %v846 = vpack.c.b16 %v786, %v783
        %v847 = vpack.c.b16 %v787, %v784
        %v848 = vpack.c.b16 %v788, %v785
        %v849 = vpack.c.b16 %v792, %v789
        %v850 = vpack.c.b16 %v793, %v790
        %v851 = vpack.c.b16 %v794, %v791
        %v852 = vpack.c.b16 %v798, %v795
        %v853 = vpack.c.b16 %v799, %v796
        %v854 = vpack.c.b16 %v800, %v797
        %v855 = vpack.c.b16 %v804, %v801
        %v856 = vpack.c.b16 %v805, %v802
        %v857 = vpack.c.b16 %v806, %v803
        %v858 = vpack.c.b16 %v810, %v807
        %v859 = vpack.c.b16 %v811, %v808
        %v860 = vpack.c.b16 %v812, %v809
        %909 = vmatpush.bf16.msra.mxu0 %v834
        %910 = vmatpush.bf16.msra.mxu0 %v831
        %911 = vmatpush.bf16.msra.mxu0 %v828
        %912 = vmatpush.bf16.msra.mxu0 %v825
        %913 = vmatpush.bf16.msra.mxu0 %v822
        %914 = vmatpush.bf16.msra.mxu0 %v819
        %915 = vmatpush.bf16.msra.mxu0 %v816
        %916 = vmatpush.bf16.msra.mxu0 %v813
        %917 = vmatmul.bf16.gmra.mxu0 %v645
        %v918 = vpop.f32.mrf.mxu0
        %v919 = vadd.f32 %v630, %v918
        %v920 = vpop.f32.mrf.mxu0
        %v921 = vadd.f32 %v630, %v920
        %922 = vmatmul.bf16.gmra.mxu0 %v647
        %v923 = vpop.f32.mrf.mxu0
        %v924 = vadd.f32 %v630, %v923
        %v925 = vpop.f32.mrf.mxu0
        %926 = vdwg.mxu0
        %927 = vmatpush.bf16.msra.mxu0 %v858
        %928 = vmatpush.bf16.msra.mxu0 %v855
        %929 = vmatpush.bf16.msra.mxu0 %v852
        %930 = vmatpush.bf16.msra.mxu0 %v849
        %931 = vmatpush.bf16.msra.mxu0 %v846
        %932 = vmatpush.bf16.msra.mxu0 %v843
        %933 = vmatpush.bf16.msra.mxu0 %v840
        %934 = vmatpush.bf16.msra.mxu0 %v837
        %935 = vmatmul.bf16.gmra.mxu0 %v646
        %v936 = vpop.f32.mrf.mxu0
        %v937 = vadd.f32 %v919, %v936
        %v938 = vpop.f32.mrf.mxu0
        %v939 = vadd.f32 %v921, %v938
        %940 = vmatmul.bf16.gmra.mxu0 %v648
        %v941 = vpop.f32.mrf.mxu0
        %v942 = vadd.f32 %v924, %v941
        %v943 = vpop.f32.mrf.mxu0
        %944 = vdwg.mxu0
        %945 = vmatpush.bf16.msra.mxu0 %v835
        %946 = vmatpush.bf16.msra.mxu0 %v832
        %947 = vmatpush.bf16.msra.mxu0 %v829
        %948 = vmatpush.bf16.msra.mxu0 %v826
        %949 = vmatpush.bf16.msra.mxu0 %v823
        %950 = vmatpush.bf16.msra.mxu0 %v820
        %951 = vmatpush.bf16.msra.mxu0 %v817
        %952 = vmatpush.bf16.msra.mxu0 %v814
        %953 = vmatmul.bf16.gmra.mxu0 %v645
        %v954 = vpop.f32.mrf.mxu0
        %v955 = vadd.f32 %v631, %v954
        %v956 = vpop.f32.mrf.mxu0
        %v957 = vadd.f32 %v631, %v956
        %958 = vmatmul.bf16.gmra.mxu0 %v647
        %v959 = vpop.f32.mrf.mxu0
        %v960 = vadd.f32 %v631, %v959
        %v961 = vpop.f32.mrf.mxu0
        %962 = vdwg.mxu0
        %963 = vmatpush.bf16.msra.mxu0 %v859
        %964 = vmatpush.bf16.msra.mxu0 %v856
        %965 = vmatpush.bf16.msra.mxu0 %v853
        %966 = vmatpush.bf16.msra.mxu0 %v850
        %967 = vmatpush.bf16.msra.mxu0 %v847
        %968 = vmatpush.bf16.msra.mxu0 %v844
        %969 = vmatpush.bf16.msra.mxu0 %v841
        %970 = vmatpush.bf16.msra.mxu0 %v838
        %971 = vmatmul.bf16.gmra.mxu0 %v646
        %v972 = vpop.f32.mrf.mxu0
        %v973 = vadd.f32 %v955, %v972
        %v974 = vpop.f32.mrf.mxu0
        %v975 = vadd.f32 %v957, %v974
        %976 = vmatmul.bf16.gmra.mxu0 %v648
        %v977 = vpop.f32.mrf.mxu0
        %v978 = vadd.f32 %v960, %v977
        %v979 = vpop.f32.mrf.mxu0
        %980 = vdwg.mxu0
        %981 = vmatpush.bf16.msra.mxu0 %v836
        %982 = vmatpush.bf16.msra.mxu0 %v833
        %983 = vmatpush.bf16.msra.mxu0 %v830
        %984 = vmatpush.bf16.msra.mxu0 %v827
        %985 = vmatpush.bf16.msra.mxu0 %v824
        %986 = vmatpush.bf16.msra.mxu0 %v821
        %987 = vmatpush.bf16.msra.mxu0 %v818
        %988 = vmatpush.bf16.msra.mxu0 %v815
        %989 = vmatmul.bf16.gmra.mxu0 %v645
        %v990 = vpop.f32.mrf.mxu0
        %v991 = vadd.f32 %v632, %v990
        %v992 = vpop.f32.mrf.mxu0
        %v993 = vadd.f32 %v632, %v992
        %994 = vmatmul.bf16.gmra.mxu0 %v647
        %v995 = vpop.f32.mrf.mxu0
        %v996 = vadd.f32 %v632, %v995
        %v997 = vpop.f32.mrf.mxu0
        %998 = vdwg.mxu0
        %999 = vmatpush.bf16.msra.mxu0 %v860
        %1000 = vmatpush.bf16.msra.mxu0 %v857
        %1001 = vmatpush.bf16.msra.mxu0 %v854
        %1002 = vmatpush.bf16.msra.mxu0 %v851
        %1003 = vmatpush.bf16.msra.mxu0 %v848
        %1004 = vmatpush.bf16.msra.mxu0 %v845
        %1005 = vmatpush.bf16.msra.mxu0 %v842
        %1006 = vmatpush.bf16.msra.mxu0 %v839
        %1007 = vmatmul.bf16.gmra.mxu0 %v646
        %v1008 = vpop.f32.mrf.mxu0
        %v1009 = vadd.f32 %v991, %v1008
        %v1010 = vpop.f32.mrf.mxu0
        %v1011 = vadd.f32 %v993, %v1010
        %1012 = vmatmul.bf16.gmra.mxu0 %v648
        %v1013 = vpop.f32.mrf.mxu0
        %v1014 = vadd.f32 %v996, %v1013
        %v1015 = vpop.f32.mrf.mxu0
        %1016 = vdwg.mxu0
        %v1017 = vpack.c.bf16 %v973, %v937
        %v1018 = vpack.c.bf16 %v1009, %v1009
        %v1019 = vpack.c.bf16 %v975, %v939
        %v1020 = vpack.c.bf16 %v1011, %v1011
        %v1021 = vpack.c.bf16 %v978, %v942
        %v1022 = vpack.c.bf16 %v1014, %v1014
        %1023 = vst [vmem:[%s420] sm:$0xff] %v1017
        %1024 = vst [vmem:[%s420 + $0x8] sm:$0xf] %v1018
        %1025 = vst [vmem:[%s420 + $0xc] sm:$0xff] %v1019
        %1026 = vst [vmem:[%s420 + $0x14] sm:$0xf] %v1020
        %1027 = vst [vmem:[%s420 + $0x18] sm:$0xff] %v1021
        %1028 = vst [vmem:[%s420 + $0x20] sm:$0xf] %v1022
        %s1029 = sand.u32 %s158, 1
        %s1030 = sand.u32 %s158, 1
        %s1031 = smul.addr %s1030, 36
        %s1032 = scalar_lea.vmem [#allocation4], %s1031
        // Predicated region
        $region71: #{_lambda_.24} parent=61 // pred_check
          %p1033 = pneg %p168
        $region72: #{_lambda_.24} parent=61 // pred_check_branch
          %1035 = sbr.rel (%p1033) target = $region74
        $region73: #{_lambda_.24} parent=61 // pred_region
          %s1036 = smul.u32 3, %s20
          %s1037 = smul.u32 3, %s21
          %s1038 = smul.addr %s1036, 6
          %s1039 = sadd.s32 %s1037, %s1038
          %s1040 = smul.addr %s1039, 4
          %s1041 = scalar_lea.vmem %s5, %s1040
          // Predicated region
          $region75: #{_lambda_.24} parent=73 // pred_check
            _
          $region76: #{_lambda_.24} parent=73 // pred_check_branch
            %1043 = sbr.rel (0) target = $region78
          $region77: #{_lambda_.24} parent=73 // pred_region
            // Predicated region
            $region79: #{_lambda_.24} parent=77 // pred_check
              _
            $region80: #{_lambda_.24} parent=77 // pred_check_branch
              %1045 = sbr.rel (0) target = $region82
            $region81: #{_lambda_.24} parent=77 // pred_region
              %s1046 = scalar_lea.vmem %s1032, 8 [#allocation4]
              %s1047 = scalar_lea.vmem %s1041, 8
              loop: start=0, step=1, limit=1
              $region83: #{_lambda_.24} parent=81 // loop_pre_header
                _
              $region84: #{_lambda_.24} parent=81 // loop_header
                %s1049 = sphi 0, %s1053
                %p1050 = scmp.ge.s32.totalorder %s1049, 1
                %s1054 = sphi %s1032, %s1032
                %s1055 = sphi %s1041, %s1041
              $region85: #{_lambda_.24} parent=81 // loop_header_branch
                %1052 = sbr.rel (%p1050) target = $region89
              $region86: #{_lambda_.24} parent=81 // loop_body
                %v1056 = vld [vmem:[%s1054] sm:$0xff]
                %1057 = vst [vmem:[%s1055] sm:$0xff] %v1056
                %v1058 = vld [vmem:[%s1054 + $0xc] sm:$0xff]
                %1059 = vst [vmem:[%s1055 + $0x18] sm:$0xff] %v1058
                %v1060 = vld [vmem:[%s1054 + $0x18] sm:$0xff]
                %1061 = vst [vmem:[%s1055 + $0x30] sm:$0xff] %v1060
              $region87: #{_lambda_.24} parent=81 // loop_footer
                %s1053 = sadd.s32 1, %s1049
              $region88: #{_lambda_.24} parent=81 // loop_footer_branch
                %1048 = sbr.rel target = $region84
              $region89: #{_lambda_.24} parent=81 // loop_exit
                _
              %s1063 = ssub.s32 16, 1
              loop: start=0, step=1, limit=1
              $region90: #{_lambda_.24} parent=81 // loop_pre_header
                _
              $region91: #{_lambda_.24} parent=81 // loop_header
                %s1065 = sphi 0, %s1069
                %p1066 = scmp.ge.s32.totalorder %s1065, 1
                %s1070 = sphi %s1046, %s1046
                %s1071 = sphi %s1047, %s1047
              $region92: #{_lambda_.24} parent=81 // loop_header_branch
                %1068 = sbr.rel (%p1066) target = $region96
              $region93: #{_lambda_.24} parent=81 // loop_body
                %v1072 = vld [vmem:[%s1070] sm:%s1063]
                %1073 = vst [vmem:[%s1071] sm:%s1063] %v1072
                %v1074 = vld [vmem:[%s1070 + $0xc] sm:%s1063]
                %1075 = vst [vmem:[%s1071 + $0x18] sm:%s1063] %v1074
                %v1076 = vld [vmem:[%s1070 + $0x18] sm:%s1063]
                %1077 = vst [vmem:[%s1071 + $0x30] sm:%s1063] %v1076
              $region94: #{_lambda_.24} parent=81 // loop_footer
                %s1069 = sadd.s32 1, %s1065
              $region95: #{_lambda_.24} parent=81 // loop_footer_branch
                %1064 = sbr.rel target = $region91
              $region96: #{_lambda_.24} parent=81 // loop_exit
                _
            $region82: #{_lambda_.24} parent=77 // pred_fallthru
              _
          $region78: #{_lambda_.24} parent=73 // pred_fallthru
            _
          %1078 = vnop
        $region74: #{_lambda_.24} parent=61 // pred_fallthru
          _
      $region62: #{_lambda_.24} parent=5 // pred_fallthru
        _
      %p1079 = scmp.le.s32.totalorder 2, %s11
      // Predicated region
      $region97: #{_lambda_.24} parent=5 // pred_check
        %p1080 = pneg %p1079
      $region98: #{_lambda_.24} parent=5 // pred_check_branch
        %1082 = sbr.rel (%p1080) target = $region100
      $region99: #{_lambda_.24} parent=5 // pred_region
        %s1083 = ssub.s32 %s11, 2
        // Predicated region
        $region101: #{_lambda_.24} parent=99 // pred_check
          %p1084 = pneg %p174
        $region102: #{_lambda_.24} parent=99 // pred_check_branch
          %1086 = sbr.rel (%p1084) target = $region104
        $region103: #{_lambda_.24} parent=99 // pred_region
          %s1087 = sand.u32 %s159, 1
          %s1088 = sand.u32 %s159, 1
          %s1089 = smul.addr %s1088, 36
          %s1090 = scalar_lea.vmem [#allocation4], %s1089
        $region104: #{_lambda_.24} parent=99 // pred_fallthru
          _
      $region100: #{_lambda_.24} parent=5 // pred_fallthru
        _
    $region6: #{_lambda_.24} parent=1 // loop_footer
      %s15 = sadd.s32 1, %s11
    $region7: #{_lambda_.24} parent=1 // loop_footer_branch
      %10 = sbr.rel target = $region3
    $region8: #{_lambda_.24} parent=1 // loop_exit
      _

// kernel: _lambda_.27
$region0: #{_lambda_.27}
  #allocation0 [shape = 'u32[]', space=smem, size = 0x4, offset = 0x4, fixed_abs, tag = 'smem constant byte address 0x4 - core index']
  #allocation1 [shape = 'u32[72,128]{1,0:T(1,128)}', space=vmem, size = 0x9000, scoped, tag = 'internal scratch']
  #allocation2 [shape = 'bf16[24,256]{1,0:T(8,128)(2,1)}', space=vmem, size = 0x3000, scoped, tag = 'scratch operand']
  %s0 = inlined_call_operand.vmem [shape: bf16[24,256], index: 0, kind: input, shape index: {}]
  %s1 = inlined_call_operand.vmem [shape: bf16[256,1408], index: 1, kind: input, shape index: {}]
  %s2 = inlined_call_operand.vmem [shape: f32[1,1408], index: 2, kind: input, shape index: {}]
  %s3 = inlined_call_operand.vmem [shape: f32[1,256], index: 3, kind: input, shape index: {}]
  %s4 = inlined_call_operand.vmem [shape: f32[1,256], index: 4, kind: input, shape index: {}]
  %s5 = inlined_call_operand.vmem [shape: bf16[24,1408], index: 5, kind: output, shape index: {}]
  %s6 = sld [smem:[#allocation0]]
  $region135: #{_lambda_.27} parent=0
    _
  %s8 = ssub.s32 1, %s6
  %s9 = scalar_select 0, %s8, %s6
  $region1: #{_lambda_.27} parent=0
    #allocation3 [shape = 'u8[131072]{0}', space=vmem, size = 0x20000, scoped, tag = 'input window, operand 1']
    #allocation4 [shape = 'u8[12288]{0}', space=vmem, size = 0x3000, scoped, tag = 'output window, operand 0']
    loop: start=0, step=1, limit=13
    $region2: #{_lambda_.27} parent=1 // loop_pre_header
      _
    $region3: #{_lambda_.27} parent=1 // loop_header
      %s11 = sphi 0, %s15
      %p12 = scmp.ge.s32.totalorder %s11, 13
      %s18 = sphi 0, %s30
      %s19 = sphi 0, %s26
      %s20 = sphi 0, %s18
      %s21 = sphi 0, %s19
      %s22 = sphi 0, %s20
      %s23 = sphi 0, %s21
      %s33 = sphi 0, %s35
      %s36 = sphi 0, %s33
      %s37 = sphi 0, %s36
      %s53 = sphi 0, %s37
      %s59 = sphi 0, %s61
      %s62 = sphi 0, %s59
      %s63 = sphi 0, %s62
      %s79 = sphi 0, %s63
      %s85 = sphi 0, %s87
      %s88 = sphi 0, %s85
      %s89 = sphi 0, %s88
      %s105 = sphi 0, %s89
      %s109 = sphi 0, %s109
      %s111 = sphi 0, %s109
      %s112 = sphi 0, %s111
      %s126 = sphi 0, %s112
      %s130 = sphi 0, %s130
      %s132 = sphi 0, %s130
      %s133 = sphi 0, %s132
      %s147 = sphi 0, %s133
      %s155 = sphi 0, %s157
      %s158 = sphi 0, %s155
      %s159 = sphi 0, %s158
      %s175 = sphi 0, %s159
    $region4: #{_lambda_.27} parent=1 // loop_header_branch
      %14 = sbr.rel (%p12) target = $region8
    $region5: #{_lambda_.27} parent=1 // loop_body
      %s16 = ssub.s32 %s11, 1
      %s17 = ssub.s32 %s11, 2
      %s24 = sadd.s32 1, %s19
      %p25 = scmp.ge.s32.totalorder %s24, 11
      %s26 = scalar_select %p25, 0, %s24
      %s27 = sadd.s32 1, %s18
      %s28 = scalar_select %p25, %s27, %s18
      %p29 = scmp.ge.s32.totalorder %s28, 1
      %s30 = scalar_select %p29, 0, %s28
      %s31 = ssub.s32 %s18, %s30
      %p32 = scmp.eq.s32.totalorder %s31, 0
      %s34 = sadd.s32 %s33, 1
      %s35 = scalar_select %p32, %s33, %s34
      %p38 = pneg %p32
      %p39 = scmp.eq.s32.totalorder %s11, 10
      %p40 = por %p38, %p39
      %p41 = scmp.ne.s32.totalorder %s33, %s36
      %p42 = scmp.eq.s32.totalorder %s11, 0
      %p43 = por %p41, %p42
      %p44 = scmp.ne.s32.totalorder %s33, %s36
      %p45 = scmp.eq.s32.totalorder %s16, 10
      %p46 = por %p44, %p45
      %p47 = scmp.ne.s32.totalorder %s36, %s37
      %p48 = scmp.eq.s32.totalorder %s16, 0
      %p49 = por %p47, %p48
      %p50 = scmp.ne.s32.totalorder %s36, %s37
      %p51 = scmp.eq.s32.totalorder %s17, 10
      %p52 = por %p50, %p51
      %p54 = scmp.ne.s32.totalorder %s37, %s53
      %p55 = scmp.eq.s32.totalorder %s17, 0
      %p56 = por %p54, %p55
      %s57 = ssub.s32 %s19, %s26
      %p58 = scmp.eq.s32.totalorder %s57, 0
      %s60 = sadd.s32 %s59, 1
      %s61 = scalar_select %p58, %s59, %s60
      %p64 = pneg %p58
      %p65 = scmp.eq.s32.totalorder %s11, 10
      %p66 = por %p64, %p65
      %p67 = scmp.ne.s32.totalorder %s59, %s62
      %p68 = scmp.eq.s32.totalorder %s11, 0
      %p69 = por %p67, %p68
      %p70 = scmp.ne.s32.totalorder %s59, %s62
      %p71 = scmp.eq.s32.totalorder %s16, 10
      %p72 = por %p70, %p71
      %p73 = scmp.ne.s32.totalorder %s62, %s63
      %p74 = scmp.eq.s32.totalorder %s16, 0
      %p75 = por %p73, %p74
      %p76 = scmp.ne.s32.totalorder %s62, %s63
      %p77 = scmp.eq.s32.totalorder %s17, 10
      %p78 = por %p76, %p77
      %p80 = scmp.ne.s32.totalorder %s63, %s79
      %p81 = scmp.eq.s32.totalorder %s17, 0
      %p82 = por %p80, %p81
      %s83 = ssub.s32 %s19, %s26
      %p84 = scmp.eq.s32.totalorder %s83, 0
      %s86 = sadd.s32 %s85, 1
      %s87 = scalar_select %p84, %s85, %s86
      %p90 = pneg %p84
      %p91 = scmp.eq.s32.totalorder %s11, 10
      %p92 = por %p90, %p91
      %p93 = scmp.ne.s32.totalorder %s85, %s88
      %p94 = scmp.eq.s32.totalorder %s11, 0
      %p95 = por %p93, %p94
      %p96 = scmp.ne.s32.totalorder %s85, %s88
      %p97 = scmp.eq.s32.totalorder %s16, 10
      %p98 = por %p96, %p97
      %p99 = scmp.ne.s32.totalorder %s88, %s89
      %p100 = scmp.eq.s32.totalorder %s16, 0
      %p101 = por %p99, %p100
      %p102 = scmp.ne.s32.totalorder %s88, %s89
      %p103 = scmp.eq.s32.totalorder %s17, 10
      %p104 = por %p102, %p103
      %p106 = scmp.ne.s32.totalorder %s89, %s105
      %p107 = scmp.eq.s32.totalorder %s17, 0
      %p108 = por %p106, %p107
      %s110 = sadd.s32 %s109, 1
      %p113 = scmp.eq.s32.totalorder %s11, 10
      %p114 = scmp.ne.s32.totalorder %s109, %s111
      %p115 = scmp.eq.s32.totalorder %s11, 0
      %p116 = por %p114, %p115
      %p117 = scmp.ne.s32.totalorder %s109, %s111
      %p118 = scmp.eq.s32.totalorder %s16, 10
      %p119 = por %p117, %p118
      %p120 = scmp.ne.s32.totalorder %s111, %s112
      %p121 = scmp.eq.s32.totalorder %s16, 0
      %p122 = por %p120, %p121
      %p123 = scmp.ne.s32.totalorder %s111, %s112
      %p124 = scmp.eq.s32.totalorder %s17, 10
      %p125 = por %p123, %p124
      %p127 = scmp.ne.s32.totalorder %s112, %s126
      %p128 = scmp.eq.s32.totalorder %s17, 0
      %p129 = por %p127, %p128
      %s131 = sadd.s32 %s130, 1
      %p134 = scmp.eq.s32.totalorder %s11, 10
      %p135 = scmp.ne.s32.totalorder %s130, %s132
      %p136 = scmp.eq.s32.totalorder %s11, 0
      %p137 = por %p135, %p136
      %p138 = scmp.ne.s32.totalorder %s130, %s132
      %p139 = scmp.eq.s32.totalorder %s16, 10
      %p140 = por %p138, %p139
      %p141 = scmp.ne.s32.totalorder %s132, %s133
      %p142 = scmp.eq.s32.totalorder %s16, 0
      %p143 = por %p141, %p142
      %p144 = scmp.ne.s32.totalorder %s132, %s133
      %p145 = scmp.eq.s32.totalorder %s17, 10
      %p146 = por %p144, %p145
      %p148 = scmp.ne.s32.totalorder %s133, %s147
      %p149 = scmp.eq.s32.totalorder %s17, 0
      %p150 = por %p148, %p149
      %s151 = ssub.s32 %s18, %s30
      %s152 = ssub.s32 %s19, %s26
      %s153 = sor.u32 %s151, %s152
      %p154 = scmp.eq.s32.totalorder %s153, 0
      %s156 = sadd.s32 %s155, 1
      %s157 = scalar_select %p154, %s155, %s156
      %p160 = pneg %p154
      %p161 = scmp.eq.s32.totalorder %s11, 10
      %p162 = por %p160, %p161
      %p163 = scmp.ne.s32.totalorder %s155, %s158
      %p164 = scmp.eq.s32.totalorder %s11, 0
      %p165 = por %p163, %p164
      %p166 = scmp.ne.s32.totalorder %s155, %s158
      %p167 = scmp.eq.s32.totalorder %s16, 10
      %p168 = por %p166, %p167
      %p169 = scmp.ne.s32.totalorder %s158, %s159
      %p170 = scmp.eq.s32.totalorder %s16, 0
      %p171 = por %p169, %p170
      %p172 = scmp.ne.s32.totalorder %s158, %s159
      %p173 = scmp.eq.s32.totalorder %s17, 10
      %p174 = por %p172, %p173
      %p176 = scmp.ne.s32.totalorder %s159, %s175
      %p177 = scmp.eq.s32.totalorder %s17, 0
      %p178 = por %p176, %p177
      %p179 = scmp.le.s32.totalorder 1, %s11
      %p180 = scmp.lt.s32.totalorder %s11, 12
      %p181 = pnand %p179, %p180
      %p182 = pneg %p181
      // Predicated region
      $region9: #{_lambda_.27} parent=5 // pred_check
        _
      $region10: #{_lambda_.27} parent=5 // pred_check_branch
        %184 = sbr.rel (%p181) target = $region12
      $region11: #{_lambda_.27} parent=5 // pred_region
        %s185 = ssub.s32 %s11, 1
        // Predicated region
        $region13: #{_lambda_.27} parent=11 // pred_check
          %p186 = pneg %p49
        $region14: #{_lambda_.27} parent=11 // pred_check_branch
          %188 = sbr.rel (%p186) target = $region16
        $region15: #{_lambda_.27} parent=11 // pred_region
          %s189 = smul.u32 3, %s20
          %p190 = scmp.lt.s32.totalorder %s189, 2
          %s191 = scalar_select %p190, %s189, 2
          %s192 = smul.addr %s191, 2
          %s193 = smul.addr %s192, 4
          %s194 = scalar_lea.vmem %s0, %s193
          %s195 = smul.u32 3, %s20
        $region16: #{_lambda_.27} parent=11 // pred_fallthru
          _
        // Predicated region
        $region17: #{_lambda_.27} parent=11 // pred_check
          %p196 = pneg %p122
        $region18: #{_lambda_.27} parent=11 // pred_check_branch
          %198 = sbr.rel (%p196) target = $region20
        $region19: #{_lambda_.27} parent=11 // pred_region
          _
        $region20: #{_lambda_.27} parent=11 // pred_fallthru
          _
        // Predicated region
        $region21: #{_lambda_.27} parent=11 // pred_check
          %p199 = pneg %p143
        $region22: #{_lambda_.27} parent=11 // pred_check_branch
          %201 = sbr.rel (%p199) target = $region24
        $region23: #{_lambda_.27} parent=11 // pred_region
          _
        $region24: #{_lambda_.27} parent=11 // pred_fallthru
          _
      $region12: #{_lambda_.27} parent=5 // pred_fallthru
        _
      %p202 = scmp.lt.s32.totalorder %s11, 11
      // Predicated region
      $region25: #{_lambda_.27} parent=5 // pred_check
        %p203 = pneg %p202
      $region26: #{_lambda_.27} parent=5 // pred_check_branch
        %205 = sbr.rel (%p203) target = $region28
      $region27: #{_lambda_.27} parent=5 // pred_region
        // Predicated region
        $region29: #{_lambda_.27} parent=27 // pred_check
          %p206 = pneg %p69
        $region30: #{_lambda_.27} parent=27 // pred_check_branch
          %208 = sbr.rel (%p206) target = $region32
        $region31: #{_lambda_.27} parent=27 // pred_region
          %s209 = sand.u32 %s59, 1
          %s210 = sand.u32 %s59, 1
          %s211 = smul.addr %s210, 128
          %s212 = scalar_lea.vmem [#allocation3], %s211
          %s213 = smul.addr %s19, 4
          %s214 = scalar_lea.vmem %s1, %s213
          // Predicated region
          $region33: #{_lambda_.27} parent=31 // pred_check
            _
          $region34: #{_lambda_.27} parent=31 // pred_check_branch
            %216 = sbr.rel (0) target = $region36
          $region35: #{_lambda_.27} parent=31 // pred_region
            // Predicated region
            $region37: #{_lambda_.27} parent=35 // pred_check
              _
            $region38: #{_lambda_.27} parent=35 // pred_check_branch
              %218 = sbr.rel target = $region40
            $region39: #{_lambda_.27} parent=35 // pred_region
              // Predicated region
              $region52: #{_lambda_.27} parent=39 // pred_check
                _
              $region53: #{_lambda_.27} parent=39 // pred_check_branch
                %296 = sbr.rel (0) target = $region55
              $region54: #{_lambda_.27} parent=39 // pred_region
                loop: start=0, step=1, limit=1
                $region56: #{_lambda_.27} parent=54 // loop_pre_header
                  _
                $region57: #{_lambda_.27} parent=54 // loop_header
                  %s298 = sphi 0, %s302
                  %p299 = scmp.ge.s32.totalorder %s298, 1
                  %s303 = sphi %s214, %s214
                  %s304 = sphi %s212, %s212
                $region58: #{_lambda_.27} parent=54 // loop_header_branch
                  %301 = sbr.rel (%p299) target = $region62
                $region59: #{_lambda_.27} parent=54 // loop_body
                  _
                $region60: #{_lambda_.27} parent=54 // loop_footer
                  %s302 = sadd.s32 1, %s298
                $region61: #{_lambda_.27} parent=54 // loop_footer_branch
                  %297 = sbr.rel target = $region57
                $region62: #{_lambda_.27} parent=54 // loop_exit
                  _
                %s306 = ssub.s32 16, 1
                loop: start=0, step=1, limit=1
                $region63: #{_lambda_.27} parent=54 // loop_pre_header
                  _
                $region64: #{_lambda_.27} parent=54 // loop_header
                  %s308 = sphi 0, %s312
                  %p309 = scmp.ge.s32.totalorder %s308, 1
                  %s313 = sphi %s214, %s214
                  %s314 = sphi %s212, %s212
                $region65: #{_lambda_.27} parent=54 // loop_header_branch
                  %311 = sbr.rel (%p309) target = $region69
                $region66: #{_lambda_.27} parent=54 // loop_body
                  %v315 = vld [vmem:[%s313] sm:%s306]
                  %316 = vst [vmem:[%s314] sm:%s306] %v315
                  %v317 = vld [vmem:[%s313 + $0x2c] sm:%s306]
                  %318 = vst [vmem:[%s314 + $0x4] sm:%s306] %v317
                  %v319 = vld [vmem:[%s313 + $0x58] sm:%s306]
                  %320 = vst [vmem:[%s314 + $0x8] sm:%s306] %v319
                  %v321 = vld [vmem:[%s313 + $0x84] sm:%s306]
                  %322 = vst [vmem:[%s314 + $0xc] sm:%s306] %v321
                  %v323 = vld [vmem:[%s313 + $0xb0] sm:%s306]
                  %324 = vst [vmem:[%s314 + $0x10] sm:%s306] %v323
                  %v325 = vld [vmem:[%s313 + $0xdc] sm:%s306]
                  %326 = vst [vmem:[%s314 + $0x14] sm:%s306] %v325
                  %v327 = vld [vmem:[%s313 + $0x108] sm:%s306]
                  %328 = vst [vmem:[%s314 + $0x18] sm:%s306] %v327
                  %v329 = vld [vmem:[%s313 + $0x134] sm:%s306]
                  %330 = vst [vmem:[%s314 + $0x1c] sm:%s306] %v329
                  %v331 = vld [vmem:[%s313 + $0x160] sm:%s306]
                  %332 = vst [vmem:[%s314 + $0x20] sm:%s306] %v331
                  %v333 = vld [vmem:[%s313 + $0x18c] sm:%s306]
                  %334 = vst [vmem:[%s314 + $0x24] sm:%s306] %v333
                  %v335 = vld [vmem:[%s313 + $0x1b8] sm:%s306]
                  %336 = vst [vmem:[%s314 + $0x28] sm:%s306] %v335
                  %v337 = vld [vmem:[%s313 + $0x1e4] sm:%s306]
                  %338 = vst [vmem:[%s314 + $0x2c] sm:%s306] %v337
                  %v339 = vld [vmem:[%s313 + $0x210] sm:%s306]
                  %340 = vst [vmem:[%s314 + $0x30] sm:%s306] %v339
                  %v341 = vld [vmem:[%s313 + $0x23c] sm:%s306]
                  %342 = vst [vmem:[%s314 + $0x34] sm:%s306] %v341
                  %v343 = vld [vmem:[%s313 + $0x268] sm:%s306]
                  %344 = vst [vmem:[%s314 + $0x38] sm:%s306] %v343
                  %v345 = vld [vmem:[%s313 + $0x294] sm:%s306]
                  %346 = vst [vmem:[%s314 + $0x3c] sm:%s306] %v345
                  %v347 = vld [vmem:[%s313 + $0x2c0] sm:%s306]
                  %348 = vst [vmem:[%s314 + $0x40] sm:%s306] %v347
                  %v349 = vld [vmem:[%s313 + $0x2ec] sm:%s306]
                  %350 = vst [vmem:[%s314 + $0x44] sm:%s306] %v349
                  %v351 = vld [vmem:[%s313 + $0x318] sm:%s306]
                  %352 = vst [vmem:[%s314 + $0x48] sm:%s306] %v351
                  %v353 = vld [vmem:[%s313 + $0x344] sm:%s306]
                  %354 = vst [vmem:[%s314 + $0x4c] sm:%s306] %v353
                  %v355 = vld [vmem:[%s313 + $0x370] sm:%s306]
                  %356 = vst [vmem:[%s314 + $0x50] sm:%s306] %v355
                  %v357 = vld [vmem:[%s313 + $0x39c] sm:%s306]
                  %358 = vst [vmem:[%s314 + $0x54] sm:%s306] %v357
                  %v359 = vld [vmem:[%s313 + $0x3c8] sm:%s306]
                  %360 = vst [vmem:[%s314 + $0x58] sm:%s306] %v359
                  %v361 = vld [vmem:[%s313 + $0x3f4] sm:%s306]
                  %362 = vst [vmem:[%s314 + $0x5c] sm:%s306] %v361
                  %v363 = vld [vmem:[%s313 + $0x420] sm:%s306]
                  %364 = vst [vmem:[%s314 + $0x60] sm:%s306] %v363
                  %v365 = vld [vmem:[%s313 + $0x44c] sm:%s306]
                  %366 = vst [vmem:[%s314 + $0x64] sm:%s306] %v365
                  %v367 = vld [vmem:[%s313 + $0x478] sm:%s306]
                  %368 = vst [vmem:[%s314 + $0x68] sm:%s306] %v367
                  %v369 = vld [vmem:[%s313 + $0x4a4] sm:%s306]
                  %370 = vst [vmem:[%s314 + $0x6c] sm:%s306] %v369
                  %v371 = vld [vmem:[%s313 + $0x4d0] sm:%s306]
                  %372 = vst [vmem:[%s314 + $0x70] sm:%s306] %v371
                  %v373 = vld [vmem:[%s313 + $0x4fc] sm:%s306]
                  %374 = vst [vmem:[%s314 + $0x74] sm:%s306] %v373
                  %v375 = vld [vmem:[%s313 + $0x528] sm:%s306]
                  %376 = vst [vmem:[%s314 + $0x78] sm:%s306] %v375
                  %v377 = vld [vmem:[%s313 + $0x554] sm:%s306]
                  %378 = vst [vmem:[%s314 + $0x7c] sm:%s306] %v377
                $region67: #{_lambda_.27} parent=54 // loop_footer
                  %s312 = sadd.s32 1, %s308
                $region68: #{_lambda_.27} parent=54 // loop_footer_branch
                  %307 = sbr.rel target = $region64
                $region69: #{_lambda_.27} parent=54 // loop_exit
                  _
              $region55: #{_lambda_.27} parent=39 // pred_fallthru
                _
            $region40: #{_lambda_.27} parent=35 // pred_fallthru
              _
            // Predicated region
            $region41: #{_lambda_.27} parent=35 // pred_check
              _
            $region42: #{_lambda_.27} parent=35 // pred_check_branch
              %220 = sbr.rel (0) target = $region44
            $region43: #{_lambda_.27} parent=35 // pred_region
              %s222 = ssub.s32 16, 1
              loop: start=0, step=1, limit=1
              $region45: #{_lambda_.27} parent=43 // loop_pre_header
                _
              $region46: #{_lambda_.27} parent=43 // loop_header
                %s224 = sphi 0, %s228
                %p225 = scmp.ge.s32.totalorder %s224, 1
                %s229 = sphi %s214, %s214
                %s230 = sphi %s212, %s212
              $region47: #{_lambda_.27} parent=43 // loop_header_branch
                %227 = sbr.rel (%p225) target = $region51
              $region48: #{_lambda_.27} parent=43 // loop_body
                %v231 = vld [vmem:[%s229] sm:%s222]
                %232 = vst [vmem:[%s230] sm:%s222] %v231
                %v233 = vld [vmem:[%s229 + $0x2c] sm:%s222]
                %234 = vst [vmem:[%s230 + $0x4] sm:%s222] %v233
                %v235 = vld [vmem:[%s229 + $0x58] sm:%s222]
                %236 = vst [vmem:[%s230 + $0x8] sm:%s222] %v235
                %v237 = vld [vmem:[%s229 + $0x84] sm:%s222]
                %238 = vst [vmem:[%s230 + $0xc] sm:%s222] %v237
                %v239 = vld [vmem:[%s229 + $0xb0] sm:%s222]
                %240 = vst [vmem:[%s230 + $0x10] sm:%s222] %v239
                %v241 = vld [vmem:[%s229 + $0xdc] sm:%s222]
                %242 = vst [vmem:[%s230 + $0x14] sm:%s222] %v241
                %v243 = vld [vmem:[%s229 + $0x108] sm:%s222]
                %244 = vst [vmem:[%s230 + $0x18] sm:%s222] %v243
                %v245 = vld [vmem:[%s229 + $0x134] sm:%s222]
                %246 = vst [vmem:[%s230 + $0x1c] sm:%s222] %v245
                %v247 = vld [vmem:[%s229 + $0x160] sm:%s222]
                %248 = vst [vmem:[%s230 + $0x20] sm:%s222] %v247
                %v249 = vld [vmem:[%s229 + $0x18c] sm:%s222]
                %250 = vst [vmem:[%s230 + $0x24] sm:%s222] %v249
                %v251 = vld [vmem:[%s229 + $0x1b8] sm:%s222]
                %252 = vst [vmem:[%s230 + $0x28] sm:%s222] %v251
                %v253 = vld [vmem:[%s229 + $0x1e4] sm:%s222]
                %254 = vst [vmem:[%s230 + $0x2c] sm:%s222] %v253
                %v255 = vld [vmem:[%s229 + $0x210] sm:%s222]
                %256 = vst [vmem:[%s230 + $0x30] sm:%s222] %v255
                %v257 = vld [vmem:[%s229 + $0x23c] sm:%s222]
                %258 = vst [vmem:[%s230 + $0x34] sm:%s222] %v257
                %v259 = vld [vmem:[%s229 + $0x268] sm:%s222]
                %260 = vst [vmem:[%s230 + $0x38] sm:%s222] %v259
                %v261 = vld [vmem:[%s229 + $0x294] sm:%s222]
                %262 = vst [vmem:[%s230 + $0x3c] sm:%s222] %v261
                %v263 = vld [vmem:[%s229 + $0x2c0] sm:%s222]
                %264 = vst [vmem:[%s230 + $0x40] sm:%s222] %v263
                %v265 = vld [vmem:[%s229 + $0x2ec] sm:%s222]
                %266 = vst [vmem:[%s230 + $0x44] sm:%s222] %v265
                %v267 = vld [vmem:[%s229 + $0x318] sm:%s222]
                %268 = vst [vmem:[%s230 + $0x48] sm:%s222] %v267
                %v269 = vld [vmem:[%s229 + $0x344] sm:%s222]
                %270 = vst [vmem:[%s230 + $0x4c] sm:%s222] %v269
                %v271 = vld [vmem:[%s229 + $0x370] sm:%s222]
                %272 = vst [vmem:[%s230 + $0x50] sm:%s222] %v271
                %v273 = vld [vmem:[%s229 + $0x39c] sm:%s222]
                %274 = vst [vmem:[%s230 + $0x54] sm:%s222] %v273
                %v275 = vld [vmem:[%s229 + $0x3c8] sm:%s222]
                %276 = vst [vmem:[%s230 + $0x58] sm:%s222] %v275
                %v277 = vld [vmem:[%s229 + $0x3f4] sm:%s222]
                %278 = vst [vmem:[%s230 + $0x5c] sm:%s222] %v277
                %v279 = vld [vmem:[%s229 + $0x420] sm:%s222]
                %280 = vst [vmem:[%s230 + $0x60] sm:%s222] %v279
                %v281 = vld [vmem:[%s229 + $0x44c] sm:%s222]
                %282 = vst [vmem:[%s230 + $0x64] sm:%s222] %v281
                %v283 = vld [vmem:[%s229 + $0x478] sm:%s222]
                %284 = vst [vmem:[%s230 + $0x68] sm:%s222] %v283
                %v285 = vld [vmem:[%s229 + $0x4a4] sm:%s222]
                %286 = vst [vmem:[%s230 + $0x6c] sm:%s222] %v285
                %v287 = vld [vmem:[%s229 + $0x4d0] sm:%s222]
                %288 = vst [vmem:[%s230 + $0x70] sm:%s222] %v287
                %v289 = vld [vmem:[%s229 + $0x4fc] sm:%s222]
                %290 = vst [vmem:[%s230 + $0x74] sm:%s222] %v289
                %v291 = vld [vmem:[%s229 + $0x528] sm:%s222]
                %292 = vst [vmem:[%s230 + $0x78] sm:%s222] %v291
                %v293 = vld [vmem:[%s229 + $0x554] sm:%s222]
                %294 = vst [vmem:[%s230 + $0x7c] sm:%s222] %v293
              $region49: #{_lambda_.27} parent=43 // loop_footer
                %s228 = sadd.s32 1, %s224
              $region50: #{_lambda_.27} parent=43 // loop_footer_branch
                %223 = sbr.rel target = $region46
              $region51: #{_lambda_.27} parent=43 // loop_exit
                _
            $region44: #{_lambda_.27} parent=35 // pred_fallthru
              _
          $region36: #{_lambda_.27} parent=31 // pred_fallthru
            _
          %379 = vnop
        $region32: #{_lambda_.27} parent=27 // pred_fallthru
          _
        // Predicated region
        $region70: #{_lambda_.27} parent=27 // pred_check
          %p380 = pneg %p95
        $region71: #{_lambda_.27} parent=27 // pred_check_branch
          %382 = sbr.rel (%p380) target = $region73
        $region72: #{_lambda_.27} parent=27 // pred_region
          %p383 = scmp.lt.s32.totalorder %s19, 10
          %s384 = scalar_select %p383, %s19, 10
          %s385 = scalar_lea.vmem %s2, %s384
        $region73: #{_lambda_.27} parent=27 // pred_fallthru
          _
      $region28: #{_lambda_.27} parent=5 // pred_fallthru
        _
      %p386 = scmp.le.s32.totalorder 1, %s11
      %p387 = scmp.lt.s32.totalorder %s11, 12
      %p388 = pnand %p386, %p387
      %p389 = pneg %p388
      // Predicated region
      $region74: #{_lambda_.27} parent=5 // pred_check
        _
      $region75: #{_lambda_.27} parent=5 // pred_check_branch
        %391 = sbr.rel (%p388) target = $region77
      $region76: #{_lambda_.27} parent=5 // pred_region
        %s392 = ssub.s32 %s11, 1
        %s393 = sand.u32 %s62, 1
        %s394 = sand.u32 %s62, 1
        %s395 = smul.addr %s394, 128
        %s396 = scalar_lea.vmem [#allocation3], %s395
        // Predicated region
        $region78: #{_lambda_.27} parent=76 // pred_check
          %p397 = pneg %p75
        $region79: #{_lambda_.27} parent=76 // pred_check_branch
          %399 = sbr.rel (%p397) target = $region81
        $region80: #{_lambda_.27} parent=76 // pred_region
          _
        $region81: #{_lambda_.27} parent=76 // pred_fallthru
          _
        %s400 = smul.u32 3, %s20
        %p401 = scmp.lt.s32.totalorder %s400, 2
        %s402 = scalar_select %p401, %s400, 2
        %s403 = smul.addr %s402, 2
        %s404 = smul.addr %s403, 4
        %s405 = scalar_lea.vmem %s0, %s404
        %p406 = pneg %p49
        %p407 = pneg %p46
        %s408 = sand.u32 %s62, 1
        %s409 = sand.u32 %s62, 1
        %s410 = smul.addr %s409, 128
        %s411 = scalar_lea.vmem [#allocation3], %s410
        %p412 = pneg %p75
        %p413 = pneg %p72
        %p414 = scmp.lt.s32.totalorder %s21, 10
        %s415 = scalar_select %p414, %s21, 10
        %s416 = scalar_lea.vmem %s2, %s415
        %p417 = pneg %p101
        %p418 = pneg %p98
        %p419 = pneg %p122
        %p420 = pneg %p119
        %p421 = pneg %p143
        %p422 = pneg %p140
        %p423 = pneg %p171
        %p424 = pneg %p168
        %s425 = sand.u32 %s158, 1
        %s426 = sand.u32 %s158, 1
        %s427 = smul.addr %s426, 12
        %s428 = scalar_lea.vmem [#allocation4], %s427
        %s429 = smul.u32 3, %s20
        %p430 = scmp.lt.s32.totalorder %s429, 2
        %s431 = scalar_select %p430, %s429, 2
        %s432 = smul.addr %s431, 2
        %s433 = smul.addr %s432, 4
        %s434 = scalar_lea.vmem %s0, %s433
        %s435 = smul.u32 3, %s20
        %p436 = scmp.lt.s32.totalorder %s21, 10
        %s437 = scalar_select %p436, %s21, 10
        %s438 = scalar_lea.vmem %s2, %s437
        %s439 = smul.u32 3, %s20
        %p440 = scmp.eq.s32.totalorder %s21, 0
        // Predicated region
        $region82: #{_lambda_.27} parent=76 // pred_check
          %p441 = pneg %p440
        $region83: #{_lambda_.27} parent=76 // pred_check_branch
          %443 = sbr.rel (%p441) target = $region85
        $region84: #{_lambda_.27} parent=76 // pred_region
          %v444 = vld [vmem:[%s434] sm:$0xff]
          %v445 = vld [vmem:[%s434 + $0x8] sm:$0xff]
          %v446 = vld [vmem:[%s434 + $0x10] sm:$0xff]
          %v447 = vunpack.c.l.bf16 %v444
          %v448 = vunpack.c.h.bf16 %v444
          %v449 = vunpack.c.l.bf16 %v445
          %v450 = vunpack.c.h.bf16 %v445
          %v451 = vunpack.c.l.bf16 %v446
          %v452 = vunpack.c.h.bf16 %v446
          %v453 = vld [vmem:[%s3] sm:$0x3]
          %v454 = vld [vmem:[%s4] sm:$0x3]
          %v455 = vadd.f32 %v447, %v448
          %456 = vadd.xlane.f32.xlu0 %v455
          %v457 = vpop.xlane.xlu0 %456
          %v458 = vadd.f32 %v449, %v450
          %459 = vadd.xlane.f32.xlu0 %v458
          %v460 = vpop.xlane.xlu0 %459
          %v461 = vadd.f32 %v451, %v452
          %462 = vadd.xlane.f32.xlu0 %v461
          %v463 = vpop.xlane.xlu0 %462
          %v464 = vrcp.pop 256.0
          %v465 = vmul.f32 256.0, %v464
          %v466 = vsub.f32 1.0, %v465
          %v467 = vmul.f32 %v464, %v466
          %v468 = vadd.f32 %v464, %v467
          %vm469 = vweird.f32 %v464
          %v470 = vsel %vm469, %v464, %v468
          %v471 = vmul.f32 %v457, %v470
          %v472 = vmul.f32 %v460, %v470
          %v473 = vmul.f32 %v463, %v470
          %v474 = vsub.f32 %v447, %v471
          %v475 = vsub.f32 %v448, %v471
          %v476 = vsub.f32 %v449, %v472
          %v477 = vsub.f32 %v450, %v472
          %v478 = vsub.f32 %v451, %v473
          %v479 = vsub.f32 %v452, %v473
          %v480 = vmul.f32 %v474, %v474
          %v481 = vmul.f32 %v475, %v475
          %v482 = vmul.f32 %v476, %v476
          %v483 = vmul.f32 %v477, %v477
          %v484 = vmul.f32 %v478, %v478
          %v485 = vmul.f32 %v479, %v479
          %v486 = vadd.f32 %v480, %v481
          %487 = vadd.xlane.f32.xlu0 %v486
          %v488 = vpop.xlane.xlu0 %487
          %v489 = vadd.f32 %v482, %v483
          %490 = vadd.xlane.f32.xlu0 %v489
          %v491 = vpop.xlane.xlu0 %490
          %v492 = vadd.f32 %v484, %v485
          %493 = vadd.xlane.f32.xlu0 %v492
          %v494 = vpop.xlane.xlu0 %493
          %v495 = vmul.f32 %v488, %v470
          %v496 = vmul.f32 %v491, %v470
          %v497 = vmul.f32 %v494, %v470
          %v498 = vadd.f32 %v495, 1e-06
          %v499 = vadd.f32 %v496, 1e-06
          %v500 = vadd.f32 %v497, 1e-06
          %v501 = vrsqrt.pop %v498
          %v502 = vmul.f32 %v501, %v498
          %v503 = vmul.f32 %v502, %v501
          %v504 = vmul.f32 0.5, %v503
          %v505 = vsub.f32 1.5, %v504
          %v506 = vmul.f32 %v501, %v505
          %vm507 = vweird.f32 %v498
          %vm508 = vweird.f32 %v501
          %vm509 = vmor %vm507, %vm508
          %v510 = vsel %vm509, %v501, %v506
          %v511 = vrsqrt.pop %v499
          %v512 = vmul.f32 %v511, %v499
          %v513 = vmul.f32 %v512, %v511
          %v514 = vmul.f32 0.5, %v513
          %v515 = vsub.f32 1.5, %v514
          %v516 = vmul.f32 %v511, %v515
          %vm517 = vweird.f32 %v499
          %vm518 = vweird.f32 %v511
          %vm519 = vmor %vm517, %vm518
          %v520 = vsel %vm519, %v511, %v516
          %v521 = vrsqrt.pop %v500
          %v522 = vmul.f32 %v521, %v500
          %v523 = vmul.f32 %v522, %v521
          %v524 = vmul.f32 0.5, %v523
          %v525 = vsub.f32 1.5, %v524
          %v526 = vmul.f32 %v521, %v525
          %vm527 = vweird.f32 %v500
          %vm528 = vweird.f32 %v521
          %vm529 = vmor %vm527, %vm528
          %v530 = vsel %vm529, %v521, %v526
          %v531 = vmul.f32 %v474, %v510
          %v532 = vmul.f32 %v475, %v510
          %v533 = vmul.f32 %v476, %v520
          %v534 = vmul.f32 %v477, %v520
          %v535 = vmul.f32 %v478, %v530
          %v536 = vmul.f32 %v479, %v530
          %v538 = vperm.slane %v453, 0
          %v539 = vperm.slane %v453, 1
          %v542 = vmul.f32 %v531, %v538
          %v543 = vmul.f32 %v532, %v539
          %v544 = vmul.f32 %v533, %v538
          %v545 = vmul.f32 %v534, %v539
          %v546 = vmul.f32 %v535, %v538
          %v547 = vmul.f32 %v536, %v539
          %v549 = vperm.slane %v454, 0
          %v550 = vperm.slane %v454, 1
          %v553 = vadd.f32 %v542, %v549
          %v554 = vadd.f32 %v543, %v550
          %v555 = vadd.f32 %v544, %v549
          %v556 = vadd.f32 %v545, %v550
          %v557 = vadd.f32 %v546, %v549
          %v558 = vadd.f32 %v547, %v550
          %v559 = vpack.c.bf16 %v554, %v553
          %v560 = vpack.c.bf16 %v556, %v555
          %v561 = vpack.c.bf16 %v558, %v557
          %562 = vst [vmem:[#allocation2] sm:$0xff] %v559
          %563 = vst [vmem:[#allocation2 + $0x8] sm:$0xff] %v560
          %564 = vst [vmem:[#allocation2 + $0x10] sm:$0xff] %v561
        $region85: #{_lambda_.27} parent=76 // pred_fallthru
          _
        %v565 = vld [vmem:[#allocation2] sm:$0xff]
        %v566 = vld [vmem:[#allocation2 + $0x8] sm:$0xff]
        %v567 = vld [vmem:[#allocation2 + $0x10] sm:$0xff]
        %v568 = vld [vmem:[%s396] sm:$0xf]
        %v569 = vld [vmem:[%s396 + $0x4] sm:$0xf]
        %v570 = vld [vmem:[%s396 + $0x8] sm:$0xf]
        %v571 = vld [vmem:[%s396 + $0xc] sm:$0xf]
        %v572 = vld [vmem:[%s396 + $0x10] sm:$0xf]
        %v573 = vld [vmem:[%s396 + $0x14] sm:$0xf]
        %v574 = vld [vmem:[%s396 + $0x18] sm:$0xf]
        %v575 = vld [vmem:[%s396 + $0x1c] sm:$0xf]
        %v576 = vld [vmem:[%s396 + $0x20] sm:$0xf]
        %v577 = vld [vmem:[%s396 + $0x24] sm:$0xf]
        %v578 = vld [vmem:[%s396 + $0x28] sm:$0xf]
        %v579 = vld [vmem:[%s396 + $0x2c] sm:$0xf]
        %v580 = vld [vmem:[%s396 + $0x30] sm:$0xf]
        %v581 = vld [vmem:[%s396 + $0x34] sm:$0xf]
        %v582 = vld [vmem:[%s396 + $0x38] sm:$0xf]
        %v583 = vld [vmem:[%s396 + $0x3c] sm:$0xf]
        %v584 = vld [vmem:[%s396 + $0x40] sm:$0xf]
        %v585 = vld [vmem:[%s396 + $0x44] sm:$0xf]
        %v586 = vld [vmem:[%s396 + $0x48] sm:$0xf]
        %v587 = vld [vmem:[%s396 + $0x4c] sm:$0xf]
        %v588 = vld [vmem:[%s396 + $0x50] sm:$0xf]
        %v589 = vld [vmem:[%s396 + $0x54] sm:$0xf]
        %v590 = vld [vmem:[%s396 + $0x58] sm:$0xf]
        %v591 = vld [vmem:[%s396 + $0x5c] sm:$0xf]
        %v592 = vld [vmem:[%s396 + $0x60] sm:$0xf]
        %v593 = vld [vmem:[%s396 + $0x64] sm:$0xf]
        %v594 = vld [vmem:[%s396 + $0x68] sm:$0xf]
        %v595 = vld [vmem:[%s396 + $0x6c] sm:$0xf]
        %v596 = vld [vmem:[%s396 + $0x70] sm:$0xf]
        %v597 = vld [vmem:[%s396 + $0x74] sm:$0xf]
        %v598 = vld [vmem:[%s396 + $0x78] sm:$0xf]
        %v599 = vld [vmem:[%s396 + $0x7c] sm:$0xf]
        %v600 = vld [vmem:[%s438] sm:$0x1]
        %v602 = vperm.slane %v600, 0
        %v607 = vunpack.c.l.b16 %v565
        %v608 = vunpack.c.h.b16 %v565
        %v609 = vunpack.c.l.b16 %v566
        %v610 = vunpack.c.h.b16 %v566
        %v611 = vunpack.c.l.b16 %v567
        %v612 = vunpack.c.h.b16 %v567
        %v613 = vpack.c.b16 %v609, %v607
        %v614 = vpack.c.b16 %v610, %v608
        %v615 = vpack.c.b16 %v611, %v611
        %v616 = vpack.c.b16 %v612, %v612
        %v653 = vunpack.c.l.b16 %v568
        %v654 = vunpack.c.l.b16 %v569
        %v655 = vunpack.c.l.b16 %v570
        %v656 = vunpack.c.l.b16 %v571
        %v657 = vunpack.c.l.b16 %v572
        %v658 = vunpack.c.l.b16 %v573
        %v659 = vunpack.c.l.b16 %v574
        %v660 = vunpack.c.l.b16 %v575
        %v661 = vunpack.c.l.b16 %v576
        %v662 = vunpack.c.l.b16 %v577
        %v663 = vunpack.c.l.b16 %v578
        %v664 = vunpack.c.l.b16 %v579
        %v665 = vunpack.c.l.b16 %v580
        %v666 = vunpack.c.l.b16 %v581
        %v667 = vunpack.c.l.b16 %v582
        %v668 = vunpack.c.l.b16 %v583
        %v669 = vunpack.c.l.b16 %v584
        %v670 = vunpack.c.l.b16 %v585
        %v671 = vunpack.c.l.b16 %v586
        %v672 = vunpack.c.l.b16 %v587
        %v673 = vunpack.c.l.b16 %v588
        %v674 = vunpack.c.l.b16 %v589
        %v675 = vunpack.c.l.b16 %v590
        %v676 = vunpack.c.l.b16 %v591
        %v677 = vunpack.c.l.b16 %v592
        %v678 = vunpack.c.l.b16 %v593
        %v679 = vunpack.c.l.b16 %v594
        %v680 = vunpack.c.l.b16 %v595
        %v681 = vunpack.c.l.b16 %v596
        %v682 = vunpack.c.l.b16 %v597
        %v683 = vunpack.c.l.b16 %v598
        %v684 = vunpack.c.l.b16 %v599
        %v685 = vpack.c.b16 %v654, %v653
        %v686 = vpack.c.b16 %v656, %v655
        %v687 = vpack.c.b16 %v658, %v657
        %v688 = vpack.c.b16 %v660, %v659
        %v689 = vpack.c.b16 %v662, %v661
        %v690 = vpack.c.b16 %v664, %v663
        %v691 = vpack.c.b16 %v666, %v665
        %v692 = vpack.c.b16 %v668, %v667
        %v693 = vpack.c.b16 %v670, %v669
        %v694 = vpack.c.b16 %v672, %v671
        %v695 = vpack.c.b16 %v674, %v673
        %v696 = vpack.c.b16 %v676, %v675
        %v697 = vpack.c.b16 %v678, %v677
        %v698 = vpack.c.b16 %v680, %v679
        %v699 = vpack.c.b16 %v682, %v681
        %v700 = vpack.c.b16 %v684, %v683
        %717 = vmatpush.bf16.msra.mxu0 %v692
        %718 = vmatpush.bf16.msra.mxu0 %v691
        %719 = vmatpush.bf16.msra.mxu0 %v690
        %720 = vmatpush.bf16.msra.mxu0 %v689
        %721 = vmatpush.bf16.msra.mxu0 %v688
        %722 = vmatpush.bf16.msra.mxu0 %v687
        %723 = vmatpush.bf16.msra.mxu0 %v686
        %724 = vmatpush.bf16.msra.mxu0 %v685
        %725 = vmatmul.bf16.gmra.mxu0 %v613
        %v726 = vpop.f32.mrf.mxu0
        %v727 = vadd.f32 %v602, %v726
        %v728 = vpop.f32.mrf.mxu0
        %v729 = vadd.f32 %v602, %v728
        %730 = vmatmul.bf16.gmra.mxu0 %v615
        %v731 = vpop.f32.mrf.mxu0
        %v732 = vadd.f32 %v602, %v731
        %v733 = vpop.f32.mrf.mxu0
        %734 = vdwg.mxu0
        %735 = vmatpush.bf16.msra.mxu0 %v700
        %736 = vmatpush.bf16.msra.mxu0 %v699
        %737 = vmatpush.bf16.msra.mxu0 %v698
        %738 = vmatpush.bf16.msra.mxu0 %v697
        %739 = vmatpush.bf16.msra.mxu0 %v696
        %740 = vmatpush.bf16.msra.mxu0 %v695
        %741 = vmatpush.bf16.msra.mxu0 %v694
        %742 = vmatpush.bf16.msra.mxu0 %v693
        %743 = vmatmul.bf16.gmra.mxu0 %v614
        %v744 = vpop.f32.mrf.mxu0
        %v745 = vadd.f32 %v727, %v744
        %v746 = vpop.f32.mrf.mxu0
        %v747 = vadd.f32 %v729, %v746
        %748 = vmatmul.bf16.gmra.mxu0 %v616
        %v749 = vpop.f32.mrf.mxu0
        %v750 = vadd.f32 %v732, %v749
        %v751 = vpop.f32.mrf.mxu0
        %752 = vdwg.mxu0
        %v753 = vmul.f32 %v745, 0.5
        %v754 = vmul.f32 %v747, 0.5
        %v755 = vmul.f32 %v750, 0.5
        %v756 = vmul.f32 %v745, 0.70710677
        %v757 = vmul.f32 %v747, 0.70710677
        %v758 = vmul.f32 %v750, 0.70710677
        %v759 = vand.u32 2147483647, %v756
        %v760 = vand.u32 2147483647, %v757
        %v761 = vand.u32 2147483647, %v758
        %v762 = vmul.f32 %v759, 0.3275911
        %v763 = vmul.f32 %v760, 0.3275911
        %v764 = vmul.f32 %v761, 0.3275911
        %v765 = vadd.f32 %v762, 1.0
        %v766 = vadd.f32 %v763, 1.0
        %v767 = vadd.f32 %v764, 1.0
        %v768 = vrcp.pop %v765
        %v769 = vmul.f32 %v765, %v768
        %v770 = vsub.f32 1.0, %v769
        %v771 = vmul.f32 %v768, %v770
        %v772 = vadd.f32 %v768, %v771
        %vm773 = vweird.f32 %v765
        %vm774 = vweird.f32 %v768
        %vm775 = vmor %vm773, %vm774
        %v776 = vsel %vm775, %v768, %v772
        %v777 = vand.u32 2147483647, %v765
        %vm778 = vcmp.eq.f32.partialorder %v777, 8.507059e+37
        %v779 = vand.u32 %v765, 2147483648
        %v780 = vor.u32 1.1754944e-38, %v779
        %v781 = vsel %vm778, %v780, %v776
        %v782 = vmul.f32 1.0, %v781
        %v783 = vrcp.pop %v766
        %v784 = vmul.f32 %v766, %v783
        %v785 = vsub.f32 1.0, %v784
        %v786 = vmul.f32 %v783, %v785
        %v787 = vadd.f32 %v783, %v786
        %vm788 = vweird.f32 %v766
        %vm789 = vweird.f32 %v783
        %vm790 = vmor %vm788, %vm789
        %v791 = vsel %vm790, %v783, %v787
        %v792 = vand.u32 2147483647, %v766
        %vm793 = vcmp.eq.f32.partialorder %v792, 8.507059e+37
        %v794 = vand.u32 %v766, 2147483648
        %v795 = vor.u32 1.1754944e-38, %v794
        %v796 = vsel %vm793, %v795, %v791
        %v797 = vmul.f32 1.0, %v796
        %v798 = vrcp.pop %v767
        %v799 = vmul.f32 %v767, %v798
        %v800 = vsub.f32 1.0, %v799
        %v801 = vmul.f32 %v798, %v800
        %v802 = vadd.f32 %v798, %v801
        %vm803 = vweird.f32 %v767
        %vm804 = vweird.f32 %v798
        %vm805 = vmor %vm803, %vm804
        %v806 = vsel %vm805, %v798, %v802
        %v807 = vand.u32 2147483647, %v767
        %vm808 = vcmp.eq.f32.partialorder %v807, 8.507059e+37
        %v809 = vand.u32 %v767, 2147483648
        %v810 = vor.u32 1.1754944e-38, %v809
        %v811 = vsel %vm808, %v810, %v806
        %v812 = vmul.f32 1.0, %v811
        %v813 = vmul.f32 %v782, 1.0614054
        %v814 = vmul.f32 %v797, 1.0614054
        %v815 = vmul.f32 %v812, 1.0614054
        %v816 = vadd.f32 %v813, -1.4531521
        %v817 = vadd.f32 %v814, -1.4531521
        %v818 = vadd.f32 %v815, -1.4531521
        %v819 = vmul.f32 %v816, %v782
        %v820 = vmul.f32 %v817, %v797
        %v821 = vmul.f32 %v818, %v812
        %v822 = vadd.f32 %v819, 1.4214138
        %v823 = vadd.f32 %v820, 1.4214138
        %v824 = vadd.f32 %v821, 1.4214138
        %v825 = vmul.f32 %v822, %v782
        %v826 = vmul.f32 %v823, %v797
        %v827 = vmul.f32 %v824, %v812
        %v828 = vadd.f32 %v825, -0.28449672
        %v829 = vadd.f32 %v826, -0.28449672
        %v830 = vadd.f32 %v827, -0.28449672
        %v831 = vmul.f32 %v828, %v782
        %v832 = vmul.f32 %v829, %v797
        %v833 = vmul.f32 %v830, %v812
        %v834 = vadd.f32 %v831, 0.2548296
        %v835 = vadd.f32 %v832, 0.2548296
        %v836 = vadd.f32 %v833, 0.2548296
        %v837 = vmul.f32 %v834, %v782
        %v838 = vmul.f32 %v835, %v797
        %v839 = vmul.f32 %v836, %v812
        %v840 = vsub.f32 0.0, %v759
        %v841 = vsub.f32 0.0, %v760
        %v842 = vsub.f32 0.0, %v761
        %v843 = vmul.f32 %v840, %v759
        %v844 = vmul.f32 %v841, %v760
        %v845 = vmul.f32 %v842, %v761
        %v846 = vmul.f32 %v843, 1.442695
        %v847 = vpow.pop %v846
        %v848 = vmul.f32 %v844, 1.442695
        %v849 = vpow.pop %v848
        %v850 = vmul.f32 %v845, 1.442695
        %v851 = vpow.pop %v850
        %v852 = vmul.f32 %v837, %v847
        %v853 = vmul.f32 %v838, %v849
        %v854 = vmul.f32 %v839, %v851
        %v855 = vsub.f32 1.0, %v852
        %v856 = vsub.f32 1.0, %v853
        %v857 = vsub.f32 1.0, %v854
        %vm858 = vcmp.ge.f32.partialorder %v756, 0.0
        %vm859 = vcmp.ge.f32.partialorder %v757, 0.0
        %vm860 = vcmp.ge.f32.partialorder %v758, 0.0
        %v861 = vsub.f32 0.0, %v855
        %v862 = vsub.f32 0.0, %v856
        %v863 = vsub.f32 0.0, %v857
        %v864 = vsel %vm858, %v855, %v861
        %v865 = vsel %vm859, %v856, %v862
        %v866 = vsel %vm860, %v857, %v863
        %v867 = vadd.f32 %v864, 1.0
        %v868 = vadd.f32 %v865, 1.0
        %v869 = vadd.f32 %v866, 1.0
        %v870 = vmul.f32 %v753, %v867
        %v871 = vmul.f32 %v754, %v868
        %v872 = vmul.f32 %v755, %v869
        %v873 = vpack.c.bf16 %v870, %v870
        %v874 = vpack.c.bf16 %v871, %v871
        %v875 = vpack.c.bf16 %v872, %v872
        %876 = vst [vmem:[%s428] sm:$0xf] %v873
        %877 = vst [vmem:[%s428 + $0x4] sm:$0xf] %v874
        %878 = vst [vmem:[%s428 + $0x8] sm:$0xf] %v875
        %s879 = sand.u32 %s158, 1
        %s880 = sand.u32 %s158, 1
        %s881 = smul.addr %s880, 12
        %s882 = scalar_lea.vmem [#allocation4], %s881
        // Predicated region
        $region86: #{_lambda_.27} parent=76 // pred_check
          %p883 = pneg %p168
        $region87: #{_lambda_.27} parent=76 // pred_check_branch
          %885 = sbr.rel (%p883) target = $region89
        $region88: #{_lambda_.27} parent=76 // pred_region
          %s886 = smul.u32 3, %s20
          %s887 = smul.addr %s886, 11
          %s888 = sadd.s32 %s21, %s887
          %s889 = smul.addr %s888, 4
          %s890 = scalar_lea.vmem %s5, %s889
          // Predicated region
          $region90: #{_lambda_.27} parent=88 // pred_check
            _
          $region91: #{_lambda_.27} parent=88 // pred_check_branch
            %892 = sbr.rel (0) target = $region93
          $region92: #{_lambda_.27} parent=88 // pred_region
            // Predicated region
            $region94: #{_lambda_.27} parent=92 // pred_check
              _
            $region95: #{_lambda_.27} parent=92 // pred_check_branch
              %894 = sbr.rel target = $region97
            $region96: #{_lambda_.27} parent=92 // pred_region
              // Predicated region
              $region109: #{_lambda_.27} parent=96 // pred_check
                _
              $region110: #{_lambda_.27} parent=96 // pred_check_branch
                %914 = sbr.rel (0) target = $region112
              $region111: #{_lambda_.27} parent=96 // pred_region
                loop: start=0, step=1, limit=1
                $region113: #{_lambda_.27} parent=111 // loop_pre_header
                  _
                $region114: #{_lambda_.27} parent=111 // loop_header
                  %s916 = sphi 0, %s920
                  %p917 = scmp.ge.s32.totalorder %s916, 1
                  %s921 = sphi %s882, %s882
                  %s922 = sphi %s890, %s890
                $region115: #{_lambda_.27} parent=111 // loop_header_branch
                  %919 = sbr.rel (%p917) target = $region119
                $region116: #{_lambda_.27} parent=111 // loop_body
                  _
                $region117: #{_lambda_.27} parent=111 // loop_footer
                  %s920 = sadd.s32 1, %s916
                $region118: #{_lambda_.27} parent=111 // loop_footer_branch
                  %915 = sbr.rel target = $region114
                $region119: #{_lambda_.27} parent=111 // loop_exit
                  _
                %s924 = ssub.s32 16, 1
                loop: start=0, step=1, limit=1
                $region120: #{_lambda_.27} parent=111 // loop_pre_header
                  _
                $region121: #{_lambda_.27} parent=111 // loop_header
                  %s926 = sphi 0, %s930
                  %p927 = scmp.ge.s32.totalorder %s926, 1
                  %s931 = sphi %s882, %s882
                  %s932 = sphi %s890, %s890
                $region122: #{_lambda_.27} parent=111 // loop_header_branch
                  %929 = sbr.rel (%p927) target = $region126
                $region123: #{_lambda_.27} parent=111 // loop_body
                  %v933 = vld [vmem:[%s931] sm:%s924]
                  %934 = vst [vmem:[%s932] sm:%s924] %v933
                  %v935 = vld [vmem:[%s931 + $0x4] sm:%s924]
                  %936 = vst [vmem:[%s932 + $0x2c] sm:%s924] %v935
                  %v937 = vld [vmem:[%s931 + $0x8] sm:%s924]
                  %938 = vst [vmem:[%s932 + $0x58] sm:%s924] %v937
                $region124: #{_lambda_.27} parent=111 // loop_footer
                  %s930 = sadd.s32 1, %s926
                $region125: #{_lambda_.27} parent=111 // loop_footer_branch
                  %925 = sbr.rel target = $region121
                $region126: #{_lambda_.27} parent=111 // loop_exit
                  _
              $region112: #{_lambda_.27} parent=96 // pred_fallthru
                _
            $region97: #{_lambda_.27} parent=92 // pred_fallthru
              _
            // Predicated region
            $region98: #{_lambda_.27} parent=92 // pred_check
              _
            $region99: #{_lambda_.27} parent=92 // pred_check_branch
              %896 = sbr.rel (0) target = $region101
            $region100: #{_lambda_.27} parent=92 // pred_region
              %s898 = ssub.s32 16, 1
              loop: start=0, step=1, limit=1
              $region102: #{_lambda_.27} parent=100 // loop_pre_header
                _
              $region103: #{_lambda_.27} parent=100 // loop_header
                %s900 = sphi 0, %s904
                %p901 = scmp.ge.s32.totalorder %s900, 1
                %s905 = sphi %s882, %s882
                %s906 = sphi %s890, %s890
              $region104: #{_lambda_.27} parent=100 // loop_header_branch
                %903 = sbr.rel (%p901) target = $region108
              $region105: #{_lambda_.27} parent=100 // loop_body
                %v907 = vld [vmem:[%s905] sm:%s898]
                %908 = vst [vmem:[%s906] sm:%s898] %v907
                %v909 = vld [vmem:[%s905 + $0x4] sm:%s898]
                %910 = vst [vmem:[%s906 + $0x2c] sm:%s898] %v909
                %v911 = vld [vmem:[%s905 + $0x8] sm:%s898]
                %912 = vst [vmem:[%s906 + $0x58] sm:%s898] %v911
              $region106: #{_lambda_.27} parent=100 // loop_footer
                %s904 = sadd.s32 1, %s900
              $region107: #{_lambda_.27} parent=100 // loop_footer_branch
                %899 = sbr.rel target = $region103
              $region108: #{_lambda_.27} parent=100 // loop_exit
                _
            $region101: #{_lambda_.27} parent=92 // pred_fallthru
              _
          $region93: #{_lambda_.27} parent=88 // pred_fallthru
            _
          %939 = vnop
        $region89: #{_lambda_.27} parent=76 // pred_fallthru
          _
      $region77: #{_lambda_.27} parent=5 // pred_fallthru
        _
      %p940 = scmp.le.s32.totalorder 2, %s11
      // Predicated region
      $region127: #{_lambda_.27} parent=5 // pred_check
        %p941 = pneg %p940
      $region128: #{_lambda_.27} parent=5 // pred_check_branch
        %943 = sbr.rel (%p941) target = $region130
      $region129: #{_lambda_.27} parent=5 // pred_region
        %s944 = ssub.s32 %s11, 2
        // Predicated region
        $region131: #{_lambda_.27} parent=129 // pred_check
          %p945 = pneg %p174
        $region132: #{_lambda_.27} parent=129 // pred_check_branch
          %947 = sbr.rel (%p945) target = $region134
        $region133: #{_lambda_.27} parent=129 // pred_region
          %s948 = sand.u32 %s159, 1
          %s949 = sand.u32 %s159, 1
          %s950 = smul.addr %s949, 12
          %s951 = scalar_lea.vmem [#allocation4], %s950
        $region134: #{_lambda_.27} parent=129 // pred_fallthru
          _
      $region130: #{_lambda_.27} parent=5 // pred_fallthru
        _
    $region6: #{_lambda_.27} parent=1 // loop_footer
      %s15 = sadd.s32 1, %s11
    $region7: #{_lambda_.27} parent=1 // loop_footer_branch
      %10 = sbr.rel target = $region3
    $region8: #{_lambda_.27} parent=1 // loop_exit
      _

// kernel: _lambda_.28
$region0: #{_lambda_.28}
  #allocation0 [shape = 'u32[]', space=smem, size = 0x4, offset = 0x4, fixed_abs, tag = 'smem constant byte address 0x4 - core index']
  #allocation1 [shape = 'u32[72,128]{1,0:T(1,128)}', space=vmem, size = 0x9000, scoped, tag = 'internal scratch']
  #allocation2 [shape = 'f32[24,256]{1,0:T(8,128)}', space=vmem, size = 0x6000, scoped, tag = 'scratch operand']
  %s0 = inlined_call_operand.vmem [shape: bf16[24,1408], index: 0, kind: input, shape index: {}]
  %s1 = inlined_call_operand.vmem [shape: bf16[1408,256], index: 1, kind: input, shape index: {}]
  %s2 = inlined_call_operand.vmem [shape: f32[1,256], index: 2, kind: input, shape index: {}]
  %s3 = inlined_call_operand.vmem [shape: f32[1,256], index: 3, kind: input, shape index: {}]
  %s4 = inlined_call_operand.vmem [shape: bf16[24,256], index: 4, kind: input, shape index: {}]
  %s5 = inlined_call_operand.vmem [shape: bf16[24,256], index: 5, kind: output, shape index: {}]
  %s6 = sld [smem:[#allocation0]]
  $region102: #{_lambda_.28} parent=0
    _
  %s8 = ssub.s32 1, %s6
  %s9 = scalar_select 0, %s8, %s6
  $region1: #{_lambda_.28} parent=0
    #allocation3 [shape = 'u8[12288]{0}', space=vmem, size = 0x3000, scoped, tag = 'input window, operand 0']
    loop: start=0, step=1, limit=13
    $region2: #{_lambda_.28} parent=1 // loop_pre_header
      _
    $region3: #{_lambda_.28} parent=1 // loop_header
      %s11 = sphi 0, %s15
      %p12 = scmp.ge.s32.totalorder %s11, 13
      %s18 = sphi 0, %s37
      %s19 = sphi 0, %s33
      %s20 = sphi 0, %s29
      %s21 = sphi 0, %s18
      %s22 = sphi 0, %s19
      %s23 = sphi 0, %s20
      %s24 = sphi 0, %s21
      %s25 = sphi 0, %s22
      %s26 = sphi 0, %s23
      %s42 = sphi 0, %s44
      %s45 = sphi 0, %s42
      %s46 = sphi 0, %s45
      %s62 = sphi 0, %s46
      %s70 = sphi 0, %s72
      %s73 = sphi 0, %s70
      %s74 = sphi 0, %s73
      %s90 = sphi 0, %s74
      %s96 = sphi 0, %s98
      %s99 = sphi 0, %s96
      %s100 = sphi 0, %s99
      %s116 = sphi 0, %s100
      %s122 = sphi 0, %s124
      %s125 = sphi 0, %s122
      %s126 = sphi 0, %s125
      %s142 = sphi 0, %s126
      %s150 = sphi 0, %s152
      %s153 = sphi 0, %s150
      %s154 = sphi 0, %s153
      %s170 = sphi 0, %s154
      %s178 = sphi 0, %s180
      %s181 = sphi 0, %s178
      %s182 = sphi 0, %s181
      %s198 = sphi 0, %s182
    $region4: #{_lambda_.28} parent=1 // loop_header_branch
      %14 = sbr.rel (%p12) target = $region8
    $region5: #{_lambda_.28} parent=1 // loop_body
      %s16 = ssub.s32 %s11, 1
      %s17 = ssub.s32 %s11, 2
      %s27 = sadd.s32 1, %s20
      %p28 = scmp.ge.s32.totalorder %s27, 11
      %s29 = scalar_select %p28, 0, %s27
      %s30 = sadd.s32 1, %s19
      %s31 = scalar_select %p28, %s30, %s19
      %p32 = scmp.ge.s32.totalorder %s31, 1
      %s33 = scalar_select %p32, 0, %s31
      %s34 = sadd.s32 1, %s18
      %s35 = scalar_select %p32, %s34, %s18
      %p36 = scmp.ge.s32.totalorder %s35, 1
      %s37 = scalar_select %p36, 0, %s35
      %s38 = ssub.s32 %s18, %s37
      %s39 = ssub.s32 %s20, %s29
      %s40 = sor.u32 %s38, %s39
      %p41 = scmp.eq.s32.totalorder %s40, 0
      %s43 = sadd.s32 %s42, 1
      %s44 = scalar_select %p41, %s42, %s43
      %p47 = pneg %p41
      %p48 = scmp.eq.s32.totalorder %s11, 10
      %p49 = por %p47, %p48
      %p50 = scmp.ne.s32.totalorder %s42, %s45
      %p51 = scmp.eq.s32.totalorder %s11, 0
      %p52 = por %p50, %p51
      %p53 = scmp.ne.s32.totalorder %s42, %s45
      %p54 = scmp.eq.s32.totalorder %s16, 10
      %p55 = por %p53, %p54
      %p56 = scmp.ne.s32.totalorder %s45, %s46
      %p57 = scmp.eq.s32.totalorder %s16, 0
      %p58 = por %p56, %p57
      %p59 = scmp.ne.s32.totalorder %s45, %s46
      %p60 = scmp.eq.s32.totalorder %s17, 10
      %p61 = por %p59, %p60
      %p63 = scmp.ne.s32.totalorder %s46, %s62
      %p64 = scmp.eq.s32.totalorder %s17, 0
      %p65 = por %p63, %p64
      %s66 = ssub.s32 %s20, %s29
      %s67 = ssub.s32 %s19, %s33
      %s68 = sor.u32 %s66, %s67
      %p69 = scmp.eq.s32.totalorder %s68, 0
      %s71 = sadd.s32 %s70, 1
      %s72 = scalar_select %p69, %s70, %s71
      %p75 = pneg %p69
      %p76 = scmp.eq.s32.totalorder %s11, 10
      %p77 = por %p75, %p76
      %p78 = scmp.ne.s32.totalorder %s70, %s73
      %p79 = scmp.eq.s32.totalorder %s11, 0
      %p80 = por %p78, %p79
      %p81 = scmp.ne.s32.totalorder %s70, %s73
      %p82 = scmp.eq.s32.totalorder %s16, 10
      %p83 = por %p81, %p82
      %p84 = scmp.ne.s32.totalorder %s73, %s74
      %p85 = scmp.eq.s32.totalorder %s16, 0
      %p86 = por %p84, %p85
      %p87 = scmp.ne.s32.totalorder %s73, %s74
      %p88 = scmp.eq.s32.totalorder %s17, 10
      %p89 = por %p87, %p88
      %p91 = scmp.ne.s32.totalorder %s74, %s90
      %p92 = scmp.eq.s32.totalorder %s17, 0
      %p93 = por %p91, %p92
      %s94 = ssub.s32 %s19, %s33
      %p95 = scmp.eq.s32.totalorder %s94, 0
      %s97 = sadd.s32 %s96, 1
      %s98 = scalar_select %p95, %s96, %s97
      %p101 = pneg %p95
      %p102 = scmp.eq.s32.totalorder %s11, 10
      %p103 = por %p101, %p102
      %p104 = scmp.ne.s32.totalorder %s96, %s99
      %p105 = scmp.eq.s32.totalorder %s11, 0
      %p106 = por %p104, %p105
      %p107 = scmp.ne.s32.totalorder %s96, %s99
      %p108 = scmp.eq.s32.totalorder %s16, 10
      %p109 = por %p107, %p108
      %p110 = scmp.ne.s32.totalorder %s99, %s100
      %p111 = scmp.eq.s32.totalorder %s16, 0
      %p112 = por %p110, %p111
      %p113 = scmp.ne.s32.totalorder %s99, %s100
      %p114 = scmp.eq.s32.totalorder %s17, 10
      %p115 = por %p113, %p114
      %p117 = scmp.ne.s32.totalorder %s100, %s116
      %p118 = scmp.eq.s32.totalorder %s17, 0
      %p119 = por %p117, %p118
      %s120 = ssub.s32 %s19, %s33
      %p121 = scmp.eq.s32.totalorder %s120, 0
      %s123 = sadd.s32 %s122, 1
      %s124 = scalar_select %p121, %s122, %s123
      %p127 = pneg %p121
      %p128 = scmp.eq.s32.totalorder %s11, 10
      %p129 = por %p127, %p128
      %p130 = scmp.ne.s32.totalorder %s122, %s125
      %p131 = scmp.eq.s32.totalorder %s11, 0
      %p132 = por %p130, %p131
      %p133 = scmp.ne.s32.totalorder %s122, %s125
      %p134 = scmp.eq.s32.totalorder %s16, 10
      %p135 = por %p133, %p134
      %p136 = scmp.ne.s32.totalorder %s125, %s126
      %p137 = scmp.eq.s32.totalorder %s16, 0
      %p138 = por %p136, %p137
      %p139 = scmp.ne.s32.totalorder %s125, %s126
      %p140 = scmp.eq.s32.totalorder %s17, 10
      %p141 = por %p139, %p140
      %p143 = scmp.ne.s32.totalorder %s126, %s142
      %p144 = scmp.eq.s32.totalorder %s17, 0
      %p145 = por %p143, %p144
      %s146 = ssub.s32 %s18, %s37
      %s147 = ssub.s32 %s19, %s33
      %s148 = sor.u32 %s146, %s147
      %p149 = scmp.eq.s32.totalorder %s148, 0
      %s151 = sadd.s32 %s150, 1
      %s152 = scalar_select %p149, %s150, %s151
      %p155 = pneg %p149
      %p156 = scmp.eq.s32.totalorder %s11, 10
      %p157 = por %p155, %p156
      %p158 = scmp.ne.s32.totalorder %s150, %s153
      %p159 = scmp.eq.s32.totalorder %s11, 0
      %p160 = por %p158, %p159
      %p161 = scmp.ne.s32.totalorder %s150, %s153
      %p162 = scmp.eq.s32.totalorder %s16, 10
      %p163 = por %p161, %p162
      %p164 = scmp.ne.s32.totalorder %s153, %s154
      %p165 = scmp.eq.s32.totalorder %s16, 0
      %p166 = por %p164, %p165
      %p167 = scmp.ne.s32.totalorder %s153, %s154
      %p168 = scmp.eq.s32.totalorder %s17, 10
      %p169 = por %p167, %p168
      %p171 = scmp.ne.s32.totalorder %s154, %s170
      %p172 = scmp.eq.s32.totalorder %s17, 0
      %p173 = por %p171, %p172
      %s174 = ssub.s32 %s18, %s37
      %s175 = ssub.s32 %s19, %s33
      %s176 = sor.u32 %s174, %s175
      %p177 = scmp.eq.s32.totalorder %s176, 0
      %s179 = sadd.s32 %s178, 1
      %s180 = scalar_select %p177, %s178, %s179
      %p183 = pneg %p177
      %p184 = scmp.eq.s32.totalorder %s11, 10
      %p185 = por %p183, %p184
      %p186 = scmp.ne.s32.totalorder %s178, %s181
      %p187 = scmp.eq.s32.totalorder %s11, 0
      %p188 = por %p186, %p187
      %p189 = scmp.ne.s32.totalorder %s178, %s181
      %p190 = scmp.eq.s32.totalorder %s16, 10
      %p191 = por %p189, %p190
      %p192 = scmp.ne.s32.totalorder %s181, %s182
      %p193 = scmp.eq.s32.totalorder %s16, 0
      %p194 = por %p192, %p193
      %p195 = scmp.ne.s32.totalorder %s181, %s182
      %p196 = scmp.eq.s32.totalorder %s17, 10
      %p197 = por %p195, %p196
      %p199 = scmp.ne.s32.totalorder %s182, %s198
      %p200 = scmp.eq.s32.totalorder %s17, 0
      %p201 = por %p199, %p200
      %p202 = scmp.le.s32.totalorder 1, %s11
      %p203 = scmp.lt.s32.totalorder %s11, 12
      %p204 = pnand %p202, %p203
      %p205 = pneg %p204
      // Predicated region
      $region9: #{_lambda_.28} parent=5 // pred_check
        _
      $region10: #{_lambda_.28} parent=5 // pred_check_branch
        %207 = sbr.rel (%p204) target = $region12
      $region11: #{_lambda_.28} parent=5 // pred_region
        %s208 = ssub.s32 %s11, 1
        // Predicated region
        $region13: #{_lambda_.28} parent=11 // pred_check
          %p209 = pneg %p112
        $region14: #{_lambda_.28} parent=11 // pred_check_branch
          %211 = sbr.rel (%p209) target = $region16
        $region15: #{_lambda_.28} parent=11 // pred_region
          %s212 = smul.u32 2, %s22
          %p213 = scmp.lt.s32.totalorder %s212, 1
          %s214 = scalar_select %p213, %s212, 1
          %s215 = scalar_lea.vmem %s2, %s214
          %s216 = smul.u32 2, %s22
        $region16: #{_lambda_.28} parent=11 // pred_fallthru
          _
        // Predicated region
        $region17: #{_lambda_.28} parent=11 // pred_check
          %p217 = pneg %p138
        $region18: #{_lambda_.28} parent=11 // pred_check_branch
          %219 = sbr.rel (%p217) target = $region20
        $region19: #{_lambda_.28} parent=11 // pred_region
          %s220 = smul.u32 2, %s22
          %p221 = scmp.lt.s32.totalorder %s220, 1
          %s222 = scalar_select %p221, %s220, 1
          %s223 = scalar_lea.vmem %s3, %s222
          %s224 = smul.u32 2, %s22
        $region20: #{_lambda_.28} parent=11 // pred_fallthru
          _
        // Predicated region
        $region21: #{_lambda_.28} parent=11 // pred_check
          %p225 = pneg %p166
        $region22: #{_lambda_.28} parent=11 // pred_check_branch
          %227 = sbr.rel (%p225) target = $region24
        $region23: #{_lambda_.28} parent=11 // pred_region
          %s228 = smul.u32 3, %s21
          %s229 = smul.u32 2, %s22
          %p230 = scmp.lt.s32.totalorder %s228, 2
          %s231 = scalar_select %p230, %s228, 2
          %p232 = scmp.lt.s32.totalorder %s229, 1
          %s233 = scalar_select %p232, %s229, 1
          %s234 = smul.addr %s231, 2
          %s235 = sadd.s32 %s233, %s234
          %s236 = smul.addr %s235, 4
          %s237 = scalar_lea.vmem %s4, %s236
          %s238 = smul.u32 3, %s21
          %s239 = smul.u32 2, %s22
        $region24: #{_lambda_.28} parent=11 // pred_fallthru
          _
      $region12: #{_lambda_.28} parent=5 // pred_fallthru
        _
      %p240 = scmp.lt.s32.totalorder %s11, 11
      // Predicated region
      $region25: #{_lambda_.28} parent=5 // pred_check
        %p241 = pneg %p240
      $region26: #{_lambda_.28} parent=5 // pred_check_branch
        %243 = sbr.rel (%p241) target = $region28
      $region27: #{_lambda_.28} parent=5 // pred_region
        // Predicated region
        $region29: #{_lambda_.28} parent=27 // pred_check
          %p244 = pneg %p52
        $region30: #{_lambda_.28} parent=27 // pred_check_branch
          %246 = sbr.rel (%p244) target = $region32
        $region31: #{_lambda_.28} parent=27 // pred_region
          %s247 = sand.u32 %s42, 1
          %s248 = sand.u32 %s42, 1
          %s249 = smul.addr %s248, 12
          %s250 = scalar_lea.vmem [#allocation3], %s249
          %s251 = smul.u32 3, %s18
          %s252 = smul.addr %s251, 11
          %s253 = sadd.s32 %s20, %s252
          %s254 = smul.addr %s253, 4
          %s255 = scalar_lea.vmem %s0, %s254
          // Predicated region
          $region33: #{_lambda_.28} parent=31 // pred_check
            _
          $region34: #{_lambda_.28} parent=31 // pred_check_branch
            %257 = sbr.rel (0) target = $region36
          $region35: #{_lambda_.28} parent=31 // pred_region
            // Predicated region
            $region37: #{_lambda_.28} parent=35 // pred_check
              _
            $region38: #{_lambda_.28} parent=35 // pred_check_branch
              %259 = sbr.rel target = $region40
            $region39: #{_lambda_.28} parent=35 // pred_region
              // Predicated region
              $region52: #{_lambda_.28} parent=39 // pred_check
                _
              $region53: #{_lambda_.28} parent=39 // pred_check_branch
                %279 = sbr.rel (0) target = $region55
              $region54: #{_lambda_.28} parent=39 // pred_region
                loop: start=0, step=1, limit=1
                $region56: #{_lambda_.28} parent=54 // loop_pre_header
                  _
                $region57: #{_lambda_.28} parent=54 // loop_header
                  %s281 = sphi 0, %s285
                  %p282 = scmp.ge.s32.totalorder %s281, 1
                  %s286 = sphi %s255, %s255
                  %s287 = sphi %s250, %s250
                $region58: #{_lambda_.28} parent=54 // loop_header_branch
                  %284 = sbr.rel (%p282) target = $region62
                $region59: #{_lambda_.28} parent=54 // loop_body
                  _
                $region60: #{_lambda_.28} parent=54 // loop_footer
                  %s285 = sadd.s32 1, %s281
                $region61: #{_lambda_.28} parent=54 // loop_footer_branch
                  %280 = sbr.rel target = $region57
                $region62: #{_lambda_.28} parent=54 // loop_exit
                  _
                %s289 = ssub.s32 16, 1
                loop: start=0, step=1, limit=1
                $region63: #{_lambda_.28} parent=54 // loop_pre_header
                  _
                $region64: #{_lambda_.28} parent=54 // loop_header
                  %s291 = sphi 0, %s295
                  %p292 = scmp.ge.s32.totalorder %s291, 1
                  %s296 = sphi %s255, %s255
                  %s297 = sphi %s250, %s250
                $region65: #{_lambda_.28} parent=54 // loop_header_branch
                  %294 = sbr.rel (%p292) target = $region69
                $region66: #{_lambda_.28} parent=54 // loop_body
                  %v298 = vld [vmem:[%s296] sm:%s289]
                  %299 = vst [vmem:[%s297] sm:%s289] %v298
                  %v300 = vld [vmem:[%s296 + $0x2c] sm:%s289]
                  %301 = vst [vmem:[%s297 + $0x4] sm:%s289] %v300
                  %v302 = vld [vmem:[%s296 + $0x58] sm:%s289]
                  %303 = vst [vmem:[%s297 + $0x8] sm:%s289] %v302
                $region67: #{_lambda_.28} parent=54 // loop_footer
                  %s295 = sadd.s32 1, %s291
                $region68: #{_lambda_.28} parent=54 // loop_footer_branch
                  %290 = sbr.rel target = $region64
                $region69: #{_lambda_.28} parent=54 // loop_exit
                  _
              $region55: #{_lambda_.28} parent=39 // pred_fallthru
                _
            $region40: #{_lambda_.28} parent=35 // pred_fallthru
              _
            // Predicated region
            $region41: #{_lambda_.28} parent=35 // pred_check
              _
            $region42: #{_lambda_.28} parent=35 // pred_check_branch
              %261 = sbr.rel (0) target = $region44
            $region43: #{_lambda_.28} parent=35 // pred_region
              %s263 = ssub.s32 16, 1
              loop: start=0, step=1, limit=1
              $region45: #{_lambda_.28} parent=43 // loop_pre_header
                _
              $region46: #{_lambda_.28} parent=43 // loop_header
                %s265 = sphi 0, %s269
                %p266 = scmp.ge.s32.totalorder %s265, 1
                %s270 = sphi %s255, %s255
                %s271 = sphi %s250, %s250
              $region47: #{_lambda_.28} parent=43 // loop_header_branch
                %268 = sbr.rel (%p266) target = $region51
              $region48: #{_lambda_.28} parent=43 // loop_body
                %v272 = vld [vmem:[%s270] sm:%s263]
                %273 = vst [vmem:[%s271] sm:%s263] %v272
                %v274 = vld [vmem:[%s270 + $0x2c] sm:%s263]
                %275 = vst [vmem:[%s271 + $0x4] sm:%s263] %v274
                %v276 = vld [vmem:[%s270 + $0x58] sm:%s263]
                %277 = vst [vmem:[%s271 + $0x8] sm:%s263] %v276
              $region49: #{_lambda_.28} parent=43 // loop_footer
                %s269 = sadd.s32 1, %s265
              $region50: #{_lambda_.28} parent=43 // loop_footer_branch
                %264 = sbr.rel target = $region46
              $region51: #{_lambda_.28} parent=43 // loop_exit
                _
            $region44: #{_lambda_.28} parent=35 // pred_fallthru
              _
          $region36: #{_lambda_.28} parent=31 // pred_fallthru
            _
          %304 = vnop
        $region32: #{_lambda_.28} parent=27 // pred_fallthru
          _
        // Predicated region
        $region70: #{_lambda_.28} parent=27 // pred_check
          %p305 = pneg %p80
        $region71: #{_lambda_.28} parent=27 // pred_check_branch
          %307 = sbr.rel (%p305) target = $region73
        $region72: #{_lambda_.28} parent=27 // pred_region
          %s308 = smul.u32 16, %s20
          %s309 = smul.u32 2, %s19
          %p310 = scmp.lt.s32.totalorder %s308, 175
          %s311 = scalar_select %p310, %s308, 175
          %p312 = scmp.lt.s32.totalorder %s309, 1
          %s313 = scalar_select %p312, %s309, 1
          %s314 = smul.addr %s311, 2
          %s315 = sadd.s32 %s313, %s314
          %s316 = smul.addr %s315, 4
          %s317 = scalar_lea.vmem %s1, %s316
          %s318 = smul.u32 16, %s20
          %s319 = smul.u32 2, %s19
        $region73: #{_lambda_.28} parent=27 // pred_fallthru
          _
      $region28: #{_lambda_.28} parent=5 // pred_fallthru
        _
      %p320 = scmp.le.s32.totalorder 1, %s11
      %p321 = scmp.lt.s32.totalorder %s11, 12
      %p322 = pnand %p320, %p321
      %p323 = pneg %p322
      // Predicated region
      $region74: #{_lambda_.28} parent=5 // pred_check
        _
      $region75: #{_lambda_.28} parent=5 // pred_check_branch
        %325 = sbr.rel (%p322) target = $region77
      $region76: #{_lambda_.28} parent=5 // pred_region
        %s326 = ssub.s32 %s11, 1
        %s327 = sand.u32 %s45, 1
        %s328 = sand.u32 %s45, 1
        %s329 = smul.addr %s328, 12
        %s330 = scalar_lea.vmem [#allocation3], %s329
        // Predicated region
        $region78: #{_lambda_.28} parent=76 // pred_check
          %p331 = pneg %p58
        $region79: #{_lambda_.28} parent=76 // pred_check_branch
          %333 = sbr.rel (%p331) target = $region81
        $region80: #{_lambda_.28} parent=76 // pred_region
          _
        $region81: #{_lambda_.28} parent=76 // pred_fallthru
          _
        %s334 = sand.u32 %s45, 1
        %s335 = sand.u32 %s45, 1
        %s336 = smul.addr %s335, 12
        %s337 = scalar_lea.vmem [#allocation3], %s336
        %p338 = pneg %p58
        %p339 = pneg %p55
        %s340 = smul.u32 16, %s23
        %s341 = smul.u32 2, %s22
        %p342 = scmp.lt.s32.totalorder %s340, 175
        %s343 = scalar_select %p342, %s340, 175
        %p344 = scmp.lt.s32.totalorder %s341, 1
        %s345 = scalar_select %p344, %s341, 1
        %s346 = smul.addr %s343, 2
        %s347 = sadd.s32 %s345, %s346
        %s348 = smul.addr %s347, 4
        %s349 = scalar_lea.vmem %s1, %s348
        %p350 = pneg %p86
        %p351 = pneg %p83
        %s352 = smul.u32 2, %s22
        %p353 = scmp.lt.s32.totalorder %s352, 1
        %s354 = scalar_select %p353, %s352, 1
        %s355 = scalar_lea.vmem %s2, %s354
        %p356 = pneg %p112
        %p357 = pneg %p109
        %s358 = smul.u32 2, %s22
        %p359 = scmp.lt.s32.totalorder %s358, 1
        %s360 = scalar_select %p359, %s358, 1
        %s361 = scalar_lea.vmem %s3, %s360
        %p362 = pneg %p138
        %p363 = pneg %p135
        %s364 = smul.u32 3, %s21
        %s365 = smul.u32 2, %s22
        %p366 = scmp.lt.s32.totalorder %s364, 2
        %s367 = scalar_select %p366, %s364, 2
        %p368 = scmp.lt.s32.totalorder %s365, 1
        %s369 = scalar_select %p368, %s365, 1
        %s370 = smul.addr %s367, 2
        %s371 = sadd.s32 %s369, %s370
        %s372 = smul.addr %s371, 4
        %s373 = scalar_lea.vmem %s4, %s372
        %p374 = pneg %p166
        %p375 = pneg %p163
        %p376 = pneg %p194
        %p377 = pneg %p191
        %s378 = smul.u32 3, %s21
        %s379 = smul.u32 2, %s22
        %p380 = scmp.lt.s32.totalorder %s378, 2
        %s381 = scalar_select %p380, %s378, 2
        %p382 = scmp.lt.s32.totalorder %s379, 1
        %s383 = scalar_select %p382, %s379, 1
        %s384 = smul.addr %s381, 2
        %s385 = sadd.s32 %s383, %s384
        %s386 = smul.addr %s385, 4
        %s387 = scalar_lea.vmem %s5, %s386
        %s388 = smul.u32 3, %s21
        %s389 = smul.u32 16, %s23
        %s390 = smul.u32 2, %s22
        %p391 = scmp.lt.s32.totalorder %s389, 175
        %s392 = scalar_select %p391, %s389, 175
        %p393 = scmp.lt.s32.totalorder %s390, 1
        %s394 = scalar_select %p393, %s390, 1
        %s395 = smul.addr %s392, 2
        %s396 = sadd.s32 %s394, %s395
        %s397 = smul.addr %s396, 4
        %s398 = scalar_lea.vmem %s1, %s397
        %s399 = smul.u32 16, %s23
        %s400 = smul.u32 2, %s22
        %s401 = smul.u32 2, %s22
        %p402 = scmp.lt.s32.totalorder %s401, 1
        %s403 = scalar_select %p402, %s401, 1
        %s404 = scalar_lea.vmem %s2, %s403
        %s405 = smul.u32 2, %s22
        %s406 = smul.u32 2, %s22
        %p407 = scmp.lt.s32.totalorder %s406, 1
        %s408 = scalar_select %p407, %s406, 1
        %s409 = scalar_lea.vmem %s3, %s408
        %s410 = smul.u32 2, %s22
        %s411 = smul.u32 3, %s21
        %s412 = smul.u32 2, %s22
        %p413 = scmp.lt.s32.totalorder %s411, 2
        %s414 = scalar_select %p413, %s411, 2
        %p415 = scmp.lt.s32.totalorder %s412, 1
        %s416 = scalar_select %p415, %s412, 1
        %s417 = smul.addr %s414, 2
        %s418 = sadd.s32 %s416, %s417
        %s419 = smul.addr %s418, 4
        %s420 = scalar_lea.vmem %s4, %s419
        %s421 = smul.u32 3, %s21
        %s422 = smul.u32 2, %s22
        %s423 = smul.u32 3, %s21
        %s424 = smul.u32 2, %s22
        %p425 = scmp.lt.s32.totalorder %s423, 2
        %s426 = scalar_select %p425, %s423, 2
        %p427 = scmp.lt.s32.totalorder %s424, 1
        %s428 = scalar_select %p427, %s424, 1
        %s429 = smul.addr %s426, 2
        %s430 = sadd.s32 %s428, %s429
        %s431 = smul.addr %s430, 4
        %s432 = scalar_lea.vmem %s5, %s431
        %s433 = smul.u32 3, %s21
        %s434 = smul.u32 2, %s22
        %p435 = scmp.eq.s32.totalorder %s23, 0
        // Predicated region
        $region82: #{_lambda_.28} parent=76 // pred_check
          %p436 = pneg %p435
        $region83: #{_lambda_.28} parent=76 // pred_check_branch
          %438 = sbr.rel (%p436) target = $region85
        $region84: #{_lambda_.28} parent=76 // pred_region
          %439 = vst [vmem:[#allocation2] sm:$0xff] 0.0
          %440 = vst [vmem:[#allocation2 + $0x8] sm:$0xff] 0.0
          %441 = vst [vmem:[#allocation2 + $0x10] sm:$0xff] 0.0
          %442 = vst [vmem:[#allocation2 + $0x18] sm:$0xff] 0.0
          %443 = vst [vmem:[#allocation2 + $0x20] sm:$0xff] 0.0
          %444 = vst [vmem:[#allocation2 + $0x28] sm:$0xff] 0.0
        $region85: #{_lambda_.28} parent=76 // pred_fallthru
          _
        %v445 = vld [vmem:[%s330] sm:$0xf]
        %v446 = vld [vmem:[%s330 + $0x4] sm:$0xf]
        %v447 = vld [vmem:[%s330 + $0x8] sm:$0xf]
        %v448 = vld [vmem:[#allocation2] sm:$0xff]
        %v449 = vld [vmem:[#allocation2 + $0x8] sm:$0xff]
        %v450 = vld [vmem:[#allocation2 + $0x10] sm:$0xff]
        %v451 = vld [vmem:[#allocation2 + $0x18] sm:$0xff]
        %v452 = vld [vmem:[#allocation2 + $0x20] sm:$0xff]
        %v453 = vld [vmem:[#allocation2 + $0x28] sm:$0xff]
        %v454 = vld [vmem:[%s398] sm:$0xff]
        %v455 = vld [vmem:[%s398 + $0x8] sm:$0xff]
        %v456 = vld [vmem:[%s398 + $0x10] sm:$0xff]
        %v457 = vld [vmem:[%s398 + $0x18] sm:$0xff]
        %v458 = vld [vmem:[%s398 + $0x20] sm:$0xff]
        %v459 = vld [vmem:[%s398 + $0x28] sm:$0xff]
        %v460 = vld [vmem:[%s398 + $0x30] sm:$0xff]
        %v461 = vld [vmem:[%s398 + $0x38] sm:$0xff]
        %v462 = vld [vmem:[%s398 + $0x40] sm:$0xff]
        %v463 = vld [vmem:[%s398 + $0x48] sm:$0xff]
        %v464 = vld [vmem:[%s398 + $0x50] sm:$0xff]
        %v465 = vld [vmem:[%s398 + $0x58] sm:$0xff]
        %v466 = vld [vmem:[%s398 + $0x60] sm:$0xff]
        %v467 = vld [vmem:[%s398 + $0x68] sm:$0xff]
        %v468 = vld [vmem:[%s398 + $0x70] sm:$0xff]
        %v469 = vld [vmem:[%s398 + $0x78] sm:$0xff]
        %v473 = vunpack.c.l.b16 %v445
        %v474 = vunpack.c.l.b16 %v446
        %v475 = vunpack.c.l.b16 %v447
        %v476 = vpack.c.b16 %v474, %v473
        %v477 = vpack.c.b16 %v475, %v475
        %v496 = vunpack.c.l.b16 %v454
        %v497 = vunpack.c.h.b16 %v454
        %v498 = vunpack.c.l.b16 %v455
        %v499 = vunpack.c.h.b16 %v455
        %v500 = vunpack.c.l.b16 %v456
        %v501 = vunpack.c.h.b16 %v456
        %v502 = vunpack.c.l.b16 %v457
        %v503 = vunpack.c.h.b16 %v457
        %v504 = vunpack.c.l.b16 %v458
        %v505 = vunpack.c.h.b16 %v458
        %v506 = vunpack.c.l.b16 %v459
        %v507 = vunpack.c.h.b16 %v459
        %v508 = vunpack.c.l.b16 %v460
        %v509 = vunpack.c.h.b16 %v460
        %v510 = vunpack.c.l.b16 %v461
        %v511 = vunpack.c.h.b16 %v461
        %v512 = vunpack.c.l.b16 %v462
        %v513 = vunpack.c.h.b16 %v462
        %v514 = vunpack.c.l.b16 %v463
        %v515 = vunpack.c.h.b16 %v463
        %v516 = vunpack.c.l.b16 %v464
        %v517 = vunpack.c.h.b16 %v464
        %v518 = vunpack.c.l.b16 %v465
        %v519 = vunpack.c.h.b16 %v465
        %v520 = vunpack.c.l.b16 %v466
        %v521 = vunpack.c.h.b16 %v466
        %v522 = vunpack.c.l.b16 %v467
        %v523 = vunpack.c.h.b16 %v467
        %v524 = vunpack.c.l.b16 %v468
        %v525 = vunpack.c.h.b16 %v468
        %v526 = vunpack.c.l.b16 %v469
        %v527 = vunpack.c.h.b16 %v469
        %v528 = vpack.c.b16 %v498, %v496
        %v529 = vpack.c.b16 %v499, %v497
        %v530 = vpack.c.b16 %v502, %v500
        %v531 = vpack.c.b16 %v503, %v501
        %v532 = vpack.c.b16 %v506, %v504
        %v533 = vpack.c.b16 %v507, %v505
        %v534 = vpack.c.b16 %v510, %v508
        %v535 = vpack.c.b16 %v511, %v509
        %v536 = vpack.c.b16 %v514, %v512
        %v537 = vpack.c.b16 %v515, %v513
        %v538 = vpack.c.b16 %v518, %v516
        %v539 = vpack.c.b16 %v519, %v517
        %v540 = vpack.c.b16 %v522, %v520
        %v541 = vpack.c.b16 %v523, %v521
        %v542 = vpack.c.b16 %v526, %v524
        %v543 = vpack.c.b16 %v527, %v525
        %560 = vmatpush.bf16.msra.mxu0 %v542
        %561 = vmatpush.bf16.msra.mxu0 %v540
        %562 = vmatpush.bf16.msra.mxu0 %v538
        %563 = vmatpush.bf16.msra.mxu0 %v536
        %564 = vmatpush.bf16.msra.mxu0 %v534
        %565 = vmatpush.bf16.msra.mxu0 %v532
        %566 = vmatpush.bf16.msra.mxu0 %v530
        %567 = vmatpush.bf16.msra.mxu0 %v528
        %568 = vmatmul.bf16.gmra.mxu0 %v476
        %v569 = vpop.f32.mrf.mxu0
        %v570 = vadd.f32 0.0, %v569
        %v571 = vpop.f32.mrf.mxu0
        %v572 = vadd.f32 0.0, %v571
        %573 = vmatmul.bf16.gmra.mxu0 %v477
        %v574 = vpop.f32.mrf.mxu0
        %v575 = vadd.f32 0.0, %v574
        %v576 = vpop.f32.mrf.mxu0
        %577 = vdwg.mxu0
        %578 = vmatpush.bf16.msra.mxu0 %v543
        %579 = vmatpush.bf16.msra.mxu0 %v541
        %580 = vmatpush.bf16.msra.mxu0 %v539
        %581 = vmatpush.bf16.msra.mxu0 %v537
        %582 = vmatpush.bf16.msra.mxu0 %v535
        %583 = vmatpush.bf16.msra.mxu0 %v533
        %584 = vmatpush.bf16.msra.mxu0 %v531
        %585 = vmatpush.bf16.msra.mxu0 %v529
        %586 = vmatmul.bf16.gmra.mxu0 %v476
        %v587 = vpop.f32.mrf.mxu0
        %v588 = vadd.f32 0.0, %v587
        %v589 = vpop.f32.mrf.mxu0
        %v590 = vadd.f32 0.0, %v589
        %591 = vmatmul.bf16.gmra.mxu0 %v477
        %v592 = vpop.f32.mrf.mxu0
        %v593 = vadd.f32 0.0, %v592
        %v594 = vpop.f32.mrf.mxu0
        %595 = vdwg.mxu0
        %v596 = vadd.f32 %v448, %v570
        %v597 = vadd.f32 %v449, %v588
        %v598 = vadd.f32 %v450, %v572
        %v599 = vadd.f32 %v451, %v590
        %v600 = vadd.f32 %v452, %v575
        %v601 = vadd.f32 %v453, %v593
        %602 = vst [vmem:[#allocation2] sm:$0xff] %v596
        %603 = vst [vmem:[#allocation2 + $0x8] sm:$0xff] %v597
        %604 = vst [vmem:[#allocation2 + $0x10] sm:$0xff] %v598
        %605 = vst [vmem:[#allocation2 + $0x18] sm:$0xff] %v599
        %606 = vst [vmem:[#allocation2 + $0x20] sm:$0xff] %v600
        %607 = vst [vmem:[#allocation2 + $0x28] sm:$0xff] %v601
        %p608 = scmp.eq.s32.totalorder %s23, 10
        // Predicated region
        $region86: #{_lambda_.28} parent=76 // pred_check
          %p609 = pneg %p608
        $region87: #{_lambda_.28} parent=76 // pred_check_branch
          %611 = sbr.rel (%p609) target = $region89
        $region88: #{_lambda_.28} parent=76 // pred_region
          %v612 = vld [vmem:[#allocation2] sm:$0xff]
          %v613 = vld [vmem:[#allocation2 + $0x8] sm:$0xff]
          %v614 = vld [vmem:[#allocation2 + $0x10] sm:$0xff]
          %v615 = vld [vmem:[#allocation2 + $0x18] sm:$0xff]
          %v616 = vld [vmem:[#allocation2 + $0x20] sm:$0xff]
          %v617 = vld [vmem:[#allocation2 + $0x28] sm:$0xff]
          %v618 = vld [vmem:[%s404] sm:$0x3]
          %v620 = vperm.slane %v618, 0
          %v621 = vperm.slane %v618, 1
          %v624 = vadd.f32 %v612, %v620
          %v625 = vadd.f32 %v613, %v621
          %v626 = vadd.f32 %v614, %v620
          %v627 = vadd.f32 %v615, %v621
          %v628 = vadd.f32 %v616, %v620
          %v629 = vadd.f32 %v617, %v621
          %v630 = vld [vmem:[%s409] sm:$0x3]
          %v632 = vperm.slane %v630, 0
          %v633 = vperm.slane %v630, 1
          %v636 = vmul.f32 %v624, %v632
          %v637 = vmul.f32 %v625, %v633
          %v638 = vmul.f32 %v626, %v632
          %v639 = vmul.f32 %v627, %v633
          %v640 = vmul.f32 %v628, %v632
          %v641 = vmul.f32 %v629, %v633
          %v642 = vld [vmem:[%s420] sm:$0xff]
          %v643 = vld [vmem:[%s420 + $0x8] sm:$0xff]
          %v644 = vld [vmem:[%s420 + $0x10] sm:$0xff]
          %v645 = vunpack.c.l.bf16 %v642
          %v646 = vunpack.c.h.bf16 %v642
          %v647 = vunpack.c.l.bf16 %v643
          %v648 = vunpack.c.h.bf16 %v643
          %v649 = vunpack.c.l.bf16 %v644
          %v650 = vunpack.c.h.bf16 %v644
          %v651 = vadd.f32 %v636, %v645
          %v652 = vadd.f32 %v637, %v646
          %v653 = vadd.f32 %v638, %v647
          %v654 = vadd.f32 %v639, %v648
          %v655 = vadd.f32 %v640, %v649
          %v656 = vadd.f32 %v641, %v650
          %v657 = vpack.c.bf16 %v652, %v651
          %v658 = vpack.c.bf16 %v654, %v653
          %v659 = vpack.c.bf16 %v656, %v655
          %660 = vst [vmem:[%s432] sm:$0xff] %v657
          %661 = vst [vmem:[%s432 + $0x8] sm:$0xff] %v658
          %662 = vst [vmem:[%s432 + $0x10] sm:$0xff] %v659
        $region89: #{_lambda_.28} parent=76 // pred_fallthru
          _
        %s663 = smul.u32 3, %s21
        %s664 = smul.u32 2, %s22
        %p665 = scmp.lt.s32.totalorder %s663, 2
        %s666 = scalar_select %p665, %s663, 2
        %p667 = scmp.lt.s32.totalorder %s664, 1
        %s668 = scalar_select %p667, %s664, 1
        %s669 = smul.addr %s666, 2
        %s670 = sadd.s32 %s668, %s669
        %s671 = smul.addr %s670, 4
        %s672 = scalar_lea.vmem %s5, %s671
        // Predicated region
        $region90: #{_lambda_.28} parent=76 // pred_check
          %p673 = pneg %p191
        $region91: #{_lambda_.28} parent=76 // pred_check_branch
          %675 = sbr.rel (%p673) target = $region93
        $region92: #{_lambda_.28} parent=76 // pred_region
          %s676 = smul.u32 3, %s21
          %s677 = smul.u32 2, %s22
        $region93: #{_lambda_.28} parent=76 // pred_fallthru
          _
        // Predicated region
        $region94: #{_lambda_.28} parent=76 // pred_check
          %p678 = pneg %p191
        $region95: #{_lambda_.28} parent=76 // pred_check_branch
          %680 = sbr.rel (%p678) target = $region97
        $region96: #{_lambda_.28} parent=76 // pred_region
          %s681 = smul.u32 3, %s21
          %s682 = smul.u32 2, %s22
          %p683 = scmp.lt.s32.totalorder %s681, 2
          %s684 = scalar_select %p683, %s681, 2
          %p685 = scmp.lt.s32.totalorder %s682, 1
          %s686 = scalar_select %p685, %s682, 1
          %s687 = smul.addr %s684, 2
          %s688 = sadd.s32 %s686, %s687
          %s689 = smul.addr %s688, 4
          %s690 = scalar_lea.vmem %s5, %s689
        $region97: #{_lambda_.28} parent=76 // pred_fallthru
          _
      $region77: #{_lambda_.28} parent=5 // pred_fallthru
        _
      %p691 = scmp.le.s32.totalorder 2, %s11
      // Predicated region
      $region98: #{_lambda_.28} parent=5 // pred_check
        %p692 = pneg %p691
      $region99: #{_lambda_.28} parent=5 // pred_check_branch
        %694 = sbr.rel (%p692) target = $region101
      $region100: #{_lambda_.28} parent=5 // pred_region
        %s695 = ssub.s32 %s11, 2
      $region101: #{_lambda_.28} parent=5 // pred_fallthru
        _
    $region6: #{_lambda_.28} parent=1 // loop_footer
      %s15 = sadd.s32 1, %s11
    $region7: #{_lambda_.28} parent=1 // loop_footer_branch
      %10 = sbr.rel target = $region3
    $region8: #{_lambda_.28} parent=1 // loop_exit
      _

// kernel: _lambda_.34
$region0: #{_lambda_.34}
  #allocation0 [shape = 'u32[]', space=smem, size = 0x4, offset = 0x4, fixed_abs, tag = 'smem constant byte address 0x4 - core index']
  #allocation1 [shape = 'u32[72,128]{1,0:T(1,128)}', space=vmem, size = 0x9000, scoped, tag = 'internal scratch']
  #allocation2 [shape = 'bf16[8,256]{1,0:T(8,128)(2,1)}', space=vmem, size = 0x1000, scoped, tag = 'scratch operand']
  %s0 = inlined_call_operand.vmem [shape: bf16[8,256], index: 0, kind: input, shape index: {}]
  %s1 = inlined_call_operand.vmem [shape: bf16[256,128], index: 1, kind: input, shape index: {}]
  %s2 = inlined_call_operand.vmem [shape: f32[1,128], index: 2, kind: input, shape index: {}]
  %s3 = inlined_call_operand.vmem [shape: f32[1,256], index: 3, kind: input, shape index: {}]
  %s4 = inlined_call_operand.vmem [shape: f32[1,256], index: 4, kind: input, shape index: {}]
  %s5 = inlined_call_operand.vmem [shape: f32[8,128], index: 5, kind: output, shape index: {}]
  %s6 = sld [smem:[#allocation0]]
  $region34: #{_lambda_.34} parent=0
    _
  %s8 = ssub.s32 1, %s6
  %s9 = scalar_select 0, %s8, %s6
  // Predicated region
  $region2: #{_lambda_.34} parent=0 // pred_check
    _
  $region3: #{_lambda_.34} parent=0 // pred_check_branch
    %11 = sbr.rel (0) target = $region5
  $region4: #{_lambda_.34} parent=0 // pred_region
    _
  $region5: #{_lambda_.34} parent=0 // pred_fallthru
    _
  // Predicated region
  $region6: #{_lambda_.34} parent=0 // pred_check
    _
  $region7: #{_lambda_.34} parent=0 // pred_check_branch
    %13 = sbr.rel (0) target = $region9
  $region8: #{_lambda_.34} parent=0 // pred_region
    _
  $region9: #{_lambda_.34} parent=0 // pred_fallthru
    _
  // Predicated region
  $region10: #{_lambda_.34} parent=0 // pred_check
    _
  $region11: #{_lambda_.34} parent=0 // pred_check_branch
    %15 = sbr.rel (0) target = $region13
  $region12: #{_lambda_.34} parent=0 // pred_region
    _
  $region13: #{_lambda_.34} parent=0 // pred_fallthru
    _
  // Predicated region
  $region14: #{_lambda_.34} parent=0 // pred_check
    _
  $region15: #{_lambda_.34} parent=0 // pred_check_branch
    %17 = sbr.rel (0) target = $region17
  $region16: #{_lambda_.34} parent=0 // pred_region
    _
  $region17: #{_lambda_.34} parent=0 // pred_fallthru
    _
  // Predicated region
  $region18: #{_lambda_.34} parent=0 // pred_check
    _
  $region19: #{_lambda_.34} parent=0 // pred_check_branch
    %19 = sbr.rel (0) target = $region21
  $region20: #{_lambda_.34} parent=0 // pred_region
    _
  $region21: #{_lambda_.34} parent=0 // pred_fallthru
    _
  %p20 = scmp.eq.s32.totalorder 0, 0
  // Predicated region
  $region22: #{_lambda_.34} parent=0 // pred_check
    %p21 = pneg %p20
  $region23: #{_lambda_.34} parent=0 // pred_check_branch
    %23 = sbr.rel (%p21) target = $region25
  $region24: #{_lambda_.34} parent=0 // pred_region
    %v24 = vld [vmem:[%s0] sm:$0xff]
    %v25 = vunpack.c.l.bf16 %v24
    %v26 = vunpack.c.h.bf16 %v24
    %v27 = vld [vmem:[%s3] sm:$0x3]
    %v28 = vld [vmem:[%s4] sm:$0x3]
    %v29 = vadd.f32 %v25, %v26
    %30 = vadd.xlane.f32.xlu0 %v29
    %v31 = vpop.xlane.xlu0 %30
    %v32 = vrcp.pop 256.0
    %v33 = vmul.f32 256.0, %v32
    %v34 = vsub.f32 1.0, %v33
    %v35 = vmul.f32 %v32, %v34
    %v36 = vadd.f32 %v32, %v35
    %vm37 = vweird.f32 %v32
    %v38 = vsel %vm37, %v32, %v36
    %v39 = vmul.f32 %v31, %v38
    %v40 = vsub.f32 %v25, %v39
    %v41 = vsub.f32 %v26, %v39
    %v42 = vmul.f32 %v40, %v40
    %v43 = vmul.f32 %v41, %v41
    %v44 = vadd.f32 %v42, %v43
    %45 = vadd.xlane.f32.xlu0 %v44
    %v46 = vpop.xlane.xlu0 %45
    %v47 = vmul.f32 %v46, %v38
    %v48 = vadd.f32 %v47, 1e-06
    %v49 = vrsqrt.pop %v48
    %v50 = vmul.f32 %v49, %v48
    %v51 = vmul.f32 %v50, %v49
    %v52 = vmul.f32 0.5, %v51
    %v53 = vsub.f32 1.5, %v52
    %v54 = vmul.f32 %v49, %v53
    %vm55 = vweird.f32 %v48
    %vm56 = vweird.f32 %v49
    %vm57 = vmor %vm55, %vm56
    %v58 = vsel %vm57, %v49, %v54
    %v59 = vmul.f32 %v40, %v58
    %v60 = vmul.f32 %v41, %v58
    %v62 = vperm.slane %v27, 0
    %v63 = vperm.slane %v27, 1
    %v66 = vmul.f32 %v59, %v62
    %v67 = vmul.f32 %v60, %v63
    %v69 = vperm.slane %v28, 0
    %v70 = vperm.slane %v28, 1
    %v73 = vadd.f32 %v66, %v69
    %v74 = vadd.f32 %v67, %v70
    %v75 = vpack.c.bf16 %v74, %v73
    %76 = vst [vmem:[#allocation2] sm:$0xff] %v75
  $region25: #{_lambda_.34} parent=0 // pred_fallthru
    _
  %v77 = vld [vmem:[#allocation2] sm:$0xff]
  %v78 = vld [vmem:[%s1] sm:$0xf]
  %v79 = vld [vmem:[%s1 + $0x4] sm:$0xf]
  %v80 = vld [vmem:[%s1 + $0x8] sm:$0xf]
  %v81 = vld [vmem:[%s1 + $0xc] sm:$0xf]
  %v82 = vld [vmem:[%s1 + $0x10] sm:$0xf]
  %v83 = vld [vmem:[%s1 + $0x14] sm:$0xf]
  %v84 = vld [vmem:[%s1 + $0x18] sm:$0xf]
  %v85 = vld [vmem:[%s1 + $0x1c] sm:$0xf]
  %v86 = vld [vmem:[%s1 + $0x20] sm:$0xf]
  %v87 = vld [vmem:[%s1 + $0x24] sm:$0xf]
  %v88 = vld [vmem:[%s1 + $0x28] sm:$0xf]
  %v89 = vld [vmem:[%s1 + $0x2c] sm:$0xf]
  %v90 = vld [vmem:[%s1 + $0x30] sm:$0xf]
  %v91 = vld [vmem:[%s1 + $0x34] sm:$0xf]
  %v92 = vld [vmem:[%s1 + $0x38] sm:$0xf]
  %v93 = vld [vmem:[%s1 + $0x3c] sm:$0xf]
  %v94 = vld [vmem:[%s1 + $0x40] sm:$0xf]
  %v95 = vld [vmem:[%s1 + $0x44] sm:$0xf]
  %v96 = vld [vmem:[%s1 + $0x48] sm:$0xf]
  %v97 = vld [vmem:[%s1 + $0x4c] sm:$0xf]
  %v98 = vld [vmem:[%s1 + $0x50] sm:$0xf]
  %v99 = vld [vmem:[%s1 + $0x54] sm:$0xf]
  %v100 = vld [vmem:[%s1 + $0x58] sm:$0xf]
  %v101 = vld [vmem:[%s1 + $0x5c] sm:$0xf]
  %v102 = vld [vmem:[%s1 + $0x60] sm:$0xf]
  %v103 = vld [vmem:[%s1 + $0x64] sm:$0xf]
  %v104 = vld [vmem:[%s1 + $0x68] sm:$0xf]
  %v105 = vld [vmem:[%s1 + $0x6c] sm:$0xf]
  %v106 = vld [vmem:[%s1 + $0x70] sm:$0xf]
  %v107 = vld [vmem:[%s1 + $0x74] sm:$0xf]
  %v108 = vld [vmem:[%s1 + $0x78] sm:$0xf]
  %v109 = vld [vmem:[%s1 + $0x7c] sm:$0xf]
  %v110 = vld [vmem:[%s2] sm:$0x1]
  %v112 = vperm.slane %v110, 0
  %v115 = vunpack.c.l.b16 %v77
  %v116 = vunpack.c.h.b16 %v77
  %v117 = vpack.c.b16 %v115, %v115
  %v118 = vpack.c.b16 %v116, %v116
  %v153 = vunpack.c.l.b16 %v78
  %v154 = vunpack.c.l.b16 %v79
  %v155 = vunpack.c.l.b16 %v80
  %v156 = vunpack.c.l.b16 %v81
  %v157 = vunpack.c.l.b16 %v82
  %v158 = vunpack.c.l.b16 %v83
  %v159 = vunpack.c.l.b16 %v84
  %v160 = vunpack.c.l.b16 %v85
  %v161 = vunpack.c.l.b16 %v86
  %v162 = vunpack.c.l.b16 %v87
  %v163 = vunpack.c.l.b16 %v88
  %v164 = vunpack.c.l.b16 %v89
  %v165 = vunpack.c.l.b16 %v90
  %v166 = vunpack.c.l.b16 %v91
  %v167 = vunpack.c.l.b16 %v92
  %v168 = vunpack.c.l.b16 %v93
  %v169 = vunpack.c.l.b16 %v94
  %v170 = vunpack.c.l.b16 %v95
  %v171 = vunpack.c.l.b16 %v96
  %v172 = vunpack.c.l.b16 %v97
  %v173 = vunpack.c.l.b16 %v98
  %v174 = vunpack.c.l.b16 %v99
  %v175 = vunpack.c.l.b16 %v100
  %v176 = vunpack.c.l.b16 %v101
  %v177 = vunpack.c.l.b16 %v102
  %v178 = vunpack.c.l.b16 %v103
  %v179 = vunpack.c.l.b16 %v104
  %v180 = vunpack.c.l.b16 %v105
  %v181 = vunpack.c.l.b16 %v106
  %v182 = vunpack.c.l.b16 %v107
  %v183 = vunpack.c.l.b16 %v108
  %v184 = vunpack.c.l.b16 %v109
  %v185 = vpack.c.b16 %v154, %v153
  %v186 = vpack.c.b16 %v156, %v155
  %v187 = vpack.c.b16 %v158, %v157
  %v188 = vpack.c.b16 %v160, %v159
  %v189 = vpack.c.b16 %v162, %v161
  %v190 = vpack.c.b16 %v164, %v163
  %v191 = vpack.c.b16 %v166, %v165
  %v192 = vpack.c.b16 %v168, %v167
  %v193 = vpack.c.b16 %v170, %v169
  %v194 = vpack.c.b16 %v172, %v171
  %v195 = vpack.c.b16 %v174, %v173
  %v196 = vpack.c.b16 %v176, %v175
  %v197 = vpack.c.b16 %v178, %v177
  %v198 = vpack.c.b16 %v180, %v179
  %v199 = vpack.c.b16 %v182, %v181
  %v200 = vpack.c.b16 %v184, %v183
  %217 = vmatpush.bf16.msra.mxu0 %v192
  %218 = vmatpush.bf16.msra.mxu0 %v191
  %219 = vmatpush.bf16.msra.mxu0 %v190
  %220 = vmatpush.bf16.msra.mxu0 %v189
  %221 = vmatpush.bf16.msra.mxu0 %v188
  %222 = vmatpush.bf16.msra.mxu0 %v187
  %223 = vmatpush.bf16.msra.mxu0 %v186
  %224 = vmatpush.bf16.msra.mxu0 %v185
  %225 = vmatmul.bf16.gmra.mxu0 %v117
  %v226 = vpop.f32.mrf.mxu0
  %v227 = vadd.f32 %v112, %v226
  %v228 = vpop.f32.mrf.mxu0
  %229 = vdwg.mxu0
  %230 = vmatpush.bf16.msra.mxu0 %v200
  %231 = vmatpush.bf16.msra.mxu0 %v199
  %232 = vmatpush.bf16.msra.mxu0 %v198
  %233 = vmatpush.bf16.msra.mxu0 %v197
  %234 = vmatpush.bf16.msra.mxu0 %v196
  %235 = vmatpush.bf16.msra.mxu0 %v195
  %236 = vmatpush.bf16.msra.mxu0 %v194
  %237 = vmatpush.bf16.msra.mxu0 %v193
  %238 = vmatmul.bf16.gmra.mxu0 %v118
  %v239 = vpop.f32.mrf.mxu0
  %v240 = vadd.f32 %v227, %v239
  %v241 = vpop.f32.mrf.mxu0
  %242 = vdwg.mxu0
  %243 = vst [vmem:[%s5] sm:$0xff] %v240
  // Predicated region
  $region26: #{_lambda_.34} parent=0 // pred_check
    _
  $region27: #{_lambda_.34} parent=0 // pred_check_branch
    %245 = sbr.rel (0) target = $region29
  $region28: #{_lambda_.34} parent=0 // pred_region
    _
  $region29: #{_lambda_.34} parent=0 // pred_fallthru
    _
  // Predicated region
  $region30: #{_lambda_.34} parent=0 // pred_check
    _
  $region31: #{_lambda_.34} parent=0 // pred_check_branch
    %247 = sbr.rel (0) target = $region33
  $region32: #{_lambda_.34} parent=0 // pred_region
    _
  $region33: #{_lambda_.34} parent=0 // pred_fallthru
    _

// kernel: _lambda_.36
$region0: #{_lambda_.36}
  #allocation0 [shape = 'u32[]', space=smem, size = 0x4, offset = 0x4, fixed_abs, tag = 'smem constant byte address 0x4 - core index']
  #allocation1 [shape = 'u32[72,128]{1,0:T(1,128)}', space=vmem, size = 0x9000, scoped, tag = 'internal scratch']
  %s0 = inlined_call_operand.vmem [shape: bf16[1,5,384], index: 0, kind: input, shape index: {}]
  %s1 = inlined_call_operand.vmem [shape: bf16[1,5,128], index: 1, kind: output, shape index: {}]
  %s2 = sld [smem:[#allocation0]]
  $region14: #{_lambda_.36} parent=0
    _
  %s4 = ssub.s32 1, %s2
  %s5 = scalar_select 0, %s4, %s2
  // Predicated region
  $region2: #{_lambda_.36} parent=0 // pred_check
    _
  $region3: #{_lambda_.36} parent=0 // pred_check_branch
    %7 = sbr.rel (0) target = $region5
  $region4: #{_lambda_.36} parent=0 // pred_region
    _
  $region5: #{_lambda_.36} parent=0 // pred_fallthru
    _
  %v9 = vld [vmem:[%s0] sm:$0x77]
  %v10 = vld [vmem:[%s0 + $0x8] sm:$0x7]
  %v11 = vunpack.c.l.bf16 %v9
  %v12 = vmul.f32 %v11, 0.125
  %v13 = vpack.c.bf16 %v12, %v12
  %v15 = vunpack.c.h.b16 %v9
  %v16 = vpack.c.b16 %v15, %v15
  %vm17 = vcmask 523264
  %v19 = vsel %vm17, %v13, 0
  %v22 = vsel %vm17, %v16, 0
  %24 = vmatpush.bf16.xpose.msra.mxu0 0
  %25 = vmatpush.bf16.xpose.msra.mxu0 0
  %26 = vmatpush.bf16.xpose.msra.mxu0 0
  %27 = vmatpush.bf16.xpose.msra.mxu0 0
  %28 = vmatpush.bf16.xpose.msra.mxu0 0
  %29 = vmatpush.bf16.xpose.msra.mxu0 0
  %30 = vmatpush.bf16.xpose.msra.mxu0 0
  %31 = vmatpush.bf16.xpose.msra.mxu0 %v22
  %32 = vmatmul.bf16.gmra.mxu0 %v19
  %v33 = vpop.f32.mrf.mxu0
  %v34 = vadd.f32 0.0, %v33
  %v35 = vpop.f32.mrf.mxu0
  %36 = vdwg.mxu0
  %vm37 = vcmask 36864
  %v38 = vsel %vm37, %v34, -inf
  %39 = vmax.xlane.f32.xlu0 %v38
  %v40 = vpop.xlane.xlu0 %39
  %v41 = vsub.f32 %v34, %v40
  %v42 = vmul.f32 %v41, 1.442695
  %v43 = vpow.pop %v42
  %v44 = vsel %vm37, %v43, 0.0
  %45 = vadd.xlane.f32.xlu0 %v44
  %v46 = vpop.xlane.xlu0 %45
  %v47 = vpack.c.bf16 %v43, %v43
  %vm48 = vcmask 39936
  %v50 = vsel %vm48, %v47, 0
  %vm52 = vcmask 1041408
  %vm53 = vcmask 1042432
  %v54 = vsel %vm52, 4294967295, 65535
  %v55 = vsel %vm53, %v54, 0
  %v57 = vand.u32 %v10, %v55
  %59 = vmatpush.bf16.msra.mxu0 0
  %60 = vmatpush.bf16.msra.mxu0 0
  %61 = vmatpush.bf16.msra.mxu0 0
  %62 = vmatpush.bf16.msra.mxu0 0
  %63 = vmatpush.bf16.msra.mxu0 0
  %64 = vmatpush.bf16.msra.mxu0 0
  %65 = vmatpush.bf16.msra.mxu0 0
  %66 = vmatpush.bf16.msra.mxu0 %v57
  %67 = vmatmul.bf16.gmra.mxu0 %v50
  %v68 = vpop.f32.mrf.mxu0
  %v69 = vadd.f32 0.0, %v68
  %v70 = vpop.f32.mrf.mxu0
  %71 = vdwg.mxu0
  %v72 = vrcp.pop %v46
  %v73 = vmul.f32 %v69, %v72
  %75 = vrot.lane.b32.xlu0 %v13, 64
  %v76 = vpop.permute.xlu0 %75
  %77 = vrot.lane.b32.xlu0 %v16, 64
  %v78 = vpop.permute.xlu0 %77
  %v80 = vsel %vm17, %v76, 0
  %v83 = vsel %vm17, %v78, 0
  %85 = vmatpush.bf16.xpose.msra.mxu0 0
  %86 = vmatpush.bf16.xpose.msra.mxu0 0
  %87 = vmatpush.bf16.xpose.msra.mxu0 0
  %88 = vmatpush.bf16.xpose.msra.mxu0 0
  %89 = vmatpush.bf16.xpose.msra.mxu0 0
  %90 = vmatpush.bf16.xpose.msra.mxu0 0
  %91 = vmatpush.bf16.xpose.msra.mxu0 0
  %92 = vmatpush.bf16.xpose.msra.mxu0 %v83
  %93 = vmatmul.bf16.gmra.mxu0 %v80
  %v94 = vpop.f32.mrf.mxu0
  %v95 = vadd.f32 0.0, %v94
  %v96 = vpop.f32.mrf.mxu0
  %97 = vdwg.mxu0
  %v98 = vsel %vm37, %v95, -inf
  %99 = vmax.xlane.f32.xlu0 %v98
  %v100 = vpop.xlane.xlu0 %99
  %v101 = vsub.f32 %v95, %v100
  %v102 = vmul.f32 %v101, 1.442695
  %v103 = vpow.pop %v102
  %v104 = vsel %vm37, %v103, 0.0
  %105 = vadd.xlane.f32.xlu0 %v104
  %v106 = vpop.xlane.xlu0 %105
  %v107 = vpack.c.bf16 %v103, %v103
  %v109 = vunpack.c.l.b16 %v10
  %v110 = vpack.c.b16 %v109, %v109
  %111 = vrot.lane.b32.xlu0 %v110, 64
  %v112 = vpop.permute.xlu0 %111
  %v114 = vsel %vm48, %v107, 0
  %v117 = vand.u32 %v112, %v55
  %119 = vmatpush.bf16.msra.mxu0 0
  %120 = vmatpush.bf16.msra.mxu0 0
  %121 = vmatpush.bf16.msra.mxu0 0
  %122 = vmatpush.bf16.msra.mxu0 0
  %123 = vmatpush.bf16.msra.mxu0 0
  %124 = vmatpush.bf16.msra.mxu0 0
  %125 = vmatpush.bf16.msra.mxu0 0
  %126 = vmatpush.bf16.msra.mxu0 %v117
  %127 = vmatmul.bf16.gmra.mxu0 %v114
  %v128 = vpop.f32.mrf.mxu0
  %v129 = vadd.f32 0.0, %v128
  %v130 = vpop.f32.mrf.mxu0
  %131 = vdwg.mxu0
  %v132 = vrcp.pop %v106
  %v133 = vmul.f32 %v129, %v132
  %135 = vrot.lane.b32.xlu0 %v133, 64
  %v136 = vpop.permute.xlu0 %135
  %v138 = vsel %vm17, %v73, %v136
  %v139 = vpack.c.bf16 %v138, %v138
  %vm140 = vcmask 1042432
  %vm141 = vsmask.f32 2304
  %vm142 = vmand %vm140, %vm141
  %v143 = vld [vmem:[%s1] sm:$0x7]
  %v144 = vsel %vm142, %v139, %v143
  %145 = vst [vmem:[%s1] sm:$0x7] %v144
  // Predicated region
  $region6: #{_lambda_.36} parent=0 // pred_check
    _
  $region7: #{_lambda_.36} parent=0 // pred_check_branch
    %147 = sbr.rel (0) target = $region9
  $region8: #{_lambda_.36} parent=0 // pred_region
    _
  $region9: #{_lambda_.36} parent=0 // pred_fallthru
    _
  // Predicated region
  $region10: #{_lambda_.36} parent=0 // pred_check
    _
  $region11: #{_lambda_.36} parent=0 // pred_check_branch
    %149 = sbr.rel (0) target = $region13
  $region12: #{_lambda_.36} parent=0 // pred_region
    _
  $region13: #{_lambda_.36} parent=0 // pred_fallthru
    _

// kernel: _lambda_.37
$region0: #{_lambda_.37}
  #allocation0 [shape = 'u32[]', space=smem, size = 0x4, offset = 0x4, fixed_abs, tag = 'smem constant byte address 0x4 - core index']
  #allocation1 [shape = 'u32[72,128]{1,0:T(1,128)}', space=vmem, size = 0x9000, scoped, tag = 'internal scratch']
  %s0 = inlined_call_operand.vmem [shape: bf16[8,128], index: 0, kind: input, shape index: {}]
  %s1 = inlined_call_operand.vmem [shape: bf16[128,128], index: 1, kind: input, shape index: {}]
  %s2 = inlined_call_operand.vmem [shape: f32[1,128], index: 2, kind: input, shape index: {}]
  %s3 = inlined_call_operand.vmem [shape: f32[1,128], index: 3, kind: input, shape index: {}]
  %s4 = inlined_call_operand.vmem [shape: bf16[8,128], index: 4, kind: input, shape index: {}]
  %s5 = inlined_call_operand.vmem [shape: bf16[8,128], index: 5, kind: output, shape index: {}]
  %s6 = sld [smem:[#allocation0]]
  $region30: #{_lambda_.37} parent=0
    _
  %s8 = ssub.s32 1, %s6
  %s9 = scalar_select 0, %s8, %s6
  // Predicated region
  $region2: #{_lambda_.37} parent=0 // pred_check
    _
  $region3: #{_lambda_.37} parent=0 // pred_check_branch
    %11 = sbr.rel (0) target = $region5
  $region4: #{_lambda_.37} parent=0 // pred_region
    _
  $region5: #{_lambda_.37} parent=0 // pred_fallthru
    _
  // Predicated region
  $region6: #{_lambda_.37} parent=0 // pred_check
    _
  $region7: #{_lambda_.37} parent=0 // pred_check_branch
    %13 = sbr.rel (0) target = $region9
  $region8: #{_lambda_.37} parent=0 // pred_region
    _
  $region9: #{_lambda_.37} parent=0 // pred_fallthru
    _
  // Predicated region
  $region10: #{_lambda_.37} parent=0 // pred_check
    _
  $region11: #{_lambda_.37} parent=0 // pred_check_branch
    %15 = sbr.rel (0) target = $region13
  $region12: #{_lambda_.37} parent=0 // pred_region
    _
  $region13: #{_lambda_.37} parent=0 // pred_fallthru
    _
  // Predicated region
  $region14: #{_lambda_.37} parent=0 // pred_check
    _
  $region15: #{_lambda_.37} parent=0 // pred_check_branch
    %17 = sbr.rel (0) target = $region17
  $region16: #{_lambda_.37} parent=0 // pred_region
    _
  $region17: #{_lambda_.37} parent=0 // pred_fallthru
    _
  // Predicated region
  $region18: #{_lambda_.37} parent=0 // pred_check
    _
  $region19: #{_lambda_.37} parent=0 // pred_check_branch
    %19 = sbr.rel (0) target = $region21
  $region20: #{_lambda_.37} parent=0 // pred_region
    _
  $region21: #{_lambda_.37} parent=0 // pred_fallthru
    _
  %v20 = vld [vmem:[%s0] sm:$0xf]
  %v21 = vld [vmem:[%s1] sm:$0xf]
  %v22 = vld [vmem:[%s1 + $0x4] sm:$0xf]
  %v23 = vld [vmem:[%s1 + $0x8] sm:$0xf]
  %v24 = vld [vmem:[%s1 + $0xc] sm:$0xf]
  %v25 = vld [vmem:[%s1 + $0x10] sm:$0xf]
  %v26 = vld [vmem:[%s1 + $0x14] sm:$0xf]
  %v27 = vld [vmem:[%s1 + $0x18] sm:$0xf]
  %v28 = vld [vmem:[%s1 + $0x1c] sm:$0xf]
  %v29 = vld [vmem:[%s1 + $0x20] sm:$0xf]
  %v30 = vld [vmem:[%s1 + $0x24] sm:$0xf]
  %v31 = vld [vmem:[%s1 + $0x28] sm:$0xf]
  %v32 = vld [vmem:[%s1 + $0x2c] sm:$0xf]
  %v33 = vld [vmem:[%s1 + $0x30] sm:$0xf]
  %v34 = vld [vmem:[%s1 + $0x34] sm:$0xf]
  %v35 = vld [vmem:[%s1 + $0x38] sm:$0xf]
  %v36 = vld [vmem:[%s1 + $0x3c] sm:$0xf]
  %v37 = vld [vmem:[%s2] sm:$0x1]
  %v39 = vperm.slane %v37, 0
  %v57 = vunpack.c.l.b16 %v21
  %v58 = vunpack.c.l.b16 %v22
  %v59 = vunpack.c.l.b16 %v23
  %v60 = vunpack.c.l.b16 %v24
  %v61 = vunpack.c.l.b16 %v25
  %v62 = vunpack.c.l.b16 %v26
  %v63 = vunpack.c.l.b16 %v27
  %v64 = vunpack.c.l.b16 %v28
  %v65 = vunpack.c.l.b16 %v29
  %v66 = vunpack.c.l.b16 %v30
  %v67 = vunpack.c.l.b16 %v31
  %v68 = vunpack.c.l.b16 %v32
  %v69 = vunpack.c.l.b16 %v33
  %v70 = vunpack.c.l.b16 %v34
  %v71 = vunpack.c.l.b16 %v35
  %v72 = vunpack.c.l.b16 %v36
  %v73 = vpack.c.b16 %v58, %v57
  %v74 = vpack.c.b16 %v60, %v59
  %v75 = vpack.c.b16 %v62, %v61
  %v76 = vpack.c.b16 %v64, %v63
  %v77 = vpack.c.b16 %v66, %v65
  %v78 = vpack.c.b16 %v68, %v67
  %v79 = vpack.c.b16 %v70, %v69
  %v80 = vpack.c.b16 %v72, %v71
  %89 = vmatpush.bf16.msra.mxu0 %v80
  %90 = vmatpush.bf16.msra.mxu0 %v79
  %91 = vmatpush.bf16.msra.mxu0 %v78
  %92 = vmatpush.bf16.msra.mxu0 %v77
  %93 = vmatpush.bf16.msra.mxu0 %v76
  %94 = vmatpush.bf16.msra.mxu0 %v75
  %95 = vmatpush.bf16.msra.mxu0 %v74
  %96 = vmatpush.bf16.msra.mxu0 %v73
  %97 = vmatmul.bf16.gmra.mxu0 %v20
  %v98 = vpop.f32.mrf.mxu0
  %v99 = vadd.f32 %v39, %v98
  %v100 = vpop.f32.mrf.mxu0
  %101 = vdwg.mxu0
  %v102 = vld [vmem:[%s3] sm:$0x1]
  %v104 = vperm.slane %v102, 0
  %v106 = vmul.f32 %v99, %v104
  %v107 = vld [vmem:[%s4] sm:$0xf]
  %v108 = vunpack.c.l.bf16 %v107
  %v109 = vadd.f32 %v106, %v108
  %v110 = vpack.c.bf16 %v109, %v109
  %111 = vst [vmem:[%s5] sm:$0xf] %v110
  // Predicated region
  $region22: #{_lambda_.37} parent=0 // pred_check
    _
  $region23: #{_lambda_.37} parent=0 // pred_check_branch
    %113 = sbr.rel (0) target = $region25
  $region24: #{_lambda_.37} parent=0 // pred_region
    _
  $region25: #{_lambda_.37} parent=0 // pred_fallthru
    _
  // Predicated region
  $region26: #{_lambda_.37} parent=0 // pred_check
    _
  $region27: #{_lambda_.37} parent=0 // pred_check_branch
    %115 = sbr.rel (0) target = $region29
  $region28: #{_lambda_.37} parent=0 // pred_region
    _
  $region29: #{_lambda_.37} parent=0 // pred_fallthru
    _

// kernel: _lambda_.35
$region0: #{_lambda_.35}
  #allocation0 [shape = 'u32[]', space=smem, size = 0x4, offset = 0x4, fixed_abs, tag = 'smem constant byte address 0x4 - core index']
  #allocation1 [shape = 'u32[72,128]{1,0:T(1,128)}', space=vmem, size = 0x9000, scoped, tag = 'internal scratch']
  #allocation2 [shape = 'bf16[8,128]{1,0:T(8,128)(2,1)}', space=vmem, size = 0x800, scoped, tag = 'scratch operand']
  %s0 = inlined_call_operand.vmem [shape: bf16[8,128], index: 0, kind: input, shape index: {}]
  %s1 = inlined_call_operand.vmem [shape: bf16[128,384], index: 1, kind: input, shape index: {}]
  %s2 = inlined_call_operand.vmem [shape: f32[1,384], index: 2, kind: input, shape index: {}]
  %s3 = inlined_call_operand.vmem [shape: f32[1,128], index: 3, kind: input, shape index: {}]
  %s4 = inlined_call_operand.vmem [shape: f32[1,128], index: 4, kind: input, shape index: {}]
  %s5 = inlined_call_operand.vmem [shape: bf16[8,384], index: 5, kind: output, shape index: {}]
  %s6 = sld [smem:[#allocation0]]
  $region34: #{_lambda_.35} parent=0
    _
  %s8 = ssub.s32 1, %s6
  %s9 = scalar_select 0, %s8, %s6
  // Predicated region
  $region2: #{_lambda_.35} parent=0 // pred_check
    _
  $region3: #{_lambda_.35} parent=0 // pred_check_branch
    %11 = sbr.rel (0) target = $region5
  $region4: #{_lambda_.35} parent=0 // pred_region
    _
  $region5: #{_lambda_.35} parent=0 // pred_fallthru
    _
  // Predicated region
  $region6: #{_lambda_.35} parent=0 // pred_check
    _
  $region7: #{_lambda_.35} parent=0 // pred_check_branch
    %13 = sbr.rel (0) target = $region9
  $region8: #{_lambda_.35} parent=0 // pred_region
    _
  $region9: #{_lambda_.35} parent=0 // pred_fallthru
    _
  // Predicated region
  $region10: #{_lambda_.35} parent=0 // pred_check
    _
  $region11: #{_lambda_.35} parent=0 // pred_check_branch
    %15 = sbr.rel (0) target = $region13
  $region12: #{_lambda_.35} parent=0 // pred_region
    _
  $region13: #{_lambda_.35} parent=0 // pred_fallthru
    _
  // Predicated region
  $region14: #{_lambda_.35} parent=0 // pred_check
    _
  $region15: #{_lambda_.35} parent=0 // pred_check_branch
    %17 = sbr.rel (0) target = $region17
  $region16: #{_lambda_.35} parent=0 // pred_region
    _
  $region17: #{_lambda_.35} parent=0 // pred_fallthru
    _
  // Predicated region
  $region18: #{_lambda_.35} parent=0 // pred_check
    _
  $region19: #{_lambda_.35} parent=0 // pred_check_branch
    %19 = sbr.rel (0) target = $region21
  $region20: #{_lambda_.35} parent=0 // pred_region
    _
  $region21: #{_lambda_.35} parent=0 // pred_fallthru
    _
  %p20 = scmp.eq.s32.totalorder 0, 0
  // Predicated region
  $region22: #{_lambda_.35} parent=0 // pred_check
    %p21 = pneg %p20
  $region23: #{_lambda_.35} parent=0 // pred_check_branch
    %23 = sbr.rel (%p21) target = $region25
  $region24: #{_lambda_.35} parent=0 // pred_region
    %v24 = vld [vmem:[%s0] sm:$0xf]
    %v25 = vunpack.c.l.bf16 %v24
    %v26 = vld [vmem:[%s3] sm:$0x1]
    %v27 = vld [vmem:[%s4] sm:$0x1]
    %28 = vadd.xlane.f32.xlu0 %v25
    %v29 = vpop.xlane.xlu0 %28
    %v30 = vrcp.pop 128.0
    %v31 = vmul.f32 128.0, %v30
    %v32 = vsub.f32 1.0, %v31
    %v33 = vmul.f32 %v30, %v32
    %v34 = vadd.f32 %v30, %v33
    %vm35 = vweird.f32 %v30
    %v36 = vsel %vm35, %v30, %v34
    %v37 = vmul.f32 %v29, %v36
    %v38 = vsub.f32 %v25, %v37
    %v39 = vmul.f32 %v38, %v38
    %40 = vadd.xlane.f32.xlu0 %v39
    %v41 = vpop.xlane.xlu0 %40
    %v42 = vmul.f32 %v41, %v36
    %v43 = vadd.f32 %v42, 1e-05
    %v44 = vrsqrt.pop %v43
    %v45 = vmul.f32 %v44, %v43
    %v46 = vmul.f32 %v45, %v44
    %v47 = vmul.f32 0.5, %v46
    %v48 = vsub.f32 1.5, %v47
    %v49 = vmul.f32 %v44, %v48
    %vm50 = vweird.f32 %v43
    %vm51 = vweird.f32 %v44
    %vm52 = vmor %vm50, %vm51
    %v53 = vsel %vm52, %v44, %v49
    %v54 = vmul.f32 %v38, %v53
    %v56 = vperm.slane %v26, 0
    %v58 = vmul.f32 %v54, %v56
    %v60 = vperm.slane %v27, 0
    %v62 = vadd.f32 %v58, %v60
    %v63 = vpack.c.bf16 %v62, %v62
    %64 = vst [vmem:[#allocation2] sm:$0xf] %v63
  $region25: #{_lambda_.35} parent=0 // pred_fallthru
    _
  %v65 = vld [vmem:[#allocation2] sm:$0xf]
  %v66 = vld [vmem:[%s1] sm:$0xff]
  %v67 = vld [vmem:[%s1 + $0x8] sm:$0xf]
  %v68 = vld [vmem:[%s1 + $0xc] sm:$0xff]
  %v69 = vld [vmem:[%s1 + $0x14] sm:$0xf]
  %v70 = vld [vmem:[%s1 + $0x18] sm:$0xff]
  %v71 = vld [vmem:[%s1 + $0x20] sm:$0xf]
  %v72 = vld [vmem:[%s1 + $0x24] sm:$0xff]
  %v73 = vld [vmem:[%s1 + $0x2c] sm:$0xf]
  %v74 = vld [vmem:[%s1 + $0x30] sm:$0xff]
  %v75 = vld [vmem:[%s1 + $0x38] sm:$0xf]
  %v76 = vld [vmem:[%s1 + $0x3c] sm:$0xff]
  %v77 = vld [vmem:[%s1 + $0x44] sm:$0xf]
  %v78 = vld [vmem:[%s1 + $0x48] sm:$0xff]
  %v79 = vld [vmem:[%s1 + $0x50] sm:$0xf]
  %v80 = vld [vmem:[%s1 + $0x54] sm:$0xff]
  %v81 = vld [vmem:[%s1 + $0x5c] sm:$0xf]
  %v82 = vld [vmem:[%s1 + $0x60] sm:$0xff]
  %v83 = vld [vmem:[%s1 + $0x68] sm:$0xf]
  %v84 = vld [vmem:[%s1 + $0x6c] sm:$0xff]
  %v85 = vld [vmem:[%s1 + $0x74] sm:$0xf]
  %v86 = vld [vmem:[%s1 + $0x78] sm:$0xff]
  %v87 = vld [vmem:[%s1 + $0x80] sm:$0xf]
  %v88 = vld [vmem:[%s1 + $0x84] sm:$0xff]
  %v89 = vld [vmem:[%s1 + $0x8c] sm:$0xf]
  %v90 = vld [vmem:[%s1 + $0x90] sm:$0xff]
  %v91 = vld [vmem:[%s1 + $0x98] sm:$0xf]
  %v92 = vld [vmem:[%s1 + $0x9c] sm:$0xff]
  %v93 = vld [vmem:[%s1 + $0xa4] sm:$0xf]
  %v94 = vld [vmem:[%s1 + $0xa8] sm:$0xff]
  %v95 = vld [vmem:[%s1 + $0xb0] sm:$0xf]
  %v96 = vld [vmem:[%s1 + $0xb4] sm:$0xff]
  %v97 = vld [vmem:[%s1 + $0xbc] sm:$0xf]
  %v98 = vld [vmem:[%s2] sm:$0x7]
  %v100 = vperm.slane %v98, 0
  %v101 = vperm.slane %v98, 1
  %v102 = vperm.slane %v98, 2
  %v138 = vunpack.c.l.b16 %v66
  %v139 = vunpack.c.h.b16 %v66
  %v140 = vunpack.c.l.b16 %v67
  %v141 = vunpack.c.l.b16 %v68
  %v142 = vunpack.c.h.b16 %v68
  %v143 = vunpack.c.l.b16 %v69
  %v144 = vunpack.c.l.b16 %v70
  %v145 = vunpack.c.h.b16 %v70
  %v146 = vunpack.c.l.b16 %v71
  %v147 = vunpack.c.l.b16 %v72
  %v148 = vunpack.c.h.b16 %v72
  %v149 = vunpack.c.l.b16 %v73
  %v150 = vunpack.c.l.b16 %v74
  %v151 = vunpack.c.h.b16 %v74
  %v152 = vunpack.c.l.b16 %v75
  %v153 = vunpack.c.l.b16 %v76
  %v154 = vunpack.c.h.b16 %v76
  %v155 = vunpack.c.l.b16 %v77
  %v156 = vunpack.c.l.b16 %v78
  %v157 = vunpack.c.h.b16 %v78
  %v158 = vunpack.c.l.b16 %v79
  %v159 = vunpack.c.l.b16 %v80
  %v160 = vunpack.c.h.b16 %v80
  %v161 = vunpack.c.l.b16 %v81
  %v162 = vunpack.c.l.b16 %v82
  %v163 = vunpack.c.h.b16 %v82
  %v164 = vunpack.c.l.b16 %v83
  %v165 = vunpack.c.l.b16 %v84
  %v166 = vunpack.c.h.b16 %v84
  %v167 = vunpack.c.l.b16 %v85
  %v168 = vunpack.c.l.b16 %v86
  %v169 = vunpack.c.h.b16 %v86
  %v170 = vunpack.c.l.b16 %v87
  %v171 = vunpack.c.l.b16 %v88
  %v172 = vunpack.c.h.b16 %v88
  %v173 = vunpack.c.l.b16 %v89
  %v174 = vunpack.c.l.b16 %v90
  %v175 = vunpack.c.h.b16 %v90
  %v176 = vunpack.c.l.b16 %v91
  %v177 = vunpack.c.l.b16 %v92
  %v178 = vunpack.c.h.b16 %v92
  %v179 = vunpack.c.l.b16 %v93
  %v180 = vunpack.c.l.b16 %v94
  %v181 = vunpack.c.h.b16 %v94
  %v182 = vunpack.c.l.b16 %v95
  %v183 = vunpack.c.l.b16 %v96
  %v184 = vunpack.c.h.b16 %v96
  %v185 = vunpack.c.l.b16 %v97
  %v186 = vpack.c.b16 %v141, %v138
  %v187 = vpack.c.b16 %v142, %v139
  %v188 = vpack.c.b16 %v143, %v140
  %v189 = vpack.c.b16 %v147, %v144
  %v190 = vpack.c.b16 %v148, %v145
  %v191 = vpack.c.b16 %v149, %v146
  %v192 = vpack.c.b16 %v153, %v150
  %v193 = vpack.c.b16 %v154, %v151
  %v194 = vpack.c.b16 %v155, %v152
  %v195 = vpack.c.b16 %v159, %v156
  %v196 = vpack.c.b16 %v160, %v157
  %v197 = vpack.c.b16 %v161, %v158
  %v198 = vpack.c.b16 %v165, %v162
  %v199 = vpack.c.b16 %v166, %v163
  %v200 = vpack.c.b16 %v167, %v164
  %v201 = vpack.c.b16 %v171, %v168
  %v202 = vpack.c.b16 %v172, %v169
  %v203 = vpack.c.b16 %v173, %v170
  %v204 = vpack.c.b16 %v177, %v174
  %v205 = vpack.c.b16 %v178, %v175
  %v206 = vpack.c.b16 %v179, %v176
  %v207 = vpack.c.b16 %v183, %v180
  %v208 = vpack.c.b16 %v184, %v181
  %v209 = vpack.c.b16 %v185, %v182
  %234 = vmatpush.bf16.msra.mxu0 %v207
  %235 = vmatpush.bf16.msra.mxu0 %v204
  %236 = vmatpush.bf16.msra.mxu0 %v201
  %237 = vmatpush.bf16.msra.mxu0 %v198
  %238 = vmatpush.bf16.msra.mxu0 %v195
  %239 = vmatpush.bf16.msra.mxu0 %v192
  %240 = vmatpush.bf16.msra.mxu0 %v189
  %241 = vmatpush.bf16.msra.mxu0 %v186
  %242 = vmatmul.bf16.gmra.mxu0 %v65
  %v243 = vpop.f32.mrf.mxu0
  %v244 = vadd.f32 %v100, %v243
  %v245 = vpop.f32.mrf.mxu0
  %246 = vdwg.mxu0
  %247 = vmatpush.bf16.msra.mxu0 %v208
  %248 = vmatpush.bf16.msra.mxu0 %v205
  %249 = vmatpush.bf16.msra.mxu0 %v202
  %250 = vmatpush.bf16.msra.mxu0 %v199
  %251 = vmatpush.bf16.msra.mxu0 %v196
  %252 = vmatpush.bf16.msra.mxu0 %v193
  %253 = vmatpush.bf16.msra.mxu0 %v190
  %254 = vmatpush.bf16.msra.mxu0 %v187
  %255 = vmatmul.bf16.gmra.mxu0 %v65
  %v256 = vpop.f32.mrf.mxu0
  %v257 = vadd.f32 %v101, %v256
  %v258 = vpop.f32.mrf.mxu0
  %259 = vdwg.mxu0
  %260 = vmatpush.bf16.msra.mxu0 %v209
  %261 = vmatpush.bf16.msra.mxu0 %v206
  %262 = vmatpush.bf16.msra.mxu0 %v203
  %263 = vmatpush.bf16.msra.mxu0 %v200
  %264 = vmatpush.bf16.msra.mxu0 %v197
  %265 = vmatpush.bf16.msra.mxu0 %v194
  %266 = vmatpush.bf16.msra.mxu0 %v191
  %267 = vmatpush.bf16.msra.mxu0 %v188
  %268 = vmatmul.bf16.gmra.mxu0 %v65
  %v269 = vpop.f32.mrf.mxu0
  %v270 = vadd.f32 %v102, %v269
  %v271 = vpop.f32.mrf.mxu0
  %272 = vdwg.mxu0
  %v273 = vpack.c.bf16 %v257, %v244
  %v274 = vpack.c.bf16 %v270, %v270
  %275 = vst [vmem:[%s5] sm:$0xff] %v273
  %276 = vst [vmem:[%s5 + $0x8] sm:$0xf] %v274
  // Predicated region
  $region26: #{_lambda_.35} parent=0 // pred_check
    _
  $region27: #{_lambda_.35} parent=0 // pred_check_branch
    %278 = sbr.rel (0) target = $region29
  $region28: #{_lambda_.35} parent=0 // pred_region
    _
  $region29: #{_lambda_.35} parent=0 // pred_fallthru
    _
  // Predicated region
  $region30: #{_lambda_.35} parent=0 // pred_check
    _
  $region31: #{_lambda_.35} parent=0 // pred_check_branch
    %280 = sbr.rel (0) target = $region33
  $region32: #{_lambda_.35} parent=0 // pred_region
    _
  $region33: #{_lambda_.35} parent=0 // pred_fallthru
    _

// kernel: _lambda_.38
$region0: #{_lambda_.38}
  #allocation0 [shape = 'u32[]', space=smem, size = 0x4, offset = 0x4, fixed_abs, tag = 'smem constant byte address 0x4 - core index']
  #allocation1 [shape = 'u32[72,128]{1,0:T(1,128)}', space=vmem, size = 0x9000, scoped, tag = 'internal scratch']
  #allocation2 [shape = 'bf16[8,128]{1,0:T(8,128)(2,1)}', space=vmem, size = 0x800, scoped, tag = 'scratch operand']
  %s0 = inlined_call_operand.vmem [shape: bf16[8,128], index: 0, kind: input, shape index: {}]
  %s1 = inlined_call_operand.vmem [shape: bf16[128,512], index: 1, kind: input, shape index: {}]
  %s2 = inlined_call_operand.vmem [shape: f32[1,512], index: 2, kind: input, shape index: {}]
  %s3 = inlined_call_operand.vmem [shape: f32[1,128], index: 3, kind: input, shape index: {}]
  %s4 = inlined_call_operand.vmem [shape: f32[1,128], index: 4, kind: input, shape index: {}]
  %s5 = inlined_call_operand.vmem [shape: bf16[8,512], index: 5, kind: output, shape index: {}]
  %s6 = sld [smem:[#allocation0]]
  $region34: #{_lambda_.38} parent=0
    _
  %s8 = ssub.s32 1, %s6
  %s9 = scalar_select 0, %s8, %s6
  // Predicated region
  $region2: #{_lambda_.38} parent=0 // pred_check
    _
  $region3: #{_lambda_.38} parent=0 // pred_check_branch
    %11 = sbr.rel (0) target = $region5
  $region4: #{_lambda_.38} parent=0 // pred_region
    _
  $region5: #{_lambda_.38} parent=0 // pred_fallthru
    _
  // Predicated region
  $region6: #{_lambda_.38} parent=0 // pred_check
    _
  $region7: #{_lambda_.38} parent=0 // pred_check_branch
    %13 = sbr.rel (0) target = $region9
  $region8: #{_lambda_.38} parent=0 // pred_region
    _
  $region9: #{_lambda_.38} parent=0 // pred_fallthru
    _
  // Predicated region
  $region10: #{_lambda_.38} parent=0 // pred_check
    _
  $region11: #{_lambda_.38} parent=0 // pred_check_branch
    %15 = sbr.rel (0) target = $region13
  $region12: #{_lambda_.38} parent=0 // pred_region
    _
  $region13: #{_lambda_.38} parent=0 // pred_fallthru
    _
  // Predicated region
  $region14: #{_lambda_.38} parent=0 // pred_check
    _
  $region15: #{_lambda_.38} parent=0 // pred_check_branch
    %17 = sbr.rel (0) target = $region17
  $region16: #{_lambda_.38} parent=0 // pred_region
    _
  $region17: #{_lambda_.38} parent=0 // pred_fallthru
    _
  // Predicated region
  $region18: #{_lambda_.38} parent=0 // pred_check
    _
  $region19: #{_lambda_.38} parent=0 // pred_check_branch
    %19 = sbr.rel (0) target = $region21
  $region20: #{_lambda_.38} parent=0 // pred_region
    _
  $region21: #{_lambda_.38} parent=0 // pred_fallthru
    _
  %p20 = scmp.eq.s32.totalorder 0, 0
  // Predicated region
  $region22: #{_lambda_.38} parent=0 // pred_check
    %p21 = pneg %p20
  $region23: #{_lambda_.38} parent=0 // pred_check_branch
    %23 = sbr.rel (%p21) target = $region25
  $region24: #{_lambda_.38} parent=0 // pred_region
    %v24 = vld [vmem:[%s0] sm:$0xf]
    %v25 = vunpack.c.l.bf16 %v24
    %v26 = vld [vmem:[%s3] sm:$0x1]
    %v27 = vld [vmem:[%s4] sm:$0x1]
    %28 = vadd.xlane.f32.xlu0 %v25
    %v29 = vpop.xlane.xlu0 %28
    %v30 = vrcp.pop 128.0
    %v31 = vmul.f32 128.0, %v30
    %v32 = vsub.f32 1.0, %v31
    %v33 = vmul.f32 %v30, %v32
    %v34 = vadd.f32 %v30, %v33
    %vm35 = vweird.f32 %v30
    %v36 = vsel %vm35, %v30, %v34
    %v37 = vmul.f32 %v29, %v36
    %v38 = vsub.f32 %v25, %v37
    %v39 = vmul.f32 %v38, %v38
    %40 = vadd.xlane.f32.xlu0 %v39
    %v41 = vpop.xlane.xlu0 %40
    %v42 = vmul.f32 %v41, %v36
    %v43 = vadd.f32 %v42, 1e-05
    %v44 = vrsqrt.pop %v43
    %v45 = vmul.f32 %v44, %v43
    %v46 = vmul.f32 %v45, %v44
    %v47 = vmul.f32 0.5, %v46
    %v48 = vsub.f32 1.5, %v47
    %v49 = vmul.f32 %v44, %v48
    %vm50 = vweird.f32 %v43
    %vm51 = vweird.f32 %v44
    %vm52 = vmor %vm50, %vm51
    %v53 = vsel %vm52, %v44, %v49
    %v54 = vmul.f32 %v38, %v53
    %v56 = vperm.slane %v26, 0
    %v58 = vmul.f32 %v54, %v56
    %v60 = vperm.slane %v27, 0
    %v62 = vadd.f32 %v58, %v60
    %v63 = vpack.c.bf16 %v62, %v62
    %64 = vst [vmem:[#allocation2] sm:$0xf] %v63
  $region25: #{_lambda_.38} parent=0 // pred_fallthru
    _
  %v65 = vld [vmem:[#allocation2] sm:$0xf]
  %v66 = vld [vmem:[%s1] sm:$0xff]
  %v67 = vld [vmem:[%s1 + $0x8] sm:$0xff]
  %v68 = vld [vmem:[%s1 + $0x10] sm:$0xff]
  %v69 = vld [vmem:[%s1 + $0x18] sm:$0xff]
  %v70 = vld [vmem:[%s1 + $0x20] sm:$0xff]
  %v71 = vld [vmem:[%s1 + $0x28] sm:$0xff]
  %v72 = vld [vmem:[%s1 + $0x30] sm:$0xff]
  %v73 = vld [vmem:[%s1 + $0x38] sm:$0xff]
  %v74 = vld [vmem:[%s1 + $0x40] sm:$0xff]
  %v75 = vld [vmem:[%s1 + $0x48] sm:$0xff]
  %v76 = vld [vmem:[%s1 + $0x50] sm:$0xff]
  %v77 = vld [vmem:[%s1 + $0x58] sm:$0xff]
  %v78 = vld [vmem:[%s1 + $0x60] sm:$0xff]
  %v79 = vld [vmem:[%s1 + $0x68] sm:$0xff]
  %v80 = vld [vmem:[%s1 + $0x70] sm:$0xff]
  %v81 = vld [vmem:[%s1 + $0x78] sm:$0xff]
  %v82 = vld [vmem:[%s1 + $0x80] sm:$0xff]
  %v83 = vld [vmem:[%s1 + $0x88] sm:$0xff]
  %v84 = vld [vmem:[%s1 + $0x90] sm:$0xff]
  %v85 = vld [vmem:[%s1 + $0x98] sm:$0xff]
  %v86 = vld [vmem:[%s1 + $0xa0] sm:$0xff]
  %v87 = vld [vmem:[%s1 + $0xa8] sm:$0xff]
  %v88 = vld [vmem:[%s1 + $0xb0] sm:$0xff]
  %v89 = vld [vmem:[%s1 + $0xb8] sm:$0xff]
  %v90 = vld [vmem:[%s1 + $0xc0] sm:$0xff]
  %v91 = vld [vmem:[%s1 + $0xc8] sm:$0xff]
  %v92 = vld [vmem:[%s1 + $0xd0] sm:$0xff]
  %v93 = vld [vmem:[%s1 + $0xd8] sm:$0xff]
  %v94 = vld [vmem:[%s1 + $0xe0] sm:$0xff]
  %v95 = vld [vmem:[%s1 + $0xe8] sm:$0xff]
  %v96 = vld [vmem:[%s1 + $0xf0] sm:$0xff]
  %v97 = vld [vmem:[%s1 + $0xf8] sm:$0xff]
  %v98 = vld [vmem:[%s2] sm:$0xf]
  %v100 = vperm.slane %v98, 0
  %v101 = vperm.slane %v98, 1
  %v102 = vperm.slane %v98, 2
  %v103 = vperm.slane %v98, 3
  %v140 = vunpack.c.l.b16 %v66
  %v141 = vunpack.c.h.b16 %v66
  %v142 = vunpack.c.l.b16 %v67
  %v143 = vunpack.c.h.b16 %v67
  %v144 = vunpack.c.l.b16 %v68
  %v145 = vunpack.c.h.b16 %v68
  %v146 = vunpack.c.l.b16 %v69
  %v147 = vunpack.c.h.b16 %v69
  %v148 = vunpack.c.l.b16 %v70
  %v149 = vunpack.c.h.b16 %v70
  %v150 = vunpack.c.l.b16 %v71
  %v151 = vunpack.c.h.b16 %v71
  %v152 = vunpack.c.l.b16 %v72
  %v153 = vunpack.c.h.b16 %v72
  %v154 = vunpack.c.l.b16 %v73
  %v155 = vunpack.c.h.b16 %v73
  %v156 = vunpack.c.l.b16 %v74
  %v157 = vunpack.c.h.b16 %v74
  %v158 = vunpack.c.l.b16 %v75
  %v159 = vunpack.c.h.b16 %v75
  %v160 = vunpack.c.l.b16 %v76
  %v161 = vunpack.c.h.b16 %v76
  %v162 = vunpack.c.l.b16 %v77
  %v163 = vunpack.c.h.b16 %v77
  %v164 = vunpack.c.l.b16 %v78
  %v165 = vunpack.c.h.b16 %v78
  %v166 = vunpack.c.l.b16 %v79
  %v167 = vunpack.c.h.b16 %v79
  %v168 = vunpack.c.l.b16 %v80
  %v169 = vunpack.c.h.b16 %v80
  %v170 = vunpack.c.l.b16 %v81
  %v171 = vunpack.c.h.b16 %v81
  %v172 = vunpack.c.l.b16 %v82
  %v173 = vunpack.c.h.b16 %v82
  %v174 = vunpack.c.l.b16 %v83
  %v175 = vunpack.c.h.b16 %v83
  %v176 = vunpack.c.l.b16 %v84
  %v177 = vunpack.c.h.b16 %v84
  %v178 = vunpack.c.l.b16 %v85
  %v179 = vunpack.c.h.b16 %v85
  %v180 = vunpack.c.l.b16 %v86
  %v181 = vunpack.c.h.b16 %v86
  %v182 = vunpack.c.l.b16 %v87
  %v183 = vunpack.c.h.b16 %v87
  %v184 = vunpack.c.l.b16 %v88
  %v185 = vunpack.c.h.b16 %v88
  %v186 = vunpack.c.l.b16 %v89
  %v187 = vunpack.c.h.b16 %v89
  %v188 = vunpack.c.l.b16 %v90
  %v189 = vunpack.c.h.b16 %v90
  %v190 = vunpack.c.l.b16 %v91
  %v191 = vunpack.c.h.b16 %v91
  %v192 = vunpack.c.l.b16 %v92
  %v193 = vunpack.c.h.b16 %v92
  %v194 = vunpack.c.l.b16 %v93
  %v195 = vunpack.c.h.b16 %v93
  %v196 = vunpack.c.l.b16 %v94
  %v197 = vunpack.c.h.b16 %v94
  %v198 = vunpack.c.l.b16 %v95
  %v199 = vunpack.c.h.b16 %v95
  %v200 = vunpack.c.l.b16 %v96
  %v201 = vunpack.c.h.b16 %v96
  %v202 = vunpack.c.l.b16 %v97
  %v203 = vunpack.c.h.b16 %v97
  %v204 = vpack.c.b16 %v144, %v140
  %v205 = vpack.c.b16 %v145, %v141
  %v206 = vpack.c.b16 %v146, %v142
  %v207 = vpack.c.b16 %v147, %v143
  %v208 = vpack.c.b16 %v152, %v148
  %v209 = vpack.c.b16 %v153, %v149
  %v210 = vpack.c.b16 %v154, %v150
  %v211 = vpack.c.b16 %v155, %v151
  %v212 = vpack.c.b16 %v160, %v156
  %v213 = vpack.c.b16 %v161, %v157
  %v214 = vpack.c.b16 %v162, %v158
  %v215 = vpack.c.b16 %v163, %v159
  %v216 = vpack.c.b16 %v168, %v164
  %v217 = vpack.c.b16 %v169, %v165
  %v218 = vpack.c.b16 %v170, %v166
  %v219 = vpack.c.b16 %v171, %v167
  %v220 = vpack.c.b16 %v176, %v172
  %v221 = vpack.c.b16 %v177, %v173
  %v222 = vpack.c.b16 %v178, %v174
  %v223 = vpack.c.b16 %v179, %v175
  %v224 = vpack.c.b16 %v184, %v180
  %v225 = vpack.c.b16 %v185, %v181
  %v226 = vpack.c.b16 %v186, %v182
  %v227 = vpack.c.b16 %v187, %v183
  %v228 = vpack.c.b16 %v192, %v188
  %v229 = vpack.c.b16 %v193, %v189
  %v230 = vpack.c.b16 %v194, %v190
  %v231 = vpack.c.b16 %v195, %v191
  %v232 = vpack.c.b16 %v200, %v196
  %v233 = vpack.c.b16 %v201, %v197
  %v234 = vpack.c.b16 %v202, %v198
  %v235 = vpack.c.b16 %v203, %v199
  %268 = vmatpush.bf16.msra.mxu0 %v232
  %269 = vmatpush.bf16.msra.mxu0 %v228
  %270 = vmatpush.bf16.msra.mxu0 %v224
  %271 = vmatpush.bf16.msra.mxu0 %v220
  %272 = vmatpush.bf16.msra.mxu0 %v216
  %273 = vmatpush.bf16.msra.mxu0 %v212
  %274 = vmatpush.bf16.msra.mxu0 %v208
  %275 = vmatpush.bf16.msra.mxu0 %v204
  %276 = vmatmul.bf16.gmra.mxu0 %v65
  %v277 = vpop.f32.mrf.mxu0
  %v278 = vadd.f32 %v100, %v277
  %v279 = vpop.f32.mrf.mxu0
  %280 = vdwg.mxu0
  %281 = vmatpush.bf16.msra.mxu0 %v233
  %282 = vmatpush.bf16.msra.mxu0 %v229
  %283 = vmatpush.bf16.msra.mxu0 %v225
  %284 = vmatpush.bf16.msra.mxu0 %v221
  %285 = vmatpush.bf16.msra.mxu0 %v217
  %286 = vmatpush.bf16.msra.mxu0 %v213
  %287 = vmatpush.bf16.msra.mxu0 %v209
  %288 = vmatpush.bf16.msra.mxu0 %v205
  %289 = vmatmul.bf16.gmra.mxu0 %v65
  %v290 = vpop.f32.mrf.mxu0
  %v291 = vadd.f32 %v101, %v290
  %v292 = vpop.f32.mrf.mxu0
  %293 = vdwg.mxu0
  %294 = vmatpush.bf16.msra.mxu0 %v234
  %295 = vmatpush.bf16.msra.mxu0 %v230
  %296 = vmatpush.bf16.msra.mxu0 %v226
  %297 = vmatpush.bf16.msra.mxu0 %v222
  %298 = vmatpush.bf16.msra.mxu0 %v218
  %299 = vmatpush.bf16.msra.mxu0 %v214
  %300 = vmatpush.bf16.msra.mxu0 %v210
  %301 = vmatpush.bf16.msra.mxu0 %v206
  %302 = vmatmul.bf16.gmra.mxu0 %v65
  %v303 = vpop.f32.mrf.mxu0
  %v304 = vadd.f32 %v102, %v303
  %v305 = vpop.f32.mrf.mxu0
  %306 = vdwg.mxu0
  %307 = vmatpush.bf16.msra.mxu0 %v235
  %308 = vmatpush.bf16.msra.mxu0 %v231
  %309 = vmatpush.bf16.msra.mxu0 %v227
  %310 = vmatpush.bf16.msra.mxu0 %v223
  %311 = vmatpush.bf16.msra.mxu0 %v219
  %312 = vmatpush.bf16.msra.mxu0 %v215
  %313 = vmatpush.bf16.msra.mxu0 %v211
  %314 = vmatpush.bf16.msra.mxu0 %v207
  %315 = vmatmul.bf16.gmra.mxu0 %v65
  %v316 = vpop.f32.mrf.mxu0
  %v317 = vadd.f32 %v103, %v316
  %v318 = vpop.f32.mrf.mxu0
  %319 = vdwg.mxu0
  %v320 = vmul.f32 %v278, 0.5
  %v321 = vmul.f32 %v291, 0.5
  %v322 = vmul.f32 %v304, 0.5
  %v323 = vmul.f32 %v317, 0.5
  %v324 = vmul.f32 %v278, 0.70710677
  %v325 = vmul.f32 %v291, 0.70710677
  %v326 = vmul.f32 %v304, 0.70710677
  %v327 = vmul.f32 %v317, 0.70710677
  %v328 = vand.u32 2147483647, %v324
  %v329 = vand.u32 2147483647, %v325
  %v330 = vand.u32 2147483647, %v326
  %v331 = vand.u32 2147483647, %v327
  %v332 = vmul.f32 %v328, 0.3275911
  %v333 = vmul.f32 %v329, 0.3275911
  %v334 = vmul.f32 %v330, 0.3275911
  %v335 = vmul.f32 %v331, 0.3275911
  %v336 = vadd.f32 %v332, 1.0
  %v337 = vadd.f32 %v333, 1.0
  %v338 = vadd.f32 %v334, 1.0
  %v339 = vadd.f32 %v335, 1.0
  %v340 = vrcp.pop %v336
  %v341 = vmul.f32 %v336, %v340
  %v342 = vsub.f32 1.0, %v341
  %v343 = vmul.f32 %v340, %v342
  %v344 = vadd.f32 %v340, %v343
  %vm345 = vweird.f32 %v336
  %vm346 = vweird.f32 %v340
  %vm347 = vmor %vm345, %vm346
  %v348 = vsel %vm347, %v340, %v344
  %v349 = vand.u32 2147483647, %v336
  %vm350 = vcmp.eq.f32.partialorder %v349, 8.507059e+37
  %v351 = vand.u32 %v336, 2147483648
  %v352 = vor.u32 1.1754944e-38, %v351
  %v353 = vsel %vm350, %v352, %v348
  %v354 = vmul.f32 1.0, %v353
  %v355 = vrcp.pop %v337
  %v356 = vmul.f32 %v337, %v355
  %v357 = vsub.f32 1.0, %v356
  %v358 = vmul.f32 %v355, %v357
  %v359 = vadd.f32 %v355, %v358
  %vm360 = vweird.f32 %v337
  %vm361 = vweird.f32 %v355
  %vm362 = vmor %vm360, %vm361
  %v363 = vsel %vm362, %v355, %v359
  %v364 = vand.u32 2147483647, %v337
  %vm365 = vcmp.eq.f32.partialorder %v364, 8.507059e+37
  %v366 = vand.u32 %v337, 2147483648
  %v367 = vor.u32 1.1754944e-38, %v366
  %v368 = vsel %vm365, %v367, %v363
  %v369 = vmul.f32 1.0, %v368
  %v370 = vrcp.pop %v338
  %v371 = vmul.f32 %v338, %v370
  %v372 = vsub.f32 1.0, %v371
  %v373 = vmul.f32 %v370, %v372
  %v374 = vadd.f32 %v370, %v373
  %vm375 = vweird.f32 %v338
  %vm376 = vweird.f32 %v370
  %vm377 = vmor %vm375, %vm376
  %v378 = vsel %vm377, %v370, %v374
  %v379 = vand.u32 2147483647, %v338
  %vm380 = vcmp.eq.f32.partialorder %v379, 8.507059e+37
  %v381 = vand.u32 %v338, 2147483648
  %v382 = vor.u32 1.1754944e-38, %v381
  %v383 = vsel %vm380, %v382, %v378
  %v384 = vmul.f32 1.0, %v383
  %v385 = vrcp.pop %v339
  %v386 = vmul.f32 %v339, %v385
  %v387 = vsub.f32 1.0, %v386
  %v388 = vmul.f32 %v385, %v387
  %v389 = vadd.f32 %v385, %v388
  %vm390 = vweird.f32 %v339
  %vm391 = vweird.f32 %v385
  %vm392 = vmor %vm390, %vm391
  %v393 = vsel %vm392, %v385, %v389
  %v394 = vand.u32 2147483647, %v339
  %vm395 = vcmp.eq.f32.partialorder %v394, 8.507059e+37
  %v396 = vand.u32 %v339, 2147483648
  %v397 = vor.u32 1.1754944e-38, %v396
  %v398 = vsel %vm395, %v397, %v393
  %v399 = vmul.f32 1.0, %v398
  %v400 = vmul.f32 %v354, 1.0614054
  %v401 = vmul.f32 %v369, 1.0614054
  %v402 = vmul.f32 %v384, 1.0614054
  %v403 = vmul.f32 %v399, 1.0614054
  %v404 = vadd.f32 %v400, -1.4531521
  %v405 = vadd.f32 %v401, -1.4531521
  %v406 = vadd.f32 %v402, -1.4531521
  %v407 = vadd.f32 %v403, -1.4531521
  %v408 = vmul.f32 %v404, %v354
  %v409 = vmul.f32 %v405, %v369
  %v410 = vmul.f32 %v406, %v384
  %v411 = vmul.f32 %v407, %v399
  %v412 = vadd.f32 %v408, 1.4214138
  %v413 = vadd.f32 %v409, 1.4214138
  %v414 = vadd.f32 %v410, 1.4214138
  %v415 = vadd.f32 %v411, 1.4214138
  %v416 = vmul.f32 %v412, %v354
  %v417 = vmul.f32 %v413, %v369
  %v418 = vmul.f32 %v414, %v384
  %v419 = vmul.f32 %v415, %v399
  %v420 = vadd.f32 %v416, -0.28449672
  %v421 = vadd.f32 %v417, -0.28449672
  %v422 = vadd.f32 %v418, -0.28449672
  %v423 = vadd.f32 %v419, -0.28449672
  %v424 = vmul.f32 %v420, %v354
  %v425 = vmul.f32 %v421, %v369
  %v426 = vmul.f32 %v422, %v384
  %v427 = vmul.f32 %v423, %v399
  %v428 = vadd.f32 %v424, 0.2548296
  %v429 = vadd.f32 %v425, 0.2548296
  %v430 = vadd.f32 %v426, 0.2548296
  %v431 = vadd.f32 %v427, 0.2548296
  %v432 = vmul.f32 %v428, %v354
  %v433 = vmul.f32 %v429, %v369
  %v434 = vmul.f32 %v430, %v384
  %v435 = vmul.f32 %v431, %v399
  %v436 = vsub.f32 0.0, %v328
  %v437 = vsub.f32 0.0, %v329
  %v438 = vsub.f32 0.0, %v330
  %v439 = vsub.f32 0.0, %v331
  %v440 = vmul.f32 %v436, %v328
  %v441 = vmul.f32 %v437, %v329
  %v442 = vmul.f32 %v438, %v330
  %v443 = vmul.f32 %v439, %v331
  %v444 = vmul.f32 %v440, 1.442695
  %v445 = vpow.pop %v444
  %v446 = vmul.f32 %v441, 1.442695
  %v447 = vpow.pop %v446
  %v448 = vmul.f32 %v442, 1.442695
  %v449 = vpow.pop %v448
  %v450 = vmul.f32 %v443, 1.442695
  %v451 = vpow.pop %v450
  %v452 = vmul.f32 %v432, %v445
  %v453 = vmul.f32 %v433, %v447
  %v454 = vmul.f32 %v434, %v449
  %v455 = vmul.f32 %v435, %v451
  %v456 = vsub.f32 1.0, %v452
  %v457 = vsub.f32 1.0, %v453
  %v458 = vsub.f32 1.0, %v454
  %v459 = vsub.f32 1.0, %v455
  %vm460 = vcmp.ge.f32.partialorder %v324, 0.0
  %vm461 = vcmp.ge.f32.partialorder %v325, 0.0
  %vm462 = vcmp.ge.f32.partialorder %v326, 0.0
  %vm463 = vcmp.ge.f32.partialorder %v327, 0.0
  %v464 = vsub.f32 0.0, %v456
  %v465 = vsub.f32 0.0, %v457
  %v466 = vsub.f32 0.0, %v458
  %v467 = vsub.f32 0.0, %v459
  %v468 = vsel %vm460, %v456, %v464
  %v469 = vsel %vm461, %v457, %v465
  %v470 = vsel %vm462, %v458, %v466
  %v471 = vsel %vm463, %v459, %v467
  %v472 = vadd.f32 %v468, 1.0
  %v473 = vadd.f32 %v469, 1.0
  %v474 = vadd.f32 %v470, 1.0
  %v475 = vadd.f32 %v471, 1.0
  %v476 = vmul.f32 %v320, %v472
  %v477 = vmul.f32 %v321, %v473
  %v478 = vmul.f32 %v322, %v474
  %v479 = vmul.f32 %v323, %v475
  %v480 = vpack.c.bf16 %v477, %v476
  %v481 = vpack.c.bf16 %v479, %v478
  %482 = vst [vmem:[%s5] sm:$0xff] %v480
  %483 = vst [vmem:[%s5 + $0x8] sm:$0xff] %v481
  // Predicated region
  $region26: #{_lambda_.38} parent=0 // pred_check
    _
  $region27: #{_lambda_.38} parent=0 // pred_check_branch
    %485 = sbr.rel (0) target = $region29
  $region28: #{_lambda_.38} parent=0 // pred_region
    _
  $region29: #{_lambda_.38} parent=0 // pred_fallthru
    _
  // Predicated region
  $region30: #{_lambda_.38} parent=0 // pred_check
    _
  $region31: #{_lambda_.38} parent=0 // pred_check_branch
    %487 = sbr.rel (0) target = $region33
  $region32: #{_lambda_.38} parent=0 // pred_region
    _
  $region33: #{_lambda_.38} parent=0 // pred_fallthru
    _

// kernel: _lambda_.45
$region0: #{_lambda_.45}
  #allocation0 [shape = 'u32[]', space=smem, size = 0x4, offset = 0x4, fixed_abs, tag = 'smem constant byte address 0x4 - core index']
  #allocation1 [shape = 'u32[72,128]{1,0:T(1,128)}', space=vmem, size = 0x9000, scoped, tag = 'internal scratch']
  %s0 = inlined_call_operand.vmem [shape: bf16[5,128], index: 0, kind: input, shape index: {}]
  %s1 = inlined_call_operand.vmem [shape: f32[1,128], index: 1, kind: input, shape index: {}]
  %s2 = inlined_call_operand.vmem [shape: f32[1,128], index: 2, kind: input, shape index: {}]
  %s3 = inlined_call_operand.vmem [shape: f32[5,128], index: 3, kind: output, shape index: {}]
  %s4 = sld [smem:[#allocation0]]
  $region22: #{_lambda_.45} parent=0
    _
  %s6 = ssub.s32 1, %s4
  %s7 = scalar_select 0, %s6, %s4
  // Predicated region
  $region2: #{_lambda_.45} parent=0 // pred_check
    _
  $region3: #{_lambda_.45} parent=0 // pred_check_branch
    %9 = sbr.rel (0) target = $region5
  $region4: #{_lambda_.45} parent=0 // pred_region
    _
  $region5: #{_lambda_.45} parent=0 // pred_fallthru
    _
  // Predicated region
  $region6: #{_lambda_.45} parent=0 // pred_check
    _
  $region7: #{_lambda_.45} parent=0 // pred_check_branch
    %11 = sbr.rel (0) target = $region9
  $region8: #{_lambda_.45} parent=0 // pred_region
    _
  $region9: #{_lambda_.45} parent=0 // pred_fallthru
    _
  // Predicated region
  $region10: #{_lambda_.45} parent=0 // pred_check
    _
  $region11: #{_lambda_.45} parent=0 // pred_check_branch
    %13 = sbr.rel (0) target = $region13
  $region12: #{_lambda_.45} parent=0 // pred_region
    _
  $region13: #{_lambda_.45} parent=0 // pred_fallthru
    _
  %v14 = vld [vmem:[%s0] sm:$0x7]
  %v15 = vunpack.c.l.bf16 %v14
  %v16 = vld [vmem:[%s1] sm:$0x1]
  %v17 = vld [vmem:[%s2] sm:$0x1]
  %vm18 = vcmask 1044480
  %v19 = vsel %vm18, %v15, 0.0
  %20 = vadd.xlane.f32.xlu0 %v19
  %v21 = vpop.xlane.xlu0 %20
  %v22 = vrcp.pop 128.0
  %v23 = vmul.f32 128.0, %v22
  %v24 = vsub.f32 1.0, %v23
  %v25 = vmul.f32 %v22, %v24
  %v26 = vadd.f32 %v22, %v25
  %vm27 = vweird.f32 %v22
  %v28 = vsel %vm27, %v22, %v26
  %v29 = vmul.f32 %v21, %v28
  %v30 = vsub.f32 %v15, %v29
  %v31 = vmul.f32 %v30, %v30
  %v32 = vsel %vm18, %v31, 0.0
  %33 = vadd.xlane.f32.xlu0 %v32
  %v34 = vpop.xlane.xlu0 %33
  %v35 = vmul.f32 %v34, %v28
  %v36 = vadd.f32 %v35, 1e-05
  %v37 = vrsqrt.pop %v36
  %v38 = vmul.f32 %v37, %v36
  %v39 = vmul.f32 %v38, %v37
  %v40 = vmul.f32 0.5, %v39
  %v41 = vsub.f32 1.5, %v40
  %v42 = vmul.f32 %v37, %v41
  %vm43 = vweird.f32 %v36
  %vm44 = vweird.f32 %v37
  %vm45 = vmor %vm43, %vm44
  %v46 = vsel %vm45, %v37, %v42
  %v47 = vmul.f32 %v30, %v46
  %v49 = vperm.slane %v16, 0
  %v51 = vmul.f32 %v47, %v49
  %v53 = vperm.slane %v17, 0
  %v55 = vadd.f32 %v51, %v53
  %56 = vst [vmem:[%s3] sm:$0x1f] %v55
  // Predicated region
  $region14: #{_lambda_.45} parent=0 // pred_check
    _
  $region15: #{_lambda_.45} parent=0 // pred_check_branch
    %58 = sbr.rel (0) target = $region17
  $region16: #{_lambda_.45} parent=0 // pred_region
    _
  $region17: #{_lambda_.45} parent=0 // pred_fallthru
    _
  // Predicated region
  $region18: #{_lambda_.45} parent=0 // pred_check
    _
  $region19: #{_lambda_.45} parent=0 // pred_check_branch
    %60 = sbr.rel (0) target = $region21
  $region20: #{_lambda_.45} parent=0 // pred_region
    _
  $region21: #{_lambda_.45} parent=0 // pred_fallthru
    _

// kernel: _lambda_.39
$region0: #{_lambda_.39}
  #allocation0 [shape = 'u32[]', space=smem, size = 0x4, offset = 0x4, fixed_abs, tag = 'smem constant byte address 0x4 - core index']
  #allocation1 [shape = 'u32[72,128]{1,0:T(1,128)}', space=vmem, size = 0x9000, scoped, tag = 'internal scratch']
  %s0 = inlined_call_operand.vmem [shape: bf16[8,512], index: 0, kind: input, shape index: {}]
  %s1 = inlined_call_operand.vmem [shape: bf16[512,128], index: 1, kind: input, shape index: {}]
  %s2 = inlined_call_operand.vmem [shape: f32[1,128], index: 2, kind: input, shape index: {}]
  %s3 = inlined_call_operand.vmem [shape: f32[1,128], index: 3, kind: input, shape index: {}]
  %s4 = inlined_call_operand.vmem [shape: bf16[8,128], index: 4, kind: input, shape index: {}]
  %s5 = inlined_call_operand.vmem [shape: bf16[8,128], index: 5, kind: output, shape index: {}]
  %s6 = sld [smem:[#allocation0]]
  $region30: #{_lambda_.39} parent=0
    _
  %s8 = ssub.s32 1, %s6
  %s9 = scalar_select 0, %s8, %s6
  // Predicated region
  $region2: #{_lambda_.39} parent=0 // pred_check
    _
  $region3: #{_lambda_.39} parent=0 // pred_check_branch
    %11 = sbr.rel (0) target = $region5
  $region4: #{_lambda_.39} parent=0 // pred_region
    _
  $region5: #{_lambda_.39} parent=0 // pred_fallthru
    _
  // Predicated region
  $region6: #{_lambda_.39} parent=0 // pred_check
    _
  $region7: #{_lambda_.39} parent=0 // pred_check_branch
    %13 = sbr.rel (0) target = $region9
  $region8: #{_lambda_.39} parent=0 // pred_region
    _
  $region9: #{_lambda_.39} parent=0 // pred_fallthru
    _
  // Predicated region
  $region10: #{_lambda_.39} parent=0 // pred_check
    _
  $region11: #{_lambda_.39} parent=0 // pred_check_branch
    %15 = sbr.rel (0) target = $region13
  $region12: #{_lambda_.39} parent=0 // pred_region
    _
  $region13: #{_lambda_.39} parent=0 // pred_fallthru
    _
  // Predicated region
  $region14: #{_lambda_.39} parent=0 // pred_check
    _
  $region15: #{_lambda_.39} parent=0 // pred_check_branch
    %17 = sbr.rel (0) target = $region17
  $region16: #{_lambda_.39} parent=0 // pred_region
    _
  $region17: #{_lambda_.39} parent=0 // pred_fallthru
    _
  // Predicated region
  $region18: #{_lambda_.39} parent=0 // pred_check
    _
  $region19: #{_lambda_.39} parent=0 // pred_check_branch
    %19 = sbr.rel (0) target = $region21
  $region20: #{_lambda_.39} parent=0 // pred_region
    _
  $region21: #{_lambda_.39} parent=0 // pred_fallthru
    _
  %v20 = vld [vmem:[%s0] sm:$0xff]
  %v21 = vld [vmem:[%s0 + $0x8] sm:$0xff]
  %v22 = vld [vmem:[%s1] sm:$0xf]
  %v23 = vld [vmem:[%s1 + $0x4] sm:$0xf]
  %v24 = vld [vmem:[%s1 + $0x8] sm:$0xf]
  %v25 = vld [vmem:[%s1 + $0xc] sm:$0xf]
  %v26 = vld [vmem:[%s1 + $0x10] sm:$0xf]
  %v27 = vld [vmem:[%s1 + $0x14] sm:$0xf]
  %v28 = vld [vmem:[%s1 + $0x18] sm:$0xf]
  %v29 = vld [vmem:[%s1 + $0x1c] sm:$0xf]
  %v30 = vld [vmem:[%s1 + $0x20] sm:$0xf]
  %v31 = vld [vmem:[%s1 + $0x24] sm:$0xf]
  %v32 = vld [vmem:[%s1 + $0x28] sm:$0xf]
  %v33 = vld [vmem:[%s1 + $0x2c] sm:$0xf]
  %v34 = vld [vmem:[%s1 + $0x30] sm:$0xf]
  %v35 = vld [vmem:[%s1 + $0x34] sm:$0xf]
  %v36 = vld [vmem:[%s1 + $0x38] sm:$0xf]
  %v37 = vld [vmem:[%s1 + $0x3c] sm:$0xf]
  %v38 = vld [vmem:[%s1 + $0x40] sm:$0xf]
  %v39 = vld [vmem:[%s1 + $0x44] sm:$0xf]
  %v40 = vld [vmem:[%s1 + $0x48] sm:$0xf]
  %v41 = vld [vmem:[%s1 + $0x4c] sm:$0xf]
  %v42 = vld [vmem:[%s1 + $0x50] sm:$0xf]
  %v43 = vld [vmem:[%s1 + $0x54] sm:$0xf]
  %v44 = vld [vmem:[%s1 + $0x58] sm:$0xf]
  %v45 = vld [vmem:[%s1 + $0x5c] sm:$0xf]
  %v46 = vld [vmem:[%s1 + $0x60] sm:$0xf]
  %v47 = vld [vmem:[%s1 + $0x64] sm:$0xf]
  %v48 = vld [vmem:[%s1 + $0x68] sm:$0xf]
  %v49 = vld [vmem:[%s1 + $0x6c] sm:$0xf]
  %v50 = vld [vmem:[%s1 + $0x70] sm:$0xf]
  %v51 = vld [vmem:[%s1 + $0x74] sm:$0xf]
  %v52 = vld [vmem:[%s1 + $0x78] sm:$0xf]
  %v53 = vld [vmem:[%s1 + $0x7c] sm:$0xf]
  %v54 = vld [vmem:[%s1 + $0x80] sm:$0xf]
  %v55 = vld [vmem:[%s1 + $0x84] sm:$0xf]
  %v56 = vld [vmem:[%s1 + $0x88] sm:$0xf]
  %v57 = vld [vmem:[%s1 + $0x8c] sm:$0xf]
  %v58 = vld [vmem:[%s1 + $0x90] sm:$0xf]
  %v59 = vld [vmem:[%s1 + $0x94] sm:$0xf]
  %v60 = vld [vmem:[%s1 + $0x98] sm:$0xf]
  %v61 = vld [vmem:[%s1 + $0x9c] sm:$0xf]
  %v62 = vld [vmem:[%s1 + $0xa0] sm:$0xf]
  %v63 = vld [vmem:[%s1 + $0xa4] sm:$0xf]
  %v64 = vld [vmem:[%s1 + $0xa8] sm:$0xf]
  %v65 = vld [vmem:[%s1 + $0xac] sm:$0xf]
  %v66 = vld [vmem:[%s1 + $0xb0] sm:$0xf]
  %v67 = vld [vmem:[%s1 + $0xb4] sm:$0xf]
  %v68 = vld [vmem:[%s1 + $0xb8] sm:$0xf]
  %v69 = vld [vmem:[%s1 + $0xbc] sm:$0xf]
  %v70 = vld [vmem:[%s1 + $0xc0] sm:$0xf]
  %v71 = vld [vmem:[%s1 + $0xc4] sm:$0xf]
  %v72 = vld [vmem:[%s1 + $0xc8] sm:$0xf]
  %v73 = vld [vmem:[%s1 + $0xcc] sm:$0xf]
  %v74 = vld [vmem:[%s1 + $0xd0] sm:$0xf]
  %v75 = vld [vmem:[%s1 + $0xd4] sm:$0xf]
  %v76 = vld [vmem:[%s1 + $0xd8] sm:$0xf]
  %v77 = vld [vmem:[%s1 + $0xdc] sm:$0xf]
  %v78 = vld [vmem:[%s1 + $0xe0] sm:$0xf]
  %v79 = vld [vmem:[%s1 + $0xe4] sm:$0xf]
  %v80 = vld [vmem:[%s1 + $0xe8] sm:$0xf]
  %v81 = vld [vmem:[%s1 + $0xec] sm:$0xf]
  %v82 = vld [vmem:[%s1 + $0xf0] sm:$0xf]
  %v83 = vld [vmem:[%s1 + $0xf4] sm:$0xf]
  %v84 = vld [vmem:[%s1 + $0xf8] sm:$0xf]
  %v85 = vld [vmem:[%s1 + $0xfc] sm:$0xf]
  %v86 = vld [vmem:[%s2] sm:$0x1]
  %v88 = vperm.slane %v86, 0
  %v92 = vunpack.c.l.b16 %v20
  %v93 = vunpack.c.h.b16 %v20
  %v94 = vunpack.c.l.b16 %v21
  %v95 = vunpack.c.h.b16 %v21
  %v96 = vpack.c.b16 %v92, %v92
  %v97 = vpack.c.b16 %v93, %v93
  %v98 = vpack.c.b16 %v94, %v94
  %v99 = vpack.c.b16 %v95, %v95
  %v168 = vunpack.c.l.b16 %v22
  %v169 = vunpack.c.l.b16 %v23
  %v170 = vunpack.c.l.b16 %v24
  %v171 = vunpack.c.l.b16 %v25
  %v172 = vunpack.c.l.b16 %v26
  %v173 = vunpack.c.l.b16 %v27
  %v174 = vunpack.c.l.b16 %v28
  %v175 = vunpack.c.l.b16 %v29
  %v176 = vunpack.c.l.b16 %v30
  %v177 = vunpack.c.l.b16 %v31
  %v178 = vunpack.c.l.b16 %v32
  %v179 = vunpack.c.l.b16 %v33
  %v180 = vunpack.c.l.b16 %v34
  %v181 = vunpack.c.l.b16 %v35
  %v182 = vunpack.c.l.b16 %v36
  %v183 = vunpack.c.l.b16 %v37
  %v184 = vunpack.c.l.b16 %v38
  %v185 = vunpack.c.l.b16 %v39
  %v186 = vunpack.c.l.b16 %v40
  %v187 = vunpack.c.l.b16 %v41
  %v188 = vunpack.c.l.b16 %v42
  %v189 = vunpack.c.l.b16 %v43
  %v190 = vunpack.c.l.b16 %v44
  %v191 = vunpack.c.l.b16 %v45
  %v192 = vunpack.c.l.b16 %v46
  %v193 = vunpack.c.l.b16 %v47
  %v194 = vunpack.c.l.b16 %v48
  %v195 = vunpack.c.l.b16 %v49
  %v196 = vunpack.c.l.b16 %v50
  %v197 = vunpack.c.l.b16 %v51
  %v198 = vunpack.c.l.b16 %v52
  %v199 = vunpack.c.l.b16 %v53
  %v200 = vunpack.c.l.b16 %v54
  %v201 = vunpack.c.l.b16 %v55
  %v202 = vunpack.c.l.b16 %v56
  %v203 = vunpack.c.l.b16 %v57
  %v204 = vunpack.c.l.b16 %v58
  %v205 = vunpack.c.l.b16 %v59
  %v206 = vunpack.c.l.b16 %v60
  %v207 = vunpack.c.l.b16 %v61
  %v208 = vunpack.c.l.b16 %v62
  %v209 = vunpack.c.l.b16 %v63
  %v210 = vunpack.c.l.b16 %v64
  %v211 = vunpack.c.l.b16 %v65
  %v212 = vunpack.c.l.b16 %v66
  %v213 = vunpack.c.l.b16 %v67
  %v214 = vunpack.c.l.b16 %v68
  %v215 = vunpack.c.l.b16 %v69
  %v216 = vunpack.c.l.b16 %v70
  %v217 = vunpack.c.l.b16 %v71
  %v218 = vunpack.c.l.b16 %v72
  %v219 = vunpack.c.l.b16 %v73
  %v220 = vunpack.c.l.b16 %v74
  %v221 = vunpack.c.l.b16 %v75
  %v222 = vunpack.c.l.b16 %v76
  %v223 = vunpack.c.l.b16 %v77
  %v224 = vunpack.c.l.b16 %v78
  %v225 = vunpack.c.l.b16 %v79
  %v226 = vunpack.c.l.b16 %v80
  %v227 = vunpack.c.l.b16 %v81
  %v228 = vunpack.c.l.b16 %v82
  %v229 = vunpack.c.l.b16 %v83
  %v230 = vunpack.c.l.b16 %v84
  %v231 = vunpack.c.l.b16 %v85
  %v232 = vpack.c.b16 %v169, %v168
  %v233 = vpack.c.b16 %v171, %v170
  %v234 = vpack.c.b16 %v173, %v172
  %v235 = vpack.c.b16 %v175, %v174
  %v236 = vpack.c.b16 %v177, %v176
  %v237 = vpack.c.b16 %v179, %v178
  %v238 = vpack.c.b16 %v181, %v180
  %v239 = vpack.c.b16 %v183, %v182
  %v240 = vpack.c.b16 %v185, %v184
  %v241 = vpack.c.b16 %v187, %v186
  %v242 = vpack.c.b16 %v189, %v188
  %v243 = vpack.c.b16 %v191, %v190
  %v244 = vpack.c.b16 %v193, %v192
  %v245 = vpack.c.b16 %v195, %v194
  %v246 = vpack.c.b16 %v197, %v196
  %v247 = vpack.c.b16 %v199, %v198
  %v248 = vpack.c.b16 %v201, %v200
  %v249 = vpack.c.b16 %v203, %v202
  %v250 = vpack.c.b16 %v205, %v204
  %v251 = vpack.c.b16 %v207, %v206
  %v252 = vpack.c.b16 %v209, %v208
  %v253 = vpack.c.b16 %v211, %v210
  %v254 = vpack.c.b16 %v213, %v212
  %v255 = vpack.c.b16 %v215, %v214
  %v256 = vpack.c.b16 %v217, %v216
  %v257 = vpack.c.b16 %v219, %v218
  %v258 = vpack.c.b16 %v221, %v220
  %v259 = vpack.c.b16 %v223, %v222
  %v260 = vpack.c.b16 %v225, %v224
  %v261 = vpack.c.b16 %v227, %v226
  %v262 = vpack.c.b16 %v229, %v228
  %v263 = vpack.c.b16 %v231, %v230
  %296 = vmatpush.bf16.msra.mxu0 %v239
  %297 = vmatpush.bf16.msra.mxu0 %v238
  %298 = vmatpush.bf16.msra.mxu0 %v237
  %299 = vmatpush.bf16.msra.mxu0 %v236
  %300 = vmatpush.bf16.msra.mxu0 %v235
  %301 = vmatpush.bf16.msra.mxu0 %v234
  %302 = vmatpush.bf16.msra.mxu0 %v233
  %303 = vmatpush.bf16.msra.mxu0 %v232
  %304 = vmatmul.bf16.gmra.mxu0 %v96
  %v305 = vpop.f32.mrf.mxu0
  %v306 = vadd.f32 %v88, %v305
  %v307 = vpop.f32.mrf.mxu0
  %308 = vdwg.mxu0
  %309 = vmatpush.bf16.msra.mxu0 %v247
  %310 = vmatpush.bf16.msra.mxu0 %v246
  %311 = vmatpush.bf16.msra.mxu0 %v245
  %312 = vmatpush.bf16.msra.mxu0 %v244
  %313 = vmatpush.bf16.msra.mxu0 %v243
  %314 = vmatpush.bf16.msra.mxu0 %v242
  %315 = vmatpush.bf16.msra.mxu0 %v241
  %316 = vmatpush.bf16.msra.mxu0 %v240
  %317 = vmatmul.bf16.gmra.mxu0 %v97
  %v318 = vpop.f32.mrf.mxu0
  %v319 = vadd.f32 %v306, %v318
  %v320 = vpop.f32.mrf.mxu0
  %321 = vdwg.mxu0
  %322 = vmatpush.bf16.msra.mxu0 %v255
  %323 = vmatpush.bf16.msra.mxu0 %v254
  %324 = vmatpush.bf16.msra.mxu0 %v253
  %325 = vmatpush.bf16.msra.mxu0 %v252
  %326 = vmatpush.bf16.msra.mxu0 %v251
  %327 = vmatpush.bf16.msra.mxu0 %v250
  %328 = vmatpush.bf16.msra.mxu0 %v249
  %329 = vmatpush.bf16.msra.mxu0 %v248
  %330 = vmatmul.bf16.gmra.mxu0 %v98
  %v331 = vpop.f32.mrf.mxu0
  %v332 = vadd.f32 %v319, %v331
  %v333 = vpop.f32.mrf.mxu0
  %334 = vdwg.mxu0
  %335 = vmatpush.bf16.msra.mxu0 %v263
  %336 = vmatpush.bf16.msra.mxu0 %v262
  %337 = vmatpush.bf16.msra.mxu0 %v261
  %338 = vmatpush.bf16.msra.mxu0 %v260
  %339 = vmatpush.bf16.msra.mxu0 %v259
  %340 = vmatpush.bf16.msra.mxu0 %v258
  %341 = vmatpush.bf16.msra.mxu0 %v257
  %342 = vmatpush.bf16.msra.mxu0 %v256
  %343 = vmatmul.bf16.gmra.mxu0 %v99
  %v344 = vpop.f32.mrf.mxu0
  %v345 = vadd.f32 %v332, %v344
  %v346 = vpop.f32.mrf.mxu0
  %347 = vdwg.mxu0
  %v348 = vld [vmem:[%s3] sm:$0x1]
  %v350 = vperm.slane %v348, 0
  %v352 = vmul.f32 %v345, %v350
  %v353 = vld [vmem:[%s4] sm:$0xf]
  %v354 = vunpack.c.l.bf16 %v353
  %v355 = vadd.f32 %v352, %v354
  %v356 = vpack.c.bf16 %v355, %v355
  %357 = vst [vmem:[%s5] sm:$0xf] %v356
  // Predicated region
  $region22: #{_lambda_.39} parent=0 // pred_check
    _
  $region23: #{_lambda_.39} parent=0 // pred_check_branch
    %359 = sbr.rel (0) target = $region25
  $region24: #{_lambda_.39} parent=0 // pred_region
    _
  $region25: #{_lambda_.39} parent=0 // pred_fallthru
    _
  // Predicated region
  $region26: #{_lambda_.39} parent=0 // pred_check
    _
  $region27: #{_lambda_.39} parent=0 // pred_check_branch
    %361 = sbr.rel (0) target = $region29
  $region28: #{_lambda_.39} parent=0 // pred_region
    _
  $region29: #{_lambda_.39} parent=0 // pred_fallthru
    _

</llo_original>
